<compile_context>
chip_gen: v7x
topology: tpu7x:2x2x1
jax: 0.10.0
libtpu: 0.0.40
codegen_flags: <defaults>
</compile_context>

<pallas_src>
import functools

import jax
import jax.numpy as jnp
from jax import lax
from jax.experimental import pallas as pl
from jax.experimental.pallas import tpu as pltpu


# ----------------------------- Pallas kernels -------------------------------
# y = act(A @ W + b [+ residual]) over a (N//tn, K//tk) grid.
#   A: (M, tk) bf16    W: (tk, tn) bf16    b: (1, tn) f32    res: (M, tn) bf16
# The f32 accumulator lives in VMEM scratch and is carried across the K axis
# (grid axis 1, "arbitrary", innermost); the N axis (grid axis 0) is
# "parallel" so v7x megacore can shard output tiles across both cores.

def _mm_kernel(a_ref, w_ref, b_ref, o_ref, acc_ref, *, act):
    k = pl.program_id(1)

    @pl.when(k == 0)
    def _():
        acc_ref[...] = jnp.zeros_like(acc_ref)

    acc_ref[...] += jnp.dot(a_ref[...], w_ref[...],
                            preferred_element_type=jnp.float32)

    @pl.when(k == pl.num_programs(1) - 1)
    def _():
        acc = acc_ref[...] + b_ref[...]
        if act == "relu":
            acc = jnp.maximum(acc, 0.0)
        elif act == "tanh":
            acc = jnp.tanh(acc)
        o_ref[...] = acc.astype(o_ref.dtype)


def _mm_res_kernel(a_ref, w_ref, b_ref, r_ref, o_ref, acc_ref, *, act):
    k = pl.program_id(1)

    @pl.when(k == 0)
    def _():
        acc_ref[...] = jnp.zeros_like(acc_ref)

    acc_ref[...] += jnp.dot(a_ref[...], w_ref[...],
                            preferred_element_type=jnp.float32)

    @pl.when(k == pl.num_programs(1) - 1)
    def _():
        acc = acc_ref[...] + b_ref[...] + r_ref[...].astype(jnp.float32)
        if act == "relu":
            acc = jnp.maximum(acc, 0.0)
        elif act == "tanh":
            acc = jnp.tanh(acc)
        o_ref[...] = acc.astype(o_ref.dtype)


def _pick_tile(dim, candidates):
    for c in candidates:
        if c <= dim and dim % c == 0:
            return c
    return dim


def matmul_bias_act(a, w, b, act="none", residual=None,
                    out_dtype=jnp.float32):
    """act(a @ w + b [+ residual]).  a:(M,K) w:(K,N) b:(1,N) residual:(M,N)."""
    M, K = a.shape
    K2, N = w.shape
    assert K == K2 and K % 128 == 0, (K, K2)

    tk = _pick_tile(K, (768, 640, 512, 384, 256, 128))     # K tile (mult of 128)
    tn = _pick_tile(N, (256, 128)) if N >= 128 else N      # lane-dense when N>=128
    grid = (N // tn, K // tk)

    a = a.astype(jnp.bfloat16)
    w = w.astype(jnp.bfloat16)
    b = b.reshape(1, N).astype(jnp.float32)

    in_specs = [
        pl.BlockSpec((M, tk), lambda j, k: (0, k)),    # A: stream K tiles
        pl.BlockSpec((tk, tn), lambda j, k: (k, j)),   # W: stream (K, N) tiles
        pl.BlockSpec((1, tn), lambda j, k: (0, j)),    # bias
    ]
    args = [a, w, b]
    if residual is not None:
        in_specs.append(pl.BlockSpec((M, tn), lambda j, k: (0, j)))
        args.append(residual.astype(jnp.bfloat16))
        kernel = functools.partial(_mm_res_kernel, act=act)
    else:
        kernel = functools.partial(_mm_kernel, act=act)

    return pl.pallas_call(
        kernel,
        grid_spec=pltpu.PrefetchScalarGridSpec(
            num_scalar_prefetch=0,
            grid=grid,
            in_specs=in_specs,
            out_specs=pl.BlockSpec((M, tn), lambda j, k: (0, j)),
            scratch_shapes=[pltpu.VMEM((M, tn), jnp.float32)],
        ),
        out_shape=jax.ShapeDtypeStruct((M, N), out_dtype),
        compiler_params=pltpu.CompilerParams(
            dimension_semantics=("parallel", "arbitrary")),
        # No vmem_limit override: largest double-buffered working set ~2 MiB,
        # safely under the default scoped VMEM on v5e/v6e/v7x.
    )(*args)


# ----------------------- im2col / padding glue (JAX) ------------------------

def _pad_cols(x, multiple=128):
    pad = (-x.shape[-1]) % multiple
    return jnp.pad(x, ((0, 0), (0, pad))) if pad else x


def _pad_rows(x, multiple=128):
    pad = (-x.shape[0]) % multiple
    return jnp.pad(x, ((0, pad), (0, 0))) if pad else x


def _patches_3d(x, ksize):
    # x: (N, D, H, W, C) channels-last.  Feature order = (c, kd, kh, kw),
    # matching PyTorch's w.reshape(O, -1).
    p = lax.conv_general_dilated_patches(
        x, tuple(ksize), (1, 1, 1), "VALID",
        dimension_numbers=("NDHWC", "DHWIO", "NDHWC"))
    n, do, ho, wo, f = p.shape
    return p.reshape(n * do * ho * wo, f), (n, do, ho, wo)


def _patches_2d(x, ksize):
    p = lax.conv_general_dilated_patches(
        x, tuple(ksize), (1, 1), "VALID",
        dimension_numbers=("NHWC", "HWIO", "NHWC"))
    n, ho, wo, f = p.shape
    return p.reshape(n * ho * wo, f), (n, ho, wo)


# ---------------------------- parameters ------------------------------------

def init_params(key, bands, height, width):
    """PyTorch-layout parameters (Conv3d/Conv2d OI*, Linear (out, in))."""
    def uinit(k, shape, fan_in):
        bound = 1.0 / jnp.sqrt(float(fan_in))
        return jax.random.uniform(k, shape, jnp.float32, -bound, bound)

    keys = jax.random.split(key, 12)
    flat_in = 64 * (height - 10) * (width - 10)
    c2d_in = 32 * (bands - 6)
    return {
        "w1_3d": uinit(keys[0], (16, 1, 5, 5, 5), 125),
        "b1_3d": uinit(keys[1], (16,), 125),
        "w2_3d": uinit(keys[2], (32, 16, 3, 3, 3), 16 * 27),
        "b2_3d": uinit(keys[3], (32,), 16 * 27),
        "w1_2d": uinit(keys[4], (64, c2d_in, 5, 5), c2d_in * 25),
        "b1_2d": uinit(keys[5], (64,), c2d_in * 25),
        "wl1": uinit(keys[6], (1024, flat_in), flat_in),
        "bl1": uinit(keys[7], (1024,), flat_in),
        "wl2": uinit(keys[8], (1024, 1024), 1024),
        "bl2": uinit(keys[9], (1024,), 1024),
        "wl3": uinit(keys[10], (1024, 1024), 1024),
        "bl3": uinit(keys[11], (1024,), 1024),
    }


def prepare_params(p, bands, height, width):
    """One-time repack: (K, N) GEMM layout, K zero-padded to a multiple of
    128, weights in bf16, biases (1, N) f32.  Row orderings match the
    channels-last im2col used in the forward pass."""
    h3, w3 = height - 10, width - 10

    def wprep(w):            # torch (out, in...) conv weight -> (K_pad, out)
        o = w.shape[0]
        return _pad_rows(w.reshape(o, -1).T).astype(jnp.bfloat16)

    # linear1 consumes the (h, w, c) flatten of the channels-last conv output;
    # permute its input axis from PyTorch's (c, h, w) flatten ordering.
    wl1 = p["wl1"].reshape(1024, 64, h3, w3).transpose(2, 3, 1, 0)
    wl1 = _pad_rows(wl1.reshape(h3 * w3 * 64, 1024)).astype(jnp.bfloat16)

    return {
        "w1": wprep(p["w1_3d"]), "b1": p["b1_3d"].reshape(1, -1),
        "w2": wprep(p["w2_3d"]), "b2": p["b2_3d"].reshape(1, -1),
        "w3": wprep(p["w1_2d"]), "b3": p["b1_2d"].reshape(1, -1),
        "wl1": wl1, "bl1": p["bl1"].reshape(1, -1),
        "wl2": p["wl2"].T.astype(jnp.bfloat16), "bl2": p["bl2"].reshape(1, -1),
        "wl3": p["wl3"].T.astype(jnp.bfloat16), "bl3": p["bl3"].reshape(1, -1),
    }


# ------------------------------ forward pass --------------------------------

def conv_feature_forward(x, pp):
    """x: (N, 1, bands, height, width) float32 (PyTorch NCDHW input)."""
    n = x.shape[0]

    # channels-last, bf16 activations end-to-end
    x = jnp.transpose(x, (0, 2, 3, 4, 1)).astype(jnp.bfloat16)   # (N,D,H,W,1)

    # conv1_3d (5x5x5) + ReLU          K: 125 -> 128
    p1, (_, d1, h1, w1) = _patches_3d(x, (5, 5, 5))
    a1 = matmul_bias_act(_pad_cols(p1), pp["w1"], pp["b1"],
                         act="relu", out_dtype=jnp.bfloat16)
    a1 = a1.reshape(n, d1, h1, w1, 16)

    # conv2_3d (3x3x3) + ReLU          K: 432 -> 512
    p2, (_, d2, h2, w2) = _patches_3d(a1, (3, 3, 3))
    a2 = matmul_bias_act(_pad_cols(p2), pp["w2"], pp["b2"],
                         act="relu", out_dtype=jnp.bfloat16)
    a2 = a2.reshape(n, d2, h2, w2, 32)

    # torch reshape(N, C*D, H, W): merged channel index = c*D + d,
    # realized channels-last as (N, H, W, C, D) -> (N, H, W, C*D).
    a2 = jnp.transpose(a2, (0, 2, 3, 4, 1)).reshape(n, h2, w2, 32 * d2)

    # conv1_2d (5x5) + ReLU            K: 32*D*25 (800) -> 896
    p3, (_, h3, w3) = _patches_2d(a2, (5, 5))
    a3 = matmul_bias_act(_pad_cols(p3), pp["w3"], pp["b3"],
                         act="relu", out_dtype=jnp.bfloat16)     # (N*h3*w3, 64)

    # flatten in (h, w, c) order (wl1 rows were permuted to match)
    xf = a3.reshape(n, h3 * w3 * 64)

    # x1 = relu(linear1(x)); x3 = relu(x1 + linear2(x1)); out = tanh(x3 + linear3(x3))
    x1 = matmul_bias_act(xf, pp["wl1"], pp["bl1"],
                         act="relu", out_dtype=jnp.bfloat16)
    x3 = matmul_bias_act(x1, pp["wl2"], pp["bl2"],
                         act="relu", residual=x1, out_dtype=jnp.bfloat16)
    out = matmul_bias_act(x3, pp["wl3"], pp["bl3"],
                          act="tanh", residual=x3, out_dtype=jnp.float32)
    return out


# ---------------------------------- main -------------------------------------

if __name__ == "__main__":
    bands, height, width = 7, 16, 16
    batch = 2

    key = jax.random.PRNGKey(0)
    kx, kp = jax.random.split(key)
    x = jax.random.normal(kx, (batch, 1, bands, height, width), jnp.float32)

    params = init_params(kp, bands, height, width)
    prepped = prepare_params(params, bands, height, width)   # one-time repack

    fwd = jax.jit(conv_feature_forward)
    out = jax.block_until_ready(fwd(x, prepped))

    assert out.shape == (batch, 1024), out.shape
    assert bool(jnp.all(jnp.isfinite(out)))
    print("KERNEL_OK")
</pallas_src>

<mosaic_0001>
module attributes {stable_mosaic.version = 11 : i64} {
  func.func @_mm_kernel(%arg0: i32, %arg1: i32, %arg2: memref<864x128xbf16, #tpu.memory_space<vmem>>, %arg3: memref<128x16xbf16, #tpu.memory_space<vmem>>, %arg4: memref<1x16xf32, #tpu.memory_space<vmem>>, %arg5: memref<864x16xbf16, #tpu.memory_space<vmem>>, %arg6: memref<864x16xf32, #tpu.memory_space<vmem>>) attributes {dimension_semantics = [#tpu.dimension_semantics<parallel>, #tpu.dimension_semantics<arbitrary>], iteration_bounds = array<i64: 1, 1>, scalar_prefetch = 0 : i64, scratch_operands = 1 : i64, tpu.core_type = #tpu.core_type<tc>, window_params = [{transform_indices = @transform_0, window_bounds = array<i64: 864, 128>}, {transform_indices = @transform_1, window_bounds = array<i64: 128, 16>}, {transform_indices = @transform_2, window_bounds = array<i64: 1, 16>}, {transform_indices = @transform_3, window_bounds = array<i64: 864, 16>}]} {
    %c0_i32 = arith.constant 0 : i32
    %0 = arith.cmpi eq, %arg1, %c0_i32 : i32
    %1 = arith.extui %0 : i1 to i32
    %c0_i32_0 = arith.constant 0 : i32
    %2 = arith.cmpi ne, %1, %c0_i32_0 : i32
    scf.if %2 {
      %cst_10 = arith.constant 0.000000e+00 : f32
      %12 = vector.broadcast %cst_10 : f32 to vector<864x16xf32>
      %c0_11 = arith.constant 0 : index
      %c0_12 = arith.constant 0 : index
      %13 = vector.load %arg6[%c0_11, %c0_12] : memref<864x16xf32, #tpu.memory_space<vmem>>, vector<864x16xf32>
      tpu.vector_store %arg6[%c0_11, %c0_12], %12 {strides = array<i32>} : memref<864x16xf32, #tpu.memory_space<vmem>>, vector<864x16xf32>,
    } else {
    }
    %c0 = arith.constant 0 : index
    %c0_1 = arith.constant 0 : index
    %3 = vector.load %arg6[%c0, %c0_1] : memref<864x16xf32, #tpu.memory_space<vmem>>, vector<864x16xf32>
    %c0_2 = arith.constant 0 : index
    %c0_3 = arith.constant 0 : index
    %4 = vector.load %arg2[%c0_2, %c0_3] : memref<864x128xbf16, #tpu.memory_space<vmem>>, vector<864x128xbf16>
    %c0_4 = arith.constant 0 : index
    %c0_5 = arith.constant 0 : index
    %5 = vector.load %arg3[%c0_4, %c0_5] : memref<128x16xbf16, #tpu.memory_space<vmem>>, vector<128x16xbf16>
    %cst = arith.constant dense<0.000000e+00> : vector<864x16xf32>
    %6 = tpu.matmul %4, %5, %cst {dimension_numbers = #tpu.dot_dimension_numbers<[1], [0], [0], [1], [0, 0, 1, 1], [], []>} : vector<864x128xbf16>, vector<128x16xbf16>, vector<864x16xf32> -> vector<864x16xf32>
    %7 = arith.addf %3, %6 : vector<864x16xf32>
    %c0_6 = arith.constant 0 : index
    %c0_7 = arith.constant 0 : index
    %8 = vector.load %arg6[%c0_6, %c0_7] : memref<864x16xf32, #tpu.memory_space<vmem>>, vector<864x16xf32>
    tpu.vector_store %arg6[%c0_6, %c0_7], %7 {strides = array<i32>} : memref<864x16xf32, #tpu.memory_space<vmem>>, vector<864x16xf32>,
    %c0_i32_8 = arith.constant 0 : i32
    %9 = arith.cmpi eq, %arg1, %c0_i32_8 : i32
    %10 = arith.extui %9 : i1 to i32
    %c0_i32_9 = arith.constant 0 : i32
    %11 = arith.cmpi ne, %10, %c0_i32_9 : i32
    scf.if %11 {
      %c0_10 = arith.constant 0 : index
      %c0_11 = arith.constant 0 : index
      %12 = vector.load %arg6[%c0_10, %c0_11] : memref<864x16xf32, #tpu.memory_space<vmem>>, vector<864x16xf32>
      %c0_12 = arith.constant 0 : index
      %c0_13 = arith.constant 0 : index
      %13 = vector.load %arg4[%c0_12, %c0_13] : memref<1x16xf32, #tpu.memory_space<vmem>>, vector<1x16xf32>
      %14 = vector.broadcast %13 : vector<1x16xf32> to vector<864x16xf32>
      %15 = arith.addf %12, %14 : vector<864x16xf32>
      %cst_14 = arith.constant 0.000000e+00 : f32
      %16 = vector.broadcast %cst_14 : f32 to vector<864x16xf32>
      %17 = arith.maximumf %15, %16 : vector<864x16xf32>
      %18 = arith.truncf %17 : vector<864x16xf32> to vector<864x16xbf16>
      %c0_15 = arith.constant 0 : index
      %c0_16 = arith.constant 0 : index
      %19 = vector.load %arg5[%c0_15, %c0_16] : memref<864x16xbf16, #tpu.memory_space<vmem>>, vector<864x16xbf16>
      tpu.vector_store %arg5[%c0_15, %c0_16], %18 {strides = array<i32>} : memref<864x16xbf16, #tpu.memory_space<vmem>>, vector<864x16xbf16>,
    } else {
    }
    return
  }
  func.func @transform_0(%arg0: i32, %arg1: i32) -> (i32, i32) {
    %c0_i32 = arith.constant 0 : i32
    %c0_i32_0 = arith.constant 0 : i32
    return %c0_i32, %arg1 : i32, i32
  }
  func.func @transform_1(%arg0: i32, %arg1: i32) -> (i32, i32) {
    %c0_i32 = arith.constant 0 : i32
    return %arg1, %arg0 : i32, i32
  }
  func.func @transform_2(%arg0: i32, %arg1: i32) -> (i32, i32) {
    %c0_i32 = arith.constant 0 : i32
    %c0_i32_0 = arith.constant 0 : i32
    return %c0_i32, %arg0 : i32, i32
  }
  func.func @transform_3(%arg0: i32, %arg1: i32) -> (i32, i32) {
    %c0_i32 = arith.constant 0 : i32
    %c0_i32_0 = arith.constant 0 : i32
    return %c0_i32, %arg0 : i32, i32
  }
}

module attributes {stable_mosaic.version = 11 : i64} {
  func.func @_mm_kernel(%arg0: i32, %arg1: i32, %arg2: memref<200x512xbf16, #tpu.memory_space<vmem>>, %arg3: memref<512x32xbf16, #tpu.memory_space<vmem>>, %arg4: memref<1x32xf32, #tpu.memory_space<vmem>>, %arg5: memref<200x32xbf16, #tpu.memory_space<vmem>>, %arg6: memref<200x32xf32, #tpu.memory_space<vmem>>) attributes {dimension_semantics = [#tpu.dimension_semantics<parallel>, #tpu.dimension_semantics<arbitrary>], iteration_bounds = array<i64: 1, 1>, scalar_prefetch = 0 : i64, scratch_operands = 1 : i64, tpu.core_type = #tpu.core_type<tc>, window_params = [{transform_indices = @transform_0, window_bounds = array<i64: 200, 512>}, {transform_indices = @transform_1, window_bounds = array<i64: 512, 32>}, {transform_indices = @transform_2, window_bounds = array<i64: 1, 32>}, {transform_indices = @transform_3, window_bounds = array<i64: 200, 32>}]} {
    %c0_i32 = arith.constant 0 : i32
    %0 = arith.cmpi eq, %arg1, %c0_i32 : i32
    %1 = arith.extui %0 : i1 to i32
    %c0_i32_0 = arith.constant 0 : i32
    %2 = arith.cmpi ne, %1, %c0_i32_0 : i32
    scf.if %2 {
      %cst_10 = arith.constant 0.000000e+00 : f32
      %12 = vector.broadcast %cst_10 : f32 to vector<200x32xf32>
      %c0_11 = arith.constant 0 : index
      %c0_12 = arith.constant 0 : index
      %13 = vector.load %arg6[%c0_11, %c0_12] : memref<200x32xf32, #tpu.memory_space<vmem>>, vector<200x32xf32>
      tpu.vector_store %arg6[%c0_11, %c0_12], %12 {strides = array<i32>} : memref<200x32xf32, #tpu.memory_space<vmem>>, vector<200x32xf32>,
    } else {
    }
    %c0 = arith.constant 0 : index
    %c0_1 = arith.constant 0 : index
    %3 = vector.load %arg6[%c0, %c0_1] : memref<200x32xf32, #tpu.memory_space<vmem>>, vector<200x32xf32>
    %c0_2 = arith.constant 0 : index
    %c0_3 = arith.constant 0 : index
    %4 = vector.load %arg2[%c0_2, %c0_3] : memref<200x512xbf16, #tpu.memory_space<vmem>>, vector<200x512xbf16>
    %c0_4 = arith.constant 0 : index
    %c0_5 = arith.constant 0 : index
    %5 = vector.load %arg3[%c0_4, %c0_5] : memref<512x32xbf16, #tpu.memory_space<vmem>>, vector<512x32xbf16>
    %cst = arith.constant dense<0.000000e+00> : vector<200x32xf32>
    %6 = tpu.matmul %4, %5, %cst {dimension_numbers = #tpu.dot_dimension_numbers<[1], [0], [0], [1], [0, 0, 1, 1], [], []>} : vector<200x512xbf16>, vector<512x32xbf16>, vector<200x32xf32> -> vector<200x32xf32>
    %7 = arith.addf %3, %6 : vector<200x32xf32>
    %c0_6 = arith.constant 0 : index
    %c0_7 = arith.constant 0 : index
    %8 = vector.load %arg6[%c0_6, %c0_7] : memref<200x32xf32, #tpu.memory_space<vmem>>, vector<200x32xf32>
    tpu.vector_store %arg6[%c0_6, %c0_7], %7 {strides = array<i32>} : memref<200x32xf32, #tpu.memory_space<vmem>>, vector<200x32xf32>,
    %c0_i32_8 = arith.constant 0 : i32
    %9 = arith.cmpi eq, %arg1, %c0_i32_8 : i32
    %10 = arith.extui %9 : i1 to i32
    %c0_i32_9 = arith.constant 0 : i32
    %11 = arith.cmpi ne, %10, %c0_i32_9 : i32
    scf.if %11 {
      %c0_10 = arith.constant 0 : index
      %c0_11 = arith.constant 0 : index
      %12 = vector.load %arg6[%c0_10, %c0_11] : memref<200x32xf32, #tpu.memory_space<vmem>>, vector<200x32xf32>
      %c0_12 = arith.constant 0 : index
      %c0_13 = arith.constant 0 : index
      %13 = vector.load %arg4[%c0_12, %c0_13] : memref<1x32xf32, #tpu.memory_space<vmem>>, vector<1x32xf32>
      %14 = vector.broadcast %13 : vector<1x32xf32> to vector<200x32xf32>
      %15 = arith.addf %12, %14 : vector<200x32xf32>
      %cst_14 = arith.constant 0.000000e+00 : f32
      %16 = vector.broadcast %cst_14 : f32 to vector<200x32xf32>
      %17 = arith.maximumf %15, %16 : vector<200x32xf32>
      %18 = arith.truncf %17 : vector<200x32xf32> to vector<200x32xbf16>
      %c0_15 = arith.constant 0 : index
      %c0_16 = arith.constant 0 : index
      %19 = vector.load %arg5[%c0_15, %c0_16] : memref<200x32xbf16, #tpu.memory_space<vmem>>, vector<200x32xbf16>
      tpu.vector_store %arg5[%c0_15, %c0_16], %18 {strides = array<i32>} : memref<200x32xbf16, #tpu.memory_space<vmem>>, vector<200x32xbf16>,
    } else {
    }
    return
  }
  func.func @transform_0(%arg0: i32, %arg1: i32) -> (i32, i32) {
    %c0_i32 = arith.constant 0 : i32
    %c0_i32_0 = arith.constant 0 : i32
    return %c0_i32, %arg1 : i32, i32
  }
  func.func @transform_1(%arg0: i32, %arg1: i32) -> (i32, i32) {
    %c0_i32 = arith.constant 0 : i32
    return %arg1, %arg0 : i32, i32
  }
  func.func @transform_2(%arg0: i32, %arg1: i32) -> (i32, i32) {
    %c0_i32 = arith.constant 0 : i32
    %c0_i32_0 = arith.constant 0 : i32
    return %c0_i32, %arg0 : i32, i32
  }
  func.func @transform_3(%arg0: i32, %arg1: i32) -> (i32, i32) {
    %c0_i32 = arith.constant 0 : i32
    %c0_i32_0 = arith.constant 0 : i32
    return %c0_i32, %arg0 : i32, i32
  }
}

module attributes {stable_mosaic.version = 11 : i64} {
  func.func @_mm_kernel(%arg0: i32, %arg1: i32, %arg2: memref<72x128xbf16, #tpu.memory_space<vmem>>, %arg3: memref<128x64xbf16, #tpu.memory_space<vmem>>, %arg4: memref<1x64xf32, #tpu.memory_space<vmem>>, %arg5: memref<72x64xbf16, #tpu.memory_space<vmem>>, %arg6: memref<72x64xf32, #tpu.memory_space<vmem>>) attributes {dimension_semantics = [#tpu.dimension_semantics<parallel>, #tpu.dimension_semantics<arbitrary>], iteration_bounds = array<i64: 1, 7>, scalar_prefetch = 0 : i64, scratch_operands = 1 : i64, tpu.core_type = #tpu.core_type<tc>, window_params = [{transform_indices = @transform_0, window_bounds = array<i64: 72, 128>}, {transform_indices = @transform_1, window_bounds = array<i64: 128, 64>}, {transform_indices = @transform_2, window_bounds = array<i64: 1, 64>}, {transform_indices = @transform_3, window_bounds = array<i64: 72, 64>}]} {
    %c0_i32 = arith.constant 0 : i32
    %0 = arith.cmpi eq, %arg1, %c0_i32 : i32
    %1 = arith.extui %0 : i1 to i32
    %c0_i32_0 = arith.constant 0 : i32
    %2 = arith.cmpi ne, %1, %c0_i32_0 : i32
    scf.if %2 {
      %cst_9 = arith.constant 0.000000e+00 : f32
      %12 = vector.broadcast %cst_9 : f32 to vector<72x64xf32>
      %c0_10 = arith.constant 0 : index
      %c0_11 = arith.constant 0 : index
      %13 = vector.load %arg6[%c0_10, %c0_11] : memref<72x64xf32, #tpu.memory_space<vmem>>, vector<72x64xf32>
      tpu.vector_store %arg6[%c0_10, %c0_11], %12 {strides = array<i32>} : memref<72x64xf32, #tpu.memory_space<vmem>>, vector<72x64xf32>,
    } else {
    }
    %c0 = arith.constant 0 : index
    %c0_1 = arith.constant 0 : index
    %3 = vector.load %arg6[%c0, %c0_1] : memref<72x64xf32, #tpu.memory_space<vmem>>, vector<72x64xf32>
    %c0_2 = arith.constant 0 : index
    %c0_3 = arith.constant 0 : index
    %4 = vector.load %arg2[%c0_2, %c0_3] : memref<72x128xbf16, #tpu.memory_space<vmem>>, vector<72x128xbf16>
    %c0_4 = arith.constant 0 : index
    %c0_5 = arith.constant 0 : index
    %5 = vector.load %arg3[%c0_4, %c0_5] : memref<128x64xbf16, #tpu.memory_space<vmem>>, vector<128x64xbf16>
    %cst = arith.constant dense<0.000000e+00> : vector<72x64xf32>
    %6 = tpu.matmul %4, %5, %cst {dimension_numbers = #tpu.dot_dimension_numbers<[1], [0], [0], [1], [0, 0, 1, 1], [], []>} : vector<72x128xbf16>, vector<128x64xbf16>, vector<72x64xf32> -> vector<72x64xf32>
    %7 = arith.addf %3, %6 : vector<72x64xf32>
    %c0_6 = arith.constant 0 : index
    %c0_7 = arith.constant 0 : index
    %8 = vector.load %arg6[%c0_6, %c0_7] : memref<72x64xf32, #tpu.memory_space<vmem>>, vector<72x64xf32>
    tpu.vector_store %arg6[%c0_6, %c0_7], %7 {strides = array<i32>} : memref<72x64xf32, #tpu.memory_space<vmem>>, vector<72x64xf32>,
    %c6_i32 = arith.constant 6 : i32
    %9 = arith.cmpi eq, %arg1, %c6_i32 : i32
    %10 = arith.extui %9 : i1 to i32
    %c0_i32_8 = arith.constant 0 : i32
    %11 = arith.cmpi ne, %10, %c0_i32_8 : i32
    scf.if %11 {
      %c0_9 = arith.constant 0 : index
      %c0_10 = arith.constant 0 : index
      %12 = vector.load %arg6[%c0_9, %c0_10] : memref<72x64xf32, #tpu.memory_space<vmem>>, vector<72x64xf32>
      %c0_11 = arith.constant 0 : index
      %c0_12 = arith.constant 0 : index
      %13 = vector.load %arg4[%c0_11, %c0_12] : memref<1x64xf32, #tpu.memory_space<vmem>>, vector<1x64xf32>
      %14 = vector.broadcast %13 : vector<1x64xf32> to vector<72x64xf32>
      %15 = arith.addf %12, %14 : vector<72x64xf32>
      %cst_13 = arith.constant 0.000000e+00 : f32
      %16 = vector.broadcast %cst_13 : f32 to vector<72x64xf32>
      %17 = arith.maximumf %15, %16 : vector<72x64xf32>
      %18 = arith.truncf %17 : vector<72x64xf32> to vector<72x64xbf16>
      %c0_14 = arith.constant 0 : index
      %c0_15 = arith.constant 0 : index
      %19 = vector.load %arg5[%c0_14, %c0_15] : memref<72x64xbf16, #tpu.memory_space<vmem>>, vector<72x64xbf16>
      tpu.vector_store %arg5[%c0_14, %c0_15], %18 {strides = array<i32>} : memref<72x64xbf16, #tpu.memory_space<vmem>>, vector<72x64xbf16>,
    } else {
    }
    return
  }
  func.func @transform_0(%arg0: i32, %arg1: i32) -> (i32, i32) {
    %c0_i32 = arith.constant 0 : i32
    %c0_i32_0 = arith.constant 0 : i32
    return %c0_i32, %arg1 : i32, i32
  }
  func.func @transform_1(%arg0: i32, %arg1: i32) -> (i32, i32) {
    %c0_i32 = arith.constant 0 : i32
    return %arg1, %arg0 : i32, i32
  }
  func.func @transform_2(%arg0: i32, %arg1: i32) -> (i32, i32) {
    %c0_i32 = arith.constant 0 : i32
    %c0_i32_0 = arith.constant 0 : i32
    return %c0_i32, %arg0 : i32, i32
  }
  func.func @transform_3(%arg0: i32, %arg1: i32) -> (i32, i32) {
    %c0_i32 = arith.constant 0 : i32
    %c0_i32_0 = arith.constant 0 : i32
    return %c0_i32, %arg0 : i32, i32
  }
}

module attributes {stable_mosaic.version = 11 : i64} {
  func.func @_mm_kernel(%arg0: i32, %arg1: i32, %arg2: memref<2x768xbf16, #tpu.memory_space<vmem>>, %arg3: memref<768x256xbf16, #tpu.memory_space<vmem>>, %arg4: memref<1x256xf32, #tpu.memory_space<vmem>>, %arg5: memref<2x256xbf16, #tpu.memory_space<vmem>>, %arg6: memref<2x256xf32, #tpu.memory_space<vmem>>) attributes {dimension_semantics = [#tpu.dimension_semantics<parallel>, #tpu.dimension_semantics<arbitrary>], iteration_bounds = array<i64: 4, 3>, scalar_prefetch = 0 : i64, scratch_operands = 1 : i64, tpu.core_type = #tpu.core_type<tc>, window_params = [{transform_indices = @transform_0, window_bounds = array<i64: 2, 768>}, {transform_indices = @transform_1, window_bounds = array<i64: 768, 256>}, {transform_indices = @transform_2, window_bounds = array<i64: 1, 256>}, {transform_indices = @transform_3, window_bounds = array<i64: 2, 256>}]} {
    %c0_i32 = arith.constant 0 : i32
    %0 = arith.cmpi eq, %arg1, %c0_i32 : i32
    %1 = arith.extui %0 : i1 to i32
    %c0_i32_0 = arith.constant 0 : i32
    %2 = arith.cmpi ne, %1, %c0_i32_0 : i32
    scf.if %2 {
      %cst_9 = arith.constant 0.000000e+00 : f32
      %12 = vector.broadcast %cst_9 : f32 to vector<2x256xf32>
      %c0_10 = arith.constant 0 : index
      %c0_11 = arith.constant 0 : index
      %13 = vector.load %arg6[%c0_10, %c0_11] : memref<2x256xf32, #tpu.memory_space<vmem>>, vector<2x256xf32>
      tpu.vector_store %arg6[%c0_10, %c0_11], %12 {strides = array<i32>} : memref<2x256xf32, #tpu.memory_space<vmem>>, vector<2x256xf32>,
    } else {
    }
    %c0 = arith.constant 0 : index
    %c0_1 = arith.constant 0 : index
    %3 = vector.load %arg6[%c0, %c0_1] : memref<2x256xf32, #tpu.memory_space<vmem>>, vector<2x256xf32>
    %c0_2 = arith.constant 0 : index
    %c0_3 = arith.constant 0 : index
    %4 = vector.load %arg2[%c0_2, %c0_3] : memref<2x768xbf16, #tpu.memory_space<vmem>>, vector<2x768xbf16>
    %c0_4 = arith.constant 0 : index
    %c0_5 = arith.constant 0 : index
    %5 = vector.load %arg3[%c0_4, %c0_5] : memref<768x256xbf16, #tpu.memory_space<vmem>>, vector<768x256xbf16>
    %cst = arith.constant dense<0.000000e+00> : vector<2x256xf32>
    %6 = tpu.matmul %4, %5, %cst {dimension_numbers = #tpu.dot_dimension_numbers<[1], [0], [0], [1], [0, 0, 1, 1], [], []>} : vector<2x768xbf16>, vector<768x256xbf16>, vector<2x256xf32> -> vector<2x256xf32>
    %7 = arith.addf %3, %6 : vector<2x256xf32>
    %c0_6 = arith.constant 0 : index
    %c0_7 = arith.constant 0 : index
    %8 = vector.load %arg6[%c0_6, %c0_7] : memref<2x256xf32, #tpu.memory_space<vmem>>, vector<2x256xf32>
    tpu.vector_store %arg6[%c0_6, %c0_7], %7 {strides = array<i32>} : memref<2x256xf32, #tpu.memory_space<vmem>>, vector<2x256xf32>,
    %c2_i32 = arith.constant 2 : i32
    %9 = arith.cmpi eq, %arg1, %c2_i32 : i32
    %10 = arith.extui %9 : i1 to i32
    %c0_i32_8 = arith.constant 0 : i32
    %11 = arith.cmpi ne, %10, %c0_i32_8 : i32
    scf.if %11 {
      %c0_9 = arith.constant 0 : index
      %c0_10 = arith.constant 0 : index
      %12 = vector.load %arg6[%c0_9, %c0_10] : memref<2x256xf32, #tpu.memory_space<vmem>>, vector<2x256xf32>
      %c0_11 = arith.constant 0 : index
      %c0_12 = arith.constant 0 : index
      %13 = vector.load %arg4[%c0_11, %c0_12] : memref<1x256xf32, #tpu.memory_space<vmem>>, vector<1x256xf32>
      %14 = vector.broadcast %13 : vector<1x256xf32> to vector<2x256xf32>
      %15 = arith.addf %12, %14 : vector<2x256xf32>
      %cst_13 = arith.constant 0.000000e+00 : f32
      %16 = vector.broadcast %cst_13 : f32 to vector<2x256xf32>
      %17 = arith.maximumf %15, %16 : vector<2x256xf32>
      %18 = arith.truncf %17 : vector<2x256xf32> to vector<2x256xbf16>
      %c0_14 = arith.constant 0 : index
      %c0_15 = arith.constant 0 : index
      %19 = vector.load %arg5[%c0_14, %c0_15] : memref<2x256xbf16, #tpu.memory_space<vmem>>, vector<2x256xbf16>
      tpu.vector_store %arg5[%c0_14, %c0_15], %18 {strides = array<i32>} : memref<2x256xbf16, #tpu.memory_space<vmem>>, vector<2x256xbf16>,
    } else {
    }
    return
  }
  func.func @transform_0(%arg0: i32, %arg1: i32) -> (i32, i32) {
    %c0_i32 = arith.constant 0 : i32
    %c0_i32_0 = arith.constant 0 : i32
    return %c0_i32, %arg1 : i32, i32
  }
  func.func @transform_1(%arg0: i32, %arg1: i32) -> (i32, i32) {
    %c0_i32 = arith.constant 0 : i32
    return %arg1, %arg0 : i32, i32
  }
  func.func @transform_2(%arg0: i32, %arg1: i32) -> (i32, i32) {
    %c0_i32 = arith.constant 0 : i32
    %c0_i32_0 = arith.constant 0 : i32
    return %c0_i32, %arg0 : i32, i32
  }
  func.func @transform_3(%arg0: i32, %arg1: i32) -> (i32, i32) {
    %c0_i32 = arith.constant 0 : i32
    %c0_i32_0 = arith.constant 0 : i32
    return %c0_i32, %arg0 : i32, i32
  }
}

module attributes {stable_mosaic.version = 11 : i64} {
  func.func @_mm_res_kernel(%arg0: i32, %arg1: i32, %arg2: memref<2x512xbf16, #tpu.memory_space<vmem>>, %arg3: memref<512x256xbf16, #tpu.memory_space<vmem>>, %arg4: memref<1x256xf32, #tpu.memory_space<vmem>>, %arg5: memref<2x256xbf16, #tpu.memory_space<vmem>>, %arg6: memref<2x256xbf16, #tpu.memory_space<vmem>>, %arg7: memref<2x256xf32, #tpu.memory_space<vmem>>) attributes {dimension_semantics = [#tpu.dimension_semantics<parallel>, #tpu.dimension_semantics<arbitrary>], iteration_bounds = array<i64: 4, 2>, scalar_prefetch = 0 : i64, scratch_operands = 1 : i64, tpu.core_type = #tpu.core_type<tc>, window_params = [{transform_indices = @transform_0, window_bounds = array<i64: 2, 512>}, {transform_indices = @transform_1, window_bounds = array<i64: 512, 256>}, {transform_indices = @transform_2, window_bounds = array<i64: 1, 256>}, {transform_indices = @transform_3, window_bounds = array<i64: 2, 256>}, {transform_indices = @transform_4, window_bounds = array<i64: 2, 256>}]} {
    %c0_i32 = arith.constant 0 : i32
    %0 = arith.cmpi eq, %arg1, %c0_i32 : i32
    %1 = arith.extui %0 : i1 to i32
    %c0_i32_0 = arith.constant 0 : i32
    %2 = arith.cmpi ne, %1, %c0_i32_0 : i32
    scf.if %2 {
      %cst_9 = arith.constant 0.000000e+00 : f32
      %12 = vector.broadcast %cst_9 : f32 to vector<2x256xf32>
      %c0_10 = arith.constant 0 : index
      %c0_11 = arith.constant 0 : index
      %13 = vector.load %arg7[%c0_10, %c0_11] : memref<2x256xf32, #tpu.memory_space<vmem>>, vector<2x256xf32>
      tpu.vector_store %arg7[%c0_10, %c0_11], %12 {strides = array<i32>} : memref<2x256xf32, #tpu.memory_space<vmem>>, vector<2x256xf32>,
    } else {
    }
    %c0 = arith.constant 0 : index
    %c0_1 = arith.constant 0 : index
    %3 = vector.load %arg7[%c0, %c0_1] : memref<2x256xf32, #tpu.memory_space<vmem>>, vector<2x256xf32>
    %c0_2 = arith.constant 0 : index
    %c0_3 = arith.constant 0 : index
    %4 = vector.load %arg2[%c0_2, %c0_3] : memref<2x512xbf16, #tpu.memory_space<vmem>>, vector<2x512xbf16>
    %c0_4 = arith.constant 0 : index
    %c0_5 = arith.constant 0 : index
    %5 = vector.load %arg3[%c0_4, %c0_5] : memref<512x256xbf16, #tpu.memory_space<vmem>>, vector<512x256xbf16>
    %cst = arith.constant dense<0.000000e+00> : vector<2x256xf32>
    %6 = tpu.matmul %4, %5, %cst {dimension_numbers = #tpu.dot_dimension_numbers<[1], [0], [0], [1], [0, 0, 1, 1], [], []>} : vector<2x512xbf16>, vector<512x256xbf16>, vector<2x256xf32> -> vector<2x256xf32>
    %7 = arith.addf %3, %6 : vector<2x256xf32>
    %c0_6 = arith.constant 0 : index
    %c0_7 = arith.constant 0 : index
    %8 = vector.load %arg7[%c0_6, %c0_7] : memref<2x256xf32, #tpu.memory_space<vmem>>, vector<2x256xf32>
    tpu.vector_store %arg7[%c0_6, %c0_7], %7 {strides = array<i32>} : memref<2x256xf32, #tpu.memory_space<vmem>>, vector<2x256xf32>,
    %c1_i32 = arith.constant 1 : i32
    %9 = arith.cmpi eq, %arg1, %c1_i32 : i32
    %10 = arith.extui %9 : i1 to i32
    %c0_i32_8 = arith.constant 0 : i32
    %11 = arith.cmpi ne, %10, %c0_i32_8 : i32
    scf.if %11 {
      %c0_9 = arith.constant 0 : index
      %c0_10 = arith.constant 0 : index
      %12 = vector.load %arg7[%c0_9, %c0_10] : memref<2x256xf32, #tpu.memory_space<vmem>>, vector<2x256xf32>
      %c0_11 = arith.constant 0 : index
      %c0_12 = arith.constant 0 : index
      %13 = vector.load %arg4[%c0_11, %c0_12] : memref<1x256xf32, #tpu.memory_space<vmem>>, vector<1x256xf32>
      %14 = vector.broadcast %13 : vector<1x256xf32> to vector<2x256xf32>
      %15 = arith.addf %12, %14 : vector<2x256xf32>
      %c0_13 = arith.constant 0 : index
      %c0_14 = arith.constant 0 : index
      %16 = vector.load %arg5[%c0_13, %c0_14] : memref<2x256xbf16, #tpu.memory_space<vmem>>, vector<2x256xbf16>
      %17 = arith.extf %16 : vector<2x256xbf16> to vector<2x256xf32>
      %18 = arith.addf %15, %17 : vector<2x256xf32>
      %cst_15 = arith.constant 0.000000e+00 : f32
      %19 = vector.broadcast %cst_15 : f32 to vector<2x256xf32>
      %20 = arith.maximumf %18, %19 : vector<2x256xf32>
      %21 = arith.truncf %20 : vector<2x256xf32> to vector<2x256xbf16>
      %c0_16 = arith.constant 0 : index
      %c0_17 = arith.constant 0 : index
      %22 = vector.load %arg6[%c0_16, %c0_17] : memref<2x256xbf16, #tpu.memory_space<vmem>>, vector<2x256xbf16>
      tpu.vector_store %arg6[%c0_16, %c0_17], %21 {strides = array<i32>} : memref<2x256xbf16, #tpu.memory_space<vmem>>, vector<2x256xbf16>,
    } else {
    }
    return
  }
  func.func @transform_0(%arg0: i32, %arg1: i32) -> (i32, i32) {
    %c0_i32 = arith.constant 0 : i32
    %c0_i32_0 = arith.constant 0 : i32
    return %c0_i32, %arg1 : i32, i32
  }
  func.func @transform_1(%arg0: i32, %arg1: i32) -> (i32, i32) {
    %c0_i32 = arith.constant 0 : i32
    return %arg1, %arg0 : i32, i32
  }
  func.func @transform_2(%arg0: i32, %arg1: i32) -> (i32, i32) {
    %c0_i32 = arith.constant 0 : i32
    %c0_i32_0 = arith.constant 0 : i32
    return %c0_i32, %arg0 : i32, i32
  }
  func.func @transform_3(%arg0: i32, %arg1: i32) -> (i32, i32) {
    %c0_i32 = arith.constant 0 : i32
    %c0_i32_0 = arith.constant 0 : i32
    return %c0_i32, %arg0 : i32, i32
  }
  func.func @transform_4(%arg0: i32, %arg1: i32) -> (i32, i32) {
    %c0_i32 = arith.constant 0 : i32
    %c0_i32_0 = arith.constant 0 : i32
    return %c0_i32, %arg0 : i32, i32
  }
}

module attributes {stable_mosaic.version = 11 : i64} {
  func.func @_mm_res_kernel(%arg0: i32, %arg1: i32, %arg2: memref<2x512xbf16, #tpu.memory_space<vmem>>, %arg3: memref<512x256xbf16, #tpu.memory_space<vmem>>, %arg4: memref<1x256xf32, #tpu.memory_space<vmem>>, %arg5: memref<2x256xbf16, #tpu.memory_space<vmem>>, %arg6: memref<2x256xf32, #tpu.memory_space<vmem>>, %arg7: memref<2x256xf32, #tpu.memory_space<vmem>>) attributes {dimension_semantics = [#tpu.dimension_semantics<parallel>, #tpu.dimension_semantics<arbitrary>], iteration_bounds = array<i64: 4, 2>, scalar_prefetch = 0 : i64, scratch_operands = 1 : i64, tpu.core_type = #tpu.core_type<tc>, window_params = [{transform_indices = @transform_0, window_bounds = array<i64: 2, 512>}, {transform_indices = @transform_1, window_bounds = array<i64: 512, 256>}, {transform_indices = @transform_2, window_bounds = array<i64: 1, 256>}, {transform_indices = @transform_3, window_bounds = array<i64: 2, 256>}, {transform_indices = @transform_4, window_bounds = array<i64: 2, 256>}]} {
    %c0_i32 = arith.constant 0 : i32
    %0 = arith.cmpi eq, %arg1, %c0_i32 : i32
    %1 = arith.extui %0 : i1 to i32
    %c0_i32_0 = arith.constant 0 : i32
    %2 = arith.cmpi ne, %1, %c0_i32_0 : i32
    scf.if %2 {
      %cst_9 = arith.constant 0.000000e+00 : f32
      %12 = vector.broadcast %cst_9 : f32 to vector<2x256xf32>
      %c0_10 = arith.constant 0 : index
      %c0_11 = arith.constant 0 : index
      %13 = vector.load %arg7[%c0_10, %c0_11] : memref<2x256xf32, #tpu.memory_space<vmem>>, vector<2x256xf32>
      tpu.vector_store %arg7[%c0_10, %c0_11], %12 {strides = array<i32>} : memref<2x256xf32, #tpu.memory_space<vmem>>, vector<2x256xf32>,
    } else {
    }
    %c0 = arith.constant 0 : index
    %c0_1 = arith.constant 0 : index
    %3 = vector.load %arg7[%c0, %c0_1] : memref<2x256xf32, #tpu.memory_space<vmem>>, vector<2x256xf32>
    %c0_2 = arith.constant 0 : index
    %c0_3 = arith.constant 0 : index
    %4 = vector.load %arg2[%c0_2, %c0_3] : memref<2x512xbf16, #tpu.memory_space<vmem>>, vector<2x512xbf16>
    %c0_4 = arith.constant 0 : index
    %c0_5 = arith.constant 0 : index
    %5 = vector.load %arg3[%c0_4, %c0_5] : memref<512x256xbf16, #tpu.memory_space<vmem>>, vector<512x256xbf16>
    %cst = arith.constant dense<0.000000e+00> : vector<2x256xf32>
    %6 = tpu.matmul %4, %5, %cst {dimension_numbers = #tpu.dot_dimension_numbers<[1], [0], [0], [1], [0, 0, 1, 1], [], []>} : vector<2x512xbf16>, vector<512x256xbf16>, vector<2x256xf32> -> vector<2x256xf32>
    %7 = arith.addf %3, %6 : vector<2x256xf32>
    %c0_6 = arith.constant 0 : index
    %c0_7 = arith.constant 0 : index
    %8 = vector.load %arg7[%c0_6, %c0_7] : memref<2x256xf32, #tpu.memory_space<vmem>>, vector<2x256xf32>
    tpu.vector_store %arg7[%c0_6, %c0_7], %7 {strides = array<i32>} : memref<2x256xf32, #tpu.memory_space<vmem>>, vector<2x256xf32>,
    %c1_i32 = arith.constant 1 : i32
    %9 = arith.cmpi eq, %arg1, %c1_i32 : i32
    %10 = arith.extui %9 : i1 to i32
    %c0_i32_8 = arith.constant 0 : i32
    %11 = arith.cmpi ne, %10, %c0_i32_8 : i32
    scf.if %11 {
      %c0_9 = arith.constant 0 : index
      %c0_10 = arith.constant 0 : index
      %12 = vector.load %arg7[%c0_9, %c0_10] : memref<2x256xf32, #tpu.memory_space<vmem>>, vector<2x256xf32>
      %c0_11 = arith.constant 0 : index
      %c0_12 = arith.constant 0 : index
      %13 = vector.load %arg4[%c0_11, %c0_12] : memref<1x256xf32, #tpu.memory_space<vmem>>, vector<1x256xf32>
      %14 = vector.broadcast %13 : vector<1x256xf32> to vector<2x256xf32>
      %15 = arith.addf %12, %14 : vector<2x256xf32>
      %c0_13 = arith.constant 0 : index
      %c0_14 = arith.constant 0 : index
      %16 = vector.load %arg5[%c0_13, %c0_14] : memref<2x256xbf16, #tpu.memory_space<vmem>>, vector<2x256xbf16>
      %17 = arith.extf %16 : vector<2x256xbf16> to vector<2x256xf32>
      %18 = arith.addf %15, %17 : vector<2x256xf32>
      %19 = math.tanh %18 : vector<2x256xf32>
      %c0_15 = arith.constant 0 : index
      %c0_16 = arith.constant 0 : index
      %20 = vector.load %arg6[%c0_15, %c0_16] : memref<2x256xf32, #tpu.memory_space<vmem>>, vector<2x256xf32>
      tpu.vector_store %arg6[%c0_15, %c0_16], %19 {strides = array<i32>} : memref<2x256xf32, #tpu.memory_space<vmem>>, vector<2x256xf32>,
    } else {
    }
    return
  }
  func.func @transform_0(%arg0: i32, %arg1: i32) -> (i32, i32) {
    %c0_i32 = arith.constant 0 : i32
    %c0_i32_0 = arith.constant 0 : i32
    return %c0_i32, %arg1 : i32, i32
  }
  func.func @transform_1(%arg0: i32, %arg1: i32) -> (i32, i32) {
    %c0_i32 = arith.constant 0 : i32
    return %arg1, %arg0 : i32, i32
  }
  func.func @transform_2(%arg0: i32, %arg1: i32) -> (i32, i32) {
    %c0_i32 = arith.constant 0 : i32
    %c0_i32_0 = arith.constant 0 : i32
    return %c0_i32, %arg0 : i32, i32
  }
  func.func @transform_3(%arg0: i32, %arg1: i32) -> (i32, i32) {
    %c0_i32 = arith.constant 0 : i32
    %c0_i32_0 = arith.constant 0 : i32
    return %c0_i32, %arg0 : i32, i32
  }
  func.func @transform_4(%arg0: i32, %arg1: i32) -> (i32, i32) {
    %c0_i32 = arith.constant 0 : i32
    %c0_i32_0 = arith.constant 0 : i32
    return %c0_i32, %arg0 : i32, i32
  }
}

</mosaic_0001>

<llo_original>
// kernel: conv_feature_forward.6
$region0: #{conv_feature_forward.6}
  #allocation0 [shape = 'u32[]', space=smem, size = 0x4, offset = 0x4, fixed_abs, tag = 'smem constant byte address 0x4 - core index']
  #allocation1 [shape = 'u32[144,128]{1,0:T(1,128)}', space=vmem, size = 0x12000, scoped, tag = 'internal scratch']
  #allocation2 [shape = 'f32[864,16]{1,0:T(8,128)}', space=vmem, size = 0x6c000, scoped, tag = 'scratch operand']
  %s0 = inlined_call_operand.vmem [shape: bf16[864,128], index: 0, kind: input, shape index: {}]
  %s1 = inlined_call_operand.vmem [shape: bf16[128,16], index: 1, kind: input, shape index: {}]
  %s2 = inlined_call_operand.vmem [shape: f32[1,16], index: 2, kind: input, shape index: {}]
  %s3 = inlined_call_operand.vmem [shape: bf16[864,16], index: 3, kind: output, shape index: {}]
  %s4 = sld [smem:[#allocation0]]
  $region30: #{conv_feature_forward.6} parent=0
    _
  %s6 = ssub.s32 1, %s4
  %s7 = scalar_select 0, %s6, %s4
  // Predicated region
  $region2: #{conv_feature_forward.6} parent=0 // pred_check
    _
  $region3: #{conv_feature_forward.6} parent=0 // pred_check_branch
    %9 = sbr.rel (0) target = $region5
  $region4: #{conv_feature_forward.6} parent=0 // pred_region
    _
  $region5: #{conv_feature_forward.6} parent=0 // pred_fallthru
    _
  // Predicated region
  $region6: #{conv_feature_forward.6} parent=0 // pred_check
    _
  $region7: #{conv_feature_forward.6} parent=0 // pred_check_branch
    %11 = sbr.rel (0) target = $region9
  $region8: #{conv_feature_forward.6} parent=0 // pred_region
    _
  $region9: #{conv_feature_forward.6} parent=0 // pred_fallthru
    _
  // Predicated region
  $region10: #{conv_feature_forward.6} parent=0 // pred_check
    _
  $region11: #{conv_feature_forward.6} parent=0 // pred_check_branch
    %13 = sbr.rel (0) target = $region13
  $region12: #{conv_feature_forward.6} parent=0 // pred_region
    _
  $region13: #{conv_feature_forward.6} parent=0 // pred_fallthru
    _
  %p15 = scmp.eq.s32.totalorder 0, 0
  // Predicated region
  $region14: #{conv_feature_forward.6} parent=0 // pred_check
    %p16 = pneg %p15
  $region15: #{conv_feature_forward.6} parent=0 // pred_check_branch
    %18 = sbr.rel (%p16) target = $region17
  $region16: #{conv_feature_forward.6} parent=0 // pred_region
    %vm19 = vcmask 130048
    %20 = vst.msk [vmem:[#allocation2] sm:$0xff] %vm19, 0.0
    %21 = vst.msk [vmem:[#allocation2 + $0x8] sm:$0xff] %vm19, 0.0
    %22 = vst.msk [vmem:[#allocation2 + $0x10] sm:$0xff] %vm19, 0.0
    %23 = vst.msk [vmem:[#allocation2 + $0x18] sm:$0xff] %vm19, 0.0
    %24 = vst.msk [vmem:[#allocation2 + $0x20] sm:$0xff] %vm19, 0.0
    %25 = vst.msk [vmem:[#allocation2 + $0x28] sm:$0xff] %vm19, 0.0
    %26 = vst.msk [vmem:[#allocation2 + $0x30] sm:$0xff] %vm19, 0.0
    %27 = vst.msk [vmem:[#allocation2 + $0x38] sm:$0xff] %vm19, 0.0
    %28 = vst.msk [vmem:[#allocation2 + $0x40] sm:$0xff] %vm19, 0.0
    %29 = vst.msk [vmem:[#allocation2 + $0x48] sm:$0xff] %vm19, 0.0
    %30 = vst.msk [vmem:[#allocation2 + $0x50] sm:$0xff] %vm19, 0.0
    %31 = vst.msk [vmem:[#allocation2 + $0x58] sm:$0xff] %vm19, 0.0
    %32 = vst.msk [vmem:[#allocation2 + $0x60] sm:$0xff] %vm19, 0.0
    %33 = vst.msk [vmem:[#allocation2 + $0x68] sm:$0xff] %vm19, 0.0
    %34 = vst.msk [vmem:[#allocation2 + $0x70] sm:$0xff] %vm19, 0.0
    %35 = vst.msk [vmem:[#allocation2 + $0x78] sm:$0xff] %vm19, 0.0
    %36 = vst.msk [vmem:[#allocation2 + $0x80] sm:$0xff] %vm19, 0.0
    %37 = vst.msk [vmem:[#allocation2 + $0x88] sm:$0xff] %vm19, 0.0
    %38 = vst.msk [vmem:[#allocation2 + $0x90] sm:$0xff] %vm19, 0.0
    %39 = vst.msk [vmem:[#allocation2 + $0x98] sm:$0xff] %vm19, 0.0
    %40 = vst.msk [vmem:[#allocation2 + $0xa0] sm:$0xff] %vm19, 0.0
    %41 = vst.msk [vmem:[#allocation2 + $0xa8] sm:$0xff] %vm19, 0.0
    %42 = vst.msk [vmem:[#allocation2 + $0xb0] sm:$0xff] %vm19, 0.0
    %43 = vst.msk [vmem:[#allocation2 + $0xb8] sm:$0xff] %vm19, 0.0
    %44 = vst.msk [vmem:[#allocation2 + $0xc0] sm:$0xff] %vm19, 0.0
    %45 = vst.msk [vmem:[#allocation2 + $0xc8] sm:$0xff] %vm19, 0.0
    %46 = vst.msk [vmem:[#allocation2 + $0xd0] sm:$0xff] %vm19, 0.0
    %47 = vst.msk [vmem:[#allocation2 + $0xd8] sm:$0xff] %vm19, 0.0
    %48 = vst.msk [vmem:[#allocation2 + $0xe0] sm:$0xff] %vm19, 0.0
    %49 = vst.msk [vmem:[#allocation2 + $0xe8] sm:$0xff] %vm19, 0.0
    %50 = vst.msk [vmem:[#allocation2 + $0xf0] sm:$0xff] %vm19, 0.0
    %51 = vst.msk [vmem:[#allocation2 + $0xf8] sm:$0xff] %vm19, 0.0
    %52 = vst.msk [vmem:[#allocation2 + $0x100] sm:$0xff] %vm19, 0.0
    %53 = vst.msk [vmem:[#allocation2 + $0x108] sm:$0xff] %vm19, 0.0
    %54 = vst.msk [vmem:[#allocation2 + $0x110] sm:$0xff] %vm19, 0.0
    %55 = vst.msk [vmem:[#allocation2 + $0x118] sm:$0xff] %vm19, 0.0
    %56 = vst.msk [vmem:[#allocation2 + $0x120] sm:$0xff] %vm19, 0.0
    %57 = vst.msk [vmem:[#allocation2 + $0x128] sm:$0xff] %vm19, 0.0
    %58 = vst.msk [vmem:[#allocation2 + $0x130] sm:$0xff] %vm19, 0.0
    %59 = vst.msk [vmem:[#allocation2 + $0x138] sm:$0xff] %vm19, 0.0
    %60 = vst.msk [vmem:[#allocation2 + $0x140] sm:$0xff] %vm19, 0.0
    %61 = vst.msk [vmem:[#allocation2 + $0x148] sm:$0xff] %vm19, 0.0
    %62 = vst.msk [vmem:[#allocation2 + $0x150] sm:$0xff] %vm19, 0.0
    %63 = vst.msk [vmem:[#allocation2 + $0x158] sm:$0xff] %vm19, 0.0
    %64 = vst.msk [vmem:[#allocation2 + $0x160] sm:$0xff] %vm19, 0.0
    %65 = vst.msk [vmem:[#allocation2 + $0x168] sm:$0xff] %vm19, 0.0
    %66 = vst.msk [vmem:[#allocation2 + $0x170] sm:$0xff] %vm19, 0.0
    %67 = vst.msk [vmem:[#allocation2 + $0x178] sm:$0xff] %vm19, 0.0
    %68 = vst.msk [vmem:[#allocation2 + $0x180] sm:$0xff] %vm19, 0.0
    %69 = vst.msk [vmem:[#allocation2 + $0x188] sm:$0xff] %vm19, 0.0
    %70 = vst.msk [vmem:[#allocation2 + $0x190] sm:$0xff] %vm19, 0.0
    %71 = vst.msk [vmem:[#allocation2 + $0x198] sm:$0xff] %vm19, 0.0
    %72 = vst.msk [vmem:[#allocation2 + $0x1a0] sm:$0xff] %vm19, 0.0
    %73 = vst.msk [vmem:[#allocation2 + $0x1a8] sm:$0xff] %vm19, 0.0
    %74 = vst.msk [vmem:[#allocation2 + $0x1b0] sm:$0xff] %vm19, 0.0
    %75 = vst.msk [vmem:[#allocation2 + $0x1b8] sm:$0xff] %vm19, 0.0
    %76 = vst.msk [vmem:[#allocation2 + $0x1c0] sm:$0xff] %vm19, 0.0
    %77 = vst.msk [vmem:[#allocation2 + $0x1c8] sm:$0xff] %vm19, 0.0
    %78 = vst.msk [vmem:[#allocation2 + $0x1d0] sm:$0xff] %vm19, 0.0
    %79 = vst.msk [vmem:[#allocation2 + $0x1d8] sm:$0xff] %vm19, 0.0
    %80 = vst.msk [vmem:[#allocation2 + $0x1e0] sm:$0xff] %vm19, 0.0
    %81 = vst.msk [vmem:[#allocation2 + $0x1e8] sm:$0xff] %vm19, 0.0
    %82 = vst.msk [vmem:[#allocation2 + $0x1f0] sm:$0xff] %vm19, 0.0
    %83 = vst.msk [vmem:[#allocation2 + $0x1f8] sm:$0xff] %vm19, 0.0
    %84 = vst.msk [vmem:[#allocation2 + $0x200] sm:$0xff] %vm19, 0.0
    %85 = vst.msk [vmem:[#allocation2 + $0x208] sm:$0xff] %vm19, 0.0
    %86 = vst.msk [vmem:[#allocation2 + $0x210] sm:$0xff] %vm19, 0.0
    %87 = vst.msk [vmem:[#allocation2 + $0x218] sm:$0xff] %vm19, 0.0
    %88 = vst.msk [vmem:[#allocation2 + $0x220] sm:$0xff] %vm19, 0.0
    %89 = vst.msk [vmem:[#allocation2 + $0x228] sm:$0xff] %vm19, 0.0
    %90 = vst.msk [vmem:[#allocation2 + $0x230] sm:$0xff] %vm19, 0.0
    %91 = vst.msk [vmem:[#allocation2 + $0x238] sm:$0xff] %vm19, 0.0
    %92 = vst.msk [vmem:[#allocation2 + $0x240] sm:$0xff] %vm19, 0.0
    %93 = vst.msk [vmem:[#allocation2 + $0x248] sm:$0xff] %vm19, 0.0
    %94 = vst.msk [vmem:[#allocation2 + $0x250] sm:$0xff] %vm19, 0.0
    %95 = vst.msk [vmem:[#allocation2 + $0x258] sm:$0xff] %vm19, 0.0
    %96 = vst.msk [vmem:[#allocation2 + $0x260] sm:$0xff] %vm19, 0.0
    %97 = vst.msk [vmem:[#allocation2 + $0x268] sm:$0xff] %vm19, 0.0
    %98 = vst.msk [vmem:[#allocation2 + $0x270] sm:$0xff] %vm19, 0.0
    %99 = vst.msk [vmem:[#allocation2 + $0x278] sm:$0xff] %vm19, 0.0
    %100 = vst.msk [vmem:[#allocation2 + $0x280] sm:$0xff] %vm19, 0.0
    %101 = vst.msk [vmem:[#allocation2 + $0x288] sm:$0xff] %vm19, 0.0
    %102 = vst.msk [vmem:[#allocation2 + $0x290] sm:$0xff] %vm19, 0.0
    %103 = vst.msk [vmem:[#allocation2 + $0x298] sm:$0xff] %vm19, 0.0
    %104 = vst.msk [vmem:[#allocation2 + $0x2a0] sm:$0xff] %vm19, 0.0
    %105 = vst.msk [vmem:[#allocation2 + $0x2a8] sm:$0xff] %vm19, 0.0
    %106 = vst.msk [vmem:[#allocation2 + $0x2b0] sm:$0xff] %vm19, 0.0
    %107 = vst.msk [vmem:[#allocation2 + $0x2b8] sm:$0xff] %vm19, 0.0
    %108 = vst.msk [vmem:[#allocation2 + $0x2c0] sm:$0xff] %vm19, 0.0
    %109 = vst.msk [vmem:[#allocation2 + $0x2c8] sm:$0xff] %vm19, 0.0
    %110 = vst.msk [vmem:[#allocation2 + $0x2d0] sm:$0xff] %vm19, 0.0
    %111 = vst.msk [vmem:[#allocation2 + $0x2d8] sm:$0xff] %vm19, 0.0
    %112 = vst.msk [vmem:[#allocation2 + $0x2e0] sm:$0xff] %vm19, 0.0
    %113 = vst.msk [vmem:[#allocation2 + $0x2e8] sm:$0xff] %vm19, 0.0
    %114 = vst.msk [vmem:[#allocation2 + $0x2f0] sm:$0xff] %vm19, 0.0
    %115 = vst.msk [vmem:[#allocation2 + $0x2f8] sm:$0xff] %vm19, 0.0
    %116 = vst.msk [vmem:[#allocation2 + $0x300] sm:$0xff] %vm19, 0.0
    %117 = vst.msk [vmem:[#allocation2 + $0x308] sm:$0xff] %vm19, 0.0
    %118 = vst.msk [vmem:[#allocation2 + $0x310] sm:$0xff] %vm19, 0.0
    %119 = vst.msk [vmem:[#allocation2 + $0x318] sm:$0xff] %vm19, 0.0
    %120 = vst.msk [vmem:[#allocation2 + $0x320] sm:$0xff] %vm19, 0.0
    %121 = vst.msk [vmem:[#allocation2 + $0x328] sm:$0xff] %vm19, 0.0
    %122 = vst.msk [vmem:[#allocation2 + $0x330] sm:$0xff] %vm19, 0.0
    %123 = vst.msk [vmem:[#allocation2 + $0x338] sm:$0xff] %vm19, 0.0
    %124 = vst.msk [vmem:[#allocation2 + $0x340] sm:$0xff] %vm19, 0.0
    %125 = vst.msk [vmem:[#allocation2 + $0x348] sm:$0xff] %vm19, 0.0
    %126 = vst.msk [vmem:[#allocation2 + $0x350] sm:$0xff] %vm19, 0.0
    %127 = vst.msk [vmem:[#allocation2 + $0x358] sm:$0xff] %vm19, 0.0
  $region17: #{conv_feature_forward.6} parent=0 // pred_fallthru
    _
  %v128 = vld [vmem:[#allocation2] sm:$0xff]
  %v129 = vld [vmem:[#allocation2 + $0x8] sm:$0xff]
  %v130 = vld [vmem:[#allocation2 + $0x10] sm:$0xff]
  %v131 = vld [vmem:[#allocation2 + $0x18] sm:$0xff]
  %v132 = vld [vmem:[#allocation2 + $0x20] sm:$0xff]
  %v133 = vld [vmem:[#allocation2 + $0x28] sm:$0xff]
  %v134 = vld [vmem:[#allocation2 + $0x30] sm:$0xff]
  %v135 = vld [vmem:[#allocation2 + $0x38] sm:$0xff]
  %v136 = vld [vmem:[#allocation2 + $0x40] sm:$0xff]
  %v137 = vld [vmem:[#allocation2 + $0x48] sm:$0xff]
  %v138 = vld [vmem:[#allocation2 + $0x50] sm:$0xff]
  %v139 = vld [vmem:[#allocation2 + $0x58] sm:$0xff]
  %v140 = vld [vmem:[#allocation2 + $0x60] sm:$0xff]
  %v141 = vld [vmem:[#allocation2 + $0x68] sm:$0xff]
  %v142 = vld [vmem:[#allocation2 + $0x70] sm:$0xff]
  %v143 = vld [vmem:[#allocation2 + $0x78] sm:$0xff]
  %v144 = vld [vmem:[#allocation2 + $0x80] sm:$0xff]
  %v145 = vld [vmem:[#allocation2 + $0x88] sm:$0xff]
  %v146 = vld [vmem:[#allocation2 + $0x90] sm:$0xff]
  %v147 = vld [vmem:[#allocation2 + $0x98] sm:$0xff]
  %v148 = vld [vmem:[#allocation2 + $0xa0] sm:$0xff]
  %v149 = vld [vmem:[#allocation2 + $0xa8] sm:$0xff]
  %v150 = vld [vmem:[#allocation2 + $0xb0] sm:$0xff]
  %v151 = vld [vmem:[#allocation2 + $0xb8] sm:$0xff]
  %v152 = vld [vmem:[#allocation2 + $0xc0] sm:$0xff]
  %v153 = vld [vmem:[#allocation2 + $0xc8] sm:$0xff]
  %v154 = vld [vmem:[#allocation2 + $0xd0] sm:$0xff]
  %v155 = vld [vmem:[#allocation2 + $0xd8] sm:$0xff]
  %v156 = vld [vmem:[#allocation2 + $0xe0] sm:$0xff]
  %v157 = vld [vmem:[#allocation2 + $0xe8] sm:$0xff]
  %v158 = vld [vmem:[#allocation2 + $0xf0] sm:$0xff]
  %v159 = vld [vmem:[#allocation2 + $0xf8] sm:$0xff]
  %v160 = vld [vmem:[#allocation2 + $0x100] sm:$0xff]
  %v161 = vld [vmem:[#allocation2 + $0x108] sm:$0xff]
  %v162 = vld [vmem:[#allocation2 + $0x110] sm:$0xff]
  %v163 = vld [vmem:[#allocation2 + $0x118] sm:$0xff]
  %v164 = vld [vmem:[#allocation2 + $0x120] sm:$0xff]
  %v165 = vld [vmem:[#allocation2 + $0x128] sm:$0xff]
  %v166 = vld [vmem:[#allocation2 + $0x130] sm:$0xff]
  %v167 = vld [vmem:[#allocation2 + $0x138] sm:$0xff]
  %v168 = vld [vmem:[#allocation2 + $0x140] sm:$0xff]
  %v169 = vld [vmem:[#allocation2 + $0x148] sm:$0xff]
  %v170 = vld [vmem:[#allocation2 + $0x150] sm:$0xff]
  %v171 = vld [vmem:[#allocation2 + $0x158] sm:$0xff]
  %v172 = vld [vmem:[#allocation2 + $0x160] sm:$0xff]
  %v173 = vld [vmem:[#allocation2 + $0x168] sm:$0xff]
  %v174 = vld [vmem:[#allocation2 + $0x170] sm:$0xff]
  %v175 = vld [vmem:[#allocation2 + $0x178] sm:$0xff]
  %v176 = vld [vmem:[#allocation2 + $0x180] sm:$0xff]
  %v177 = vld [vmem:[#allocation2 + $0x188] sm:$0xff]
  %v178 = vld [vmem:[#allocation2 + $0x190] sm:$0xff]
  %v179 = vld [vmem:[#allocation2 + $0x198] sm:$0xff]
  %v180 = vld [vmem:[#allocation2 + $0x1a0] sm:$0xff]
  %v181 = vld [vmem:[#allocation2 + $0x1a8] sm:$0xff]
  %v182 = vld [vmem:[#allocation2 + $0x1b0] sm:$0xff]
  %v183 = vld [vmem:[#allocation2 + $0x1b8] sm:$0xff]
  %v184 = vld [vmem:[#allocation2 + $0x1c0] sm:$0xff]
  %v185 = vld [vmem:[#allocation2 + $0x1c8] sm:$0xff]
  %v186 = vld [vmem:[#allocation2 + $0x1d0] sm:$0xff]
  %v187 = vld [vmem:[#allocation2 + $0x1d8] sm:$0xff]
  %v188 = vld [vmem:[#allocation2 + $0x1e0] sm:$0xff]
  %v189 = vld [vmem:[#allocation2 + $0x1e8] sm:$0xff]
  %v190 = vld [vmem:[#allocation2 + $0x1f0] sm:$0xff]
  %v191 = vld [vmem:[#allocation2 + $0x1f8] sm:$0xff]
  %v192 = vld [vmem:[#allocation2 + $0x200] sm:$0xff]
  %v193 = vld [vmem:[#allocation2 + $0x208] sm:$0xff]
  %v194 = vld [vmem:[#allocation2 + $0x210] sm:$0xff]
  %v195 = vld [vmem:[#allocation2 + $0x218] sm:$0xff]
  %v196 = vld [vmem:[#allocation2 + $0x220] sm:$0xff]
  %v197 = vld [vmem:[#allocation2 + $0x228] sm:$0xff]
  %v198 = vld [vmem:[#allocation2 + $0x230] sm:$0xff]
  %v199 = vld [vmem:[#allocation2 + $0x238] sm:$0xff]
  %v200 = vld [vmem:[#allocation2 + $0x240] sm:$0xff]
  %v201 = vld [vmem:[#allocation2 + $0x248] sm:$0xff]
  %v202 = vld [vmem:[#allocation2 + $0x250] sm:$0xff]
  %v203 = vld [vmem:[#allocation2 + $0x258] sm:$0xff]
  %v204 = vld [vmem:[#allocation2 + $0x260] sm:$0xff]
  %v205 = vld [vmem:[#allocation2 + $0x268] sm:$0xff]
  %v206 = vld [vmem:[#allocation2 + $0x270] sm:$0xff]
  %v207 = vld [vmem:[#allocation2 + $0x278] sm:$0xff]
  %v208 = vld [vmem:[#allocation2 + $0x280] sm:$0xff]
  %v209 = vld [vmem:[#allocation2 + $0x288] sm:$0xff]
  %v210 = vld [vmem:[#allocation2 + $0x290] sm:$0xff]
  %v211 = vld [vmem:[#allocation2 + $0x298] sm:$0xff]
  %v212 = vld [vmem:[#allocation2 + $0x2a0] sm:$0xff]
  %v213 = vld [vmem:[#allocation2 + $0x2a8] sm:$0xff]
  %v214 = vld [vmem:[#allocation2 + $0x2b0] sm:$0xff]
  %v215 = vld [vmem:[#allocation2 + $0x2b8] sm:$0xff]
  %v216 = vld [vmem:[#allocation2 + $0x2c0] sm:$0xff]
  %v217 = vld [vmem:[#allocation2 + $0x2c8] sm:$0xff]
  %v218 = vld [vmem:[#allocation2 + $0x2d0] sm:$0xff]
  %v219 = vld [vmem:[#allocation2 + $0x2d8] sm:$0xff]
  %v220 = vld [vmem:[#allocation2 + $0x2e0] sm:$0xff]
  %v221 = vld [vmem:[#allocation2 + $0x2e8] sm:$0xff]
  %v222 = vld [vmem:[#allocation2 + $0x2f0] sm:$0xff]
  %v223 = vld [vmem:[#allocation2 + $0x2f8] sm:$0xff]
  %v224 = vld [vmem:[#allocation2 + $0x300] sm:$0xff]
  %v225 = vld [vmem:[#allocation2 + $0x308] sm:$0xff]
  %v226 = vld [vmem:[#allocation2 + $0x310] sm:$0xff]
  %v227 = vld [vmem:[#allocation2 + $0x318] sm:$0xff]
  %v228 = vld [vmem:[#allocation2 + $0x320] sm:$0xff]
  %v229 = vld [vmem:[#allocation2 + $0x328] sm:$0xff]
  %v230 = vld [vmem:[#allocation2 + $0x330] sm:$0xff]
  %v231 = vld [vmem:[#allocation2 + $0x338] sm:$0xff]
  %v232 = vld [vmem:[#allocation2 + $0x340] sm:$0xff]
  %v233 = vld [vmem:[#allocation2 + $0x348] sm:$0xff]
  %v234 = vld [vmem:[#allocation2 + $0x350] sm:$0xff]
  %v235 = vld [vmem:[#allocation2 + $0x358] sm:$0xff]
  %v236 = vld [vmem:[%s0] sm:$0xf]
  %v237 = vld [vmem:[%s0 + $0x4] sm:$0xf]
  %v238 = vld [vmem:[%s0 + $0x8] sm:$0xf]
  %v239 = vld [vmem:[%s0 + $0xc] sm:$0xf]
  %v240 = vld [vmem:[%s0 + $0x10] sm:$0xf]
  %v241 = vld [vmem:[%s0 + $0x14] sm:$0xf]
  %v242 = vld [vmem:[%s0 + $0x18] sm:$0xf]
  %v243 = vld [vmem:[%s0 + $0x1c] sm:$0xf]
  %v244 = vld [vmem:[%s0 + $0x20] sm:$0xf]
  %v245 = vld [vmem:[%s0 + $0x24] sm:$0xf]
  %v246 = vld [vmem:[%s0 + $0x28] sm:$0xf]
  %v247 = vld [vmem:[%s0 + $0x2c] sm:$0xf]
  %v248 = vld [vmem:[%s0 + $0x30] sm:$0xf]
  %v249 = vld [vmem:[%s0 + $0x34] sm:$0xf]
  %v250 = vld [vmem:[%s0 + $0x38] sm:$0xf]
  %v251 = vld [vmem:[%s0 + $0x3c] sm:$0xf]
  %v252 = vld [vmem:[%s0 + $0x40] sm:$0xf]
  %v253 = vld [vmem:[%s0 + $0x44] sm:$0xf]
  %v254 = vld [vmem:[%s0 + $0x48] sm:$0xf]
  %v255 = vld [vmem:[%s0 + $0x4c] sm:$0xf]
  %v256 = vld [vmem:[%s0 + $0x50] sm:$0xf]
  %v257 = vld [vmem:[%s0 + $0x54] sm:$0xf]
  %v258 = vld [vmem:[%s0 + $0x58] sm:$0xf]
  %v259 = vld [vmem:[%s0 + $0x5c] sm:$0xf]
  %v260 = vld [vmem:[%s0 + $0x60] sm:$0xf]
  %v261 = vld [vmem:[%s0 + $0x64] sm:$0xf]
  %v262 = vld [vmem:[%s0 + $0x68] sm:$0xf]
  %v263 = vld [vmem:[%s0 + $0x6c] sm:$0xf]
  %v264 = vld [vmem:[%s0 + $0x70] sm:$0xf]
  %v265 = vld [vmem:[%s0 + $0x74] sm:$0xf]
  %v266 = vld [vmem:[%s0 + $0x78] sm:$0xf]
  %v267 = vld [vmem:[%s0 + $0x7c] sm:$0xf]
  %v268 = vld [vmem:[%s0 + $0x80] sm:$0xf]
  %v269 = vld [vmem:[%s0 + $0x84] sm:$0xf]
  %v270 = vld [vmem:[%s0 + $0x88] sm:$0xf]
  %v271 = vld [vmem:[%s0 + $0x8c] sm:$0xf]
  %v272 = vld [vmem:[%s0 + $0x90] sm:$0xf]
  %v273 = vld [vmem:[%s0 + $0x94] sm:$0xf]
  %v274 = vld [vmem:[%s0 + $0x98] sm:$0xf]
  %v275 = vld [vmem:[%s0 + $0x9c] sm:$0xf]
  %v276 = vld [vmem:[%s0 + $0xa0] sm:$0xf]
  %v277 = vld [vmem:[%s0 + $0xa4] sm:$0xf]
  %v278 = vld [vmem:[%s0 + $0xa8] sm:$0xf]
  %v279 = vld [vmem:[%s0 + $0xac] sm:$0xf]
  %v280 = vld [vmem:[%s0 + $0xb0] sm:$0xf]
  %v281 = vld [vmem:[%s0 + $0xb4] sm:$0xf]
  %v282 = vld [vmem:[%s0 + $0xb8] sm:$0xf]
  %v283 = vld [vmem:[%s0 + $0xbc] sm:$0xf]
  %v284 = vld [vmem:[%s0 + $0xc0] sm:$0xf]
  %v285 = vld [vmem:[%s0 + $0xc4] sm:$0xf]
  %v286 = vld [vmem:[%s0 + $0xc8] sm:$0xf]
  %v287 = vld [vmem:[%s0 + $0xcc] sm:$0xf]
  %v288 = vld [vmem:[%s0 + $0xd0] sm:$0xf]
  %v289 = vld [vmem:[%s0 + $0xd4] sm:$0xf]
  %v290 = vld [vmem:[%s0 + $0xd8] sm:$0xf]
  %v291 = vld [vmem:[%s0 + $0xdc] sm:$0xf]
  %v292 = vld [vmem:[%s0 + $0xe0] sm:$0xf]
  %v293 = vld [vmem:[%s0 + $0xe4] sm:$0xf]
  %v294 = vld [vmem:[%s0 + $0xe8] sm:$0xf]
  %v295 = vld [vmem:[%s0 + $0xec] sm:$0xf]
  %v296 = vld [vmem:[%s0 + $0xf0] sm:$0xf]
  %v297 = vld [vmem:[%s0 + $0xf4] sm:$0xf]
  %v298 = vld [vmem:[%s0 + $0xf8] sm:$0xf]
  %v299 = vld [vmem:[%s0 + $0xfc] sm:$0xf]
  %v300 = vld [vmem:[%s0 + $0x100] sm:$0xf]
  %v301 = vld [vmem:[%s0 + $0x104] sm:$0xf]
  %v302 = vld [vmem:[%s0 + $0x108] sm:$0xf]
  %v303 = vld [vmem:[%s0 + $0x10c] sm:$0xf]
  %v304 = vld [vmem:[%s0 + $0x110] sm:$0xf]
  %v305 = vld [vmem:[%s0 + $0x114] sm:$0xf]
  %v306 = vld [vmem:[%s0 + $0x118] sm:$0xf]
  %v307 = vld [vmem:[%s0 + $0x11c] sm:$0xf]
  %v308 = vld [vmem:[%s0 + $0x120] sm:$0xf]
  %v309 = vld [vmem:[%s0 + $0x124] sm:$0xf]
  %v310 = vld [vmem:[%s0 + $0x128] sm:$0xf]
  %v311 = vld [vmem:[%s0 + $0x12c] sm:$0xf]
  %v312 = vld [vmem:[%s0 + $0x130] sm:$0xf]
  %v313 = vld [vmem:[%s0 + $0x134] sm:$0xf]
  %v314 = vld [vmem:[%s0 + $0x138] sm:$0xf]
  %v315 = vld [vmem:[%s0 + $0x13c] sm:$0xf]
  %v316 = vld [vmem:[%s0 + $0x140] sm:$0xf]
  %v317 = vld [vmem:[%s0 + $0x144] sm:$0xf]
  %v318 = vld [vmem:[%s0 + $0x148] sm:$0xf]
  %v319 = vld [vmem:[%s0 + $0x14c] sm:$0xf]
  %v320 = vld [vmem:[%s0 + $0x150] sm:$0xf]
  %v321 = vld [vmem:[%s0 + $0x154] sm:$0xf]
  %v322 = vld [vmem:[%s0 + $0x158] sm:$0xf]
  %v323 = vld [vmem:[%s0 + $0x15c] sm:$0xf]
  %v324 = vld [vmem:[%s0 + $0x160] sm:$0xf]
  %v325 = vld [vmem:[%s0 + $0x164] sm:$0xf]
  %v326 = vld [vmem:[%s0 + $0x168] sm:$0xf]
  %v327 = vld [vmem:[%s0 + $0x16c] sm:$0xf]
  %v328 = vld [vmem:[%s0 + $0x170] sm:$0xf]
  %v329 = vld [vmem:[%s0 + $0x174] sm:$0xf]
  %v330 = vld [vmem:[%s0 + $0x178] sm:$0xf]
  %v331 = vld [vmem:[%s0 + $0x17c] sm:$0xf]
  %v332 = vld [vmem:[%s0 + $0x180] sm:$0xf]
  %v333 = vld [vmem:[%s0 + $0x184] sm:$0xf]
  %v334 = vld [vmem:[%s0 + $0x188] sm:$0xf]
  %v335 = vld [vmem:[%s0 + $0x18c] sm:$0xf]
  %v336 = vld [vmem:[%s0 + $0x190] sm:$0xf]
  %v337 = vld [vmem:[%s0 + $0x194] sm:$0xf]
  %v338 = vld [vmem:[%s0 + $0x198] sm:$0xf]
  %v339 = vld [vmem:[%s0 + $0x19c] sm:$0xf]
  %v340 = vld [vmem:[%s0 + $0x1a0] sm:$0xf]
  %v341 = vld [vmem:[%s0 + $0x1a4] sm:$0xf]
  %v342 = vld [vmem:[%s0 + $0x1a8] sm:$0xf]
  %v343 = vld [vmem:[%s0 + $0x1ac] sm:$0xf]
  %v344 = vld [vmem:[%s1] sm:$0xf]
  %v345 = vld [vmem:[%s1 + $0x4] sm:$0xf]
  %v346 = vld [vmem:[%s1 + $0x8] sm:$0xf]
  %v347 = vld [vmem:[%s1 + $0xc] sm:$0xf]
  %v348 = vld [vmem:[%s1 + $0x10] sm:$0xf]
  %v349 = vld [vmem:[%s1 + $0x14] sm:$0xf]
  %v350 = vld [vmem:[%s1 + $0x18] sm:$0xf]
  %v351 = vld [vmem:[%s1 + $0x1c] sm:$0xf]
  %v352 = vld [vmem:[%s1 + $0x20] sm:$0xf]
  %v353 = vld [vmem:[%s1 + $0x24] sm:$0xf]
  %v354 = vld [vmem:[%s1 + $0x28] sm:$0xf]
  %v355 = vld [vmem:[%s1 + $0x2c] sm:$0xf]
  %v356 = vld [vmem:[%s1 + $0x30] sm:$0xf]
  %v357 = vld [vmem:[%s1 + $0x34] sm:$0xf]
  %v358 = vld [vmem:[%s1 + $0x38] sm:$0xf]
  %v359 = vld [vmem:[%s1 + $0x3c] sm:$0xf]
  %v468 = vunpack.c.l.b16 %v236
  %v469 = vunpack.c.l.b16 %v237
  %v470 = vunpack.c.l.b16 %v238
  %v471 = vunpack.c.l.b16 %v239
  %v472 = vunpack.c.l.b16 %v240
  %v473 = vunpack.c.l.b16 %v241
  %v474 = vunpack.c.l.b16 %v242
  %v475 = vunpack.c.l.b16 %v243
  %v476 = vunpack.c.l.b16 %v244
  %v477 = vunpack.c.l.b16 %v245
  %v478 = vunpack.c.l.b16 %v246
  %v479 = vunpack.c.l.b16 %v247
  %v480 = vunpack.c.l.b16 %v248
  %v481 = vunpack.c.l.b16 %v249
  %v482 = vunpack.c.l.b16 %v250
  %v483 = vunpack.c.l.b16 %v251
  %v484 = vunpack.c.l.b16 %v252
  %v485 = vunpack.c.l.b16 %v253
  %v486 = vunpack.c.l.b16 %v254
  %v487 = vunpack.c.l.b16 %v255
  %v488 = vunpack.c.l.b16 %v256
  %v489 = vunpack.c.l.b16 %v257
  %v490 = vunpack.c.l.b16 %v258
  %v491 = vunpack.c.l.b16 %v259
  %v492 = vunpack.c.l.b16 %v260
  %v493 = vunpack.c.l.b16 %v261
  %v494 = vunpack.c.l.b16 %v262
  %v495 = vunpack.c.l.b16 %v263
  %v496 = vunpack.c.l.b16 %v264
  %v497 = vunpack.c.l.b16 %v265
  %v498 = vunpack.c.l.b16 %v266
  %v499 = vunpack.c.l.b16 %v267
  %v500 = vunpack.c.l.b16 %v268
  %v501 = vunpack.c.l.b16 %v269
  %v502 = vunpack.c.l.b16 %v270
  %v503 = vunpack.c.l.b16 %v271
  %v504 = vunpack.c.l.b16 %v272
  %v505 = vunpack.c.l.b16 %v273
  %v506 = vunpack.c.l.b16 %v274
  %v507 = vunpack.c.l.b16 %v275
  %v508 = vunpack.c.l.b16 %v276
  %v509 = vunpack.c.l.b16 %v277
  %v510 = vunpack.c.l.b16 %v278
  %v511 = vunpack.c.l.b16 %v279
  %v512 = vunpack.c.l.b16 %v280
  %v513 = vunpack.c.l.b16 %v281
  %v514 = vunpack.c.l.b16 %v282
  %v515 = vunpack.c.l.b16 %v283
  %v516 = vunpack.c.l.b16 %v284
  %v517 = vunpack.c.l.b16 %v285
  %v518 = vunpack.c.l.b16 %v286
  %v519 = vunpack.c.l.b16 %v287
  %v520 = vunpack.c.l.b16 %v288
  %v521 = vunpack.c.l.b16 %v289
  %v522 = vunpack.c.l.b16 %v290
  %v523 = vunpack.c.l.b16 %v291
  %v524 = vunpack.c.l.b16 %v292
  %v525 = vunpack.c.l.b16 %v293
  %v526 = vunpack.c.l.b16 %v294
  %v527 = vunpack.c.l.b16 %v295
  %v528 = vunpack.c.l.b16 %v296
  %v529 = vunpack.c.l.b16 %v297
  %v530 = vunpack.c.l.b16 %v298
  %v531 = vunpack.c.l.b16 %v299
  %v532 = vunpack.c.l.b16 %v300
  %v533 = vunpack.c.l.b16 %v301
  %v534 = vunpack.c.l.b16 %v302
  %v535 = vunpack.c.l.b16 %v303
  %v536 = vunpack.c.l.b16 %v304
  %v537 = vunpack.c.l.b16 %v305
  %v538 = vunpack.c.l.b16 %v306
  %v539 = vunpack.c.l.b16 %v307
  %v540 = vunpack.c.l.b16 %v308
  %v541 = vunpack.c.l.b16 %v309
  %v542 = vunpack.c.l.b16 %v310
  %v543 = vunpack.c.l.b16 %v311
  %v544 = vunpack.c.l.b16 %v312
  %v545 = vunpack.c.l.b16 %v313
  %v546 = vunpack.c.l.b16 %v314
  %v547 = vunpack.c.l.b16 %v315
  %v548 = vunpack.c.l.b16 %v316
  %v549 = vunpack.c.l.b16 %v317
  %v550 = vunpack.c.l.b16 %v318
  %v551 = vunpack.c.l.b16 %v319
  %v552 = vunpack.c.l.b16 %v320
  %v553 = vunpack.c.l.b16 %v321
  %v554 = vunpack.c.l.b16 %v322
  %v555 = vunpack.c.l.b16 %v323
  %v556 = vunpack.c.l.b16 %v324
  %v557 = vunpack.c.l.b16 %v325
  %v558 = vunpack.c.l.b16 %v326
  %v559 = vunpack.c.l.b16 %v327
  %v560 = vunpack.c.l.b16 %v328
  %v561 = vunpack.c.l.b16 %v329
  %v562 = vunpack.c.l.b16 %v330
  %v563 = vunpack.c.l.b16 %v331
  %v564 = vunpack.c.l.b16 %v332
  %v565 = vunpack.c.l.b16 %v333
  %v566 = vunpack.c.l.b16 %v334
  %v567 = vunpack.c.l.b16 %v335
  %v568 = vunpack.c.l.b16 %v336
  %v569 = vunpack.c.l.b16 %v337
  %v570 = vunpack.c.l.b16 %v338
  %v571 = vunpack.c.l.b16 %v339
  %v572 = vunpack.c.l.b16 %v340
  %v573 = vunpack.c.l.b16 %v341
  %v574 = vunpack.c.l.b16 %v342
  %v575 = vunpack.c.l.b16 %v343
  %v576 = vpack.c.b16 %v469, %v468
  %v577 = vpack.c.b16 %v471, %v470
  %v578 = vpack.c.b16 %v473, %v472
  %v579 = vpack.c.b16 %v475, %v474
  %v580 = vpack.c.b16 %v477, %v476
  %v581 = vpack.c.b16 %v479, %v478
  %v582 = vpack.c.b16 %v481, %v480
  %v583 = vpack.c.b16 %v483, %v482
  %v584 = vpack.c.b16 %v485, %v484
  %v585 = vpack.c.b16 %v487, %v486
  %v586 = vpack.c.b16 %v489, %v488
  %v587 = vpack.c.b16 %v491, %v490
  %v588 = vpack.c.b16 %v493, %v492
  %v589 = vpack.c.b16 %v495, %v494
  %v590 = vpack.c.b16 %v497, %v496
  %v591 = vpack.c.b16 %v499, %v498
  %v592 = vpack.c.b16 %v501, %v500
  %v593 = vpack.c.b16 %v503, %v502
  %v594 = vpack.c.b16 %v505, %v504
  %v595 = vpack.c.b16 %v507, %v506
  %v596 = vpack.c.b16 %v509, %v508
  %v597 = vpack.c.b16 %v511, %v510
  %v598 = vpack.c.b16 %v513, %v512
  %v599 = vpack.c.b16 %v515, %v514
  %v600 = vpack.c.b16 %v517, %v516
  %v601 = vpack.c.b16 %v519, %v518
  %v602 = vpack.c.b16 %v521, %v520
  %v603 = vpack.c.b16 %v523, %v522
  %v604 = vpack.c.b16 %v525, %v524
  %v605 = vpack.c.b16 %v527, %v526
  %v606 = vpack.c.b16 %v529, %v528
  %v607 = vpack.c.b16 %v531, %v530
  %v608 = vpack.c.b16 %v533, %v532
  %v609 = vpack.c.b16 %v535, %v534
  %v610 = vpack.c.b16 %v537, %v536
  %v611 = vpack.c.b16 %v539, %v538
  %v612 = vpack.c.b16 %v541, %v540
  %v613 = vpack.c.b16 %v543, %v542
  %v614 = vpack.c.b16 %v545, %v544
  %v615 = vpack.c.b16 %v547, %v546
  %v616 = vpack.c.b16 %v549, %v548
  %v617 = vpack.c.b16 %v551, %v550
  %v618 = vpack.c.b16 %v553, %v552
  %v619 = vpack.c.b16 %v555, %v554
  %v620 = vpack.c.b16 %v557, %v556
  %v621 = vpack.c.b16 %v559, %v558
  %v622 = vpack.c.b16 %v561, %v560
  %v623 = vpack.c.b16 %v563, %v562
  %v624 = vpack.c.b16 %v565, %v564
  %v625 = vpack.c.b16 %v567, %v566
  %v626 = vpack.c.b16 %v569, %v568
  %v627 = vpack.c.b16 %v571, %v570
  %v628 = vpack.c.b16 %v573, %v572
  %v629 = vpack.c.b16 %v575, %v574
  %v700 = vunpack.c.l.b16 %v344
  %v701 = vunpack.c.l.b16 %v345
  %v702 = vunpack.c.l.b16 %v346
  %v703 = vunpack.c.l.b16 %v347
  %v704 = vunpack.c.l.b16 %v348
  %v705 = vunpack.c.l.b16 %v349
  %v706 = vunpack.c.l.b16 %v350
  %v707 = vunpack.c.l.b16 %v351
  %v708 = vunpack.c.l.b16 %v352
  %v709 = vunpack.c.l.b16 %v353
  %v710 = vunpack.c.l.b16 %v354
  %v711 = vunpack.c.l.b16 %v355
  %v712 = vunpack.c.l.b16 %v356
  %v713 = vunpack.c.l.b16 %v357
  %v714 = vunpack.c.l.b16 %v358
  %v715 = vunpack.c.l.b16 %v359
  %v716 = vpack.c.b16 %v701, %v700
  %v717 = vpack.c.b16 %v703, %v702
  %v718 = vpack.c.b16 %v705, %v704
  %v719 = vpack.c.b16 %v707, %v706
  %v720 = vpack.c.b16 %v709, %v708
  %v721 = vpack.c.b16 %v711, %v710
  %v722 = vpack.c.b16 %v713, %v712
  %v723 = vpack.c.b16 %v715, %v714
  %732 = vmatprep.subr.bf16.mxu0 0
  %733 = vmatpush1.bf16.msra.mxu0 %v716
  %734 = vmatprep.subr.bf16.mxu0 0
  %735 = vmatpush1.bf16.msra.mxu0 %v717
  %736 = vmatprep.subr.bf16.mxu0 0
  %737 = vmatpush1.bf16.msra.mxu0 %v718
  %738 = vmatprep.subr.bf16.mxu0 0
  %739 = vmatpush1.bf16.msra.mxu0 %v719
  %740 = vmatprep.subr.bf16.mxu0 0
  %741 = vmatpush1.bf16.msra.mxu0 %v720
  %742 = vmatprep.subr.bf16.mxu0 0
  %743 = vmatpush1.bf16.msra.mxu0 %v721
  %744 = vmatprep.subr.bf16.mxu0 0
  %745 = vmatpush1.bf16.msra.mxu0 %v722
  %746 = vmatprep.subr.bf16.mxu0 0
  %747 = vmatpush1.bf16.msra.mxu0 %v723
  %748 = vmatprep.subr.bf16.mxu0 0
  %749 = vmatpush1.bf16.msra.mxu0 0
  %750 = vmatprep.subr.bf16.mxu0 0
  %751 = vmatpush1.bf16.msra.mxu0 0
  %752 = vmatprep.subr.bf16.mxu0 0
  %753 = vmatpush1.bf16.msra.mxu0 0
  %754 = vmatprep.subr.bf16.mxu0 0
  %755 = vmatpush1.bf16.msra.mxu0 0
  %756 = vmatprep.subr.bf16.mxu0 0
  %757 = vmatpush1.bf16.msra.mxu0 0
  %758 = vmatprep.subr.bf16.mxu0 0
  %759 = vmatpush1.bf16.msra.mxu0 0
  %760 = vmatprep.subr.bf16.mxu0 0
  %761 = vmatpush1.bf16.msra.mxu0 0
  %762 = vmatprep.subr.bf16.mxu0 0
  %763 = vmatpush1.bf16.msra.mxu0 0
  %764 = vmatprep.mubr.bf16.mxu0 0
  %765 = vmatmul.mubr.bf16.gmra.mrb[0].mxu0 %v576
  %v766 = vpop.f32.mrb[0].mxu0
  %v767 = vadd.f32 0.0, %v766
  %v768 = vpop.f32.mrb[0].mxu0
  %v769 = vpop.f32.mrb[0].mxu0
  %v770 = vadd.f32 0.0, %v769
  %v771 = vpop.f32.mrb[0].mxu0
  %772 = vmatprep.mubr.bf16.mxu0 0
  %773 = vmatmul.mubr.bf16.gmra.mrb[0].mxu0 %v577
  %v774 = vpop.f32.mrb[0].mxu0
  %v775 = vadd.f32 0.0, %v774
  %v776 = vpop.f32.mrb[0].mxu0
  %v777 = vpop.f32.mrb[0].mxu0
  %v778 = vadd.f32 0.0, %v777
  %v779 = vpop.f32.mrb[0].mxu0
  %780 = vmatprep.mubr.bf16.mxu0 0
  %781 = vmatmul.mubr.bf16.gmra.mrb[0].mxu0 %v578
  %v782 = vpop.f32.mrb[0].mxu0
  %v783 = vadd.f32 0.0, %v782
  %v784 = vpop.f32.mrb[0].mxu0
  %v785 = vpop.f32.mrb[0].mxu0
  %v786 = vadd.f32 0.0, %v785
  %v787 = vpop.f32.mrb[0].mxu0
  %788 = vmatprep.mubr.bf16.mxu0 0
  %789 = vmatmul.mubr.bf16.gmra.mrb[0].mxu0 %v579
  %v790 = vpop.f32.mrb[0].mxu0
  %v791 = vadd.f32 0.0, %v790
  %v792 = vpop.f32.mrb[0].mxu0
  %v793 = vpop.f32.mrb[0].mxu0
  %v794 = vadd.f32 0.0, %v793
  %v795 = vpop.f32.mrb[0].mxu0
  %796 = vmatprep.mubr.bf16.mxu0 0
  %797 = vmatmul.mubr.bf16.gmra.mrb[0].mxu0 %v580
  %v798 = vpop.f32.mrb[0].mxu0
  %v799 = vadd.f32 0.0, %v798
  %v800 = vpop.f32.mrb[0].mxu0
  %v801 = vpop.f32.mrb[0].mxu0
  %v802 = vadd.f32 0.0, %v801
  %v803 = vpop.f32.mrb[0].mxu0
  %804 = vmatprep.mubr.bf16.mxu0 0
  %805 = vmatmul.mubr.bf16.gmra.mrb[0].mxu0 %v581
  %v806 = vpop.f32.mrb[0].mxu0
  %v807 = vadd.f32 0.0, %v806
  %v808 = vpop.f32.mrb[0].mxu0
  %v809 = vpop.f32.mrb[0].mxu0
  %v810 = vadd.f32 0.0, %v809
  %v811 = vpop.f32.mrb[0].mxu0
  %812 = vmatprep.mubr.bf16.mxu0 0
  %813 = vmatmul.mubr.bf16.gmra.mrb[0].mxu0 %v582
  %v814 = vpop.f32.mrb[0].mxu0
  %v815 = vadd.f32 0.0, %v814
  %v816 = vpop.f32.mrb[0].mxu0
  %v817 = vpop.f32.mrb[0].mxu0
  %v818 = vadd.f32 0.0, %v817
  %v819 = vpop.f32.mrb[0].mxu0
  %820 = vmatprep.mubr.bf16.mxu0 0
  %821 = vmatmul.mubr.bf16.gmra.mrb[0].mxu0 %v583
  %v822 = vpop.f32.mrb[0].mxu0
  %v823 = vadd.f32 0.0, %v822
  %v824 = vpop.f32.mrb[0].mxu0
  %v825 = vpop.f32.mrb[0].mxu0
  %v826 = vadd.f32 0.0, %v825
  %v827 = vpop.f32.mrb[0].mxu0
  %828 = vmatprep.mubr.bf16.mxu0 0
  %829 = vmatmul.mubr.bf16.gmra.mrb[0].mxu0 %v584
  %v830 = vpop.f32.mrb[0].mxu0
  %v831 = vadd.f32 0.0, %v830
  %v832 = vpop.f32.mrb[0].mxu0
  %v833 = vpop.f32.mrb[0].mxu0
  %v834 = vadd.f32 0.0, %v833
  %v835 = vpop.f32.mrb[0].mxu0
  %836 = vmatprep.mubr.bf16.mxu0 0
  %837 = vmatmul.mubr.bf16.gmra.mrb[0].mxu0 %v585
  %v838 = vpop.f32.mrb[0].mxu0
  %v839 = vadd.f32 0.0, %v838
  %v840 = vpop.f32.mrb[0].mxu0
  %v841 = vpop.f32.mrb[0].mxu0
  %v842 = vadd.f32 0.0, %v841
  %v843 = vpop.f32.mrb[0].mxu0
  %844 = vmatprep.mubr.bf16.mxu0 0
  %845 = vmatmul.mubr.bf16.gmra.mrb[0].mxu0 %v586
  %v846 = vpop.f32.mrb[0].mxu0
  %v847 = vadd.f32 0.0, %v846
  %v848 = vpop.f32.mrb[0].mxu0
  %v849 = vpop.f32.mrb[0].mxu0
  %v850 = vadd.f32 0.0, %v849
  %v851 = vpop.f32.mrb[0].mxu0
  %852 = vmatprep.mubr.bf16.mxu0 0
  %853 = vmatmul.mubr.bf16.gmra.mrb[0].mxu0 %v587
  %v854 = vpop.f32.mrb[0].mxu0
  %v855 = vadd.f32 0.0, %v854
  %v856 = vpop.f32.mrb[0].mxu0
  %v857 = vpop.f32.mrb[0].mxu0
  %v858 = vadd.f32 0.0, %v857
  %v859 = vpop.f32.mrb[0].mxu0
  %860 = vmatprep.mubr.bf16.mxu0 0
  %861 = vmatmul.mubr.bf16.gmra.mrb[0].mxu0 %v588
  %v862 = vpop.f32.mrb[0].mxu0
  %v863 = vadd.f32 0.0, %v862
  %v864 = vpop.f32.mrb[0].mxu0
  %v865 = vpop.f32.mrb[0].mxu0
  %v866 = vadd.f32 0.0, %v865
  %v867 = vpop.f32.mrb[0].mxu0
  %868 = vmatprep.mubr.bf16.mxu0 0
  %869 = vmatmul.mubr.bf16.gmra.mrb[0].mxu0 %v589
  %v870 = vpop.f32.mrb[0].mxu0
  %v871 = vadd.f32 0.0, %v870
  %v872 = vpop.f32.mrb[0].mxu0
  %v873 = vpop.f32.mrb[0].mxu0
  %v874 = vadd.f32 0.0, %v873
  %v875 = vpop.f32.mrb[0].mxu0
  %876 = vmatprep.mubr.bf16.mxu0 0
  %877 = vmatmul.mubr.bf16.gmra.mrb[0].mxu0 %v590
  %v878 = vpop.f32.mrb[0].mxu0
  %v879 = vadd.f32 0.0, %v878
  %v880 = vpop.f32.mrb[0].mxu0
  %v881 = vpop.f32.mrb[0].mxu0
  %v882 = vadd.f32 0.0, %v881
  %v883 = vpop.f32.mrb[0].mxu0
  %884 = vmatprep.mubr.bf16.mxu0 0
  %885 = vmatmul.mubr.bf16.gmra.mrb[0].mxu0 %v591
  %v886 = vpop.f32.mrb[0].mxu0
  %v887 = vadd.f32 0.0, %v886
  %v888 = vpop.f32.mrb[0].mxu0
  %v889 = vpop.f32.mrb[0].mxu0
  %v890 = vadd.f32 0.0, %v889
  %v891 = vpop.f32.mrb[0].mxu0
  %892 = vmatprep.mubr.bf16.mxu0 0
  %893 = vmatmul.mubr.bf16.gmra.mrb[0].mxu0 %v592
  %v894 = vpop.f32.mrb[0].mxu0
  %v895 = vadd.f32 0.0, %v894
  %v896 = vpop.f32.mrb[0].mxu0
  %v897 = vpop.f32.mrb[0].mxu0
  %v898 = vadd.f32 0.0, %v897
  %v899 = vpop.f32.mrb[0].mxu0
  %900 = vmatprep.mubr.bf16.mxu0 0
  %901 = vmatmul.mubr.bf16.gmra.mrb[0].mxu0 %v593
  %v902 = vpop.f32.mrb[0].mxu0
  %v903 = vadd.f32 0.0, %v902
  %v904 = vpop.f32.mrb[0].mxu0
  %v905 = vpop.f32.mrb[0].mxu0
  %v906 = vadd.f32 0.0, %v905
  %v907 = vpop.f32.mrb[0].mxu0
  %908 = vmatprep.mubr.bf16.mxu0 0
  %909 = vmatmul.mubr.bf16.gmra.mrb[0].mxu0 %v594
  %v910 = vpop.f32.mrb[0].mxu0
  %v911 = vadd.f32 0.0, %v910
  %v912 = vpop.f32.mrb[0].mxu0
  %v913 = vpop.f32.mrb[0].mxu0
  %v914 = vadd.f32 0.0, %v913
  %v915 = vpop.f32.mrb[0].mxu0
  %916 = vmatprep.mubr.bf16.mxu0 0
  %917 = vmatmul.mubr.bf16.gmra.mrb[0].mxu0 %v595
  %v918 = vpop.f32.mrb[0].mxu0
  %v919 = vadd.f32 0.0, %v918
  %v920 = vpop.f32.mrb[0].mxu0
  %v921 = vpop.f32.mrb[0].mxu0
  %v922 = vadd.f32 0.0, %v921
  %v923 = vpop.f32.mrb[0].mxu0
  %924 = vmatprep.mubr.bf16.mxu0 0
  %925 = vmatmul.mubr.bf16.gmra.mrb[0].mxu0 %v596
  %v926 = vpop.f32.mrb[0].mxu0
  %v927 = vadd.f32 0.0, %v926
  %v928 = vpop.f32.mrb[0].mxu0
  %v929 = vpop.f32.mrb[0].mxu0
  %v930 = vadd.f32 0.0, %v929
  %v931 = vpop.f32.mrb[0].mxu0
  %932 = vmatprep.mubr.bf16.mxu0 0
  %933 = vmatmul.mubr.bf16.gmra.mrb[0].mxu0 %v597
  %v934 = vpop.f32.mrb[0].mxu0
  %v935 = vadd.f32 0.0, %v934
  %v936 = vpop.f32.mrb[0].mxu0
  %v937 = vpop.f32.mrb[0].mxu0
  %v938 = vadd.f32 0.0, %v937
  %v939 = vpop.f32.mrb[0].mxu0
  %940 = vmatprep.mubr.bf16.mxu0 0
  %941 = vmatmul.mubr.bf16.gmra.mrb[0].mxu0 %v598
  %v942 = vpop.f32.mrb[0].mxu0
  %v943 = vadd.f32 0.0, %v942
  %v944 = vpop.f32.mrb[0].mxu0
  %v945 = vpop.f32.mrb[0].mxu0
  %v946 = vadd.f32 0.0, %v945
  %v947 = vpop.f32.mrb[0].mxu0
  %948 = vmatprep.mubr.bf16.mxu0 0
  %949 = vmatmul.mubr.bf16.gmra.mrb[0].mxu0 %v599
  %v950 = vpop.f32.mrb[0].mxu0
  %v951 = vadd.f32 0.0, %v950
  %v952 = vpop.f32.mrb[0].mxu0
  %v953 = vpop.f32.mrb[0].mxu0
  %v954 = vadd.f32 0.0, %v953
  %v955 = vpop.f32.mrb[0].mxu0
  %956 = vmatprep.mubr.bf16.mxu0 0
  %957 = vmatmul.mubr.bf16.gmra.mrb[0].mxu0 %v600
  %v958 = vpop.f32.mrb[0].mxu0
  %v959 = vadd.f32 0.0, %v958
  %v960 = vpop.f32.mrb[0].mxu0
  %v961 = vpop.f32.mrb[0].mxu0
  %v962 = vadd.f32 0.0, %v961
  %v963 = vpop.f32.mrb[0].mxu0
  %964 = vmatprep.mubr.bf16.mxu0 0
  %965 = vmatmul.mubr.bf16.gmra.mrb[0].mxu0 %v601
  %v966 = vpop.f32.mrb[0].mxu0
  %v967 = vadd.f32 0.0, %v966
  %v968 = vpop.f32.mrb[0].mxu0
  %v969 = vpop.f32.mrb[0].mxu0
  %v970 = vadd.f32 0.0, %v969
  %v971 = vpop.f32.mrb[0].mxu0
  %972 = vmatprep.mubr.bf16.mxu0 0
  %973 = vmatmul.mubr.bf16.gmra.mrb[0].mxu0 %v602
  %v974 = vpop.f32.mrb[0].mxu0
  %v975 = vadd.f32 0.0, %v974
  %v976 = vpop.f32.mrb[0].mxu0
  %v977 = vpop.f32.mrb[0].mxu0
  %v978 = vadd.f32 0.0, %v977
  %v979 = vpop.f32.mrb[0].mxu0
  %980 = vmatprep.mubr.bf16.mxu0 0
  %981 = vmatmul.mubr.bf16.gmra.mrb[0].mxu0 %v603
  %v982 = vpop.f32.mrb[0].mxu0
  %v983 = vadd.f32 0.0, %v982
  %v984 = vpop.f32.mrb[0].mxu0
  %v985 = vpop.f32.mrb[0].mxu0
  %v986 = vadd.f32 0.0, %v985
  %v987 = vpop.f32.mrb[0].mxu0
  %988 = vmatprep.mubr.bf16.mxu0 0
  %989 = vmatmul.mubr.bf16.gmra.mrb[0].mxu0 %v604
  %v990 = vpop.f32.mrb[0].mxu0
  %v991 = vadd.f32 0.0, %v990
  %v992 = vpop.f32.mrb[0].mxu0
  %v993 = vpop.f32.mrb[0].mxu0
  %v994 = vadd.f32 0.0, %v993
  %v995 = vpop.f32.mrb[0].mxu0
  %996 = vmatprep.mubr.bf16.mxu0 0
  %997 = vmatmul.mubr.bf16.gmra.mrb[0].mxu0 %v605
  %v998 = vpop.f32.mrb[0].mxu0
  %v999 = vadd.f32 0.0, %v998
  %v1000 = vpop.f32.mrb[0].mxu0
  %v1001 = vpop.f32.mrb[0].mxu0
  %v1002 = vadd.f32 0.0, %v1001
  %v1003 = vpop.f32.mrb[0].mxu0
  %1004 = vmatprep.mubr.bf16.mxu0 0
  %1005 = vmatmul.mubr.bf16.gmra.mrb[0].mxu0 %v606
  %v1006 = vpop.f32.mrb[0].mxu0
  %v1007 = vadd.f32 0.0, %v1006
  %v1008 = vpop.f32.mrb[0].mxu0
  %v1009 = vpop.f32.mrb[0].mxu0
  %v1010 = vadd.f32 0.0, %v1009
  %v1011 = vpop.f32.mrb[0].mxu0
  %1012 = vmatprep.mubr.bf16.mxu0 0
  %1013 = vmatmul.mubr.bf16.gmra.mrb[0].mxu0 %v607
  %v1014 = vpop.f32.mrb[0].mxu0
  %v1015 = vadd.f32 0.0, %v1014
  %v1016 = vpop.f32.mrb[0].mxu0
  %v1017 = vpop.f32.mrb[0].mxu0
  %v1018 = vadd.f32 0.0, %v1017
  %v1019 = vpop.f32.mrb[0].mxu0
  %1020 = vmatprep.mubr.bf16.mxu0 0
  %1021 = vmatmul.mubr.bf16.gmra.mrb[0].mxu0 %v608
  %v1022 = vpop.f32.mrb[0].mxu0
  %v1023 = vadd.f32 0.0, %v1022
  %v1024 = vpop.f32.mrb[0].mxu0
  %v1025 = vpop.f32.mrb[0].mxu0
  %v1026 = vadd.f32 0.0, %v1025
  %v1027 = vpop.f32.mrb[0].mxu0
  %1028 = vmatprep.mubr.bf16.mxu0 0
  %1029 = vmatmul.mubr.bf16.gmra.mrb[0].mxu0 %v609
  %v1030 = vpop.f32.mrb[0].mxu0
  %v1031 = vadd.f32 0.0, %v1030
  %v1032 = vpop.f32.mrb[0].mxu0
  %v1033 = vpop.f32.mrb[0].mxu0
  %v1034 = vadd.f32 0.0, %v1033
  %v1035 = vpop.f32.mrb[0].mxu0
  %1036 = vmatprep.mubr.bf16.mxu0 0
  %1037 = vmatmul.mubr.bf16.gmra.mrb[0].mxu0 %v610
  %v1038 = vpop.f32.mrb[0].mxu0
  %v1039 = vadd.f32 0.0, %v1038
  %v1040 = vpop.f32.mrb[0].mxu0
  %v1041 = vpop.f32.mrb[0].mxu0
  %v1042 = vadd.f32 0.0, %v1041
  %v1043 = vpop.f32.mrb[0].mxu0
  %1044 = vmatprep.mubr.bf16.mxu0 0
  %1045 = vmatmul.mubr.bf16.gmra.mrb[0].mxu0 %v611
  %v1046 = vpop.f32.mrb[0].mxu0
  %v1047 = vadd.f32 0.0, %v1046
  %v1048 = vpop.f32.mrb[0].mxu0
  %v1049 = vpop.f32.mrb[0].mxu0
  %v1050 = vadd.f32 0.0, %v1049
  %v1051 = vpop.f32.mrb[0].mxu0
  %1052 = vmatprep.mubr.bf16.mxu0 0
  %1053 = vmatmul.mubr.bf16.gmra.mrb[0].mxu0 %v612
  %v1054 = vpop.f32.mrb[0].mxu0
  %v1055 = vadd.f32 0.0, %v1054
  %v1056 = vpop.f32.mrb[0].mxu0
  %v1057 = vpop.f32.mrb[0].mxu0
  %v1058 = vadd.f32 0.0, %v1057
  %v1059 = vpop.f32.mrb[0].mxu0
  %1060 = vmatprep.mubr.bf16.mxu0 0
  %1061 = vmatmul.mubr.bf16.gmra.mrb[0].mxu0 %v613
  %v1062 = vpop.f32.mrb[0].mxu0
  %v1063 = vadd.f32 0.0, %v1062
  %v1064 = vpop.f32.mrb[0].mxu0
  %v1065 = vpop.f32.mrb[0].mxu0
  %v1066 = vadd.f32 0.0, %v1065
  %v1067 = vpop.f32.mrb[0].mxu0
  %1068 = vmatprep.mubr.bf16.mxu0 0
  %1069 = vmatmul.mubr.bf16.gmra.mrb[0].mxu0 %v614
  %v1070 = vpop.f32.mrb[0].mxu0
  %v1071 = vadd.f32 0.0, %v1070
  %v1072 = vpop.f32.mrb[0].mxu0
  %v1073 = vpop.f32.mrb[0].mxu0
  %v1074 = vadd.f32 0.0, %v1073
  %v1075 = vpop.f32.mrb[0].mxu0
  %1076 = vmatprep.mubr.bf16.mxu0 0
  %1077 = vmatmul.mubr.bf16.gmra.mrb[0].mxu0 %v615
  %v1078 = vpop.f32.mrb[0].mxu0
  %v1079 = vadd.f32 0.0, %v1078
  %v1080 = vpop.f32.mrb[0].mxu0
  %v1081 = vpop.f32.mrb[0].mxu0
  %v1082 = vadd.f32 0.0, %v1081
  %v1083 = vpop.f32.mrb[0].mxu0
  %1084 = vmatprep.mubr.bf16.mxu0 0
  %1085 = vmatmul.mubr.bf16.gmra.mrb[0].mxu0 %v616
  %v1086 = vpop.f32.mrb[0].mxu0
  %v1087 = vadd.f32 0.0, %v1086
  %v1088 = vpop.f32.mrb[0].mxu0
  %v1089 = vpop.f32.mrb[0].mxu0
  %v1090 = vadd.f32 0.0, %v1089
  %v1091 = vpop.f32.mrb[0].mxu0
  %1092 = vmatprep.mubr.bf16.mxu0 0
  %1093 = vmatmul.mubr.bf16.gmra.mrb[0].mxu0 %v617
  %v1094 = vpop.f32.mrb[0].mxu0
  %v1095 = vadd.f32 0.0, %v1094
  %v1096 = vpop.f32.mrb[0].mxu0
  %v1097 = vpop.f32.mrb[0].mxu0
  %v1098 = vadd.f32 0.0, %v1097
  %v1099 = vpop.f32.mrb[0].mxu0
  %1100 = vmatprep.mubr.bf16.mxu0 0
  %1101 = vmatmul.mubr.bf16.gmra.mrb[0].mxu0 %v618
  %v1102 = vpop.f32.mrb[0].mxu0
  %v1103 = vadd.f32 0.0, %v1102
  %v1104 = vpop.f32.mrb[0].mxu0
  %v1105 = vpop.f32.mrb[0].mxu0
  %v1106 = vadd.f32 0.0, %v1105
  %v1107 = vpop.f32.mrb[0].mxu0
  %1108 = vmatprep.mubr.bf16.mxu0 0
  %1109 = vmatmul.mubr.bf16.gmra.mrb[0].mxu0 %v619
  %v1110 = vpop.f32.mrb[0].mxu0
  %v1111 = vadd.f32 0.0, %v1110
  %v1112 = vpop.f32.mrb[0].mxu0
  %v1113 = vpop.f32.mrb[0].mxu0
  %v1114 = vadd.f32 0.0, %v1113
  %v1115 = vpop.f32.mrb[0].mxu0
  %1116 = vmatprep.mubr.bf16.mxu0 0
  %1117 = vmatmul.mubr.bf16.gmra.mrb[0].mxu0 %v620
  %v1118 = vpop.f32.mrb[0].mxu0
  %v1119 = vadd.f32 0.0, %v1118
  %v1120 = vpop.f32.mrb[0].mxu0
  %v1121 = vpop.f32.mrb[0].mxu0
  %v1122 = vadd.f32 0.0, %v1121
  %v1123 = vpop.f32.mrb[0].mxu0
  %1124 = vmatprep.mubr.bf16.mxu0 0
  %1125 = vmatmul.mubr.bf16.gmra.mrb[0].mxu0 %v621
  %v1126 = vpop.f32.mrb[0].mxu0
  %v1127 = vadd.f32 0.0, %v1126
  %v1128 = vpop.f32.mrb[0].mxu0
  %v1129 = vpop.f32.mrb[0].mxu0
  %v1130 = vadd.f32 0.0, %v1129
  %v1131 = vpop.f32.mrb[0].mxu0
  %1132 = vmatprep.mubr.bf16.mxu0 0
  %1133 = vmatmul.mubr.bf16.gmra.mrb[0].mxu0 %v622
  %v1134 = vpop.f32.mrb[0].mxu0
  %v1135 = vadd.f32 0.0, %v1134
  %v1136 = vpop.f32.mrb[0].mxu0
  %v1137 = vpop.f32.mrb[0].mxu0
  %v1138 = vadd.f32 0.0, %v1137
  %v1139 = vpop.f32.mrb[0].mxu0
  %1140 = vmatprep.mubr.bf16.mxu0 0
  %1141 = vmatmul.mubr.bf16.gmra.mrb[0].mxu0 %v623
  %v1142 = vpop.f32.mrb[0].mxu0
  %v1143 = vadd.f32 0.0, %v1142
  %v1144 = vpop.f32.mrb[0].mxu0
  %v1145 = vpop.f32.mrb[0].mxu0
  %v1146 = vadd.f32 0.0, %v1145
  %v1147 = vpop.f32.mrb[0].mxu0
  %1148 = vmatprep.mubr.bf16.mxu0 0
  %1149 = vmatmul.mubr.bf16.gmra.mrb[0].mxu0 %v624
  %v1150 = vpop.f32.mrb[0].mxu0
  %v1151 = vadd.f32 0.0, %v1150
  %v1152 = vpop.f32.mrb[0].mxu0
  %v1153 = vpop.f32.mrb[0].mxu0
  %v1154 = vadd.f32 0.0, %v1153
  %v1155 = vpop.f32.mrb[0].mxu0
  %1156 = vmatprep.mubr.bf16.mxu0 0
  %1157 = vmatmul.mubr.bf16.gmra.mrb[0].mxu0 %v625
  %v1158 = vpop.f32.mrb[0].mxu0
  %v1159 = vadd.f32 0.0, %v1158
  %v1160 = vpop.f32.mrb[0].mxu0
  %v1161 = vpop.f32.mrb[0].mxu0
  %v1162 = vadd.f32 0.0, %v1161
  %v1163 = vpop.f32.mrb[0].mxu0
  %1164 = vmatprep.mubr.bf16.mxu0 0
  %1165 = vmatmul.mubr.bf16.gmra.mrb[0].mxu0 %v626
  %v1166 = vpop.f32.mrb[0].mxu0
  %v1167 = vadd.f32 0.0, %v1166
  %v1168 = vpop.f32.mrb[0].mxu0
  %v1169 = vpop.f32.mrb[0].mxu0
  %v1170 = vadd.f32 0.0, %v1169
  %v1171 = vpop.f32.mrb[0].mxu0
  %1172 = vmatprep.mubr.bf16.mxu0 0
  %1173 = vmatmul.mubr.bf16.gmra.mrb[0].mxu0 %v627
  %v1174 = vpop.f32.mrb[0].mxu0
  %v1175 = vadd.f32 0.0, %v1174
  %v1176 = vpop.f32.mrb[0].mxu0
  %v1177 = vpop.f32.mrb[0].mxu0
  %v1178 = vadd.f32 0.0, %v1177
  %v1179 = vpop.f32.mrb[0].mxu0
  %1180 = vmatprep.mubr.bf16.mxu0 0
  %1181 = vmatmul.mubr.bf16.gmra.mrb[0].mxu0 %v628
  %v1182 = vpop.f32.mrb[0].mxu0
  %v1183 = vadd.f32 0.0, %v1182
  %v1184 = vpop.f32.mrb[0].mxu0
  %v1185 = vpop.f32.mrb[0].mxu0
  %v1186 = vadd.f32 0.0, %v1185
  %v1187 = vpop.f32.mrb[0].mxu0
  %1188 = vmatprep.mubr.bf16.mxu0 0
  %1189 = vmatmul.mubr.bf16.gmra.mrb[0].mxu0 %v629
  %v1190 = vpop.f32.mrb[0].mxu0
  %v1191 = vadd.f32 0.0, %v1190
  %v1192 = vpop.f32.mrb[0].mxu0
  %v1193 = vpop.f32.mrb[0].mxu0
  %v1194 = vadd.f32 0.0, %v1193
  %v1195 = vpop.f32.mrb[0].mxu0
  %1196 = vdwg.mxu0
  %v1197 = vadd.f32 %v128, %v767
  %v1198 = vadd.f32 %v129, %v770
  %v1199 = vadd.f32 %v130, %v775
  %v1200 = vadd.f32 %v131, %v778
  %v1201 = vadd.f32 %v132, %v783
  %v1202 = vadd.f32 %v133, %v786
  %v1203 = vadd.f32 %v134, %v791
  %v1204 = vadd.f32 %v135, %v794
  %v1205 = vadd.f32 %v136, %v799
  %v1206 = vadd.f32 %v137, %v802
  %v1207 = vadd.f32 %v138, %v807
  %v1208 = vadd.f32 %v139, %v810
  %v1209 = vadd.f32 %v140, %v815
  %v1210 = vadd.f32 %v141, %v818
  %v1211 = vadd.f32 %v142, %v823
  %v1212 = vadd.f32 %v143, %v826
  %v1213 = vadd.f32 %v144, %v831
  %v1214 = vadd.f32 %v145, %v834
  %v1215 = vadd.f32 %v146, %v839
  %v1216 = vadd.f32 %v147, %v842
  %v1217 = vadd.f32 %v148, %v847
  %v1218 = vadd.f32 %v149, %v850
  %v1219 = vadd.f32 %v150, %v855
  %v1220 = vadd.f32 %v151, %v858
  %v1221 = vadd.f32 %v152, %v863
  %v1222 = vadd.f32 %v153, %v866
  %v1223 = vadd.f32 %v154, %v871
  %v1224 = vadd.f32 %v155, %v874
  %v1225 = vadd.f32 %v156, %v879
  %v1226 = vadd.f32 %v157, %v882
  %v1227 = vadd.f32 %v158, %v887
  %v1228 = vadd.f32 %v159, %v890
  %v1229 = vadd.f32 %v160, %v895
  %v1230 = vadd.f32 %v161, %v898
  %v1231 = vadd.f32 %v162, %v903
  %v1232 = vadd.f32 %v163, %v906
  %v1233 = vadd.f32 %v164, %v911
  %v1234 = vadd.f32 %v165, %v914
  %v1235 = vadd.f32 %v166, %v919
  %v1236 = vadd.f32 %v167, %v922
  %v1237 = vadd.f32 %v168, %v927
  %v1238 = vadd.f32 %v169, %v930
  %v1239 = vadd.f32 %v170, %v935
  %v1240 = vadd.f32 %v171, %v938
  %v1241 = vadd.f32 %v172, %v943
  %v1242 = vadd.f32 %v173, %v946
  %v1243 = vadd.f32 %v174, %v951
  %v1244 = vadd.f32 %v175, %v954
  %v1245 = vadd.f32 %v176, %v959
  %v1246 = vadd.f32 %v177, %v962
  %v1247 = vadd.f32 %v178, %v967
  %v1248 = vadd.f32 %v179, %v970
  %v1249 = vadd.f32 %v180, %v975
  %v1250 = vadd.f32 %v181, %v978
  %v1251 = vadd.f32 %v182, %v983
  %v1252 = vadd.f32 %v183, %v986
  %v1253 = vadd.f32 %v184, %v991
  %v1254 = vadd.f32 %v185, %v994
  %v1255 = vadd.f32 %v186, %v999
  %v1256 = vadd.f32 %v187, %v1002
  %v1257 = vadd.f32 %v188, %v1007
  %v1258 = vadd.f32 %v189, %v1010
  %v1259 = vadd.f32 %v190, %v1015
  %v1260 = vadd.f32 %v191, %v1018
  %v1261 = vadd.f32 %v192, %v1023
  %v1262 = vadd.f32 %v193, %v1026
  %v1263 = vadd.f32 %v194, %v1031
  %v1264 = vadd.f32 %v195, %v1034
  %v1265 = vadd.f32 %v196, %v1039
  %v1266 = vadd.f32 %v197, %v1042
  %v1267 = vadd.f32 %v198, %v1047
  %v1268 = vadd.f32 %v199, %v1050
  %v1269 = vadd.f32 %v200, %v1055
  %v1270 = vadd.f32 %v201, %v1058
  %v1271 = vadd.f32 %v202, %v1063
  %v1272 = vadd.f32 %v203, %v1066
  %v1273 = vadd.f32 %v204, %v1071
  %v1274 = vadd.f32 %v205, %v1074
  %v1275 = vadd.f32 %v206, %v1079
  %v1276 = vadd.f32 %v207, %v1082
  %v1277 = vadd.f32 %v208, %v1087
  %v1278 = vadd.f32 %v209, %v1090
  %v1279 = vadd.f32 %v210, %v1095
  %v1280 = vadd.f32 %v211, %v1098
  %v1281 = vadd.f32 %v212, %v1103
  %v1282 = vadd.f32 %v213, %v1106
  %v1283 = vadd.f32 %v214, %v1111
  %v1284 = vadd.f32 %v215, %v1114
  %v1285 = vadd.f32 %v216, %v1119
  %v1286 = vadd.f32 %v217, %v1122
  %v1287 = vadd.f32 %v218, %v1127
  %v1288 = vadd.f32 %v219, %v1130
  %v1289 = vadd.f32 %v220, %v1135
  %v1290 = vadd.f32 %v221, %v1138
  %v1291 = vadd.f32 %v222, %v1143
  %v1292 = vadd.f32 %v223, %v1146
  %v1293 = vadd.f32 %v224, %v1151
  %v1294 = vadd.f32 %v225, %v1154
  %v1295 = vadd.f32 %v226, %v1159
  %v1296 = vadd.f32 %v227, %v1162
  %v1297 = vadd.f32 %v228, %v1167
  %v1298 = vadd.f32 %v229, %v1170
  %v1299 = vadd.f32 %v230, %v1175
  %v1300 = vadd.f32 %v231, %v1178
  %v1301 = vadd.f32 %v232, %v1183
  %v1302 = vadd.f32 %v233, %v1186
  %v1303 = vadd.f32 %v234, %v1191
  %v1304 = vadd.f32 %v235, %v1194
  %vm1305 = vcmask 130048
  %1306 = vst.msk [vmem:[#allocation2] sm:$0xff] %vm1305, %v1197
  %1307 = vst.msk [vmem:[#allocation2 + $0x8] sm:$0xff] %vm1305, %v1198
  %1308 = vst.msk [vmem:[#allocation2 + $0x10] sm:$0xff] %vm1305, %v1199
  %1309 = vst.msk [vmem:[#allocation2 + $0x18] sm:$0xff] %vm1305, %v1200
  %1310 = vst.msk [vmem:[#allocation2 + $0x20] sm:$0xff] %vm1305, %v1201
  %1311 = vst.msk [vmem:[#allocation2 + $0x28] sm:$0xff] %vm1305, %v1202
  %1312 = vst.msk [vmem:[#allocation2 + $0x30] sm:$0xff] %vm1305, %v1203
  %1313 = vst.msk [vmem:[#allocation2 + $0x38] sm:$0xff] %vm1305, %v1204
  %1314 = vst.msk [vmem:[#allocation2 + $0x40] sm:$0xff] %vm1305, %v1205
  %1315 = vst.msk [vmem:[#allocation2 + $0x48] sm:$0xff] %vm1305, %v1206
  %1316 = vst.msk [vmem:[#allocation2 + $0x50] sm:$0xff] %vm1305, %v1207
  %1317 = vst.msk [vmem:[#allocation2 + $0x58] sm:$0xff] %vm1305, %v1208
  %1318 = vst.msk [vmem:[#allocation2 + $0x60] sm:$0xff] %vm1305, %v1209
  %1319 = vst.msk [vmem:[#allocation2 + $0x68] sm:$0xff] %vm1305, %v1210
  %1320 = vst.msk [vmem:[#allocation2 + $0x70] sm:$0xff] %vm1305, %v1211
  %1321 = vst.msk [vmem:[#allocation2 + $0x78] sm:$0xff] %vm1305, %v1212
  %1322 = vst.msk [vmem:[#allocation2 + $0x80] sm:$0xff] %vm1305, %v1213
  %1323 = vst.msk [vmem:[#allocation2 + $0x88] sm:$0xff] %vm1305, %v1214
  %1324 = vst.msk [vmem:[#allocation2 + $0x90] sm:$0xff] %vm1305, %v1215
  %1325 = vst.msk [vmem:[#allocation2 + $0x98] sm:$0xff] %vm1305, %v1216
  %1326 = vst.msk [vmem:[#allocation2 + $0xa0] sm:$0xff] %vm1305, %v1217
  %1327 = vst.msk [vmem:[#allocation2 + $0xa8] sm:$0xff] %vm1305, %v1218
  %1328 = vst.msk [vmem:[#allocation2 + $0xb0] sm:$0xff] %vm1305, %v1219
  %1329 = vst.msk [vmem:[#allocation2 + $0xb8] sm:$0xff] %vm1305, %v1220
  %1330 = vst.msk [vmem:[#allocation2 + $0xc0] sm:$0xff] %vm1305, %v1221
  %1331 = vst.msk [vmem:[#allocation2 + $0xc8] sm:$0xff] %vm1305, %v1222
  %1332 = vst.msk [vmem:[#allocation2 + $0xd0] sm:$0xff] %vm1305, %v1223
  %1333 = vst.msk [vmem:[#allocation2 + $0xd8] sm:$0xff] %vm1305, %v1224
  %1334 = vst.msk [vmem:[#allocation2 + $0xe0] sm:$0xff] %vm1305, %v1225
  %1335 = vst.msk [vmem:[#allocation2 + $0xe8] sm:$0xff] %vm1305, %v1226
  %1336 = vst.msk [vmem:[#allocation2 + $0xf0] sm:$0xff] %vm1305, %v1227
  %1337 = vst.msk [vmem:[#allocation2 + $0xf8] sm:$0xff] %vm1305, %v1228
  %1338 = vst.msk [vmem:[#allocation2 + $0x100] sm:$0xff] %vm1305, %v1229
  %1339 = vst.msk [vmem:[#allocation2 + $0x108] sm:$0xff] %vm1305, %v1230
  %1340 = vst.msk [vmem:[#allocation2 + $0x110] sm:$0xff] %vm1305, %v1231
  %1341 = vst.msk [vmem:[#allocation2 + $0x118] sm:$0xff] %vm1305, %v1232
  %1342 = vst.msk [vmem:[#allocation2 + $0x120] sm:$0xff] %vm1305, %v1233
  %1343 = vst.msk [vmem:[#allocation2 + $0x128] sm:$0xff] %vm1305, %v1234
  %1344 = vst.msk [vmem:[#allocation2 + $0x130] sm:$0xff] %vm1305, %v1235
  %1345 = vst.msk [vmem:[#allocation2 + $0x138] sm:$0xff] %vm1305, %v1236
  %1346 = vst.msk [vmem:[#allocation2 + $0x140] sm:$0xff] %vm1305, %v1237
  %1347 = vst.msk [vmem:[#allocation2 + $0x148] sm:$0xff] %vm1305, %v1238
  %1348 = vst.msk [vmem:[#allocation2 + $0x150] sm:$0xff] %vm1305, %v1239
  %1349 = vst.msk [vmem:[#allocation2 + $0x158] sm:$0xff] %vm1305, %v1240
  %1350 = vst.msk [vmem:[#allocation2 + $0x160] sm:$0xff] %vm1305, %v1241
  %1351 = vst.msk [vmem:[#allocation2 + $0x168] sm:$0xff] %vm1305, %v1242
  %1352 = vst.msk [vmem:[#allocation2 + $0x170] sm:$0xff] %vm1305, %v1243
  %1353 = vst.msk [vmem:[#allocation2 + $0x178] sm:$0xff] %vm1305, %v1244
  %1354 = vst.msk [vmem:[#allocation2 + $0x180] sm:$0xff] %vm1305, %v1245
  %1355 = vst.msk [vmem:[#allocation2 + $0x188] sm:$0xff] %vm1305, %v1246
  %1356 = vst.msk [vmem:[#allocation2 + $0x190] sm:$0xff] %vm1305, %v1247
  %1357 = vst.msk [vmem:[#allocation2 + $0x198] sm:$0xff] %vm1305, %v1248
  %1358 = vst.msk [vmem:[#allocation2 + $0x1a0] sm:$0xff] %vm1305, %v1249
  %1359 = vst.msk [vmem:[#allocation2 + $0x1a8] sm:$0xff] %vm1305, %v1250
  %1360 = vst.msk [vmem:[#allocation2 + $0x1b0] sm:$0xff] %vm1305, %v1251
  %1361 = vst.msk [vmem:[#allocation2 + $0x1b8] sm:$0xff] %vm1305, %v1252
  %1362 = vst.msk [vmem:[#allocation2 + $0x1c0] sm:$0xff] %vm1305, %v1253
  %1363 = vst.msk [vmem:[#allocation2 + $0x1c8] sm:$0xff] %vm1305, %v1254
  %1364 = vst.msk [vmem:[#allocation2 + $0x1d0] sm:$0xff] %vm1305, %v1255
  %1365 = vst.msk [vmem:[#allocation2 + $0x1d8] sm:$0xff] %vm1305, %v1256
  %1366 = vst.msk [vmem:[#allocation2 + $0x1e0] sm:$0xff] %vm1305, %v1257
  %1367 = vst.msk [vmem:[#allocation2 + $0x1e8] sm:$0xff] %vm1305, %v1258
  %1368 = vst.msk [vmem:[#allocation2 + $0x1f0] sm:$0xff] %vm1305, %v1259
  %1369 = vst.msk [vmem:[#allocation2 + $0x1f8] sm:$0xff] %vm1305, %v1260
  %1370 = vst.msk [vmem:[#allocation2 + $0x200] sm:$0xff] %vm1305, %v1261
  %1371 = vst.msk [vmem:[#allocation2 + $0x208] sm:$0xff] %vm1305, %v1262
  %1372 = vst.msk [vmem:[#allocation2 + $0x210] sm:$0xff] %vm1305, %v1263
  %1373 = vst.msk [vmem:[#allocation2 + $0x218] sm:$0xff] %vm1305, %v1264
  %1374 = vst.msk [vmem:[#allocation2 + $0x220] sm:$0xff] %vm1305, %v1265
  %1375 = vst.msk [vmem:[#allocation2 + $0x228] sm:$0xff] %vm1305, %v1266
  %1376 = vst.msk [vmem:[#allocation2 + $0x230] sm:$0xff] %vm1305, %v1267
  %1377 = vst.msk [vmem:[#allocation2 + $0x238] sm:$0xff] %vm1305, %v1268
  %1378 = vst.msk [vmem:[#allocation2 + $0x240] sm:$0xff] %vm1305, %v1269
  %1379 = vst.msk [vmem:[#allocation2 + $0x248] sm:$0xff] %vm1305, %v1270
  %1380 = vst.msk [vmem:[#allocation2 + $0x250] sm:$0xff] %vm1305, %v1271
  %1381 = vst.msk [vmem:[#allocation2 + $0x258] sm:$0xff] %vm1305, %v1272
  %1382 = vst.msk [vmem:[#allocation2 + $0x260] sm:$0xff] %vm1305, %v1273
  %1383 = vst.msk [vmem:[#allocation2 + $0x268] sm:$0xff] %vm1305, %v1274
  %1384 = vst.msk [vmem:[#allocation2 + $0x270] sm:$0xff] %vm1305, %v1275
  %1385 = vst.msk [vmem:[#allocation2 + $0x278] sm:$0xff] %vm1305, %v1276
  %1386 = vst.msk [vmem:[#allocation2 + $0x280] sm:$0xff] %vm1305, %v1277
  %1387 = vst.msk [vmem:[#allocation2 + $0x288] sm:$0xff] %vm1305, %v1278
  %1388 = vst.msk [vmem:[#allocation2 + $0x290] sm:$0xff] %vm1305, %v1279
  %1389 = vst.msk [vmem:[#allocation2 + $0x298] sm:$0xff] %vm1305, %v1280
  %1390 = vst.msk [vmem:[#allocation2 + $0x2a0] sm:$0xff] %vm1305, %v1281
  %1391 = vst.msk [vmem:[#allocation2 + $0x2a8] sm:$0xff] %vm1305, %v1282
  %1392 = vst.msk [vmem:[#allocation2 + $0x2b0] sm:$0xff] %vm1305, %v1283
  %1393 = vst.msk [vmem:[#allocation2 + $0x2b8] sm:$0xff] %vm1305, %v1284
  %1394 = vst.msk [vmem:[#allocation2 + $0x2c0] sm:$0xff] %vm1305, %v1285
  %1395 = vst.msk [vmem:[#allocation2 + $0x2c8] sm:$0xff] %vm1305, %v1286
  %1396 = vst.msk [vmem:[#allocation2 + $0x2d0] sm:$0xff] %vm1305, %v1287
  %1397 = vst.msk [vmem:[#allocation2 + $0x2d8] sm:$0xff] %vm1305, %v1288
  %1398 = vst.msk [vmem:[#allocation2 + $0x2e0] sm:$0xff] %vm1305, %v1289
  %1399 = vst.msk [vmem:[#allocation2 + $0x2e8] sm:$0xff] %vm1305, %v1290
  %1400 = vst.msk [vmem:[#allocation2 + $0x2f0] sm:$0xff] %vm1305, %v1291
  %1401 = vst.msk [vmem:[#allocation2 + $0x2f8] sm:$0xff] %vm1305, %v1292
  %1402 = vst.msk [vmem:[#allocation2 + $0x300] sm:$0xff] %vm1305, %v1293
  %1403 = vst.msk [vmem:[#allocation2 + $0x308] sm:$0xff] %vm1305, %v1294
  %1404 = vst.msk [vmem:[#allocation2 + $0x310] sm:$0xff] %vm1305, %v1295
  %1405 = vst.msk [vmem:[#allocation2 + $0x318] sm:$0xff] %vm1305, %v1296
  %1406 = vst.msk [vmem:[#allocation2 + $0x320] sm:$0xff] %vm1305, %v1297
  %1407 = vst.msk [vmem:[#allocation2 + $0x328] sm:$0xff] %vm1305, %v1298
  %1408 = vst.msk [vmem:[#allocation2 + $0x330] sm:$0xff] %vm1305, %v1299
  %1409 = vst.msk [vmem:[#allocation2 + $0x338] sm:$0xff] %vm1305, %v1300
  %1410 = vst.msk [vmem:[#allocation2 + $0x340] sm:$0xff] %vm1305, %v1301
  %1411 = vst.msk [vmem:[#allocation2 + $0x348] sm:$0xff] %vm1305, %v1302
  %1412 = vst.msk [vmem:[#allocation2 + $0x350] sm:$0xff] %vm1305, %v1303
  %1413 = vst.msk [vmem:[#allocation2 + $0x358] sm:$0xff] %vm1305, %v1304
  // Predicated region
  $region18: #{conv_feature_forward.6} parent=0 // pred_check
    %p1414 = pneg %p15
  $region19: #{conv_feature_forward.6} parent=0 // pred_check_branch
    %1416 = sbr.rel (%p1414) target = $region21
  $region20: #{conv_feature_forward.6} parent=0 // pred_region
    %v1417 = vld [vmem:[#allocation2] sm:$0xff]
    %v1418 = vld [vmem:[#allocation2 + $0x8] sm:$0xff]
    %v1419 = vld [vmem:[#allocation2 + $0x10] sm:$0xff]
    %v1420 = vld [vmem:[#allocation2 + $0x18] sm:$0xff]
    %v1421 = vld [vmem:[#allocation2 + $0x20] sm:$0xff]
    %v1422 = vld [vmem:[#allocation2 + $0x28] sm:$0xff]
    %v1423 = vld [vmem:[#allocation2 + $0x30] sm:$0xff]
    %v1424 = vld [vmem:[#allocation2 + $0x38] sm:$0xff]
    %v1425 = vld [vmem:[#allocation2 + $0x40] sm:$0xff]
    %v1426 = vld [vmem:[#allocation2 + $0x48] sm:$0xff]
    %v1427 = vld [vmem:[#allocation2 + $0x50] sm:$0xff]
    %v1428 = vld [vmem:[#allocation2 + $0x58] sm:$0xff]
    %v1429 = vld [vmem:[#allocation2 + $0x60] sm:$0xff]
    %v1430 = vld [vmem:[#allocation2 + $0x68] sm:$0xff]
    %v1431 = vld [vmem:[#allocation2 + $0x70] sm:$0xff]
    %v1432 = vld [vmem:[#allocation2 + $0x78] sm:$0xff]
    %v1433 = vld [vmem:[#allocation2 + $0x80] sm:$0xff]
    %v1434 = vld [vmem:[#allocation2 + $0x88] sm:$0xff]
    %v1435 = vld [vmem:[#allocation2 + $0x90] sm:$0xff]
    %v1436 = vld [vmem:[#allocation2 + $0x98] sm:$0xff]
    %v1437 = vld [vmem:[#allocation2 + $0xa0] sm:$0xff]
    %v1438 = vld [vmem:[#allocation2 + $0xa8] sm:$0xff]
    %v1439 = vld [vmem:[#allocation2 + $0xb0] sm:$0xff]
    %v1440 = vld [vmem:[#allocation2 + $0xb8] sm:$0xff]
    %v1441 = vld [vmem:[#allocation2 + $0xc0] sm:$0xff]
    %v1442 = vld [vmem:[#allocation2 + $0xc8] sm:$0xff]
    %v1443 = vld [vmem:[#allocation2 + $0xd0] sm:$0xff]
    %v1444 = vld [vmem:[#allocation2 + $0xd8] sm:$0xff]
    %v1445 = vld [vmem:[#allocation2 + $0xe0] sm:$0xff]
    %v1446 = vld [vmem:[#allocation2 + $0xe8] sm:$0xff]
    %v1447 = vld [vmem:[#allocation2 + $0xf0] sm:$0xff]
    %v1448 = vld [vmem:[#allocation2 + $0xf8] sm:$0xff]
    %v1449 = vld [vmem:[#allocation2 + $0x100] sm:$0xff]
    %v1450 = vld [vmem:[#allocation2 + $0x108] sm:$0xff]
    %v1451 = vld [vmem:[#allocation2 + $0x110] sm:$0xff]
    %v1452 = vld [vmem:[#allocation2 + $0x118] sm:$0xff]
    %v1453 = vld [vmem:[#allocation2 + $0x120] sm:$0xff]
    %v1454 = vld [vmem:[#allocation2 + $0x128] sm:$0xff]
    %v1455 = vld [vmem:[#allocation2 + $0x130] sm:$0xff]
    %v1456 = vld [vmem:[#allocation2 + $0x138] sm:$0xff]
    %v1457 = vld [vmem:[#allocation2 + $0x140] sm:$0xff]
    %v1458 = vld [vmem:[#allocation2 + $0x148] sm:$0xff]
    %v1459 = vld [vmem:[#allocation2 + $0x150] sm:$0xff]
    %v1460 = vld [vmem:[#allocation2 + $0x158] sm:$0xff]
    %v1461 = vld [vmem:[#allocation2 + $0x160] sm:$0xff]
    %v1462 = vld [vmem:[#allocation2 + $0x168] sm:$0xff]
    %v1463 = vld [vmem:[#allocation2 + $0x170] sm:$0xff]
    %v1464 = vld [vmem:[#allocation2 + $0x178] sm:$0xff]
    %v1465 = vld [vmem:[#allocation2 + $0x180] sm:$0xff]
    %v1466 = vld [vmem:[#allocation2 + $0x188] sm:$0xff]
    %v1467 = vld [vmem:[#allocation2 + $0x190] sm:$0xff]
    %v1468 = vld [vmem:[#allocation2 + $0x198] sm:$0xff]
    %v1469 = vld [vmem:[#allocation2 + $0x1a0] sm:$0xff]
    %v1470 = vld [vmem:[#allocation2 + $0x1a8] sm:$0xff]
    %v1471 = vld [vmem:[#allocation2 + $0x1b0] sm:$0xff]
    %v1472 = vld [vmem:[#allocation2 + $0x1b8] sm:$0xff]
    %v1473 = vld [vmem:[#allocation2 + $0x1c0] sm:$0xff]
    %v1474 = vld [vmem:[#allocation2 + $0x1c8] sm:$0xff]
    %v1475 = vld [vmem:[#allocation2 + $0x1d0] sm:$0xff]
    %v1476 = vld [vmem:[#allocation2 + $0x1d8] sm:$0xff]
    %v1477 = vld [vmem:[#allocation2 + $0x1e0] sm:$0xff]
    %v1478 = vld [vmem:[#allocation2 + $0x1e8] sm:$0xff]
    %v1479 = vld [vmem:[#allocation2 + $0x1f0] sm:$0xff]
    %v1480 = vld [vmem:[#allocation2 + $0x1f8] sm:$0xff]
    %v1481 = vld [vmem:[#allocation2 + $0x200] sm:$0xff]
    %v1482 = vld [vmem:[#allocation2 + $0x208] sm:$0xff]
    %v1483 = vld [vmem:[#allocation2 + $0x210] sm:$0xff]
    %v1484 = vld [vmem:[#allocation2 + $0x218] sm:$0xff]
    %v1485 = vld [vmem:[#allocation2 + $0x220] sm:$0xff]
    %v1486 = vld [vmem:[#allocation2 + $0x228] sm:$0xff]
    %v1487 = vld [vmem:[#allocation2 + $0x230] sm:$0xff]
    %v1488 = vld [vmem:[#allocation2 + $0x238] sm:$0xff]
    %v1489 = vld [vmem:[#allocation2 + $0x240] sm:$0xff]
    %v1490 = vld [vmem:[#allocation2 + $0x248] sm:$0xff]
    %v1491 = vld [vmem:[#allocation2 + $0x250] sm:$0xff]
    %v1492 = vld [vmem:[#allocation2 + $0x258] sm:$0xff]
    %v1493 = vld [vmem:[#allocation2 + $0x260] sm:$0xff]
    %v1494 = vld [vmem:[#allocation2 + $0x268] sm:$0xff]
    %v1495 = vld [vmem:[#allocation2 + $0x270] sm:$0xff]
    %v1496 = vld [vmem:[#allocation2 + $0x278] sm:$0xff]
    %v1497 = vld [vmem:[#allocation2 + $0x280] sm:$0xff]
    %v1498 = vld [vmem:[#allocation2 + $0x288] sm:$0xff]
    %v1499 = vld [vmem:[#allocation2 + $0x290] sm:$0xff]
    %v1500 = vld [vmem:[#allocation2 + $0x298] sm:$0xff]
    %v1501 = vld [vmem:[#allocation2 + $0x2a0] sm:$0xff]
    %v1502 = vld [vmem:[#allocation2 + $0x2a8] sm:$0xff]
    %v1503 = vld [vmem:[#allocation2 + $0x2b0] sm:$0xff]
    %v1504 = vld [vmem:[#allocation2 + $0x2b8] sm:$0xff]
    %v1505 = vld [vmem:[#allocation2 + $0x2c0] sm:$0xff]
    %v1506 = vld [vmem:[#allocation2 + $0x2c8] sm:$0xff]
    %v1507 = vld [vmem:[#allocation2 + $0x2d0] sm:$0xff]
    %v1508 = vld [vmem:[#allocation2 + $0x2d8] sm:$0xff]
    %v1509 = vld [vmem:[#allocation2 + $0x2e0] sm:$0xff]
    %v1510 = vld [vmem:[#allocation2 + $0x2e8] sm:$0xff]
    %v1511 = vld [vmem:[#allocation2 + $0x2f0] sm:$0xff]
    %v1512 = vld [vmem:[#allocation2 + $0x2f8] sm:$0xff]
    %v1513 = vld [vmem:[#allocation2 + $0x300] sm:$0xff]
    %v1514 = vld [vmem:[#allocation2 + $0x308] sm:$0xff]
    %v1515 = vld [vmem:[#allocation2 + $0x310] sm:$0xff]
    %v1516 = vld [vmem:[#allocation2 + $0x318] sm:$0xff]
    %v1517 = vld [vmem:[#allocation2 + $0x320] sm:$0xff]
    %v1518 = vld [vmem:[#allocation2 + $0x328] sm:$0xff]
    %v1519 = vld [vmem:[#allocation2 + $0x330] sm:$0xff]
    %v1520 = vld [vmem:[#allocation2 + $0x338] sm:$0xff]
    %v1521 = vld [vmem:[#allocation2 + $0x340] sm:$0xff]
    %v1522 = vld [vmem:[#allocation2 + $0x348] sm:$0xff]
    %v1523 = vld [vmem:[#allocation2 + $0x350] sm:$0xff]
    %v1524 = vld [vmem:[#allocation2 + $0x358] sm:$0xff]
    %v1525 = vld [vmem:[%s2] sm:$0x1]
    %v1527 = vlaneseq
    %v1528 = vshrl.u32 %v1527, 7
    %v1529 = vsub.s32 0, %v1528
    %v1530 = vrot.slane %v1525, %v1529
    %v1532 = vadd.f32 %v1417, %v1530
    %v1533 = vadd.f32 %v1418, %v1530
    %v1534 = vadd.f32 %v1419, %v1530
    %v1535 = vadd.f32 %v1420, %v1530
    %v1536 = vadd.f32 %v1421, %v1530
    %v1537 = vadd.f32 %v1422, %v1530
    %v1538 = vadd.f32 %v1423, %v1530
    %v1539 = vadd.f32 %v1424, %v1530
    %v1540 = vadd.f32 %v1425, %v1530
    %v1541 = vadd.f32 %v1426, %v1530
    %v1542 = vadd.f32 %v1427, %v1530
    %v1543 = vadd.f32 %v1428, %v1530
    %v1544 = vadd.f32 %v1429, %v1530
    %v1545 = vadd.f32 %v1430, %v1530
    %v1546 = vadd.f32 %v1431, %v1530
    %v1547 = vadd.f32 %v1432, %v1530
    %v1548 = vadd.f32 %v1433, %v1530
    %v1549 = vadd.f32 %v1434, %v1530
    %v1550 = vadd.f32 %v1435, %v1530
    %v1551 = vadd.f32 %v1436, %v1530
    %v1552 = vadd.f32 %v1437, %v1530
    %v1553 = vadd.f32 %v1438, %v1530
    %v1554 = vadd.f32 %v1439, %v1530
    %v1555 = vadd.f32 %v1440, %v1530
    %v1556 = vadd.f32 %v1441, %v1530
    %v1557 = vadd.f32 %v1442, %v1530
    %v1558 = vadd.f32 %v1443, %v1530
    %v1559 = vadd.f32 %v1444, %v1530
    %v1560 = vadd.f32 %v1445, %v1530
    %v1561 = vadd.f32 %v1446, %v1530
    %v1562 = vadd.f32 %v1447, %v1530
    %v1563 = vadd.f32 %v1448, %v1530
    %v1564 = vadd.f32 %v1449, %v1530
    %v1565 = vadd.f32 %v1450, %v1530
    %v1566 = vadd.f32 %v1451, %v1530
    %v1567 = vadd.f32 %v1452, %v1530
    %v1568 = vadd.f32 %v1453, %v1530
    %v1569 = vadd.f32 %v1454, %v1530
    %v1570 = vadd.f32 %v1455, %v1530
    %v1571 = vadd.f32 %v1456, %v1530
    %v1572 = vadd.f32 %v1457, %v1530
    %v1573 = vadd.f32 %v1458, %v1530
    %v1574 = vadd.f32 %v1459, %v1530
    %v1575 = vadd.f32 %v1460, %v1530
    %v1576 = vadd.f32 %v1461, %v1530
    %v1577 = vadd.f32 %v1462, %v1530
    %v1578 = vadd.f32 %v1463, %v1530
    %v1579 = vadd.f32 %v1464, %v1530
    %v1580 = vadd.f32 %v1465, %v1530
    %v1581 = vadd.f32 %v1466, %v1530
    %v1582 = vadd.f32 %v1467, %v1530
    %v1583 = vadd.f32 %v1468, %v1530
    %v1584 = vadd.f32 %v1469, %v1530
    %v1585 = vadd.f32 %v1470, %v1530
    %v1586 = vadd.f32 %v1471, %v1530
    %v1587 = vadd.f32 %v1472, %v1530
    %v1588 = vadd.f32 %v1473, %v1530
    %v1589 = vadd.f32 %v1474, %v1530
    %v1590 = vadd.f32 %v1475, %v1530
    %v1591 = vadd.f32 %v1476, %v1530
    %v1592 = vadd.f32 %v1477, %v1530
    %v1593 = vadd.f32 %v1478, %v1530
    %v1594 = vadd.f32 %v1479, %v1530
    %v1595 = vadd.f32 %v1480, %v1530
    %v1596 = vadd.f32 %v1481, %v1530
    %v1597 = vadd.f32 %v1482, %v1530
    %v1598 = vadd.f32 %v1483, %v1530
    %v1599 = vadd.f32 %v1484, %v1530
    %v1600 = vadd.f32 %v1485, %v1530
    %v1601 = vadd.f32 %v1486, %v1530
    %v1602 = vadd.f32 %v1487, %v1530
    %v1603 = vadd.f32 %v1488, %v1530
    %v1604 = vadd.f32 %v1489, %v1530
    %v1605 = vadd.f32 %v1490, %v1530
    %v1606 = vadd.f32 %v1491, %v1530
    %v1607 = vadd.f32 %v1492, %v1530
    %v1608 = vadd.f32 %v1493, %v1530
    %v1609 = vadd.f32 %v1494, %v1530
    %v1610 = vadd.f32 %v1495, %v1530
    %v1611 = vadd.f32 %v1496, %v1530
    %v1612 = vadd.f32 %v1497, %v1530
    %v1613 = vadd.f32 %v1498, %v1530
    %v1614 = vadd.f32 %v1499, %v1530
    %v1615 = vadd.f32 %v1500, %v1530
    %v1616 = vadd.f32 %v1501, %v1530
    %v1617 = vadd.f32 %v1502, %v1530
    %v1618 = vadd.f32 %v1503, %v1530
    %v1619 = vadd.f32 %v1504, %v1530
    %v1620 = vadd.f32 %v1505, %v1530
    %v1621 = vadd.f32 %v1506, %v1530
    %v1622 = vadd.f32 %v1507, %v1530
    %v1623 = vadd.f32 %v1508, %v1530
    %v1624 = vadd.f32 %v1509, %v1530
    %v1625 = vadd.f32 %v1510, %v1530
    %v1626 = vadd.f32 %v1511, %v1530
    %v1627 = vadd.f32 %v1512, %v1530
    %v1628 = vadd.f32 %v1513, %v1530
    %v1629 = vadd.f32 %v1514, %v1530
    %v1630 = vadd.f32 %v1515, %v1530
    %v1631 = vadd.f32 %v1516, %v1530
    %v1632 = vadd.f32 %v1517, %v1530
    %v1633 = vadd.f32 %v1518, %v1530
    %v1634 = vadd.f32 %v1519, %v1530
    %v1635 = vadd.f32 %v1520, %v1530
    %v1636 = vadd.f32 %v1521, %v1530
    %v1637 = vadd.f32 %v1522, %v1530
    %v1638 = vadd.f32 %v1523, %v1530
    %v1639 = vadd.f32 %v1524, %v1530
    %v1640 = vmax.f32 %v1532, 0.0
    %v1641 = vmax.f32 %v1533, 0.0
    %v1642 = vmax.f32 %v1534, 0.0
    %v1643 = vmax.f32 %v1535, 0.0
    %v1644 = vmax.f32 %v1536, 0.0
    %v1645 = vmax.f32 %v1537, 0.0
    %v1646 = vmax.f32 %v1538, 0.0
    %v1647 = vmax.f32 %v1539, 0.0
    %v1648 = vmax.f32 %v1540, 0.0
    %v1649 = vmax.f32 %v1541, 0.0
    %v1650 = vmax.f32 %v1542, 0.0
    %v1651 = vmax.f32 %v1543, 0.0
    %v1652 = vmax.f32 %v1544, 0.0
    %v1653 = vmax.f32 %v1545, 0.0
    %v1654 = vmax.f32 %v1546, 0.0
    %v1655 = vmax.f32 %v1547, 0.0
    %v1656 = vmax.f32 %v1548, 0.0
    %v1657 = vmax.f32 %v1549, 0.0
    %v1658 = vmax.f32 %v1550, 0.0
    %v1659 = vmax.f32 %v1551, 0.0
    %v1660 = vmax.f32 %v1552, 0.0
    %v1661 = vmax.f32 %v1553, 0.0
    %v1662 = vmax.f32 %v1554, 0.0
    %v1663 = vmax.f32 %v1555, 0.0
    %v1664 = vmax.f32 %v1556, 0.0
    %v1665 = vmax.f32 %v1557, 0.0
    %v1666 = vmax.f32 %v1558, 0.0
    %v1667 = vmax.f32 %v1559, 0.0
    %v1668 = vmax.f32 %v1560, 0.0
    %v1669 = vmax.f32 %v1561, 0.0
    %v1670 = vmax.f32 %v1562, 0.0
    %v1671 = vmax.f32 %v1563, 0.0
    %v1672 = vmax.f32 %v1564, 0.0
    %v1673 = vmax.f32 %v1565, 0.0
    %v1674 = vmax.f32 %v1566, 0.0
    %v1675 = vmax.f32 %v1567, 0.0
    %v1676 = vmax.f32 %v1568, 0.0
    %v1677 = vmax.f32 %v1569, 0.0
    %v1678 = vmax.f32 %v1570, 0.0
    %v1679 = vmax.f32 %v1571, 0.0
    %v1680 = vmax.f32 %v1572, 0.0
    %v1681 = vmax.f32 %v1573, 0.0
    %v1682 = vmax.f32 %v1574, 0.0
    %v1683 = vmax.f32 %v1575, 0.0
    %v1684 = vmax.f32 %v1576, 0.0
    %v1685 = vmax.f32 %v1577, 0.0
    %v1686 = vmax.f32 %v1578, 0.0
    %v1687 = vmax.f32 %v1579, 0.0
    %v1688 = vmax.f32 %v1580, 0.0
    %v1689 = vmax.f32 %v1581, 0.0
    %v1690 = vmax.f32 %v1582, 0.0
    %v1691 = vmax.f32 %v1583, 0.0
    %v1692 = vmax.f32 %v1584, 0.0
    %v1693 = vmax.f32 %v1585, 0.0
    %v1694 = vmax.f32 %v1586, 0.0
    %v1695 = vmax.f32 %v1587, 0.0
    %v1696 = vmax.f32 %v1588, 0.0
    %v1697 = vmax.f32 %v1589, 0.0
    %v1698 = vmax.f32 %v1590, 0.0
    %v1699 = vmax.f32 %v1591, 0.0
    %v1700 = vmax.f32 %v1592, 0.0
    %v1701 = vmax.f32 %v1593, 0.0
    %v1702 = vmax.f32 %v1594, 0.0
    %v1703 = vmax.f32 %v1595, 0.0
    %v1704 = vmax.f32 %v1596, 0.0
    %v1705 = vmax.f32 %v1597, 0.0
    %v1706 = vmax.f32 %v1598, 0.0
    %v1707 = vmax.f32 %v1599, 0.0
    %v1708 = vmax.f32 %v1600, 0.0
    %v1709 = vmax.f32 %v1601, 0.0
    %v1710 = vmax.f32 %v1602, 0.0
    %v1711 = vmax.f32 %v1603, 0.0
    %v1712 = vmax.f32 %v1604, 0.0
    %v1713 = vmax.f32 %v1605, 0.0
    %v1714 = vmax.f32 %v1606, 0.0
    %v1715 = vmax.f32 %v1607, 0.0
    %v1716 = vmax.f32 %v1608, 0.0
    %v1717 = vmax.f32 %v1609, 0.0
    %v1718 = vmax.f32 %v1610, 0.0
    %v1719 = vmax.f32 %v1611, 0.0
    %v1720 = vmax.f32 %v1612, 0.0
    %v1721 = vmax.f32 %v1613, 0.0
    %v1722 = vmax.f32 %v1614, 0.0
    %v1723 = vmax.f32 %v1615, 0.0
    %v1724 = vmax.f32 %v1616, 0.0
    %v1725 = vmax.f32 %v1617, 0.0
    %v1726 = vmax.f32 %v1618, 0.0
    %v1727 = vmax.f32 %v1619, 0.0
    %v1728 = vmax.f32 %v1620, 0.0
    %v1729 = vmax.f32 %v1621, 0.0
    %v1730 = vmax.f32 %v1622, 0.0
    %v1731 = vmax.f32 %v1623, 0.0
    %v1732 = vmax.f32 %v1624, 0.0
    %v1733 = vmax.f32 %v1625, 0.0
    %v1734 = vmax.f32 %v1626, 0.0
    %v1735 = vmax.f32 %v1627, 0.0
    %v1736 = vmax.f32 %v1628, 0.0
    %v1737 = vmax.f32 %v1629, 0.0
    %v1738 = vmax.f32 %v1630, 0.0
    %v1739 = vmax.f32 %v1631, 0.0
    %v1740 = vmax.f32 %v1632, 0.0
    %v1741 = vmax.f32 %v1633, 0.0
    %v1742 = vmax.f32 %v1634, 0.0
    %v1743 = vmax.f32 %v1635, 0.0
    %v1744 = vmax.f32 %v1636, 0.0
    %v1745 = vmax.f32 %v1637, 0.0
    %v1746 = vmax.f32 %v1638, 0.0
    %v1747 = vmax.f32 %v1639, 0.0
    %v1748 = vpack.c.bf16 %v1641, %v1640
    %v1749 = vpack.c.bf16 %v1643, %v1642
    %v1750 = vpack.c.bf16 %v1645, %v1644
    %v1751 = vpack.c.bf16 %v1647, %v1646
    %v1752 = vpack.c.bf16 %v1649, %v1648
    %v1753 = vpack.c.bf16 %v1651, %v1650
    %v1754 = vpack.c.bf16 %v1653, %v1652
    %v1755 = vpack.c.bf16 %v1655, %v1654
    %v1756 = vpack.c.bf16 %v1657, %v1656
    %v1757 = vpack.c.bf16 %v1659, %v1658
    %v1758 = vpack.c.bf16 %v1661, %v1660
    %v1759 = vpack.c.bf16 %v1663, %v1662
    %v1760 = vpack.c.bf16 %v1665, %v1664
    %v1761 = vpack.c.bf16 %v1667, %v1666
    %v1762 = vpack.c.bf16 %v1669, %v1668
    %v1763 = vpack.c.bf16 %v1671, %v1670
    %v1764 = vpack.c.bf16 %v1673, %v1672
    %v1765 = vpack.c.bf16 %v1675, %v1674
    %v1766 = vpack.c.bf16 %v1677, %v1676
    %v1767 = vpack.c.bf16 %v1679, %v1678
    %v1768 = vpack.c.bf16 %v1681, %v1680
    %v1769 = vpack.c.bf16 %v1683, %v1682
    %v1770 = vpack.c.bf16 %v1685, %v1684
    %v1771 = vpack.c.bf16 %v1687, %v1686
    %v1772 = vpack.c.bf16 %v1689, %v1688
    %v1773 = vpack.c.bf16 %v1691, %v1690
    %v1774 = vpack.c.bf16 %v1693, %v1692
    %v1775 = vpack.c.bf16 %v1695, %v1694
    %v1776 = vpack.c.bf16 %v1697, %v1696
    %v1777 = vpack.c.bf16 %v1699, %v1698
    %v1778 = vpack.c.bf16 %v1701, %v1700
    %v1779 = vpack.c.bf16 %v1703, %v1702
    %v1780 = vpack.c.bf16 %v1705, %v1704
    %v1781 = vpack.c.bf16 %v1707, %v1706
    %v1782 = vpack.c.bf16 %v1709, %v1708
    %v1783 = vpack.c.bf16 %v1711, %v1710
    %v1784 = vpack.c.bf16 %v1713, %v1712
    %v1785 = vpack.c.bf16 %v1715, %v1714
    %v1786 = vpack.c.bf16 %v1717, %v1716
    %v1787 = vpack.c.bf16 %v1719, %v1718
    %v1788 = vpack.c.bf16 %v1721, %v1720
    %v1789 = vpack.c.bf16 %v1723, %v1722
    %v1790 = vpack.c.bf16 %v1725, %v1724
    %v1791 = vpack.c.bf16 %v1727, %v1726
    %v1792 = vpack.c.bf16 %v1729, %v1728
    %v1793 = vpack.c.bf16 %v1731, %v1730
    %v1794 = vpack.c.bf16 %v1733, %v1732
    %v1795 = vpack.c.bf16 %v1735, %v1734
    %v1796 = vpack.c.bf16 %v1737, %v1736
    %v1797 = vpack.c.bf16 %v1739, %v1738
    %v1798 = vpack.c.bf16 %v1741, %v1740
    %v1799 = vpack.c.bf16 %v1743, %v1742
    %v1800 = vpack.c.bf16 %v1745, %v1744
    %v1801 = vpack.c.bf16 %v1747, %v1746
    %v1856 = vunpack.c.l.b16 %v1748
    %v1857 = vunpack.c.h.b16 %v1748
    %v1858 = vunpack.c.l.b16 %v1749
    %v1859 = vunpack.c.h.b16 %v1749
    %v1860 = vunpack.c.l.b16 %v1750
    %v1861 = vunpack.c.h.b16 %v1750
    %v1862 = vunpack.c.l.b16 %v1751
    %v1863 = vunpack.c.h.b16 %v1751
    %v1864 = vunpack.c.l.b16 %v1752
    %v1865 = vunpack.c.h.b16 %v1752
    %v1866 = vunpack.c.l.b16 %v1753
    %v1867 = vunpack.c.h.b16 %v1753
    %v1868 = vunpack.c.l.b16 %v1754
    %v1869 = vunpack.c.h.b16 %v1754
    %v1870 = vunpack.c.l.b16 %v1755
    %v1871 = vunpack.c.h.b16 %v1755
    %v1872 = vunpack.c.l.b16 %v1756
    %v1873 = vunpack.c.h.b16 %v1756
    %v1874 = vunpack.c.l.b16 %v1757
    %v1875 = vunpack.c.h.b16 %v1757
    %v1876 = vunpack.c.l.b16 %v1758
    %v1877 = vunpack.c.h.b16 %v1758
    %v1878 = vunpack.c.l.b16 %v1759
    %v1879 = vunpack.c.h.b16 %v1759
    %v1880 = vunpack.c.l.b16 %v1760
    %v1881 = vunpack.c.h.b16 %v1760
    %v1882 = vunpack.c.l.b16 %v1761
    %v1883 = vunpack.c.h.b16 %v1761
    %v1884 = vunpack.c.l.b16 %v1762
    %v1885 = vunpack.c.h.b16 %v1762
    %v1886 = vunpack.c.l.b16 %v1763
    %v1887 = vunpack.c.h.b16 %v1763
    %v1888 = vunpack.c.l.b16 %v1764
    %v1889 = vunpack.c.h.b16 %v1764
    %v1890 = vunpack.c.l.b16 %v1765
    %v1891 = vunpack.c.h.b16 %v1765
    %v1892 = vunpack.c.l.b16 %v1766
    %v1893 = vunpack.c.h.b16 %v1766
    %v1894 = vunpack.c.l.b16 %v1767
    %v1895 = vunpack.c.h.b16 %v1767
    %v1896 = vunpack.c.l.b16 %v1768
    %v1897 = vunpack.c.h.b16 %v1768
    %v1898 = vunpack.c.l.b16 %v1769
    %v1899 = vunpack.c.h.b16 %v1769
    %v1900 = vunpack.c.l.b16 %v1770
    %v1901 = vunpack.c.h.b16 %v1770
    %v1902 = vunpack.c.l.b16 %v1771
    %v1903 = vunpack.c.h.b16 %v1771
    %v1904 = vunpack.c.l.b16 %v1772
    %v1905 = vunpack.c.h.b16 %v1772
    %v1906 = vunpack.c.l.b16 %v1773
    %v1907 = vunpack.c.h.b16 %v1773
    %v1908 = vunpack.c.l.b16 %v1774
    %v1909 = vunpack.c.h.b16 %v1774
    %v1910 = vunpack.c.l.b16 %v1775
    %v1911 = vunpack.c.h.b16 %v1775
    %v1912 = vunpack.c.l.b16 %v1776
    %v1913 = vunpack.c.h.b16 %v1776
    %v1914 = vunpack.c.l.b16 %v1777
    %v1915 = vunpack.c.h.b16 %v1777
    %v1916 = vunpack.c.l.b16 %v1778
    %v1917 = vunpack.c.h.b16 %v1778
    %v1918 = vunpack.c.l.b16 %v1779
    %v1919 = vunpack.c.h.b16 %v1779
    %v1920 = vunpack.c.l.b16 %v1780
    %v1921 = vunpack.c.h.b16 %v1780
    %v1922 = vunpack.c.l.b16 %v1781
    %v1923 = vunpack.c.h.b16 %v1781
    %v1924 = vunpack.c.l.b16 %v1782
    %v1925 = vunpack.c.h.b16 %v1782
    %v1926 = vunpack.c.l.b16 %v1783
    %v1927 = vunpack.c.h.b16 %v1783
    %v1928 = vunpack.c.l.b16 %v1784
    %v1929 = vunpack.c.h.b16 %v1784
    %v1930 = vunpack.c.l.b16 %v1785
    %v1931 = vunpack.c.h.b16 %v1785
    %v1932 = vunpack.c.l.b16 %v1786
    %v1933 = vunpack.c.h.b16 %v1786
    %v1934 = vunpack.c.l.b16 %v1787
    %v1935 = vunpack.c.h.b16 %v1787
    %v1936 = vunpack.c.l.b16 %v1788
    %v1937 = vunpack.c.h.b16 %v1788
    %v1938 = vunpack.c.l.b16 %v1789
    %v1939 = vunpack.c.h.b16 %v1789
    %v1940 = vunpack.c.l.b16 %v1790
    %v1941 = vunpack.c.h.b16 %v1790
    %v1942 = vunpack.c.l.b16 %v1791
    %v1943 = vunpack.c.h.b16 %v1791
    %v1944 = vunpack.c.l.b16 %v1792
    %v1945 = vunpack.c.h.b16 %v1792
    %v1946 = vunpack.c.l.b16 %v1793
    %v1947 = vunpack.c.h.b16 %v1793
    %v1948 = vunpack.c.l.b16 %v1794
    %v1949 = vunpack.c.h.b16 %v1794
    %v1950 = vunpack.c.l.b16 %v1795
    %v1951 = vunpack.c.h.b16 %v1795
    %v1952 = vunpack.c.l.b16 %v1796
    %v1953 = vunpack.c.h.b16 %v1796
    %v1954 = vunpack.c.l.b16 %v1797
    %v1955 = vunpack.c.h.b16 %v1797
    %v1956 = vunpack.c.l.b16 %v1798
    %v1957 = vunpack.c.h.b16 %v1798
    %v1958 = vunpack.c.l.b16 %v1799
    %v1959 = vunpack.c.h.b16 %v1799
    %v1960 = vunpack.c.l.b16 %v1800
    %v1961 = vunpack.c.h.b16 %v1800
    %v1962 = vunpack.c.l.b16 %v1801
    %v1963 = vunpack.c.h.b16 %v1801
    %v1964 = vpack.c.b16 %v1856, %v1856
    %v1965 = vpack.c.b16 %v1857, %v1857
    %v1966 = vpack.c.b16 %v1858, %v1858
    %v1967 = vpack.c.b16 %v1859, %v1859
    %v1968 = vpack.c.b16 %v1860, %v1860
    %v1969 = vpack.c.b16 %v1861, %v1861
    %v1970 = vpack.c.b16 %v1862, %v1862
    %v1971 = vpack.c.b16 %v1863, %v1863
    %v1972 = vpack.c.b16 %v1864, %v1864
    %v1973 = vpack.c.b16 %v1865, %v1865
    %v1974 = vpack.c.b16 %v1866, %v1866
    %v1975 = vpack.c.b16 %v1867, %v1867
    %v1976 = vpack.c.b16 %v1868, %v1868
    %v1977 = vpack.c.b16 %v1869, %v1869
    %v1978 = vpack.c.b16 %v1870, %v1870
    %v1979 = vpack.c.b16 %v1871, %v1871
    %v1980 = vpack.c.b16 %v1872, %v1872
    %v1981 = vpack.c.b16 %v1873, %v1873
    %v1982 = vpack.c.b16 %v1874, %v1874
    %v1983 = vpack.c.b16 %v1875, %v1875
    %v1984 = vpack.c.b16 %v1876, %v1876
    %v1985 = vpack.c.b16 %v1877, %v1877
    %v1986 = vpack.c.b16 %v1878, %v1878
    %v1987 = vpack.c.b16 %v1879, %v1879
    %v1988 = vpack.c.b16 %v1880, %v1880
    %v1989 = vpack.c.b16 %v1881, %v1881
    %v1990 = vpack.c.b16 %v1882, %v1882
    %v1991 = vpack.c.b16 %v1883, %v1883
    %v1992 = vpack.c.b16 %v1884, %v1884
    %v1993 = vpack.c.b16 %v1885, %v1885
    %v1994 = vpack.c.b16 %v1886, %v1886
    %v1995 = vpack.c.b16 %v1887, %v1887
    %v1996 = vpack.c.b16 %v1888, %v1888
    %v1997 = vpack.c.b16 %v1889, %v1889
    %v1998 = vpack.c.b16 %v1890, %v1890
    %v1999 = vpack.c.b16 %v1891, %v1891
    %v2000 = vpack.c.b16 %v1892, %v1892
    %v2001 = vpack.c.b16 %v1893, %v1893
    %v2002 = vpack.c.b16 %v1894, %v1894
    %v2003 = vpack.c.b16 %v1895, %v1895
    %v2004 = vpack.c.b16 %v1896, %v1896
    %v2005 = vpack.c.b16 %v1897, %v1897
    %v2006 = vpack.c.b16 %v1898, %v1898
    %v2007 = vpack.c.b16 %v1899, %v1899
    %v2008 = vpack.c.b16 %v1900, %v1900
    %v2009 = vpack.c.b16 %v1901, %v1901
    %v2010 = vpack.c.b16 %v1902, %v1902
    %v2011 = vpack.c.b16 %v1903, %v1903
    %v2012 = vpack.c.b16 %v1904, %v1904
    %v2013 = vpack.c.b16 %v1905, %v1905
    %v2014 = vpack.c.b16 %v1906, %v1906
    %v2015 = vpack.c.b16 %v1907, %v1907
    %v2016 = vpack.c.b16 %v1908, %v1908
    %v2017 = vpack.c.b16 %v1909, %v1909
    %v2018 = vpack.c.b16 %v1910, %v1910
    %v2019 = vpack.c.b16 %v1911, %v1911
    %v2020 = vpack.c.b16 %v1912, %v1912
    %v2021 = vpack.c.b16 %v1913, %v1913
    %v2022 = vpack.c.b16 %v1914, %v1914
    %v2023 = vpack.c.b16 %v1915, %v1915
    %v2024 = vpack.c.b16 %v1916, %v1916
    %v2025 = vpack.c.b16 %v1917, %v1917
    %v2026 = vpack.c.b16 %v1918, %v1918
    %v2027 = vpack.c.b16 %v1919, %v1919
    %v2028 = vpack.c.b16 %v1920, %v1920
    %v2029 = vpack.c.b16 %v1921, %v1921
    %v2030 = vpack.c.b16 %v1922, %v1922
    %v2031 = vpack.c.b16 %v1923, %v1923
    %v2032 = vpack.c.b16 %v1924, %v1924
    %v2033 = vpack.c.b16 %v1925, %v1925
    %v2034 = vpack.c.b16 %v1926, %v1926
    %v2035 = vpack.c.b16 %v1927, %v1927
    %v2036 = vpack.c.b16 %v1928, %v1928
    %v2037 = vpack.c.b16 %v1929, %v1929
    %v2038 = vpack.c.b16 %v1930, %v1930
    %v2039 = vpack.c.b16 %v1931, %v1931
    %v2040 = vpack.c.b16 %v1932, %v1932
    %v2041 = vpack.c.b16 %v1933, %v1933
    %v2042 = vpack.c.b16 %v1934, %v1934
    %v2043 = vpack.c.b16 %v1935, %v1935
    %v2044 = vpack.c.b16 %v1936, %v1936
    %v2045 = vpack.c.b16 %v1937, %v1937
    %v2046 = vpack.c.b16 %v1938, %v1938
    %v2047 = vpack.c.b16 %v1939, %v1939
    %v2048 = vpack.c.b16 %v1940, %v1940
    %v2049 = vpack.c.b16 %v1941, %v1941
    %v2050 = vpack.c.b16 %v1942, %v1942
    %v2051 = vpack.c.b16 %v1943, %v1943
    %v2052 = vpack.c.b16 %v1944, %v1944
    %v2053 = vpack.c.b16 %v1945, %v1945
    %v2054 = vpack.c.b16 %v1946, %v1946
    %v2055 = vpack.c.b16 %v1947, %v1947
    %v2056 = vpack.c.b16 %v1948, %v1948
    %v2057 = vpack.c.b16 %v1949, %v1949
    %v2058 = vpack.c.b16 %v1950, %v1950
    %v2059 = vpack.c.b16 %v1951, %v1951
    %v2060 = vpack.c.b16 %v1952, %v1952
    %v2061 = vpack.c.b16 %v1953, %v1953
    %v2062 = vpack.c.b16 %v1954, %v1954
    %v2063 = vpack.c.b16 %v1955, %v1955
    %v2064 = vpack.c.b16 %v1956, %v1956
    %v2065 = vpack.c.b16 %v1957, %v1957
    %v2066 = vpack.c.b16 %v1958, %v1958
    %v2067 = vpack.c.b16 %v1959, %v1959
    %v2068 = vpack.c.b16 %v1960, %v1960
    %v2069 = vpack.c.b16 %v1961, %v1961
    %v2070 = vpack.c.b16 %v1962, %v1962
    %v2071 = vpack.c.b16 %v1963, %v1963
    %vm2180 = vcmask 125952
    %2181 = vst.msk [vmem:[%s3] sm:$0xf] %vm2180, %v1964
    %2182 = vst.msk [vmem:[%s3 + $0x4] sm:$0xf] %vm2180, %v1965
    %2183 = vst.msk [vmem:[%s3 + $0x8] sm:$0xf] %vm2180, %v1966
    %2184 = vst.msk [vmem:[%s3 + $0xc] sm:$0xf] %vm2180, %v1967
    %2185 = vst.msk [vmem:[%s3 + $0x10] sm:$0xf] %vm2180, %v1968
    %2186 = vst.msk [vmem:[%s3 + $0x14] sm:$0xf] %vm2180, %v1969
    %2187 = vst.msk [vmem:[%s3 + $0x18] sm:$0xf] %vm2180, %v1970
    %2188 = vst.msk [vmem:[%s3 + $0x1c] sm:$0xf] %vm2180, %v1971
    %2189 = vst.msk [vmem:[%s3 + $0x20] sm:$0xf] %vm2180, %v1972
    %2190 = vst.msk [vmem:[%s3 + $0x24] sm:$0xf] %vm2180, %v1973
    %2191 = vst.msk [vmem:[%s3 + $0x28] sm:$0xf] %vm2180, %v1974
    %2192 = vst.msk [vmem:[%s3 + $0x2c] sm:$0xf] %vm2180, %v1975
    %2193 = vst.msk [vmem:[%s3 + $0x30] sm:$0xf] %vm2180, %v1976
    %2194 = vst.msk [vmem:[%s3 + $0x34] sm:$0xf] %vm2180, %v1977
    %2195 = vst.msk [vmem:[%s3 + $0x38] sm:$0xf] %vm2180, %v1978
    %2196 = vst.msk [vmem:[%s3 + $0x3c] sm:$0xf] %vm2180, %v1979
    %2197 = vst.msk [vmem:[%s3 + $0x40] sm:$0xf] %vm2180, %v1980
    %2198 = vst.msk [vmem:[%s3 + $0x44] sm:$0xf] %vm2180, %v1981
    %2199 = vst.msk [vmem:[%s3 + $0x48] sm:$0xf] %vm2180, %v1982
    %2200 = vst.msk [vmem:[%s3 + $0x4c] sm:$0xf] %vm2180, %v1983
    %2201 = vst.msk [vmem:[%s3 + $0x50] sm:$0xf] %vm2180, %v1984
    %2202 = vst.msk [vmem:[%s3 + $0x54] sm:$0xf] %vm2180, %v1985
    %2203 = vst.msk [vmem:[%s3 + $0x58] sm:$0xf] %vm2180, %v1986
    %2204 = vst.msk [vmem:[%s3 + $0x5c] sm:$0xf] %vm2180, %v1987
    %2205 = vst.msk [vmem:[%s3 + $0x60] sm:$0xf] %vm2180, %v1988
    %2206 = vst.msk [vmem:[%s3 + $0x64] sm:$0xf] %vm2180, %v1989
    %2207 = vst.msk [vmem:[%s3 + $0x68] sm:$0xf] %vm2180, %v1990
    %2208 = vst.msk [vmem:[%s3 + $0x6c] sm:$0xf] %vm2180, %v1991
    %2209 = vst.msk [vmem:[%s3 + $0x70] sm:$0xf] %vm2180, %v1992
    %2210 = vst.msk [vmem:[%s3 + $0x74] sm:$0xf] %vm2180, %v1993
    %2211 = vst.msk [vmem:[%s3 + $0x78] sm:$0xf] %vm2180, %v1994
    %2212 = vst.msk [vmem:[%s3 + $0x7c] sm:$0xf] %vm2180, %v1995
    %2213 = vst.msk [vmem:[%s3 + $0x80] sm:$0xf] %vm2180, %v1996
    %2214 = vst.msk [vmem:[%s3 + $0x84] sm:$0xf] %vm2180, %v1997
    %2215 = vst.msk [vmem:[%s3 + $0x88] sm:$0xf] %vm2180, %v1998
    %2216 = vst.msk [vmem:[%s3 + $0x8c] sm:$0xf] %vm2180, %v1999
    %2217 = vst.msk [vmem:[%s3 + $0x90] sm:$0xf] %vm2180, %v2000
    %2218 = vst.msk [vmem:[%s3 + $0x94] sm:$0xf] %vm2180, %v2001
    %2219 = vst.msk [vmem:[%s3 + $0x98] sm:$0xf] %vm2180, %v2002
    %2220 = vst.msk [vmem:[%s3 + $0x9c] sm:$0xf] %vm2180, %v2003
    %2221 = vst.msk [vmem:[%s3 + $0xa0] sm:$0xf] %vm2180, %v2004
    %2222 = vst.msk [vmem:[%s3 + $0xa4] sm:$0xf] %vm2180, %v2005
    %2223 = vst.msk [vmem:[%s3 + $0xa8] sm:$0xf] %vm2180, %v2006
    %2224 = vst.msk [vmem:[%s3 + $0xac] sm:$0xf] %vm2180, %v2007
    %2225 = vst.msk [vmem:[%s3 + $0xb0] sm:$0xf] %vm2180, %v2008
    %2226 = vst.msk [vmem:[%s3 + $0xb4] sm:$0xf] %vm2180, %v2009
    %2227 = vst.msk [vmem:[%s3 + $0xb8] sm:$0xf] %vm2180, %v2010
    %2228 = vst.msk [vmem:[%s3 + $0xbc] sm:$0xf] %vm2180, %v2011
    %2229 = vst.msk [vmem:[%s3 + $0xc0] sm:$0xf] %vm2180, %v2012
    %2230 = vst.msk [vmem:[%s3 + $0xc4] sm:$0xf] %vm2180, %v2013
    %2231 = vst.msk [vmem:[%s3 + $0xc8] sm:$0xf] %vm2180, %v2014
    %2232 = vst.msk [vmem:[%s3 + $0xcc] sm:$0xf] %vm2180, %v2015
    %2233 = vst.msk [vmem:[%s3 + $0xd0] sm:$0xf] %vm2180, %v2016
    %2234 = vst.msk [vmem:[%s3 + $0xd4] sm:$0xf] %vm2180, %v2017
    %2235 = vst.msk [vmem:[%s3 + $0xd8] sm:$0xf] %vm2180, %v2018
    %2236 = vst.msk [vmem:[%s3 + $0xdc] sm:$0xf] %vm2180, %v2019
    %2237 = vst.msk [vmem:[%s3 + $0xe0] sm:$0xf] %vm2180, %v2020
    %2238 = vst.msk [vmem:[%s3 + $0xe4] sm:$0xf] %vm2180, %v2021
    %2239 = vst.msk [vmem:[%s3 + $0xe8] sm:$0xf] %vm2180, %v2022
    %2240 = vst.msk [vmem:[%s3 + $0xec] sm:$0xf] %vm2180, %v2023
    %2241 = vst.msk [vmem:[%s3 + $0xf0] sm:$0xf] %vm2180, %v2024
    %2242 = vst.msk [vmem:[%s3 + $0xf4] sm:$0xf] %vm2180, %v2025
    %2243 = vst.msk [vmem:[%s3 + $0xf8] sm:$0xf] %vm2180, %v2026
    %2244 = vst.msk [vmem:[%s3 + $0xfc] sm:$0xf] %vm2180, %v2027
    %2245 = vst.msk [vmem:[%s3 + $0x100] sm:$0xf] %vm2180, %v2028
    %2246 = vst.msk [vmem:[%s3 + $0x104] sm:$0xf] %vm2180, %v2029
    %2247 = vst.msk [vmem:[%s3 + $0x108] sm:$0xf] %vm2180, %v2030
    %2248 = vst.msk [vmem:[%s3 + $0x10c] sm:$0xf] %vm2180, %v2031
    %2249 = vst.msk [vmem:[%s3 + $0x110] sm:$0xf] %vm2180, %v2032
    %2250 = vst.msk [vmem:[%s3 + $0x114] sm:$0xf] %vm2180, %v2033
    %2251 = vst.msk [vmem:[%s3 + $0x118] sm:$0xf] %vm2180, %v2034
    %2252 = vst.msk [vmem:[%s3 + $0x11c] sm:$0xf] %vm2180, %v2035
    %2253 = vst.msk [vmem:[%s3 + $0x120] sm:$0xf] %vm2180, %v2036
    %2254 = vst.msk [vmem:[%s3 + $0x124] sm:$0xf] %vm2180, %v2037
    %2255 = vst.msk [vmem:[%s3 + $0x128] sm:$0xf] %vm2180, %v2038
    %2256 = vst.msk [vmem:[%s3 + $0x12c] sm:$0xf] %vm2180, %v2039
    %2257 = vst.msk [vmem:[%s3 + $0x130] sm:$0xf] %vm2180, %v2040
    %2258 = vst.msk [vmem:[%s3 + $0x134] sm:$0xf] %vm2180, %v2041
    %2259 = vst.msk [vmem:[%s3 + $0x138] sm:$0xf] %vm2180, %v2042
    %2260 = vst.msk [vmem:[%s3 + $0x13c] sm:$0xf] %vm2180, %v2043
    %2261 = vst.msk [vmem:[%s3 + $0x140] sm:$0xf] %vm2180, %v2044
    %2262 = vst.msk [vmem:[%s3 + $0x144] sm:$0xf] %vm2180, %v2045
    %2263 = vst.msk [vmem:[%s3 + $0x148] sm:$0xf] %vm2180, %v2046
    %2264 = vst.msk [vmem:[%s3 + $0x14c] sm:$0xf] %vm2180, %v2047
    %2265 = vst.msk [vmem:[%s3 + $0x150] sm:$0xf] %vm2180, %v2048
    %2266 = vst.msk [vmem:[%s3 + $0x154] sm:$0xf] %vm2180, %v2049
    %2267 = vst.msk [vmem:[%s3 + $0x158] sm:$0xf] %vm2180, %v2050
    %2268 = vst.msk [vmem:[%s3 + $0x15c] sm:$0xf] %vm2180, %v2051
    %2269 = vst.msk [vmem:[%s3 + $0x160] sm:$0xf] %vm2180, %v2052
    %2270 = vst.msk [vmem:[%s3 + $0x164] sm:$0xf] %vm2180, %v2053
    %2271 = vst.msk [vmem:[%s3 + $0x168] sm:$0xf] %vm2180, %v2054
    %2272 = vst.msk [vmem:[%s3 + $0x16c] sm:$0xf] %vm2180, %v2055
    %2273 = vst.msk [vmem:[%s3 + $0x170] sm:$0xf] %vm2180, %v2056
    %2274 = vst.msk [vmem:[%s3 + $0x174] sm:$0xf] %vm2180, %v2057
    %2275 = vst.msk [vmem:[%s3 + $0x178] sm:$0xf] %vm2180, %v2058
    %2276 = vst.msk [vmem:[%s3 + $0x17c] sm:$0xf] %vm2180, %v2059
    %2277 = vst.msk [vmem:[%s3 + $0x180] sm:$0xf] %vm2180, %v2060
    %2278 = vst.msk [vmem:[%s3 + $0x184] sm:$0xf] %vm2180, %v2061
    %2279 = vst.msk [vmem:[%s3 + $0x188] sm:$0xf] %vm2180, %v2062
    %2280 = vst.msk [vmem:[%s3 + $0x18c] sm:$0xf] %vm2180, %v2063
    %2281 = vst.msk [vmem:[%s3 + $0x190] sm:$0xf] %vm2180, %v2064
    %2282 = vst.msk [vmem:[%s3 + $0x194] sm:$0xf] %vm2180, %v2065
    %2283 = vst.msk [vmem:[%s3 + $0x198] sm:$0xf] %vm2180, %v2066
    %2284 = vst.msk [vmem:[%s3 + $0x19c] sm:$0xf] %vm2180, %v2067
    %2285 = vst.msk [vmem:[%s3 + $0x1a0] sm:$0xf] %vm2180, %v2068
    %2286 = vst.msk [vmem:[%s3 + $0x1a4] sm:$0xf] %vm2180, %v2069
    %2287 = vst.msk [vmem:[%s3 + $0x1a8] sm:$0xf] %vm2180, %v2070
    %2288 = vst.msk [vmem:[%s3 + $0x1ac] sm:$0xf] %vm2180, %v2071
  $region21: #{conv_feature_forward.6} parent=0 // pred_fallthru
    _
  // Predicated region
  $region22: #{conv_feature_forward.6} parent=0 // pred_check
    _
  $region23: #{conv_feature_forward.6} parent=0 // pred_check_branch
    %2290 = sbr.rel (0) target = $region25
  $region24: #{conv_feature_forward.6} parent=0 // pred_region
    _
  $region25: #{conv_feature_forward.6} parent=0 // pred_fallthru
    _
  // Predicated region
  $region26: #{conv_feature_forward.6} parent=0 // pred_check
    _
  $region27: #{conv_feature_forward.6} parent=0 // pred_check_branch
    %2292 = sbr.rel (0) target = $region29
  $region28: #{conv_feature_forward.6} parent=0 // pred_region
    _
  $region29: #{conv_feature_forward.6} parent=0 // pred_fallthru
    _

// kernel: conv_feature_forward.7
$region0: #{conv_feature_forward.7}
  #allocation0 [shape = 'u32[]', space=smem, size = 0x4, offset = 0x4, fixed_abs, tag = 'smem constant byte address 0x4 - core index']
  #allocation1 [shape = 'u32[144,128]{1,0:T(1,128)}', space=vmem, size = 0x12000, scoped, tag = 'internal scratch']
  #allocation2 [shape = 'f32[200,32]{1,0:T(8,128)}', space=vmem, size = 0x19000, scoped, tag = 'scratch operand']
  %s0 = inlined_call_operand.vmem [shape: bf16[200,512], index: 0, kind: input, shape index: {}]
  %s1 = inlined_call_operand.vmem [shape: bf16[512,32], index: 1, kind: input, shape index: {}]
  %s2 = inlined_call_operand.vmem [shape: f32[1,32], index: 2, kind: input, shape index: {}]
  %s3 = inlined_call_operand.vmem [shape: bf16[200,32], index: 3, kind: output, shape index: {}]
  %s4 = sld [smem:[#allocation0]]
  $region30: #{conv_feature_forward.7} parent=0
    _
  %s6 = ssub.s32 1, %s4
  %s7 = scalar_select 0, %s6, %s4
  // Predicated region
  $region2: #{conv_feature_forward.7} parent=0 // pred_check
    _
  $region3: #{conv_feature_forward.7} parent=0 // pred_check_branch
    %9 = sbr.rel (0) target = $region5
  $region4: #{conv_feature_forward.7} parent=0 // pred_region
    _
  $region5: #{conv_feature_forward.7} parent=0 // pred_fallthru
    _
  // Predicated region
  $region6: #{conv_feature_forward.7} parent=0 // pred_check
    _
  $region7: #{conv_feature_forward.7} parent=0 // pred_check_branch
    %11 = sbr.rel (0) target = $region9
  $region8: #{conv_feature_forward.7} parent=0 // pred_region
    _
  $region9: #{conv_feature_forward.7} parent=0 // pred_fallthru
    _
  // Predicated region
  $region10: #{conv_feature_forward.7} parent=0 // pred_check
    _
  $region11: #{conv_feature_forward.7} parent=0 // pred_check_branch
    %13 = sbr.rel (0) target = $region13
  $region12: #{conv_feature_forward.7} parent=0 // pred_region
    _
  $region13: #{conv_feature_forward.7} parent=0 // pred_fallthru
    _
  %p15 = scmp.eq.s32.totalorder 0, 0
  // Predicated region
  $region14: #{conv_feature_forward.7} parent=0 // pred_check
    %p16 = pneg %p15
  $region15: #{conv_feature_forward.7} parent=0 // pred_check_branch
    %18 = sbr.rel (%p16) target = $region17
  $region16: #{conv_feature_forward.7} parent=0 // pred_region
    %vm19 = vcmask 261120
    %20 = vst.msk [vmem:[#allocation2] sm:$0xff] %vm19, 0.0
    %21 = vst.msk [vmem:[#allocation2 + $0x8] sm:$0xff] %vm19, 0.0
    %22 = vst.msk [vmem:[#allocation2 + $0x10] sm:$0xff] %vm19, 0.0
    %23 = vst.msk [vmem:[#allocation2 + $0x18] sm:$0xff] %vm19, 0.0
    %24 = vst.msk [vmem:[#allocation2 + $0x20] sm:$0xff] %vm19, 0.0
    %25 = vst.msk [vmem:[#allocation2 + $0x28] sm:$0xff] %vm19, 0.0
    %26 = vst.msk [vmem:[#allocation2 + $0x30] sm:$0xff] %vm19, 0.0
    %27 = vst.msk [vmem:[#allocation2 + $0x38] sm:$0xff] %vm19, 0.0
    %28 = vst.msk [vmem:[#allocation2 + $0x40] sm:$0xff] %vm19, 0.0
    %29 = vst.msk [vmem:[#allocation2 + $0x48] sm:$0xff] %vm19, 0.0
    %30 = vst.msk [vmem:[#allocation2 + $0x50] sm:$0xff] %vm19, 0.0
    %31 = vst.msk [vmem:[#allocation2 + $0x58] sm:$0xff] %vm19, 0.0
    %32 = vst.msk [vmem:[#allocation2 + $0x60] sm:$0xff] %vm19, 0.0
    %33 = vst.msk [vmem:[#allocation2 + $0x68] sm:$0xff] %vm19, 0.0
    %34 = vst.msk [vmem:[#allocation2 + $0x70] sm:$0xff] %vm19, 0.0
    %35 = vst.msk [vmem:[#allocation2 + $0x78] sm:$0xff] %vm19, 0.0
    %36 = vst.msk [vmem:[#allocation2 + $0x80] sm:$0xff] %vm19, 0.0
    %37 = vst.msk [vmem:[#allocation2 + $0x88] sm:$0xff] %vm19, 0.0
    %38 = vst.msk [vmem:[#allocation2 + $0x90] sm:$0xff] %vm19, 0.0
    %39 = vst.msk [vmem:[#allocation2 + $0x98] sm:$0xff] %vm19, 0.0
    %40 = vst.msk [vmem:[#allocation2 + $0xa0] sm:$0xff] %vm19, 0.0
    %41 = vst.msk [vmem:[#allocation2 + $0xa8] sm:$0xff] %vm19, 0.0
    %42 = vst.msk [vmem:[#allocation2 + $0xb0] sm:$0xff] %vm19, 0.0
    %43 = vst.msk [vmem:[#allocation2 + $0xb8] sm:$0xff] %vm19, 0.0
    %44 = vst.msk [vmem:[#allocation2 + $0xc0] sm:$0xff] %vm19, 0.0
  $region17: #{conv_feature_forward.7} parent=0 // pred_fallthru
    _
  %v45 = vld [vmem:[#allocation2] sm:$0xff]
  %v46 = vld [vmem:[#allocation2 + $0x8] sm:$0xff]
  %v47 = vld [vmem:[#allocation2 + $0x10] sm:$0xff]
  %v48 = vld [vmem:[#allocation2 + $0x18] sm:$0xff]
  %v49 = vld [vmem:[#allocation2 + $0x20] sm:$0xff]
  %v50 = vld [vmem:[#allocation2 + $0x28] sm:$0xff]
  %v51 = vld [vmem:[#allocation2 + $0x30] sm:$0xff]
  %v52 = vld [vmem:[#allocation2 + $0x38] sm:$0xff]
  %v53 = vld [vmem:[#allocation2 + $0x40] sm:$0xff]
  %v54 = vld [vmem:[#allocation2 + $0x48] sm:$0xff]
  %v55 = vld [vmem:[#allocation2 + $0x50] sm:$0xff]
  %v56 = vld [vmem:[#allocation2 + $0x58] sm:$0xff]
  %v57 = vld [vmem:[#allocation2 + $0x60] sm:$0xff]
  %v58 = vld [vmem:[#allocation2 + $0x68] sm:$0xff]
  %v59 = vld [vmem:[#allocation2 + $0x70] sm:$0xff]
  %v60 = vld [vmem:[#allocation2 + $0x78] sm:$0xff]
  %v61 = vld [vmem:[#allocation2 + $0x80] sm:$0xff]
  %v62 = vld [vmem:[#allocation2 + $0x88] sm:$0xff]
  %v63 = vld [vmem:[#allocation2 + $0x90] sm:$0xff]
  %v64 = vld [vmem:[#allocation2 + $0x98] sm:$0xff]
  %v65 = vld [vmem:[#allocation2 + $0xa0] sm:$0xff]
  %v66 = vld [vmem:[#allocation2 + $0xa8] sm:$0xff]
  %v67 = vld [vmem:[#allocation2 + $0xb0] sm:$0xff]
  %v68 = vld [vmem:[#allocation2 + $0xb8] sm:$0xff]
  %v69 = vld [vmem:[#allocation2 + $0xc0] sm:$0xff]
  %v70 = vld [vmem:[%s0] sm:$0xff]
  %v71 = vld [vmem:[%s0 + $0x8] sm:$0xff]
  %v72 = vld [vmem:[%s0 + $0x10] sm:$0xff]
  %v73 = vld [vmem:[%s0 + $0x18] sm:$0xff]
  %v74 = vld [vmem:[%s0 + $0x20] sm:$0xff]
  %v75 = vld [vmem:[%s0 + $0x28] sm:$0xff]
  %v76 = vld [vmem:[%s0 + $0x30] sm:$0xff]
  %v77 = vld [vmem:[%s0 + $0x38] sm:$0xff]
  %v78 = vld [vmem:[%s0 + $0x40] sm:$0xff]
  %v79 = vld [vmem:[%s0 + $0x48] sm:$0xff]
  %v80 = vld [vmem:[%s0 + $0x50] sm:$0xff]
  %v81 = vld [vmem:[%s0 + $0x58] sm:$0xff]
  %v82 = vld [vmem:[%s0 + $0x60] sm:$0xff]
  %v83 = vld [vmem:[%s0 + $0x68] sm:$0xff]
  %v84 = vld [vmem:[%s0 + $0x70] sm:$0xff]
  %v85 = vld [vmem:[%s0 + $0x78] sm:$0xff]
  %v86 = vld [vmem:[%s0 + $0x80] sm:$0xff]
  %v87 = vld [vmem:[%s0 + $0x88] sm:$0xff]
  %v88 = vld [vmem:[%s0 + $0x90] sm:$0xff]
  %v89 = vld [vmem:[%s0 + $0x98] sm:$0xff]
  %v90 = vld [vmem:[%s0 + $0xa0] sm:$0xff]
  %v91 = vld [vmem:[%s0 + $0xa8] sm:$0xff]
  %v92 = vld [vmem:[%s0 + $0xb0] sm:$0xff]
  %v93 = vld [vmem:[%s0 + $0xb8] sm:$0xff]
  %v94 = vld [vmem:[%s0 + $0xc0] sm:$0xff]
  %v95 = vld [vmem:[%s0 + $0xc8] sm:$0xff]
  %v96 = vld [vmem:[%s0 + $0xd0] sm:$0xff]
  %v97 = vld [vmem:[%s0 + $0xd8] sm:$0xff]
  %v98 = vld [vmem:[%s0 + $0xe0] sm:$0xff]
  %v99 = vld [vmem:[%s0 + $0xe8] sm:$0xff]
  %v100 = vld [vmem:[%s0 + $0xf0] sm:$0xff]
  %v101 = vld [vmem:[%s0 + $0xf8] sm:$0xff]
  %v102 = vld [vmem:[%s0 + $0x100] sm:$0xff]
  %v103 = vld [vmem:[%s0 + $0x108] sm:$0xff]
  %v104 = vld [vmem:[%s0 + $0x110] sm:$0xff]
  %v105 = vld [vmem:[%s0 + $0x118] sm:$0xff]
  %v106 = vld [vmem:[%s0 + $0x120] sm:$0xff]
  %v107 = vld [vmem:[%s0 + $0x128] sm:$0xff]
  %v108 = vld [vmem:[%s0 + $0x130] sm:$0xff]
  %v109 = vld [vmem:[%s0 + $0x138] sm:$0xff]
  %v110 = vld [vmem:[%s0 + $0x140] sm:$0xff]
  %v111 = vld [vmem:[%s0 + $0x148] sm:$0xff]
  %v112 = vld [vmem:[%s0 + $0x150] sm:$0xff]
  %v113 = vld [vmem:[%s0 + $0x158] sm:$0xff]
  %v114 = vld [vmem:[%s0 + $0x160] sm:$0xff]
  %v115 = vld [vmem:[%s0 + $0x168] sm:$0xff]
  %v116 = vld [vmem:[%s0 + $0x170] sm:$0xff]
  %v117 = vld [vmem:[%s0 + $0x178] sm:$0xff]
  %v118 = vld [vmem:[%s0 + $0x180] sm:$0xff]
  %v119 = vld [vmem:[%s0 + $0x188] sm:$0xff]
  %v120 = vld [vmem:[%s1] sm:$0xf]
  %v121 = vld [vmem:[%s1 + $0x4] sm:$0xf]
  %v122 = vld [vmem:[%s1 + $0x8] sm:$0xf]
  %v123 = vld [vmem:[%s1 + $0xc] sm:$0xf]
  %v124 = vld [vmem:[%s1 + $0x10] sm:$0xf]
  %v125 = vld [vmem:[%s1 + $0x14] sm:$0xf]
  %v126 = vld [vmem:[%s1 + $0x18] sm:$0xf]
  %v127 = vld [vmem:[%s1 + $0x1c] sm:$0xf]
  %v128 = vld [vmem:[%s1 + $0x20] sm:$0xf]
  %v129 = vld [vmem:[%s1 + $0x24] sm:$0xf]
  %v130 = vld [vmem:[%s1 + $0x28] sm:$0xf]
  %v131 = vld [vmem:[%s1 + $0x2c] sm:$0xf]
  %v132 = vld [vmem:[%s1 + $0x30] sm:$0xf]
  %v133 = vld [vmem:[%s1 + $0x34] sm:$0xf]
  %v134 = vld [vmem:[%s1 + $0x38] sm:$0xf]
  %v135 = vld [vmem:[%s1 + $0x3c] sm:$0xf]
  %v136 = vld [vmem:[%s1 + $0x40] sm:$0xf]
  %v137 = vld [vmem:[%s1 + $0x44] sm:$0xf]
  %v138 = vld [vmem:[%s1 + $0x48] sm:$0xf]
  %v139 = vld [vmem:[%s1 + $0x4c] sm:$0xf]
  %v140 = vld [vmem:[%s1 + $0x50] sm:$0xf]
  %v141 = vld [vmem:[%s1 + $0x54] sm:$0xf]
  %v142 = vld [vmem:[%s1 + $0x58] sm:$0xf]
  %v143 = vld [vmem:[%s1 + $0x5c] sm:$0xf]
  %v144 = vld [vmem:[%s1 + $0x60] sm:$0xf]
  %v145 = vld [vmem:[%s1 + $0x64] sm:$0xf]
  %v146 = vld [vmem:[%s1 + $0x68] sm:$0xf]
  %v147 = vld [vmem:[%s1 + $0x6c] sm:$0xf]
  %v148 = vld [vmem:[%s1 + $0x70] sm:$0xf]
  %v149 = vld [vmem:[%s1 + $0x74] sm:$0xf]
  %v150 = vld [vmem:[%s1 + $0x78] sm:$0xf]
  %v151 = vld [vmem:[%s1 + $0x7c] sm:$0xf]
  %v152 = vld [vmem:[%s1 + $0x80] sm:$0xf]
  %v153 = vld [vmem:[%s1 + $0x84] sm:$0xf]
  %v154 = vld [vmem:[%s1 + $0x88] sm:$0xf]
  %v155 = vld [vmem:[%s1 + $0x8c] sm:$0xf]
  %v156 = vld [vmem:[%s1 + $0x90] sm:$0xf]
  %v157 = vld [vmem:[%s1 + $0x94] sm:$0xf]
  %v158 = vld [vmem:[%s1 + $0x98] sm:$0xf]
  %v159 = vld [vmem:[%s1 + $0x9c] sm:$0xf]
  %v160 = vld [vmem:[%s1 + $0xa0] sm:$0xf]
  %v161 = vld [vmem:[%s1 + $0xa4] sm:$0xf]
  %v162 = vld [vmem:[%s1 + $0xa8] sm:$0xf]
  %v163 = vld [vmem:[%s1 + $0xac] sm:$0xf]
  %v164 = vld [vmem:[%s1 + $0xb0] sm:$0xf]
  %v165 = vld [vmem:[%s1 + $0xb4] sm:$0xf]
  %v166 = vld [vmem:[%s1 + $0xb8] sm:$0xf]
  %v167 = vld [vmem:[%s1 + $0xbc] sm:$0xf]
  %v168 = vld [vmem:[%s1 + $0xc0] sm:$0xf]
  %v169 = vld [vmem:[%s1 + $0xc4] sm:$0xf]
  %v170 = vld [vmem:[%s1 + $0xc8] sm:$0xf]
  %v171 = vld [vmem:[%s1 + $0xcc] sm:$0xf]
  %v172 = vld [vmem:[%s1 + $0xd0] sm:$0xf]
  %v173 = vld [vmem:[%s1 + $0xd4] sm:$0xf]
  %v174 = vld [vmem:[%s1 + $0xd8] sm:$0xf]
  %v175 = vld [vmem:[%s1 + $0xdc] sm:$0xf]
  %v176 = vld [vmem:[%s1 + $0xe0] sm:$0xf]
  %v177 = vld [vmem:[%s1 + $0xe4] sm:$0xf]
  %v178 = vld [vmem:[%s1 + $0xe8] sm:$0xf]
  %v179 = vld [vmem:[%s1 + $0xec] sm:$0xf]
  %v180 = vld [vmem:[%s1 + $0xf0] sm:$0xf]
  %v181 = vld [vmem:[%s1 + $0xf4] sm:$0xf]
  %v182 = vld [vmem:[%s1 + $0xf8] sm:$0xf]
  %v183 = vld [vmem:[%s1 + $0xfc] sm:$0xf]
  %v234 = vunpack.c.l.b16 %v70
  %v235 = vunpack.c.h.b16 %v70
  %v236 = vunpack.c.l.b16 %v71
  %v237 = vunpack.c.h.b16 %v71
  %v238 = vunpack.c.l.b16 %v72
  %v239 = vunpack.c.h.b16 %v72
  %v240 = vunpack.c.l.b16 %v73
  %v241 = vunpack.c.h.b16 %v73
  %v242 = vunpack.c.l.b16 %v74
  %v243 = vunpack.c.h.b16 %v74
  %v244 = vunpack.c.l.b16 %v75
  %v245 = vunpack.c.h.b16 %v75
  %v246 = vunpack.c.l.b16 %v76
  %v247 = vunpack.c.h.b16 %v76
  %v248 = vunpack.c.l.b16 %v77
  %v249 = vunpack.c.h.b16 %v77
  %v250 = vunpack.c.l.b16 %v78
  %v251 = vunpack.c.h.b16 %v78
  %v252 = vunpack.c.l.b16 %v79
  %v253 = vunpack.c.h.b16 %v79
  %v254 = vunpack.c.l.b16 %v80
  %v255 = vunpack.c.h.b16 %v80
  %v256 = vunpack.c.l.b16 %v81
  %v257 = vunpack.c.h.b16 %v81
  %v258 = vunpack.c.l.b16 %v82
  %v259 = vunpack.c.h.b16 %v82
  %v260 = vunpack.c.l.b16 %v83
  %v261 = vunpack.c.h.b16 %v83
  %v262 = vunpack.c.l.b16 %v84
  %v263 = vunpack.c.h.b16 %v84
  %v264 = vunpack.c.l.b16 %v85
  %v265 = vunpack.c.h.b16 %v85
  %v266 = vunpack.c.l.b16 %v86
  %v267 = vunpack.c.h.b16 %v86
  %v268 = vunpack.c.l.b16 %v87
  %v269 = vunpack.c.h.b16 %v87
  %v270 = vunpack.c.l.b16 %v88
  %v271 = vunpack.c.h.b16 %v88
  %v272 = vunpack.c.l.b16 %v89
  %v273 = vunpack.c.h.b16 %v89
  %v274 = vunpack.c.l.b16 %v90
  %v275 = vunpack.c.h.b16 %v90
  %v276 = vunpack.c.l.b16 %v91
  %v277 = vunpack.c.h.b16 %v91
  %v278 = vunpack.c.l.b16 %v92
  %v279 = vunpack.c.h.b16 %v92
  %v280 = vunpack.c.l.b16 %v93
  %v281 = vunpack.c.h.b16 %v93
  %v282 = vunpack.c.l.b16 %v94
  %v283 = vunpack.c.h.b16 %v94
  %v284 = vunpack.c.l.b16 %v95
  %v285 = vunpack.c.h.b16 %v95
  %v286 = vunpack.c.l.b16 %v96
  %v287 = vunpack.c.h.b16 %v96
  %v288 = vunpack.c.l.b16 %v97
  %v289 = vunpack.c.h.b16 %v97
  %v290 = vunpack.c.l.b16 %v98
  %v291 = vunpack.c.h.b16 %v98
  %v292 = vunpack.c.l.b16 %v99
  %v293 = vunpack.c.h.b16 %v99
  %v294 = vunpack.c.l.b16 %v100
  %v295 = vunpack.c.h.b16 %v100
  %v296 = vunpack.c.l.b16 %v101
  %v297 = vunpack.c.h.b16 %v101
  %v298 = vunpack.c.l.b16 %v102
  %v299 = vunpack.c.h.b16 %v102
  %v300 = vunpack.c.l.b16 %v103
  %v301 = vunpack.c.h.b16 %v103
  %v302 = vunpack.c.l.b16 %v104
  %v303 = vunpack.c.h.b16 %v104
  %v304 = vunpack.c.l.b16 %v105
  %v305 = vunpack.c.h.b16 %v105
  %v306 = vunpack.c.l.b16 %v106
  %v307 = vunpack.c.h.b16 %v106
  %v308 = vunpack.c.l.b16 %v107
  %v309 = vunpack.c.h.b16 %v107
  %v310 = vunpack.c.l.b16 %v108
  %v311 = vunpack.c.h.b16 %v108
  %v312 = vunpack.c.l.b16 %v109
  %v313 = vunpack.c.h.b16 %v109
  %v314 = vunpack.c.l.b16 %v110
  %v315 = vunpack.c.h.b16 %v110
  %v316 = vunpack.c.l.b16 %v111
  %v317 = vunpack.c.h.b16 %v111
  %v318 = vunpack.c.l.b16 %v112
  %v319 = vunpack.c.h.b16 %v112
  %v320 = vunpack.c.l.b16 %v113
  %v321 = vunpack.c.h.b16 %v113
  %v322 = vunpack.c.l.b16 %v114
  %v323 = vunpack.c.h.b16 %v114
  %v324 = vunpack.c.l.b16 %v115
  %v325 = vunpack.c.h.b16 %v115
  %v326 = vunpack.c.l.b16 %v116
  %v327 = vunpack.c.h.b16 %v116
  %v328 = vunpack.c.l.b16 %v117
  %v329 = vunpack.c.h.b16 %v117
  %v330 = vunpack.c.l.b16 %v118
  %v331 = vunpack.c.h.b16 %v118
  %v332 = vunpack.c.l.b16 %v119
  %v333 = vunpack.c.h.b16 %v119
  %v334 = vpack.c.b16 %v238, %v234
  %v335 = vpack.c.b16 %v239, %v235
  %v336 = vpack.c.b16 %v240, %v236
  %v337 = vpack.c.b16 %v241, %v237
  %v338 = vpack.c.b16 %v246, %v242
  %v339 = vpack.c.b16 %v247, %v243
  %v340 = vpack.c.b16 %v248, %v244
  %v341 = vpack.c.b16 %v249, %v245
  %v342 = vpack.c.b16 %v254, %v250
  %v343 = vpack.c.b16 %v255, %v251
  %v344 = vpack.c.b16 %v256, %v252
  %v345 = vpack.c.b16 %v257, %v253
  %v346 = vpack.c.b16 %v262, %v258
  %v347 = vpack.c.b16 %v263, %v259
  %v348 = vpack.c.b16 %v264, %v260
  %v349 = vpack.c.b16 %v265, %v261
  %v350 = vpack.c.b16 %v270, %v266
  %v351 = vpack.c.b16 %v271, %v267
  %v352 = vpack.c.b16 %v272, %v268
  %v353 = vpack.c.b16 %v273, %v269
  %v354 = vpack.c.b16 %v278, %v274
  %v355 = vpack.c.b16 %v279, %v275
  %v356 = vpack.c.b16 %v280, %v276
  %v357 = vpack.c.b16 %v281, %v277
  %v358 = vpack.c.b16 %v286, %v282
  %v359 = vpack.c.b16 %v287, %v283
  %v360 = vpack.c.b16 %v288, %v284
  %v361 = vpack.c.b16 %v289, %v285
  %v362 = vpack.c.b16 %v294, %v290
  %v363 = vpack.c.b16 %v295, %v291
  %v364 = vpack.c.b16 %v296, %v292
  %v365 = vpack.c.b16 %v297, %v293
  %v366 = vpack.c.b16 %v302, %v298
  %v367 = vpack.c.b16 %v303, %v299
  %v368 = vpack.c.b16 %v304, %v300
  %v369 = vpack.c.b16 %v305, %v301
  %v370 = vpack.c.b16 %v310, %v306
  %v371 = vpack.c.b16 %v311, %v307
  %v372 = vpack.c.b16 %v312, %v308
  %v373 = vpack.c.b16 %v313, %v309
  %v374 = vpack.c.b16 %v318, %v314
  %v375 = vpack.c.b16 %v319, %v315
  %v376 = vpack.c.b16 %v320, %v316
  %v377 = vpack.c.b16 %v321, %v317
  %v378 = vpack.c.b16 %v326, %v322
  %v379 = vpack.c.b16 %v327, %v323
  %v380 = vpack.c.b16 %v328, %v324
  %v381 = vpack.c.b16 %v329, %v325
  %v382 = vpack.c.b16 %v330, %v330
  %v383 = vpack.c.b16 %v331, %v331
  %v384 = vpack.c.b16 %v332, %v332
  %v385 = vpack.c.b16 %v333, %v333
  %v502 = vunpack.c.l.b16 %v120
  %v503 = vunpack.c.l.b16 %v121
  %v504 = vunpack.c.l.b16 %v122
  %v505 = vunpack.c.l.b16 %v123
  %v506 = vunpack.c.l.b16 %v124
  %v507 = vunpack.c.l.b16 %v125
  %v508 = vunpack.c.l.b16 %v126
  %v509 = vunpack.c.l.b16 %v127
  %v510 = vunpack.c.l.b16 %v128
  %v511 = vunpack.c.l.b16 %v129
  %v512 = vunpack.c.l.b16 %v130
  %v513 = vunpack.c.l.b16 %v131
  %v514 = vunpack.c.l.b16 %v132
  %v515 = vunpack.c.l.b16 %v133
  %v516 = vunpack.c.l.b16 %v134
  %v517 = vunpack.c.l.b16 %v135
  %v518 = vunpack.c.l.b16 %v136
  %v519 = vunpack.c.l.b16 %v137
  %v520 = vunpack.c.l.b16 %v138
  %v521 = vunpack.c.l.b16 %v139
  %v522 = vunpack.c.l.b16 %v140
  %v523 = vunpack.c.l.b16 %v141
  %v524 = vunpack.c.l.b16 %v142
  %v525 = vunpack.c.l.b16 %v143
  %v526 = vunpack.c.l.b16 %v144
  %v527 = vunpack.c.l.b16 %v145
  %v528 = vunpack.c.l.b16 %v146
  %v529 = vunpack.c.l.b16 %v147
  %v530 = vunpack.c.l.b16 %v148
  %v531 = vunpack.c.l.b16 %v149
  %v532 = vunpack.c.l.b16 %v150
  %v533 = vunpack.c.l.b16 %v151
  %v534 = vunpack.c.l.b16 %v152
  %v535 = vunpack.c.l.b16 %v153
  %v536 = vunpack.c.l.b16 %v154
  %v537 = vunpack.c.l.b16 %v155
  %v538 = vunpack.c.l.b16 %v156
  %v539 = vunpack.c.l.b16 %v157
  %v540 = vunpack.c.l.b16 %v158
  %v541 = vunpack.c.l.b16 %v159
  %v542 = vunpack.c.l.b16 %v160
  %v543 = vunpack.c.l.b16 %v161
  %v544 = vunpack.c.l.b16 %v162
  %v545 = vunpack.c.l.b16 %v163
  %v546 = vunpack.c.l.b16 %v164
  %v547 = vunpack.c.l.b16 %v165
  %v548 = vunpack.c.l.b16 %v166
  %v549 = vunpack.c.l.b16 %v167
  %v550 = vunpack.c.l.b16 %v168
  %v551 = vunpack.c.l.b16 %v169
  %v552 = vunpack.c.l.b16 %v170
  %v553 = vunpack.c.l.b16 %v171
  %v554 = vunpack.c.l.b16 %v172
  %v555 = vunpack.c.l.b16 %v173
  %v556 = vunpack.c.l.b16 %v174
  %v557 = vunpack.c.l.b16 %v175
  %v558 = vunpack.c.l.b16 %v176
  %v559 = vunpack.c.l.b16 %v177
  %v560 = vunpack.c.l.b16 %v178
  %v561 = vunpack.c.l.b16 %v179
  %v562 = vunpack.c.l.b16 %v180
  %v563 = vunpack.c.l.b16 %v181
  %v564 = vunpack.c.l.b16 %v182
  %v565 = vunpack.c.l.b16 %v183
  %v566 = vpack.c.b16 %v503, %v502
  %v567 = vpack.c.b16 %v505, %v504
  %v568 = vpack.c.b16 %v507, %v506
  %v569 = vpack.c.b16 %v509, %v508
  %v570 = vpack.c.b16 %v511, %v510
  %v571 = vpack.c.b16 %v513, %v512
  %v572 = vpack.c.b16 %v515, %v514
  %v573 = vpack.c.b16 %v517, %v516
  %v574 = vpack.c.b16 %v519, %v518
  %v575 = vpack.c.b16 %v521, %v520
  %v576 = vpack.c.b16 %v523, %v522
  %v577 = vpack.c.b16 %v525, %v524
  %v578 = vpack.c.b16 %v527, %v526
  %v579 = vpack.c.b16 %v529, %v528
  %v580 = vpack.c.b16 %v531, %v530
  %v581 = vpack.c.b16 %v533, %v532
  %v582 = vpack.c.b16 %v535, %v534
  %v583 = vpack.c.b16 %v537, %v536
  %v584 = vpack.c.b16 %v539, %v538
  %v585 = vpack.c.b16 %v541, %v540
  %v586 = vpack.c.b16 %v543, %v542
  %v587 = vpack.c.b16 %v545, %v544
  %v588 = vpack.c.b16 %v547, %v546
  %v589 = vpack.c.b16 %v549, %v548
  %v590 = vpack.c.b16 %v551, %v550
  %v591 = vpack.c.b16 %v553, %v552
  %v592 = vpack.c.b16 %v555, %v554
  %v593 = vpack.c.b16 %v557, %v556
  %v594 = vpack.c.b16 %v559, %v558
  %v595 = vpack.c.b16 %v561, %v560
  %v596 = vpack.c.b16 %v563, %v562
  %v597 = vpack.c.b16 %v565, %v564
  %630 = vmatprep.subr.bf16.mxu0 0
  %631 = vmatpush1.bf16.msra.mxu0 %v566
  %632 = vmatprep.subr.bf16.mxu0 0
  %633 = vmatpush1.bf16.msra.mxu0 %v567
  %634 = vmatprep.subr.bf16.mxu0 0
  %635 = vmatpush1.bf16.msra.mxu0 %v568
  %636 = vmatprep.subr.bf16.mxu0 0
  %637 = vmatpush1.bf16.msra.mxu0 %v569
  %638 = vmatprep.subr.bf16.mxu0 0
  %639 = vmatpush1.bf16.msra.mxu0 %v570
  %640 = vmatprep.subr.bf16.mxu0 0
  %641 = vmatpush1.bf16.msra.mxu0 %v571
  %642 = vmatprep.subr.bf16.mxu0 0
  %643 = vmatpush1.bf16.msra.mxu0 %v572
  %644 = vmatprep.subr.bf16.mxu0 0
  %645 = vmatpush1.bf16.msra.mxu0 %v573
  %646 = vmatprep.subr.bf16.mxu0 0
  %647 = vmatpush1.bf16.msra.mxu0 %v574
  %648 = vmatprep.subr.bf16.mxu0 0
  %649 = vmatpush1.bf16.msra.mxu0 %v575
  %650 = vmatprep.subr.bf16.mxu0 0
  %651 = vmatpush1.bf16.msra.mxu0 %v576
  %652 = vmatprep.subr.bf16.mxu0 0
  %653 = vmatpush1.bf16.msra.mxu0 %v577
  %654 = vmatprep.subr.bf16.mxu0 0
  %655 = vmatpush1.bf16.msra.mxu0 %v578
  %656 = vmatprep.subr.bf16.mxu0 0
  %657 = vmatpush1.bf16.msra.mxu0 %v579
  %658 = vmatprep.subr.bf16.mxu0 0
  %659 = vmatpush1.bf16.msra.mxu0 %v580
  %660 = vmatprep.subr.bf16.mxu0 0
  %661 = vmatpush1.bf16.msra.mxu0 %v581
  %662 = vmatprep.mubr.bf16.mxu0 %v335
  %663 = vmatmul.mubr.bf16.gmra.mrb[0].mxu0 %v334
  %v664 = vpop.f32.mrb[0].mxu0
  %v665 = vadd.f32 0.0, %v664
  %v666 = vpop.f32.mrb[0].mxu0
  %v667 = vpop.f32.mrb[0].mxu0
  %v668 = vadd.f32 0.0, %v667
  %v669 = vpop.f32.mrb[0].mxu0
  %670 = vmatprep.mubr.bf16.mxu0 %v339
  %671 = vmatmul.mubr.bf16.gmra.mrb[0].mxu0 %v338
  %v672 = vpop.f32.mrb[0].mxu0
  %v673 = vadd.f32 0.0, %v672
  %v674 = vpop.f32.mrb[0].mxu0
  %v675 = vpop.f32.mrb[0].mxu0
  %v676 = vadd.f32 0.0, %v675
  %v677 = vpop.f32.mrb[0].mxu0
  %678 = vmatprep.mubr.bf16.mxu0 %v343
  %679 = vmatmul.mubr.bf16.gmra.mrb[0].mxu0 %v342
  %v680 = vpop.f32.mrb[0].mxu0
  %v681 = vadd.f32 0.0, %v680
  %v682 = vpop.f32.mrb[0].mxu0
  %v683 = vpop.f32.mrb[0].mxu0
  %v684 = vadd.f32 0.0, %v683
  %v685 = vpop.f32.mrb[0].mxu0
  %686 = vmatprep.mubr.bf16.mxu0 %v347
  %687 = vmatmul.mubr.bf16.gmra.mrb[0].mxu0 %v346
  %v688 = vpop.f32.mrb[0].mxu0
  %v689 = vadd.f32 0.0, %v688
  %v690 = vpop.f32.mrb[0].mxu0
  %v691 = vpop.f32.mrb[0].mxu0
  %v692 = vadd.f32 0.0, %v691
  %v693 = vpop.f32.mrb[0].mxu0
  %694 = vmatprep.mubr.bf16.mxu0 %v351
  %695 = vmatmul.mubr.bf16.gmra.mrb[0].mxu0 %v350
  %v696 = vpop.f32.mrb[0].mxu0
  %v697 = vadd.f32 0.0, %v696
  %v698 = vpop.f32.mrb[0].mxu0
  %v699 = vpop.f32.mrb[0].mxu0
  %v700 = vadd.f32 0.0, %v699
  %v701 = vpop.f32.mrb[0].mxu0
  %702 = vmatprep.mubr.bf16.mxu0 %v355
  %703 = vmatmul.mubr.bf16.gmra.mrb[0].mxu0 %v354
  %v704 = vpop.f32.mrb[0].mxu0
  %v705 = vadd.f32 0.0, %v704
  %v706 = vpop.f32.mrb[0].mxu0
  %v707 = vpop.f32.mrb[0].mxu0
  %v708 = vadd.f32 0.0, %v707
  %v709 = vpop.f32.mrb[0].mxu0
  %710 = vmatprep.mubr.bf16.mxu0 %v359
  %711 = vmatmul.mubr.bf16.gmra.mrb[0].mxu0 %v358
  %v712 = vpop.f32.mrb[0].mxu0
  %v713 = vadd.f32 0.0, %v712
  %v714 = vpop.f32.mrb[0].mxu0
  %v715 = vpop.f32.mrb[0].mxu0
  %v716 = vadd.f32 0.0, %v715
  %v717 = vpop.f32.mrb[0].mxu0
  %718 = vmatprep.mubr.bf16.mxu0 %v363
  %719 = vmatmul.mubr.bf16.gmra.mrb[0].mxu0 %v362
  %v720 = vpop.f32.mrb[0].mxu0
  %v721 = vadd.f32 0.0, %v720
  %v722 = vpop.f32.mrb[0].mxu0
  %v723 = vpop.f32.mrb[0].mxu0
  %v724 = vadd.f32 0.0, %v723
  %v725 = vpop.f32.mrb[0].mxu0
  %726 = vmatprep.mubr.bf16.mxu0 %v367
  %727 = vmatmul.mubr.bf16.gmra.mrb[0].mxu0 %v366
  %v728 = vpop.f32.mrb[0].mxu0
  %v729 = vadd.f32 0.0, %v728
  %v730 = vpop.f32.mrb[0].mxu0
  %v731 = vpop.f32.mrb[0].mxu0
  %v732 = vadd.f32 0.0, %v731
  %v733 = vpop.f32.mrb[0].mxu0
  %734 = vmatprep.mubr.bf16.mxu0 %v371
  %735 = vmatmul.mubr.bf16.gmra.mrb[0].mxu0 %v370
  %v736 = vpop.f32.mrb[0].mxu0
  %v737 = vadd.f32 0.0, %v736
  %v738 = vpop.f32.mrb[0].mxu0
  %v739 = vpop.f32.mrb[0].mxu0
  %v740 = vadd.f32 0.0, %v739
  %v741 = vpop.f32.mrb[0].mxu0
  %742 = vmatprep.mubr.bf16.mxu0 %v375
  %743 = vmatmul.mubr.bf16.gmra.mrb[0].mxu0 %v374
  %v744 = vpop.f32.mrb[0].mxu0
  %v745 = vadd.f32 0.0, %v744
  %v746 = vpop.f32.mrb[0].mxu0
  %v747 = vpop.f32.mrb[0].mxu0
  %v748 = vadd.f32 0.0, %v747
  %v749 = vpop.f32.mrb[0].mxu0
  %750 = vmatprep.mubr.bf16.mxu0 %v379
  %751 = vmatmul.mubr.bf16.gmra.mrb[0].mxu0 %v378
  %v752 = vpop.f32.mrb[0].mxu0
  %v753 = vadd.f32 0.0, %v752
  %v754 = vpop.f32.mrb[0].mxu0
  %v755 = vpop.f32.mrb[0].mxu0
  %v756 = vadd.f32 0.0, %v755
  %v757 = vpop.f32.mrb[0].mxu0
  %758 = vmatprep.mubr.bf16.mxu0 %v383
  %759 = vmatmul.mubr.bf16.gmra.mrb[0].mxu0 %v382
  %v760 = vpop.f32.mrb[0].mxu0
  %v761 = vadd.f32 0.0, %v760
  %v762 = vpop.f32.mrb[0].mxu0
  %v763 = vpop.f32.mrb[0].mxu0
  %v764 = vpop.f32.mrb[0].mxu0
  %765 = vdwg.mxu0
  %766 = vmatprep.subr.bf16.mxu0 0
  %767 = vmatpush1.bf16.msra.mxu0 %v582
  %768 = vmatprep.subr.bf16.mxu0 0
  %769 = vmatpush1.bf16.msra.mxu0 %v583
  %770 = vmatprep.subr.bf16.mxu0 0
  %771 = vmatpush1.bf16.msra.mxu0 %v584
  %772 = vmatprep.subr.bf16.mxu0 0
  %773 = vmatpush1.bf16.msra.mxu0 %v585
  %774 = vmatprep.subr.bf16.mxu0 0
  %775 = vmatpush1.bf16.msra.mxu0 %v586
  %776 = vmatprep.subr.bf16.mxu0 0
  %777 = vmatpush1.bf16.msra.mxu0 %v587
  %778 = vmatprep.subr.bf16.mxu0 0
  %779 = vmatpush1.bf16.msra.mxu0 %v588
  %780 = vmatprep.subr.bf16.mxu0 0
  %781 = vmatpush1.bf16.msra.mxu0 %v589
  %782 = vmatprep.subr.bf16.mxu0 0
  %783 = vmatpush1.bf16.msra.mxu0 %v590
  %784 = vmatprep.subr.bf16.mxu0 0
  %785 = vmatpush1.bf16.msra.mxu0 %v591
  %786 = vmatprep.subr.bf16.mxu0 0
  %787 = vmatpush1.bf16.msra.mxu0 %v592
  %788 = vmatprep.subr.bf16.mxu0 0
  %789 = vmatpush1.bf16.msra.mxu0 %v593
  %790 = vmatprep.subr.bf16.mxu0 0
  %791 = vmatpush1.bf16.msra.mxu0 %v594
  %792 = vmatprep.subr.bf16.mxu0 0
  %793 = vmatpush1.bf16.msra.mxu0 %v595
  %794 = vmatprep.subr.bf16.mxu0 0
  %795 = vmatpush1.bf16.msra.mxu0 %v596
  %796 = vmatprep.subr.bf16.mxu0 0
  %797 = vmatpush1.bf16.msra.mxu0 %v597
  %798 = vmatprep.mubr.bf16.mxu0 %v337
  %799 = vmatmul.mubr.bf16.gmra.mrb[0].mxu0 %v336
  %v800 = vpop.f32.mrb[0].mxu0
  %v801 = vadd.f32 %v665, %v800
  %v802 = vpop.f32.mrb[0].mxu0
  %v803 = vpop.f32.mrb[0].mxu0
  %v804 = vadd.f32 %v668, %v803
  %v805 = vpop.f32.mrb[0].mxu0
  %806 = vmatprep.mubr.bf16.mxu0 %v341
  %807 = vmatmul.mubr.bf16.gmra.mrb[0].mxu0 %v340
  %v808 = vpop.f32.mrb[0].mxu0
  %v809 = vadd.f32 %v673, %v808
  %v810 = vpop.f32.mrb[0].mxu0
  %v811 = vpop.f32.mrb[0].mxu0
  %v812 = vadd.f32 %v676, %v811
  %v813 = vpop.f32.mrb[0].mxu0
  %814 = vmatprep.mubr.bf16.mxu0 %v345
  %815 = vmatmul.mubr.bf16.gmra.mrb[0].mxu0 %v344
  %v816 = vpop.f32.mrb[0].mxu0
  %v817 = vadd.f32 %v681, %v816
  %v818 = vpop.f32.mrb[0].mxu0
  %v819 = vpop.f32.mrb[0].mxu0
  %v820 = vadd.f32 %v684, %v819
  %v821 = vpop.f32.mrb[0].mxu0
  %822 = vmatprep.mubr.bf16.mxu0 %v349
  %823 = vmatmul.mubr.bf16.gmra.mrb[0].mxu0 %v348
  %v824 = vpop.f32.mrb[0].mxu0
  %v825 = vadd.f32 %v689, %v824
  %v826 = vpop.f32.mrb[0].mxu0
  %v827 = vpop.f32.mrb[0].mxu0
  %v828 = vadd.f32 %v692, %v827
  %v829 = vpop.f32.mrb[0].mxu0
  %830 = vmatprep.mubr.bf16.mxu0 %v353
  %831 = vmatmul.mubr.bf16.gmra.mrb[0].mxu0 %v352
  %v832 = vpop.f32.mrb[0].mxu0
  %v833 = vadd.f32 %v697, %v832
  %v834 = vpop.f32.mrb[0].mxu0
  %v835 = vpop.f32.mrb[0].mxu0
  %v836 = vadd.f32 %v700, %v835
  %v837 = vpop.f32.mrb[0].mxu0
  %838 = vmatprep.mubr.bf16.mxu0 %v357
  %839 = vmatmul.mubr.bf16.gmra.mrb[0].mxu0 %v356
  %v840 = vpop.f32.mrb[0].mxu0
  %v841 = vadd.f32 %v705, %v840
  %v842 = vpop.f32.mrb[0].mxu0
  %v843 = vpop.f32.mrb[0].mxu0
  %v844 = vadd.f32 %v708, %v843
  %v845 = vpop.f32.mrb[0].mxu0
  %846 = vmatprep.mubr.bf16.mxu0 %v361
  %847 = vmatmul.mubr.bf16.gmra.mrb[0].mxu0 %v360
  %v848 = vpop.f32.mrb[0].mxu0
  %v849 = vadd.f32 %v713, %v848
  %v850 = vpop.f32.mrb[0].mxu0
  %v851 = vpop.f32.mrb[0].mxu0
  %v852 = vadd.f32 %v716, %v851
  %v853 = vpop.f32.mrb[0].mxu0
  %854 = vmatprep.mubr.bf16.mxu0 %v365
  %855 = vmatmul.mubr.bf16.gmra.mrb[0].mxu0 %v364
  %v856 = vpop.f32.mrb[0].mxu0
  %v857 = vadd.f32 %v721, %v856
  %v858 = vpop.f32.mrb[0].mxu0
  %v859 = vpop.f32.mrb[0].mxu0
  %v860 = vadd.f32 %v724, %v859
  %v861 = vpop.f32.mrb[0].mxu0
  %862 = vmatprep.mubr.bf16.mxu0 %v369
  %863 = vmatmul.mubr.bf16.gmra.mrb[0].mxu0 %v368
  %v864 = vpop.f32.mrb[0].mxu0
  %v865 = vadd.f32 %v729, %v864
  %v866 = vpop.f32.mrb[0].mxu0
  %v867 = vpop.f32.mrb[0].mxu0
  %v868 = vadd.f32 %v732, %v867
  %v869 = vpop.f32.mrb[0].mxu0
  %870 = vmatprep.mubr.bf16.mxu0 %v373
  %871 = vmatmul.mubr.bf16.gmra.mrb[0].mxu0 %v372
  %v872 = vpop.f32.mrb[0].mxu0
  %v873 = vadd.f32 %v737, %v872
  %v874 = vpop.f32.mrb[0].mxu0
  %v875 = vpop.f32.mrb[0].mxu0
  %v876 = vadd.f32 %v740, %v875
  %v877 = vpop.f32.mrb[0].mxu0
  %878 = vmatprep.mubr.bf16.mxu0 %v377
  %879 = vmatmul.mubr.bf16.gmra.mrb[0].mxu0 %v376
  %v880 = vpop.f32.mrb[0].mxu0
  %v881 = vadd.f32 %v745, %v880
  %v882 = vpop.f32.mrb[0].mxu0
  %v883 = vpop.f32.mrb[0].mxu0
  %v884 = vadd.f32 %v748, %v883
  %v885 = vpop.f32.mrb[0].mxu0
  %886 = vmatprep.mubr.bf16.mxu0 %v381
  %887 = vmatmul.mubr.bf16.gmra.mrb[0].mxu0 %v380
  %v888 = vpop.f32.mrb[0].mxu0
  %v889 = vadd.f32 %v753, %v888
  %v890 = vpop.f32.mrb[0].mxu0
  %v891 = vpop.f32.mrb[0].mxu0
  %v892 = vadd.f32 %v756, %v891
  %v893 = vpop.f32.mrb[0].mxu0
  %894 = vmatprep.mubr.bf16.mxu0 %v385
  %895 = vmatmul.mubr.bf16.gmra.mrb[0].mxu0 %v384
  %v896 = vpop.f32.mrb[0].mxu0
  %v897 = vadd.f32 %v761, %v896
  %v898 = vpop.f32.mrb[0].mxu0
  %v899 = vpop.f32.mrb[0].mxu0
  %v900 = vpop.f32.mrb[0].mxu0
  %901 = vdwg.mxu0
  %v902 = vadd.f32 %v45, %v801
  %v903 = vadd.f32 %v46, %v804
  %v904 = vadd.f32 %v47, %v809
  %v905 = vadd.f32 %v48, %v812
  %v906 = vadd.f32 %v49, %v817
  %v907 = vadd.f32 %v50, %v820
  %v908 = vadd.f32 %v51, %v825
  %v909 = vadd.f32 %v52, %v828
  %v910 = vadd.f32 %v53, %v833
  %v911 = vadd.f32 %v54, %v836
  %v912 = vadd.f32 %v55, %v841
  %v913 = vadd.f32 %v56, %v844
  %v914 = vadd.f32 %v57, %v849
  %v915 = vadd.f32 %v58, %v852
  %v916 = vadd.f32 %v59, %v857
  %v917 = vadd.f32 %v60, %v860
  %v918 = vadd.f32 %v61, %v865
  %v919 = vadd.f32 %v62, %v868
  %v920 = vadd.f32 %v63, %v873
  %v921 = vadd.f32 %v64, %v876
  %v922 = vadd.f32 %v65, %v881
  %v923 = vadd.f32 %v66, %v884
  %v924 = vadd.f32 %v67, %v889
  %v925 = vadd.f32 %v68, %v892
  %v926 = vadd.f32 %v69, %v897
  %vm927 = vcmask 261120
  %928 = vst.msk [vmem:[#allocation2] sm:$0xff] %vm927, %v902
  %929 = vst.msk [vmem:[#allocation2 + $0x8] sm:$0xff] %vm927, %v903
  %930 = vst.msk [vmem:[#allocation2 + $0x10] sm:$0xff] %vm927, %v904
  %931 = vst.msk [vmem:[#allocation2 + $0x18] sm:$0xff] %vm927, %v905
  %932 = vst.msk [vmem:[#allocation2 + $0x20] sm:$0xff] %vm927, %v906
  %933 = vst.msk [vmem:[#allocation2 + $0x28] sm:$0xff] %vm927, %v907
  %934 = vst.msk [vmem:[#allocation2 + $0x30] sm:$0xff] %vm927, %v908
  %935 = vst.msk [vmem:[#allocation2 + $0x38] sm:$0xff] %vm927, %v909
  %936 = vst.msk [vmem:[#allocation2 + $0x40] sm:$0xff] %vm927, %v910
  %937 = vst.msk [vmem:[#allocation2 + $0x48] sm:$0xff] %vm927, %v911
  %938 = vst.msk [vmem:[#allocation2 + $0x50] sm:$0xff] %vm927, %v912
  %939 = vst.msk [vmem:[#allocation2 + $0x58] sm:$0xff] %vm927, %v913
  %940 = vst.msk [vmem:[#allocation2 + $0x60] sm:$0xff] %vm927, %v914
  %941 = vst.msk [vmem:[#allocation2 + $0x68] sm:$0xff] %vm927, %v915
  %942 = vst.msk [vmem:[#allocation2 + $0x70] sm:$0xff] %vm927, %v916
  %943 = vst.msk [vmem:[#allocation2 + $0x78] sm:$0xff] %vm927, %v917
  %944 = vst.msk [vmem:[#allocation2 + $0x80] sm:$0xff] %vm927, %v918
  %945 = vst.msk [vmem:[#allocation2 + $0x88] sm:$0xff] %vm927, %v919
  %946 = vst.msk [vmem:[#allocation2 + $0x90] sm:$0xff] %vm927, %v920
  %947 = vst.msk [vmem:[#allocation2 + $0x98] sm:$0xff] %vm927, %v921
  %948 = vst.msk [vmem:[#allocation2 + $0xa0] sm:$0xff] %vm927, %v922
  %949 = vst.msk [vmem:[#allocation2 + $0xa8] sm:$0xff] %vm927, %v923
  %950 = vst.msk [vmem:[#allocation2 + $0xb0] sm:$0xff] %vm927, %v924
  %951 = vst.msk [vmem:[#allocation2 + $0xb8] sm:$0xff] %vm927, %v925
  %952 = vst.msk [vmem:[#allocation2 + $0xc0] sm:$0xff] %vm927, %v926
  // Predicated region
  $region18: #{conv_feature_forward.7} parent=0 // pred_check
    %p953 = pneg %p15
  $region19: #{conv_feature_forward.7} parent=0 // pred_check_branch
    %955 = sbr.rel (%p953) target = $region21
  $region20: #{conv_feature_forward.7} parent=0 // pred_region
    %v956 = vld [vmem:[#allocation2] sm:$0xff]
    %v957 = vld [vmem:[#allocation2 + $0x8] sm:$0xff]
    %v958 = vld [vmem:[#allocation2 + $0x10] sm:$0xff]
    %v959 = vld [vmem:[#allocation2 + $0x18] sm:$0xff]
    %v960 = vld [vmem:[#allocation2 + $0x20] sm:$0xff]
    %v961 = vld [vmem:[#allocation2 + $0x28] sm:$0xff]
    %v962 = vld [vmem:[#allocation2 + $0x30] sm:$0xff]
    %v963 = vld [vmem:[#allocation2 + $0x38] sm:$0xff]
    %v964 = vld [vmem:[#allocation2 + $0x40] sm:$0xff]
    %v965 = vld [vmem:[#allocation2 + $0x48] sm:$0xff]
    %v966 = vld [vmem:[#allocation2 + $0x50] sm:$0xff]
    %v967 = vld [vmem:[#allocation2 + $0x58] sm:$0xff]
    %v968 = vld [vmem:[#allocation2 + $0x60] sm:$0xff]
    %v969 = vld [vmem:[#allocation2 + $0x68] sm:$0xff]
    %v970 = vld [vmem:[#allocation2 + $0x70] sm:$0xff]
    %v971 = vld [vmem:[#allocation2 + $0x78] sm:$0xff]
    %v972 = vld [vmem:[#allocation2 + $0x80] sm:$0xff]
    %v973 = vld [vmem:[#allocation2 + $0x88] sm:$0xff]
    %v974 = vld [vmem:[#allocation2 + $0x90] sm:$0xff]
    %v975 = vld [vmem:[#allocation2 + $0x98] sm:$0xff]
    %v976 = vld [vmem:[#allocation2 + $0xa0] sm:$0xff]
    %v977 = vld [vmem:[#allocation2 + $0xa8] sm:$0xff]
    %v978 = vld [vmem:[#allocation2 + $0xb0] sm:$0xff]
    %v979 = vld [vmem:[#allocation2 + $0xb8] sm:$0xff]
    %v980 = vld [vmem:[#allocation2 + $0xc0] sm:$0xff]
    %v981 = vld [vmem:[%s2] sm:$0x1]
    %v983 = vlaneseq
    %v984 = vshrl.u32 %v983, 7
    %v985 = vsub.s32 0, %v984
    %v986 = vrot.slane %v981, %v985
    %v988 = vadd.f32 %v956, %v986
    %v989 = vadd.f32 %v957, %v986
    %v990 = vadd.f32 %v958, %v986
    %v991 = vadd.f32 %v959, %v986
    %v992 = vadd.f32 %v960, %v986
    %v993 = vadd.f32 %v961, %v986
    %v994 = vadd.f32 %v962, %v986
    %v995 = vadd.f32 %v963, %v986
    %v996 = vadd.f32 %v964, %v986
    %v997 = vadd.f32 %v965, %v986
    %v998 = vadd.f32 %v966, %v986
    %v999 = vadd.f32 %v967, %v986
    %v1000 = vadd.f32 %v968, %v986
    %v1001 = vadd.f32 %v969, %v986
    %v1002 = vadd.f32 %v970, %v986
    %v1003 = vadd.f32 %v971, %v986
    %v1004 = vadd.f32 %v972, %v986
    %v1005 = vadd.f32 %v973, %v986
    %v1006 = vadd.f32 %v974, %v986
    %v1007 = vadd.f32 %v975, %v986
    %v1008 = vadd.f32 %v976, %v986
    %v1009 = vadd.f32 %v977, %v986
    %v1010 = vadd.f32 %v978, %v986
    %v1011 = vadd.f32 %v979, %v986
    %v1012 = vadd.f32 %v980, %v986
    %v1013 = vmax.f32 %v988, 0.0
    %v1014 = vmax.f32 %v989, 0.0
    %v1015 = vmax.f32 %v990, 0.0
    %v1016 = vmax.f32 %v991, 0.0
    %v1017 = vmax.f32 %v992, 0.0
    %v1018 = vmax.f32 %v993, 0.0
    %v1019 = vmax.f32 %v994, 0.0
    %v1020 = vmax.f32 %v995, 0.0
    %v1021 = vmax.f32 %v996, 0.0
    %v1022 = vmax.f32 %v997, 0.0
    %v1023 = vmax.f32 %v998, 0.0
    %v1024 = vmax.f32 %v999, 0.0
    %v1025 = vmax.f32 %v1000, 0.0
    %v1026 = vmax.f32 %v1001, 0.0
    %v1027 = vmax.f32 %v1002, 0.0
    %v1028 = vmax.f32 %v1003, 0.0
    %v1029 = vmax.f32 %v1004, 0.0
    %v1030 = vmax.f32 %v1005, 0.0
    %v1031 = vmax.f32 %v1006, 0.0
    %v1032 = vmax.f32 %v1007, 0.0
    %v1033 = vmax.f32 %v1008, 0.0
    %v1034 = vmax.f32 %v1009, 0.0
    %v1035 = vmax.f32 %v1010, 0.0
    %v1036 = vmax.f32 %v1011, 0.0
    %v1037 = vmax.f32 %v1012, 0.0
    %v1038 = vpack.c.bf16 %v1014, %v1013
    %v1039 = vpack.c.bf16 %v1016, %v1015
    %v1040 = vpack.c.bf16 %v1018, %v1017
    %v1041 = vpack.c.bf16 %v1020, %v1019
    %v1042 = vpack.c.bf16 %v1022, %v1021
    %v1043 = vpack.c.bf16 %v1024, %v1023
    %v1044 = vpack.c.bf16 %v1026, %v1025
    %v1045 = vpack.c.bf16 %v1028, %v1027
    %v1046 = vpack.c.bf16 %v1030, %v1029
    %v1047 = vpack.c.bf16 %v1032, %v1031
    %v1048 = vpack.c.bf16 %v1034, %v1033
    %v1049 = vpack.c.bf16 %v1036, %v1035
    %v1050 = vpack.c.bf16 %v1037, %v1037
    %v1064 = vunpack.c.l.b16 %v1038
    %v1065 = vunpack.c.h.b16 %v1038
    %v1066 = vunpack.c.l.b16 %v1039
    %v1067 = vunpack.c.h.b16 %v1039
    %v1068 = vunpack.c.l.b16 %v1040
    %v1069 = vunpack.c.h.b16 %v1040
    %v1070 = vunpack.c.l.b16 %v1041
    %v1071 = vunpack.c.h.b16 %v1041
    %v1072 = vunpack.c.l.b16 %v1042
    %v1073 = vunpack.c.h.b16 %v1042
    %v1074 = vunpack.c.l.b16 %v1043
    %v1075 = vunpack.c.h.b16 %v1043
    %v1076 = vunpack.c.l.b16 %v1044
    %v1077 = vunpack.c.h.b16 %v1044
    %v1078 = vunpack.c.l.b16 %v1045
    %v1079 = vunpack.c.h.b16 %v1045
    %v1080 = vunpack.c.l.b16 %v1046
    %v1081 = vunpack.c.h.b16 %v1046
    %v1082 = vunpack.c.l.b16 %v1047
    %v1083 = vunpack.c.h.b16 %v1047
    %v1084 = vunpack.c.l.b16 %v1048
    %v1085 = vunpack.c.h.b16 %v1048
    %v1086 = vunpack.c.l.b16 %v1049
    %v1087 = vunpack.c.h.b16 %v1049
    %v1088 = vunpack.c.l.b16 %v1050
    %v1089 = vpack.c.b16 %v1064, %v1064
    %v1090 = vpack.c.b16 %v1065, %v1065
    %v1091 = vpack.c.b16 %v1066, %v1066
    %v1092 = vpack.c.b16 %v1067, %v1067
    %v1093 = vpack.c.b16 %v1068, %v1068
    %v1094 = vpack.c.b16 %v1069, %v1069
    %v1095 = vpack.c.b16 %v1070, %v1070
    %v1096 = vpack.c.b16 %v1071, %v1071
    %v1097 = vpack.c.b16 %v1072, %v1072
    %v1098 = vpack.c.b16 %v1073, %v1073
    %v1099 = vpack.c.b16 %v1074, %v1074
    %v1100 = vpack.c.b16 %v1075, %v1075
    %v1101 = vpack.c.b16 %v1076, %v1076
    %v1102 = vpack.c.b16 %v1077, %v1077
    %v1103 = vpack.c.b16 %v1078, %v1078
    %v1104 = vpack.c.b16 %v1079, %v1079
    %v1105 = vpack.c.b16 %v1080, %v1080
    %v1106 = vpack.c.b16 %v1081, %v1081
    %v1107 = vpack.c.b16 %v1082, %v1082
    %v1108 = vpack.c.b16 %v1083, %v1083
    %v1109 = vpack.c.b16 %v1084, %v1084
    %v1110 = vpack.c.b16 %v1085, %v1085
    %v1111 = vpack.c.b16 %v1086, %v1086
    %v1112 = vpack.c.b16 %v1087, %v1087
    %v1113 = vpack.c.b16 %v1088, %v1088
    %vm1139 = vcmask 257024
    %1140 = vst.msk [vmem:[%s3] sm:$0xf] %vm1139, %v1089
    %1141 = vst.msk [vmem:[%s3 + $0x4] sm:$0xf] %vm1139, %v1090
    %1142 = vst.msk [vmem:[%s3 + $0x8] sm:$0xf] %vm1139, %v1091
    %1143 = vst.msk [vmem:[%s3 + $0xc] sm:$0xf] %vm1139, %v1092
    %1144 = vst.msk [vmem:[%s3 + $0x10] sm:$0xf] %vm1139, %v1093
    %1145 = vst.msk [vmem:[%s3 + $0x14] sm:$0xf] %vm1139, %v1094
    %1146 = vst.msk [vmem:[%s3 + $0x18] sm:$0xf] %vm1139, %v1095
    %1147 = vst.msk [vmem:[%s3 + $0x1c] sm:$0xf] %vm1139, %v1096
    %1148 = vst.msk [vmem:[%s3 + $0x20] sm:$0xf] %vm1139, %v1097
    %1149 = vst.msk [vmem:[%s3 + $0x24] sm:$0xf] %vm1139, %v1098
    %1150 = vst.msk [vmem:[%s3 + $0x28] sm:$0xf] %vm1139, %v1099
    %1151 = vst.msk [vmem:[%s3 + $0x2c] sm:$0xf] %vm1139, %v1100
    %1152 = vst.msk [vmem:[%s3 + $0x30] sm:$0xf] %vm1139, %v1101
    %1153 = vst.msk [vmem:[%s3 + $0x34] sm:$0xf] %vm1139, %v1102
    %1154 = vst.msk [vmem:[%s3 + $0x38] sm:$0xf] %vm1139, %v1103
    %1155 = vst.msk [vmem:[%s3 + $0x3c] sm:$0xf] %vm1139, %v1104
    %1156 = vst.msk [vmem:[%s3 + $0x40] sm:$0xf] %vm1139, %v1105
    %1157 = vst.msk [vmem:[%s3 + $0x44] sm:$0xf] %vm1139, %v1106
    %1158 = vst.msk [vmem:[%s3 + $0x48] sm:$0xf] %vm1139, %v1107
    %1159 = vst.msk [vmem:[%s3 + $0x4c] sm:$0xf] %vm1139, %v1108
    %1160 = vst.msk [vmem:[%s3 + $0x50] sm:$0xf] %vm1139, %v1109
    %1161 = vst.msk [vmem:[%s3 + $0x54] sm:$0xf] %vm1139, %v1110
    %1162 = vst.msk [vmem:[%s3 + $0x58] sm:$0xf] %vm1139, %v1111
    %1163 = vst.msk [vmem:[%s3 + $0x5c] sm:$0xf] %vm1139, %v1112
    %1164 = vst.msk [vmem:[%s3 + $0x60] sm:$0xf] %vm1139, %v1113
  $region21: #{conv_feature_forward.7} parent=0 // pred_fallthru
    _
  // Predicated region
  $region22: #{conv_feature_forward.7} parent=0 // pred_check
    _
  $region23: #{conv_feature_forward.7} parent=0 // pred_check_branch
    %1166 = sbr.rel (0) target = $region25
  $region24: #{conv_feature_forward.7} parent=0 // pred_region
    _
  $region25: #{conv_feature_forward.7} parent=0 // pred_fallthru
    _
  // Predicated region
  $region26: #{conv_feature_forward.7} parent=0 // pred_check
    _
  $region27: #{conv_feature_forward.7} parent=0 // pred_check_branch
    %1168 = sbr.rel (0) target = $region29
  $region28: #{conv_feature_forward.7} parent=0 // pred_region
    _
  $region29: #{conv_feature_forward.7} parent=0 // pred_fallthru
    _

// kernel: conv_feature_forward.8
$region0: #{conv_feature_forward.8}
  #allocation0 [shape = 'u32[]', space=smem, size = 0x4, offset = 0x4, fixed_abs, tag = 'smem constant byte address 0x4 - core index']
  #allocation1 [shape = 'u32[144,128]{1,0:T(1,128)}', space=vmem, size = 0x12000, scoped, tag = 'internal scratch']
  #allocation2 [shape = 'f32[72,64]{1,0:T(8,128)}', space=vmem, size = 0x9000, scoped, tag = 'scratch operand']
  %s0 = inlined_call_operand.vmem [shape: bf16[72,896], index: 0, kind: input, shape index: {}]
  %s1 = inlined_call_operand.vmem [shape: bf16[896,64], index: 1, kind: input, shape index: {}]
  %s2 = inlined_call_operand.vmem [shape: f32[1,64], index: 2, kind: input, shape index: {}]
  %s3 = inlined_call_operand.vmem [shape: bf16[72,64], index: 3, kind: output, shape index: {}]
  %s4 = sld [smem:[#allocation0]]
  $region94: #{conv_feature_forward.8} parent=0
    _
  %s6 = ssub.s32 1, %s4
  %s7 = scalar_select 0, %s6, %s4
  $region1: #{conv_feature_forward.8} parent=0
    #allocation3 [shape = 'u8[36864]{0}', space=vmem, size = 0x9000, scoped, tag = 'input window, operand 0']
    loop: start=0, step=1, limit=9
    $region2: #{conv_feature_forward.8} parent=1 // loop_pre_header
      _
    $region3: #{conv_feature_forward.8} parent=1 // loop_header
      %s9 = sphi 0, %s13
      %p10 = scmp.ge.s32.totalorder %s9, 9
      %s16 = sphi 0, %s28
      %s17 = sphi 0, %s24
      %s18 = sphi 0, %s16
      %s19 = sphi 0, %s17
      %s20 = sphi 0, %s18
      %s21 = sphi 0, %s19
      %s31 = sphi 0, %s33
      %s34 = sphi 0, %s31
      %s35 = sphi 0, %s34
      %s51 = sphi 0, %s35
      %s59 = sphi 0, %s61
      %s62 = sphi 0, %s59
      %s63 = sphi 0, %s62
      %s79 = sphi 0, %s63
      %s85 = sphi 0, %s87
      %s88 = sphi 0, %s85
      %s89 = sphi 0, %s88
      %s105 = sphi 0, %s89
      %s111 = sphi 0, %s113
      %s114 = sphi 0, %s111
      %s115 = sphi 0, %s114
      %s131 = sphi 0, %s115
    $region4: #{conv_feature_forward.8} parent=1 // loop_header_branch
      %12 = sbr.rel (%p10) target = $region8
    $region5: #{conv_feature_forward.8} parent=1 // loop_body
      %s14 = ssub.s32 %s9, 1
      %s15 = ssub.s32 %s9, 2
      %s22 = sadd.s32 1, %s17
      %p23 = scmp.ge.s32.totalorder %s22, 7
      %s24 = scalar_select %p23, 0, %s22
      %s25 = sadd.s32 1, %s16
      %s26 = scalar_select %p23, %s25, %s16
      %p27 = scmp.ge.s32.totalorder %s26, 1
      %s28 = scalar_select %p27, 0, %s26
      %s29 = ssub.s32 %s17, %s24
      %p30 = scmp.eq.s32.totalorder %s29, 0
      %s32 = sadd.s32 %s31, 1
      %s33 = scalar_select %p30, %s31, %s32
      %p36 = pneg %p30
      %p37 = scmp.eq.s32.totalorder %s9, 6
      %p38 = por %p36, %p37
      %p39 = scmp.ne.s32.totalorder %s31, %s34
      %p40 = scmp.eq.s32.totalorder %s9, 0
      %p41 = por %p39, %p40
      %p42 = scmp.ne.s32.totalorder %s31, %s34
      %p43 = scmp.eq.s32.totalorder %s14, 6
      %p44 = por %p42, %p43
      %p45 = scmp.ne.s32.totalorder %s34, %s35
      %p46 = scmp.eq.s32.totalorder %s14, 0
      %p47 = por %p45, %p46
      %p48 = scmp.ne.s32.totalorder %s34, %s35
      %p49 = scmp.eq.s32.totalorder %s15, 6
      %p50 = por %p48, %p49
      %p52 = scmp.ne.s32.totalorder %s35, %s51
      %p53 = scmp.eq.s32.totalorder %s15, 0
      %p54 = por %p52, %p53
      %s55 = ssub.s32 %s17, %s24
      %s56 = ssub.s32 %s16, %s28
      %s57 = sor.u32 %s55, %s56
      %p58 = scmp.eq.s32.totalorder %s57, 0
      %s60 = sadd.s32 %s59, 1
      %s61 = scalar_select %p58, %s59, %s60
      %p64 = pneg %p58
      %p65 = scmp.eq.s32.totalorder %s9, 6
      %p66 = por %p64, %p65
      %p67 = scmp.ne.s32.totalorder %s59, %s62
      %p68 = scmp.eq.s32.totalorder %s9, 0
      %p69 = por %p67, %p68
      %p70 = scmp.ne.s32.totalorder %s59, %s62
      %p71 = scmp.eq.s32.totalorder %s14, 6
      %p72 = por %p70, %p71
      %p73 = scmp.ne.s32.totalorder %s62, %s63
      %p74 = scmp.eq.s32.totalorder %s14, 0
      %p75 = por %p73, %p74
      %p76 = scmp.ne.s32.totalorder %s62, %s63
      %p77 = scmp.eq.s32.totalorder %s15, 6
      %p78 = por %p76, %p77
      %p80 = scmp.ne.s32.totalorder %s63, %s79
      %p81 = scmp.eq.s32.totalorder %s15, 0
      %p82 = por %p80, %p81
      %s83 = ssub.s32 %s16, %s28
      %p84 = scmp.eq.s32.totalorder %s83, 0
      %s86 = sadd.s32 %s85, 1
      %s87 = scalar_select %p84, %s85, %s86
      %p90 = pneg %p84
      %p91 = scmp.eq.s32.totalorder %s9, 6
      %p92 = por %p90, %p91
      %p93 = scmp.ne.s32.totalorder %s85, %s88
      %p94 = scmp.eq.s32.totalorder %s9, 0
      %p95 = por %p93, %p94
      %p96 = scmp.ne.s32.totalorder %s85, %s88
      %p97 = scmp.eq.s32.totalorder %s14, 6
      %p98 = por %p96, %p97
      %p99 = scmp.ne.s32.totalorder %s88, %s89
      %p100 = scmp.eq.s32.totalorder %s14, 0
      %p101 = por %p99, %p100
      %p102 = scmp.ne.s32.totalorder %s88, %s89
      %p103 = scmp.eq.s32.totalorder %s15, 6
      %p104 = por %p102, %p103
      %p106 = scmp.ne.s32.totalorder %s89, %s105
      %p107 = scmp.eq.s32.totalorder %s15, 0
      %p108 = por %p106, %p107
      %s109 = ssub.s32 %s16, %s28
      %p110 = scmp.eq.s32.totalorder %s109, 0
      %s112 = sadd.s32 %s111, 1
      %s113 = scalar_select %p110, %s111, %s112
      %p116 = pneg %p110
      %p117 = scmp.eq.s32.totalorder %s9, 6
      %p118 = por %p116, %p117
      %p119 = scmp.ne.s32.totalorder %s111, %s114
      %p120 = scmp.eq.s32.totalorder %s9, 0
      %p121 = por %p119, %p120
      %p122 = scmp.ne.s32.totalorder %s111, %s114
      %p123 = scmp.eq.s32.totalorder %s14, 6
      %p124 = por %p122, %p123
      %p125 = scmp.ne.s32.totalorder %s114, %s115
      %p126 = scmp.eq.s32.totalorder %s14, 0
      %p127 = por %p125, %p126
      %p128 = scmp.ne.s32.totalorder %s114, %s115
      %p129 = scmp.eq.s32.totalorder %s15, 6
      %p130 = por %p128, %p129
      %p132 = scmp.ne.s32.totalorder %s115, %s131
      %p133 = scmp.eq.s32.totalorder %s15, 0
      %p134 = por %p132, %p133
      %p135 = scmp.le.s32.totalorder 1, %s9
      %p136 = scmp.lt.s32.totalorder %s9, 8
      %p137 = pnand %p135, %p136
      %p138 = pneg %p137
      // Predicated region
      $region9: #{conv_feature_forward.8} parent=5 // pred_check
        _
      $region10: #{conv_feature_forward.8} parent=5 // pred_check_branch
        %140 = sbr.rel (%p137) target = $region12
      $region11: #{conv_feature_forward.8} parent=5 // pred_region
        %s141 = ssub.s32 %s9, 1
        // Predicated region
        $region13: #{conv_feature_forward.8} parent=11 // pred_check
          %p142 = pneg %p101
        $region14: #{conv_feature_forward.8} parent=11 // pred_check_branch
          %144 = sbr.rel (%p142) target = $region16
        $region15: #{conv_feature_forward.8} parent=11 // pred_region
          %p145 = scmp.lt.s32.totalorder %s18, 0
          %s146 = scalar_select %p145, %s18, 0
          %s147 = scalar_lea.vmem %s2, %s146
        $region16: #{conv_feature_forward.8} parent=11 // pred_fallthru
          _
      $region12: #{conv_feature_forward.8} parent=5 // pred_fallthru
        _
      %p148 = scmp.lt.s32.totalorder %s9, 7
      // Predicated region
      $region17: #{conv_feature_forward.8} parent=5 // pred_check
        %p149 = pneg %p148
      $region18: #{conv_feature_forward.8} parent=5 // pred_check_branch
        %151 = sbr.rel (%p149) target = $region20
      $region19: #{conv_feature_forward.8} parent=5 // pred_region
        // Predicated region
        $region21: #{conv_feature_forward.8} parent=19 // pred_check
          %p152 = pneg %p41
        $region22: #{conv_feature_forward.8} parent=19 // pred_check_branch
          %154 = sbr.rel (%p152) target = $region24
        $region23: #{conv_feature_forward.8} parent=19 // pred_region
          %s155 = sand.u32 %s31, 1
          %s156 = sand.u32 %s31, 1
          %s157 = smul.addr %s156, 36
          %s158 = scalar_lea.vmem [#allocation3], %s157
          %s159 = smul.addr %s17, 4
          %s160 = scalar_lea.vmem %s0, %s159
          // Predicated region
          $region25: #{conv_feature_forward.8} parent=23 // pred_check
            _
          $region26: #{conv_feature_forward.8} parent=23 // pred_check_branch
            %162 = sbr.rel (0) target = $region28
          $region27: #{conv_feature_forward.8} parent=23 // pred_region
            // Predicated region
            $region29: #{conv_feature_forward.8} parent=27 // pred_check
              _
            $region30: #{conv_feature_forward.8} parent=27 // pred_check_branch
              %164 = sbr.rel target = $region32
            $region31: #{conv_feature_forward.8} parent=27 // pred_region
              // Predicated region
              $region44: #{conv_feature_forward.8} parent=31 // pred_check
                _
              $region45: #{conv_feature_forward.8} parent=31 // pred_check_branch
                %195 = sbr.rel (0) target = $region47
              $region46: #{conv_feature_forward.8} parent=31 // pred_region
                loop: start=0, step=1, limit=1
                $region48: #{conv_feature_forward.8} parent=46 // loop_pre_header
                  _
                $region49: #{conv_feature_forward.8} parent=46 // loop_header
                  %s197 = sphi 0, %s201
                  %p198 = scmp.ge.s32.totalorder %s197, 1
                  %s202 = sphi %s160, %s160
                  %s203 = sphi %s158, %s158
                $region50: #{conv_feature_forward.8} parent=46 // loop_header_branch
                  %200 = sbr.rel (%p198) target = $region54
                $region51: #{conv_feature_forward.8} parent=46 // loop_body
                  _
                $region52: #{conv_feature_forward.8} parent=46 // loop_footer
                  %s201 = sadd.s32 1, %s197
                $region53: #{conv_feature_forward.8} parent=46 // loop_footer_branch
                  %196 = sbr.rel target = $region49
                $region54: #{conv_feature_forward.8} parent=46 // loop_exit
                  _
                loop: start=0, step=1, limit=1
                $region55: #{conv_feature_forward.8} parent=46 // loop_pre_header
                  _
                $region56: #{conv_feature_forward.8} parent=46 // loop_header
                  %s206 = sphi 0, %s210
                  %p207 = scmp.ge.s32.totalorder %s206, 1
                  %s211 = sphi %s160, %s160
                  %s212 = sphi %s158, %s158
                $region57: #{conv_feature_forward.8} parent=46 // loop_header_branch
                  %209 = sbr.rel (%p207) target = $region61
                $region58: #{conv_feature_forward.8} parent=46 // loop_body
                  %v213 = vld [vmem:[%s211] sm:$0xf]
                  %214 = vst [vmem:[%s212] sm:$0xf] %v213
                  %v215 = vld [vmem:[%s211 + $0x1c] sm:$0xf]
                  %216 = vst [vmem:[%s212 + $0x4] sm:$0xf] %v215
                  %v217 = vld [vmem:[%s211 + $0x38] sm:$0xf]
                  %218 = vst [vmem:[%s212 + $0x8] sm:$0xf] %v217
                  %v219 = vld [vmem:[%s211 + $0x54] sm:$0xf]
                  %220 = vst [vmem:[%s212 + $0xc] sm:$0xf] %v219
                  %v221 = vld [vmem:[%s211 + $0x70] sm:$0xf]
                  %222 = vst [vmem:[%s212 + $0x10] sm:$0xf] %v221
                  %v223 = vld [vmem:[%s211 + $0x8c] sm:$0xf]
                  %224 = vst [vmem:[%s212 + $0x14] sm:$0xf] %v223
                  %v225 = vld [vmem:[%s211 + $0xa8] sm:$0xf]
                  %226 = vst [vmem:[%s212 + $0x18] sm:$0xf] %v225
                  %v227 = vld [vmem:[%s211 + $0xc4] sm:$0xf]
                  %228 = vst [vmem:[%s212 + $0x1c] sm:$0xf] %v227
                  %v229 = vld [vmem:[%s211 + $0xe0] sm:$0xf]
                  %230 = vst [vmem:[%s212 + $0x20] sm:$0xf] %v229
                $region59: #{conv_feature_forward.8} parent=46 // loop_footer
                  %s210 = sadd.s32 1, %s206
                $region60: #{conv_feature_forward.8} parent=46 // loop_footer_branch
                  %205 = sbr.rel target = $region56
                $region61: #{conv_feature_forward.8} parent=46 // loop_exit
                  _
              $region47: #{conv_feature_forward.8} parent=31 // pred_fallthru
                _
            $region32: #{conv_feature_forward.8} parent=27 // pred_fallthru
              _
            // Predicated region
            $region33: #{conv_feature_forward.8} parent=27 // pred_check
              _
            $region34: #{conv_feature_forward.8} parent=27 // pred_check_branch
              %166 = sbr.rel (0) target = $region36
            $region35: #{conv_feature_forward.8} parent=27 // pred_region
              loop: start=0, step=1, limit=1
              $region37: #{conv_feature_forward.8} parent=35 // loop_pre_header
                _
              $region38: #{conv_feature_forward.8} parent=35 // loop_header
                %s169 = sphi 0, %s173
                %p170 = scmp.ge.s32.totalorder %s169, 1
                %s174 = sphi %s160, %s160
                %s175 = sphi %s158, %s158
              $region39: #{conv_feature_forward.8} parent=35 // loop_header_branch
                %172 = sbr.rel (%p170) target = $region43
              $region40: #{conv_feature_forward.8} parent=35 // loop_body
                %v176 = vld [vmem:[%s174] sm:$0xf]
                %177 = vst [vmem:[%s175] sm:$0xf] %v176
                %v178 = vld [vmem:[%s174 + $0x1c] sm:$0xf]
                %179 = vst [vmem:[%s175 + $0x4] sm:$0xf] %v178
                %v180 = vld [vmem:[%s174 + $0x38] sm:$0xf]
                %181 = vst [vmem:[%s175 + $0x8] sm:$0xf] %v180
                %v182 = vld [vmem:[%s174 + $0x54] sm:$0xf]
                %183 = vst [vmem:[%s175 + $0xc] sm:$0xf] %v182
                %v184 = vld [vmem:[%s174 + $0x70] sm:$0xf]
                %185 = vst [vmem:[%s175 + $0x10] sm:$0xf] %v184
                %v186 = vld [vmem:[%s174 + $0x8c] sm:$0xf]
                %187 = vst [vmem:[%s175 + $0x14] sm:$0xf] %v186
                %v188 = vld [vmem:[%s174 + $0xa8] sm:$0xf]
                %189 = vst [vmem:[%s175 + $0x18] sm:$0xf] %v188
                %v190 = vld [vmem:[%s174 + $0xc4] sm:$0xf]
                %191 = vst [vmem:[%s175 + $0x1c] sm:$0xf] %v190
                %v192 = vld [vmem:[%s174 + $0xe0] sm:$0xf]
                %193 = vst [vmem:[%s175 + $0x20] sm:$0xf] %v192
              $region41: #{conv_feature_forward.8} parent=35 // loop_footer
                %s173 = sadd.s32 1, %s169
              $region42: #{conv_feature_forward.8} parent=35 // loop_footer_branch
                %168 = sbr.rel target = $region38
              $region43: #{conv_feature_forward.8} parent=35 // loop_exit
                _
            $region36: #{conv_feature_forward.8} parent=27 // pred_fallthru
              _
          $region28: #{conv_feature_forward.8} parent=23 // pred_fallthru
            _
          %231 = vnop
        $region24: #{conv_feature_forward.8} parent=19 // pred_fallthru
          _
        // Predicated region
        $region62: #{conv_feature_forward.8} parent=19 // pred_check
          %p232 = pneg %p69
        $region63: #{conv_feature_forward.8} parent=19 // pred_check_branch
          %234 = sbr.rel (%p232) target = $region65
        $region64: #{conv_feature_forward.8} parent=19 // pred_region
          %s235 = smul.u32 16, %s17
          %p236 = scmp.lt.s32.totalorder %s235, 111
          %s237 = scalar_select %p236, %s235, 111
          %p238 = scmp.lt.s32.totalorder %s16, 0
          %s239 = scalar_select %p238, %s16, 0
          %s240 = sadd.s32 %s239, %s237
          %s241 = smul.addr %s240, 4
          %s242 = scalar_lea.vmem %s1, %s241
          %s243 = smul.u32 16, %s17
        $region65: #{conv_feature_forward.8} parent=19 // pred_fallthru
          _
      $region20: #{conv_feature_forward.8} parent=5 // pred_fallthru
        _
      %p244 = scmp.le.s32.totalorder 1, %s9
      %p245 = scmp.lt.s32.totalorder %s9, 8
      %p246 = pnand %p244, %p245
      %p247 = pneg %p246
      // Predicated region
      $region66: #{conv_feature_forward.8} parent=5 // pred_check
        _
      $region67: #{conv_feature_forward.8} parent=5 // pred_check_branch
        %249 = sbr.rel (%p246) target = $region69
      $region68: #{conv_feature_forward.8} parent=5 // pred_region
        %s250 = ssub.s32 %s9, 1
        %s251 = sand.u32 %s34, 1
        %s252 = sand.u32 %s34, 1
        %s253 = smul.addr %s252, 36
        %s254 = scalar_lea.vmem [#allocation3], %s253
        // Predicated region
        $region70: #{conv_feature_forward.8} parent=68 // pred_check
          %p255 = pneg %p47
        $region71: #{conv_feature_forward.8} parent=68 // pred_check_branch
          %257 = sbr.rel (%p255) target = $region73
        $region72: #{conv_feature_forward.8} parent=68 // pred_region
          _
        $region73: #{conv_feature_forward.8} parent=68 // pred_fallthru
          _
        %s258 = sand.u32 %s34, 1
        %s259 = sand.u32 %s34, 1
        %s260 = smul.addr %s259, 36
        %s261 = scalar_lea.vmem [#allocation3], %s260
        %p262 = pneg %p47
        %p263 = pneg %p44
        %s264 = smul.u32 16, %s19
        %p265 = scmp.lt.s32.totalorder %s264, 111
        %s266 = scalar_select %p265, %s264, 111
        %p267 = scmp.lt.s32.totalorder %s18, 0
        %s268 = scalar_select %p267, %s18, 0
        %s269 = sadd.s32 %s268, %s266
        %s270 = smul.addr %s269, 4
        %s271 = scalar_lea.vmem %s1, %s270
        %p272 = pneg %p75
        %p273 = pneg %p72
        %p274 = scmp.lt.s32.totalorder %s18, 0
        %s275 = scalar_select %p274, %s18, 0
        %s276 = scalar_lea.vmem %s2, %s275
        %p277 = pneg %p101
        %p278 = pneg %p98
        %p279 = pneg %p127
        %p280 = pneg %p124
        %p281 = scmp.lt.s32.totalorder %s18, 0
        %s282 = scalar_select %p281, %s18, 0
        %s283 = smul.addr %s282, 4
        %s284 = scalar_lea.vmem %s3, %s283
        %s285 = smul.u32 16, %s19
        %p286 = scmp.lt.s32.totalorder %s285, 111
        %s287 = scalar_select %p286, %s285, 111
        %p288 = scmp.lt.s32.totalorder %s18, 0
        %s289 = scalar_select %p288, %s18, 0
        %s290 = sadd.s32 %s289, %s287
        %s291 = smul.addr %s290, 4
        %s292 = scalar_lea.vmem %s1, %s291
        %s293 = smul.u32 16, %s19
        %p294 = scmp.lt.s32.totalorder %s18, 0
        %s295 = scalar_select %p294, %s18, 0
        %s296 = scalar_lea.vmem %s2, %s295
        %p297 = scmp.lt.s32.totalorder %s18, 0
        %s298 = scalar_select %p297, %s18, 0
        %s299 = smul.addr %s298, 4
        %s300 = scalar_lea.vmem %s3, %s299
        %p302 = scmp.eq.s32.totalorder %s19, 0
        // Predicated region
        $region74: #{conv_feature_forward.8} parent=68 // pred_check
          %p303 = pneg %p302
        $region75: #{conv_feature_forward.8} parent=68 // pred_check_branch
          %305 = sbr.rel (%p303) target = $region77
        $region76: #{conv_feature_forward.8} parent=68 // pred_region
          %vm306 = vcmask 523264
          %307 = vst.msk [vmem:[#allocation2] sm:$0xff] %vm306, 0.0
          %308 = vst.msk [vmem:[#allocation2 + $0x8] sm:$0xff] %vm306, 0.0
          %309 = vst.msk [vmem:[#allocation2 + $0x10] sm:$0xff] %vm306, 0.0
          %310 = vst.msk [vmem:[#allocation2 + $0x18] sm:$0xff] %vm306, 0.0
          %311 = vst.msk [vmem:[#allocation2 + $0x20] sm:$0xff] %vm306, 0.0
          %312 = vst.msk [vmem:[#allocation2 + $0x28] sm:$0xff] %vm306, 0.0
          %313 = vst.msk [vmem:[#allocation2 + $0x30] sm:$0xff] %vm306, 0.0
          %314 = vst.msk [vmem:[#allocation2 + $0x38] sm:$0xff] %vm306, 0.0
          %315 = vst.msk [vmem:[#allocation2 + $0x40] sm:$0xff] %vm306, 0.0
        $region77: #{conv_feature_forward.8} parent=68 // pred_fallthru
          _
        %v316 = vld [vmem:[#allocation2] sm:$0xff]
        %v317 = vld [vmem:[#allocation2 + $0x8] sm:$0xff]
        %v318 = vld [vmem:[#allocation2 + $0x10] sm:$0xff]
        %v319 = vld [vmem:[#allocation2 + $0x18] sm:$0xff]
        %v320 = vld [vmem:[#allocation2 + $0x20] sm:$0xff]
        %v321 = vld [vmem:[#allocation2 + $0x28] sm:$0xff]
        %v322 = vld [vmem:[#allocation2 + $0x30] sm:$0xff]
        %v323 = vld [vmem:[#allocation2 + $0x38] sm:$0xff]
        %v324 = vld [vmem:[#allocation2 + $0x40] sm:$0xff]
        %v325 = vld [vmem:[%s254] sm:$0xf]
        %v326 = vld [vmem:[%s254 + $0x4] sm:$0xf]
        %v327 = vld [vmem:[%s254 + $0x8] sm:$0xf]
        %v328 = vld [vmem:[%s254 + $0xc] sm:$0xf]
        %v329 = vld [vmem:[%s254 + $0x10] sm:$0xf]
        %v330 = vld [vmem:[%s254 + $0x14] sm:$0xf]
        %v331 = vld [vmem:[%s254 + $0x18] sm:$0xf]
        %v332 = vld [vmem:[%s254 + $0x1c] sm:$0xf]
        %v333 = vld [vmem:[%s254 + $0x20] sm:$0xf]
        %v334 = vld [vmem:[%s292] sm:$0xf]
        %v335 = vld [vmem:[%s292 + $0x4] sm:$0xf]
        %v336 = vld [vmem:[%s292 + $0x8] sm:$0xf]
        %v337 = vld [vmem:[%s292 + $0xc] sm:$0xf]
        %v338 = vld [vmem:[%s292 + $0x10] sm:$0xf]
        %v339 = vld [vmem:[%s292 + $0x14] sm:$0xf]
        %v340 = vld [vmem:[%s292 + $0x18] sm:$0xf]
        %v341 = vld [vmem:[%s292 + $0x1c] sm:$0xf]
        %v342 = vld [vmem:[%s292 + $0x20] sm:$0xf]
        %v343 = vld [vmem:[%s292 + $0x24] sm:$0xf]
        %v344 = vld [vmem:[%s292 + $0x28] sm:$0xf]
        %v345 = vld [vmem:[%s292 + $0x2c] sm:$0xf]
        %v346 = vld [vmem:[%s292 + $0x30] sm:$0xf]
        %v347 = vld [vmem:[%s292 + $0x34] sm:$0xf]
        %v348 = vld [vmem:[%s292 + $0x38] sm:$0xf]
        %v349 = vld [vmem:[%s292 + $0x3c] sm:$0xf]
        %v359 = vunpack.c.l.b16 %v325
        %v360 = vunpack.c.l.b16 %v326
        %v361 = vunpack.c.l.b16 %v327
        %v362 = vunpack.c.l.b16 %v328
        %v363 = vunpack.c.l.b16 %v329
        %v364 = vunpack.c.l.b16 %v330
        %v365 = vunpack.c.l.b16 %v331
        %v366 = vunpack.c.l.b16 %v332
        %v367 = vunpack.c.l.b16 %v333
        %v368 = vpack.c.b16 %v360, %v359
        %v369 = vpack.c.b16 %v362, %v361
        %v370 = vpack.c.b16 %v364, %v363
        %v371 = vpack.c.b16 %v366, %v365
        %v372 = vpack.c.b16 %v367, %v367
        %v394 = vunpack.c.l.b16 %v334
        %v395 = vunpack.c.l.b16 %v335
        %v396 = vunpack.c.l.b16 %v336
        %v397 = vunpack.c.l.b16 %v337
        %v398 = vunpack.c.l.b16 %v338
        %v399 = vunpack.c.l.b16 %v339
        %v400 = vunpack.c.l.b16 %v340
        %v401 = vunpack.c.l.b16 %v341
        %v402 = vunpack.c.l.b16 %v342
        %v403 = vunpack.c.l.b16 %v343
        %v404 = vunpack.c.l.b16 %v344
        %v405 = vunpack.c.l.b16 %v345
        %v406 = vunpack.c.l.b16 %v346
        %v407 = vunpack.c.l.b16 %v347
        %v408 = vunpack.c.l.b16 %v348
        %v409 = vunpack.c.l.b16 %v349
        %v410 = vpack.c.b16 %v395, %v394
        %v411 = vpack.c.b16 %v397, %v396
        %v412 = vpack.c.b16 %v399, %v398
        %v413 = vpack.c.b16 %v401, %v400
        %v414 = vpack.c.b16 %v403, %v402
        %v415 = vpack.c.b16 %v405, %v404
        %v416 = vpack.c.b16 %v407, %v406
        %v417 = vpack.c.b16 %v409, %v408
        %426 = vmatprep.subr.bf16.mxu0 0
        %427 = vmatpush1.bf16.msra.mxu0 %v410
        %428 = vmatprep.subr.bf16.mxu0 0
        %429 = vmatpush1.bf16.msra.mxu0 %v411
        %430 = vmatprep.subr.bf16.mxu0 0
        %431 = vmatpush1.bf16.msra.mxu0 %v412
        %432 = vmatprep.subr.bf16.mxu0 0
        %433 = vmatpush1.bf16.msra.mxu0 %v413
        %434 = vmatprep.subr.bf16.mxu0 0
        %435 = vmatpush1.bf16.msra.mxu0 %v414
        %436 = vmatprep.subr.bf16.mxu0 0
        %437 = vmatpush1.bf16.msra.mxu0 %v415
        %438 = vmatprep.subr.bf16.mxu0 0
        %439 = vmatpush1.bf16.msra.mxu0 %v416
        %440 = vmatprep.subr.bf16.mxu0 0
        %441 = vmatpush1.bf16.msra.mxu0 %v417
        %442 = vmatprep.subr.bf16.mxu0 0
        %443 = vmatpush1.bf16.msra.mxu0 0
        %444 = vmatprep.subr.bf16.mxu0 0
        %445 = vmatpush1.bf16.msra.mxu0 0
        %446 = vmatprep.subr.bf16.mxu0 0
        %447 = vmatpush1.bf16.msra.mxu0 0
        %448 = vmatprep.subr.bf16.mxu0 0
        %449 = vmatpush1.bf16.msra.mxu0 0
        %450 = vmatprep.subr.bf16.mxu0 0
        %451 = vmatpush1.bf16.msra.mxu0 0
        %452 = vmatprep.subr.bf16.mxu0 0
        %453 = vmatpush1.bf16.msra.mxu0 0
        %454 = vmatprep.subr.bf16.mxu0 0
        %455 = vmatpush1.bf16.msra.mxu0 0
        %456 = vmatprep.subr.bf16.mxu0 0
        %457 = vmatpush1.bf16.msra.mxu0 0
        %458 = vmatprep.mubr.bf16.mxu0 0
        %459 = vmatmul.mubr.bf16.gmra.mrb[0].mxu0 %v368
        %v460 = vpop.f32.mrb[0].mxu0
        %v461 = vadd.f32 0.0, %v460
        %v462 = vpop.f32.mrb[0].mxu0
        %v463 = vpop.f32.mrb[0].mxu0
        %v464 = vadd.f32 0.0, %v463
        %v465 = vpop.f32.mrb[0].mxu0
        %466 = vmatprep.mubr.bf16.mxu0 0
        %467 = vmatmul.mubr.bf16.gmra.mrb[0].mxu0 %v369
        %v468 = vpop.f32.mrb[0].mxu0
        %v469 = vadd.f32 0.0, %v468
        %v470 = vpop.f32.mrb[0].mxu0
        %v471 = vpop.f32.mrb[0].mxu0
        %v472 = vadd.f32 0.0, %v471
        %v473 = vpop.f32.mrb[0].mxu0
        %474 = vmatprep.mubr.bf16.mxu0 0
        %475 = vmatmul.mubr.bf16.gmra.mrb[0].mxu0 %v370
        %v476 = vpop.f32.mrb[0].mxu0
        %v477 = vadd.f32 0.0, %v476
        %v478 = vpop.f32.mrb[0].mxu0
        %v479 = vpop.f32.mrb[0].mxu0
        %v480 = vadd.f32 0.0, %v479
        %v481 = vpop.f32.mrb[0].mxu0
        %482 = vmatprep.mubr.bf16.mxu0 0
        %483 = vmatmul.mubr.bf16.gmra.mrb[0].mxu0 %v371
        %v484 = vpop.f32.mrb[0].mxu0
        %v485 = vadd.f32 0.0, %v484
        %v486 = vpop.f32.mrb[0].mxu0
        %v487 = vpop.f32.mrb[0].mxu0
        %v488 = vadd.f32 0.0, %v487
        %v489 = vpop.f32.mrb[0].mxu0
        %490 = vmatprep.mubr.bf16.mxu0 0
        %491 = vmatmul.mubr.bf16.gmra.mrb[0].mxu0 %v372
        %v492 = vpop.f32.mrb[0].mxu0
        %v493 = vadd.f32 0.0, %v492
        %v494 = vpop.f32.mrb[0].mxu0
        %v495 = vpop.f32.mrb[0].mxu0
        %v496 = vpop.f32.mrb[0].mxu0
        %497 = vdwg.mxu0
        %v498 = vadd.f32 %v316, %v461
        %v499 = vadd.f32 %v317, %v464
        %v500 = vadd.f32 %v318, %v469
        %v501 = vadd.f32 %v319, %v472
        %v502 = vadd.f32 %v320, %v477
        %v503 = vadd.f32 %v321, %v480
        %v504 = vadd.f32 %v322, %v485
        %v505 = vadd.f32 %v323, %v488
        %v506 = vadd.f32 %v324, %v493
        %vm507 = vcmask 523264
        %508 = vst.msk [vmem:[#allocation2] sm:$0xff] %vm507, %v498
        %509 = vst.msk [vmem:[#allocation2 + $0x8] sm:$0xff] %vm507, %v499
        %510 = vst.msk [vmem:[#allocation2 + $0x10] sm:$0xff] %vm507, %v500
        %511 = vst.msk [vmem:[#allocation2 + $0x18] sm:$0xff] %vm507, %v501
        %512 = vst.msk [vmem:[#allocation2 + $0x20] sm:$0xff] %vm507, %v502
        %513 = vst.msk [vmem:[#allocation2 + $0x28] sm:$0xff] %vm507, %v503
        %514 = vst.msk [vmem:[#allocation2 + $0x30] sm:$0xff] %vm507, %v504
        %515 = vst.msk [vmem:[#allocation2 + $0x38] sm:$0xff] %vm507, %v505
        %516 = vst.msk [vmem:[#allocation2 + $0x40] sm:$0xff] %vm507, %v506
        %p517 = scmp.eq.s32.totalorder %s19, 6
        // Predicated region
        $region78: #{conv_feature_forward.8} parent=68 // pred_check
          %p518 = pneg %p517
        $region79: #{conv_feature_forward.8} parent=68 // pred_check_branch
          %520 = sbr.rel (%p518) target = $region81
        $region80: #{conv_feature_forward.8} parent=68 // pred_region
          %v521 = vld [vmem:[#allocation2] sm:$0xff]
          %v522 = vld [vmem:[#allocation2 + $0x8] sm:$0xff]
          %v523 = vld [vmem:[#allocation2 + $0x10] sm:$0xff]
          %v524 = vld [vmem:[#allocation2 + $0x18] sm:$0xff]
          %v525 = vld [vmem:[#allocation2 + $0x20] sm:$0xff]
          %v526 = vld [vmem:[#allocation2 + $0x28] sm:$0xff]
          %v527 = vld [vmem:[#allocation2 + $0x30] sm:$0xff]
          %v528 = vld [vmem:[#allocation2 + $0x38] sm:$0xff]
          %v529 = vld [vmem:[#allocation2 + $0x40] sm:$0xff]
          %v530 = vld [vmem:[%s296] sm:$0x1]
          %v532 = vlaneseq
          %v533 = vshrl.u32 %v532, 7
          %v534 = vsub.s32 0, %v533
          %v535 = vrot.slane %v530, %v534
          %v537 = vadd.f32 %v521, %v535
          %v538 = vadd.f32 %v522, %v535
          %v539 = vadd.f32 %v523, %v535
          %v540 = vadd.f32 %v524, %v535
          %v541 = vadd.f32 %v525, %v535
          %v542 = vadd.f32 %v526, %v535
          %v543 = vadd.f32 %v527, %v535
          %v544 = vadd.f32 %v528, %v535
          %v545 = vadd.f32 %v529, %v535
          %v546 = vmax.f32 %v537, 0.0
          %v547 = vmax.f32 %v538, 0.0
          %v548 = vmax.f32 %v539, 0.0
          %v549 = vmax.f32 %v540, 0.0
          %v550 = vmax.f32 %v541, 0.0
          %v551 = vmax.f32 %v542, 0.0
          %v552 = vmax.f32 %v543, 0.0
          %v553 = vmax.f32 %v544, 0.0
          %v554 = vmax.f32 %v545, 0.0
          %v555 = vpack.c.bf16 %v547, %v546
          %v556 = vpack.c.bf16 %v549, %v548
          %v557 = vpack.c.bf16 %v551, %v550
          %v558 = vpack.c.bf16 %v553, %v552
          %v559 = vpack.c.bf16 %v554, %v554
          %v565 = vunpack.c.l.b16 %v555
          %v566 = vunpack.c.h.b16 %v555
          %v567 = vunpack.c.l.b16 %v556
          %v568 = vunpack.c.h.b16 %v556
          %v569 = vunpack.c.l.b16 %v557
          %v570 = vunpack.c.h.b16 %v557
          %v571 = vunpack.c.l.b16 %v558
          %v572 = vunpack.c.h.b16 %v558
          %v573 = vunpack.c.l.b16 %v559
          %v574 = vpack.c.b16 %v565, %v565
          %v575 = vpack.c.b16 %v566, %v566
          %v576 = vpack.c.b16 %v567, %v567
          %v577 = vpack.c.b16 %v568, %v568
          %v578 = vpack.c.b16 %v569, %v569
          %v579 = vpack.c.b16 %v570, %v570
          %v580 = vpack.c.b16 %v571, %v571
          %v581 = vpack.c.b16 %v572, %v572
          %v582 = vpack.c.b16 %v573, %v573
          %vm592 = vcmask 519168
          %593 = vst.msk [vmem:[%s300] sm:$0xf] %vm592, %v574
          %594 = vst.msk [vmem:[%s300 + $0x4] sm:$0xf] %vm592, %v575
          %595 = vst.msk [vmem:[%s300 + $0x8] sm:$0xf] %vm592, %v576
          %596 = vst.msk [vmem:[%s300 + $0xc] sm:$0xf] %vm592, %v577
          %597 = vst.msk [vmem:[%s300 + $0x10] sm:$0xf] %vm592, %v578
          %598 = vst.msk [vmem:[%s300 + $0x14] sm:$0xf] %vm592, %v579
          %599 = vst.msk [vmem:[%s300 + $0x18] sm:$0xf] %vm592, %v580
          %600 = vst.msk [vmem:[%s300 + $0x1c] sm:$0xf] %vm592, %v581
          %601 = vst.msk [vmem:[%s300 + $0x20] sm:$0xf] %vm592, %v582
        $region81: #{conv_feature_forward.8} parent=68 // pred_fallthru
          _
        %p602 = scmp.lt.s32.totalorder %s18, 0
        %s603 = scalar_select %p602, %s18, 0
        %s604 = smul.addr %s603, 4
        %s605 = scalar_lea.vmem %s3, %s604
        // Predicated region
        $region82: #{conv_feature_forward.8} parent=68 // pred_check
          %p606 = pneg %p124
        $region83: #{conv_feature_forward.8} parent=68 // pred_check_branch
          %608 = sbr.rel (%p606) target = $region85
        $region84: #{conv_feature_forward.8} parent=68 // pred_region
          _
        $region85: #{conv_feature_forward.8} parent=68 // pred_fallthru
          _
        // Predicated region
        $region86: #{conv_feature_forward.8} parent=68 // pred_check
          %p609 = pneg %p124
        $region87: #{conv_feature_forward.8} parent=68 // pred_check_branch
          %611 = sbr.rel (%p609) target = $region89
        $region88: #{conv_feature_forward.8} parent=68 // pred_region
          %p612 = scmp.lt.s32.totalorder %s18, 0
          %s613 = scalar_select %p612, %s18, 0
          %s614 = smul.addr %s613, 4
          %s615 = scalar_lea.vmem %s3, %s614
        $region89: #{conv_feature_forward.8} parent=68 // pred_fallthru
          _
      $region69: #{conv_feature_forward.8} parent=5 // pred_fallthru
        _
      %p616 = scmp.le.s32.totalorder 2, %s9
      // Predicated region
      $region90: #{conv_feature_forward.8} parent=5 // pred_check
        %p617 = pneg %p616
      $region91: #{conv_feature_forward.8} parent=5 // pred_check_branch
        %619 = sbr.rel (%p617) target = $region93
      $region92: #{conv_feature_forward.8} parent=5 // pred_region
        %s620 = ssub.s32 %s9, 2
      $region93: #{conv_feature_forward.8} parent=5 // pred_fallthru
        _
    $region6: #{conv_feature_forward.8} parent=1 // loop_footer
      %s13 = sadd.s32 1, %s9
    $region7: #{conv_feature_forward.8} parent=1 // loop_footer_branch
      %8 = sbr.rel target = $region3
    $region8: #{conv_feature_forward.8} parent=1 // loop_exit
      _

// kernel: conv_feature_forward.9
$region0: #{conv_feature_forward.9}
  #allocation0 [shape = 'u32[]', space=smem, size = 0x4, offset = 0x4, fixed_abs, tag = 'smem constant byte address 0x4 - core index']
  #allocation1 [shape = 'u32[144,128]{1,0:T(1,128)}', space=vmem, size = 0x12000, scoped, tag = 'internal scratch']
  #allocation2 [shape = 'f32[2,256]{1,0:T(2,128)}', space=vmem, size = 0x800, scoped, tag = 'scratch operand']
  %s0 = inlined_call_operand.vmem [shape: bf16[2,2304], index: 0, kind: input, shape index: {}]
  %s1 = inlined_call_operand.vmem [shape: bf16[2304,1024], index: 1, kind: input, shape index: {}]
  %s2 = inlined_call_operand.vmem [shape: f32[1,1024], index: 2, kind: input, shape index: {}]
  %s3 = inlined_call_operand.vmem [shape: bf16[2,1024], index: 3, kind: output, shape index: {}]
  %s4 = sld [smem:[#allocation0]]
  $region91: #{conv_feature_forward.9} parent=0
    _
  %s6 = ssub.s32 1, %s4
  %s7 = scalar_select 0, %s6, %s4
  $region1: #{conv_feature_forward.9} parent=0
    #allocation3 [shape = 'u8[786432]{0}', space=vmem, size = 0xc0000, scoped, tag = 'input window, operand 1']
    loop: start=0, step=1, limit=14
    $region2: #{conv_feature_forward.9} parent=1 // loop_pre_header
      _
    $region3: #{conv_feature_forward.9} parent=1 // loop_header
      %s9 = sphi 0, %s13
      %p10 = scmp.ge.s32.totalorder %s9, 14
      %s16 = sphi 0, %s28
      %s17 = sphi 0, %s24
      %s18 = sphi 0, %s16
      %s19 = sphi 0, %s17
      %s20 = sphi 0, %s18
      %s21 = sphi 0, %s19
      %s31 = sphi 0, %s33
      %s34 = sphi 0, %s31
      %s35 = sphi 0, %s34
      %s51 = sphi 0, %s35
      %s59 = sphi 0, %s61
      %s62 = sphi 0, %s59
      %s63 = sphi 0, %s62
      %s79 = sphi 0, %s63
      %s85 = sphi 0, %s87
      %s88 = sphi 0, %s85
      %s89 = sphi 0, %s88
      %s105 = sphi 0, %s89
      %s111 = sphi 0, %s113
      %s114 = sphi 0, %s111
      %s115 = sphi 0, %s114
      %s131 = sphi 0, %s115
    $region4: #{conv_feature_forward.9} parent=1 // loop_header_branch
      %12 = sbr.rel (%p10) target = $region8
    $region5: #{conv_feature_forward.9} parent=1 // loop_body
      %s14 = ssub.s32 %s9, 1
      %s15 = ssub.s32 %s9, 2
      %s22 = sadd.s32 1, %s17
      %p23 = scmp.ge.s32.totalorder %s22, 3
      %s24 = scalar_select %p23, 0, %s22
      %s25 = sadd.s32 1, %s16
      %s26 = scalar_select %p23, %s25, %s16
      %p27 = scmp.ge.s32.totalorder %s26, 4
      %s28 = scalar_select %p27, 0, %s26
      %s29 = ssub.s32 %s17, %s24
      %p30 = scmp.eq.s32.totalorder %s29, 0
      %s32 = sadd.s32 %s31, 1
      %s33 = scalar_select %p30, %s31, %s32
      %p36 = pneg %p30
      %p37 = scmp.eq.s32.totalorder %s9, 11
      %p38 = por %p36, %p37
      %p39 = scmp.ne.s32.totalorder %s31, %s34
      %p40 = scmp.eq.s32.totalorder %s9, 0
      %p41 = por %p39, %p40
      %p42 = scmp.ne.s32.totalorder %s31, %s34
      %p43 = scmp.eq.s32.totalorder %s14, 11
      %p44 = por %p42, %p43
      %p45 = scmp.ne.s32.totalorder %s34, %s35
      %p46 = scmp.eq.s32.totalorder %s14, 0
      %p47 = por %p45, %p46
      %p48 = scmp.ne.s32.totalorder %s34, %s35
      %p49 = scmp.eq.s32.totalorder %s15, 11
      %p50 = por %p48, %p49
      %p52 = scmp.ne.s32.totalorder %s35, %s51
      %p53 = scmp.eq.s32.totalorder %s15, 0
      %p54 = por %p52, %p53
      %s55 = ssub.s32 %s17, %s24
      %s56 = ssub.s32 %s16, %s28
      %s57 = sor.u32 %s55, %s56
      %p58 = scmp.eq.s32.totalorder %s57, 0
      %s60 = sadd.s32 %s59, 1
      %s61 = scalar_select %p58, %s59, %s60
      %p64 = pneg %p58
      %p65 = scmp.eq.s32.totalorder %s9, 11
      %p66 = por %p64, %p65
      %p67 = scmp.ne.s32.totalorder %s59, %s62
      %p68 = scmp.eq.s32.totalorder %s9, 0
      %p69 = por %p67, %p68
      %p70 = scmp.ne.s32.totalorder %s59, %s62
      %p71 = scmp.eq.s32.totalorder %s14, 11
      %p72 = por %p70, %p71
      %p73 = scmp.ne.s32.totalorder %s62, %s63
      %p74 = scmp.eq.s32.totalorder %s14, 0
      %p75 = por %p73, %p74
      %p76 = scmp.ne.s32.totalorder %s62, %s63
      %p77 = scmp.eq.s32.totalorder %s15, 11
      %p78 = por %p76, %p77
      %p80 = scmp.ne.s32.totalorder %s63, %s79
      %p81 = scmp.eq.s32.totalorder %s15, 0
      %p82 = por %p80, %p81
      %s83 = ssub.s32 %s16, %s28
      %p84 = scmp.eq.s32.totalorder %s83, 0
      %s86 = sadd.s32 %s85, 1
      %s87 = scalar_select %p84, %s85, %s86
      %p90 = pneg %p84
      %p91 = scmp.eq.s32.totalorder %s9, 11
      %p92 = por %p90, %p91
      %p93 = scmp.ne.s32.totalorder %s85, %s88
      %p94 = scmp.eq.s32.totalorder %s9, 0
      %p95 = por %p93, %p94
      %p96 = scmp.ne.s32.totalorder %s85, %s88
      %p97 = scmp.eq.s32.totalorder %s14, 11
      %p98 = por %p96, %p97
      %p99 = scmp.ne.s32.totalorder %s88, %s89
      %p100 = scmp.eq.s32.totalorder %s14, 0
      %p101 = por %p99, %p100
      %p102 = scmp.ne.s32.totalorder %s88, %s89
      %p103 = scmp.eq.s32.totalorder %s15, 11
      %p104 = por %p102, %p103
      %p106 = scmp.ne.s32.totalorder %s89, %s105
      %p107 = scmp.eq.s32.totalorder %s15, 0
      %p108 = por %p106, %p107
      %s109 = ssub.s32 %s16, %s28
      %p110 = scmp.eq.s32.totalorder %s109, 0
      %s112 = sadd.s32 %s111, 1
      %s113 = scalar_select %p110, %s111, %s112
      %p116 = pneg %p110
      %p117 = scmp.eq.s32.totalorder %s9, 11
      %p118 = por %p116, %p117
      %p119 = scmp.ne.s32.totalorder %s111, %s114
      %p120 = scmp.eq.s32.totalorder %s9, 0
      %p121 = por %p119, %p120
      %p122 = scmp.ne.s32.totalorder %s111, %s114
      %p123 = scmp.eq.s32.totalorder %s14, 11
      %p124 = por %p122, %p123
      %p125 = scmp.ne.s32.totalorder %s114, %s115
      %p126 = scmp.eq.s32.totalorder %s14, 0
      %p127 = por %p125, %p126
      %p128 = scmp.ne.s32.totalorder %s114, %s115
      %p129 = scmp.eq.s32.totalorder %s15, 11
      %p130 = por %p128, %p129
      %p132 = scmp.ne.s32.totalorder %s115, %s131
      %p133 = scmp.eq.s32.totalorder %s15, 0
      %p134 = por %p132, %p133
      %p135 = scmp.le.s32.totalorder 1, %s9
      %p136 = scmp.lt.s32.totalorder %s9, 13
      %p137 = pnand %p135, %p136
      %p138 = pneg %p137
      // Predicated region
      $region9: #{conv_feature_forward.9} parent=5 // pred_check
        _
      $region10: #{conv_feature_forward.9} parent=5 // pred_check_branch
        %140 = sbr.rel (%p137) target = $region12
      $region11: #{conv_feature_forward.9} parent=5 // pred_region
        %s141 = ssub.s32 %s9, 1
      $region12: #{conv_feature_forward.9} parent=5 // pred_fallthru
        _
      %p142 = scmp.lt.s32.totalorder %s9, 12
      // Predicated region
      $region13: #{conv_feature_forward.9} parent=5 // pred_check
        %p143 = pneg %p142
      $region14: #{conv_feature_forward.9} parent=5 // pred_check_branch
        %145 = sbr.rel (%p143) target = $region16
      $region15: #{conv_feature_forward.9} parent=5 // pred_region
        // Predicated region
        $region17: #{conv_feature_forward.9} parent=15 // pred_check
          %p146 = pneg %p41
        $region18: #{conv_feature_forward.9} parent=15 // pred_check_branch
          %148 = sbr.rel (%p146) target = $region20
        $region19: #{conv_feature_forward.9} parent=15 // pred_region
          %s149 = smul.u32 6, %s17
          %p150 = scmp.lt.s32.totalorder %s149, 17
          %s151 = scalar_select %p150, %s149, 17
          %s152 = scalar_lea.vmem %s0, %s151
          %s153 = smul.u32 6, %s17
        $region20: #{conv_feature_forward.9} parent=15 // pred_fallthru
          _
        // Predicated region
        $region21: #{conv_feature_forward.9} parent=15 // pred_check
          %p154 = pneg %p69
        $region22: #{conv_feature_forward.9} parent=15 // pred_check_branch
          %156 = sbr.rel (%p154) target = $region24
        $region23: #{conv_feature_forward.9} parent=15 // pred_region
          %s157 = sand.u32 %s59, 1
          %s158 = sand.u32 %s59, 1
          %s159 = smul.addr %s158, 768
          %s160 = scalar_lea.vmem [#allocation3], %s159
          %s161 = smul.u32 96, %s17
          %s162 = smul.u32 2, %s16
          %s163 = smul.addr %s161, 8
          %s164 = sadd.s32 %s162, %s163
          %s165 = smul.addr %s164, 4
          %s166 = scalar_lea.vmem %s1, %s165
          // Predicated region
          $region25: #{conv_feature_forward.9} parent=23 // pred_check
            _
          $region26: #{conv_feature_forward.9} parent=23 // pred_check_branch
            %168 = sbr.rel (0) target = $region28
          $region27: #{conv_feature_forward.9} parent=23 // pred_region
            // Predicated region
            $region29: #{conv_feature_forward.9} parent=27 // pred_check
              _
            $region30: #{conv_feature_forward.9} parent=27 // pred_check_branch
              %170 = sbr.rel (0) target = $region32
            $region31: #{conv_feature_forward.9} parent=27 // pred_region
              // Predicated region
              $region44: #{conv_feature_forward.9} parent=31 // pred_check
                _
              $region45: #{conv_feature_forward.9} parent=31 // pred_check_branch
                %375 = sbr.rel (0) target = $region47
              $region46: #{conv_feature_forward.9} parent=31 // pred_region
                loop: start=0, step=1, limit=1
                $region48: #{conv_feature_forward.9} parent=46 // loop_pre_header
                  _
                $region49: #{conv_feature_forward.9} parent=46 // loop_header
                  %s377 = sphi 0, %s381
                  %p378 = scmp.ge.s32.totalorder %s377, 1
                  %s382 = sphi %s166, %s166
                  %s383 = sphi %s160, %s160
                $region50: #{conv_feature_forward.9} parent=46 // loop_header_branch
                  %380 = sbr.rel (%p378) target = $region54
                $region51: #{conv_feature_forward.9} parent=46 // loop_body
                  %v384 = vld [vmem:[%s382] sm:$0xff]
                  %385 = vst [vmem:[%s383] sm:$0xff] %v384
                  %v386 = vld [vmem:[%s382 + $0x20] sm:$0xff]
                  %387 = vst [vmem:[%s383 + $0x8] sm:$0xff] %v386
                  %v388 = vld [vmem:[%s382 + $0x40] sm:$0xff]
                  %389 = vst [vmem:[%s383 + $0x10] sm:$0xff] %v388
                  %v390 = vld [vmem:[%s382 + $0x60] sm:$0xff]
                  %391 = vst [vmem:[%s383 + $0x18] sm:$0xff] %v390
                  %v392 = vld [vmem:[%s382 + $0x80] sm:$0xff]
                  %393 = vst [vmem:[%s383 + $0x20] sm:$0xff] %v392
                  %v394 = vld [vmem:[%s382 + $0xa0] sm:$0xff]
                  %395 = vst [vmem:[%s383 + $0x28] sm:$0xff] %v394
                  %v396 = vld [vmem:[%s382 + $0xc0] sm:$0xff]
                  %397 = vst [vmem:[%s383 + $0x30] sm:$0xff] %v396
                  %v398 = vld [vmem:[%s382 + $0xe0] sm:$0xff]
                  %399 = vst [vmem:[%s383 + $0x38] sm:$0xff] %v398
                  %v400 = vld [vmem:[%s382 + $0x100] sm:$0xff]
                  %401 = vst [vmem:[%s383 + $0x40] sm:$0xff] %v400
                  %v402 = vld [vmem:[%s382 + $0x120] sm:$0xff]
                  %403 = vst [vmem:[%s383 + $0x48] sm:$0xff] %v402
                  %v404 = vld [vmem:[%s382 + $0x140] sm:$0xff]
                  %405 = vst [vmem:[%s383 + $0x50] sm:$0xff] %v404
                  %v406 = vld [vmem:[%s382 + $0x160] sm:$0xff]
                  %407 = vst [vmem:[%s383 + $0x58] sm:$0xff] %v406
                  %v408 = vld [vmem:[%s382 + $0x180] sm:$0xff]
                  %409 = vst [vmem:[%s383 + $0x60] sm:$0xff] %v408
                  %v410 = vld [vmem:[%s382 + $0x1a0] sm:$0xff]
                  %411 = vst [vmem:[%s383 + $0x68] sm:$0xff] %v410
                  %v412 = vld [vmem:[%s382 + $0x1c0] sm:$0xff]
                  %413 = vst [vmem:[%s383 + $0x70] sm:$0xff] %v412
                  %v414 = vld [vmem:[%s382 + $0x1e0] sm:$0xff]
                  %415 = vst [vmem:[%s383 + $0x78] sm:$0xff] %v414
                  %v416 = vld [vmem:[%s382 + $0x200] sm:$0xff]
                  %417 = vst [vmem:[%s383 + $0x80] sm:$0xff] %v416
                  %v418 = vld [vmem:[%s382 + $0x220] sm:$0xff]
                  %419 = vst [vmem:[%s383 + $0x88] sm:$0xff] %v418
                  %v420 = vld [vmem:[%s382 + $0x240] sm:$0xff]
                  %421 = vst [vmem:[%s383 + $0x90] sm:$0xff] %v420
                  %v422 = vld [vmem:[%s382 + $0x260] sm:$0xff]
                  %423 = vst [vmem:[%s383 + $0x98] sm:$0xff] %v422
                  %v424 = vld [vmem:[%s382 + $0x280] sm:$0xff]
                  %425 = vst [vmem:[%s383 + $0xa0] sm:$0xff] %v424
                  %v426 = vld [vmem:[%s382 + $0x2a0] sm:$0xff]
                  %427 = vst [vmem:[%s383 + $0xa8] sm:$0xff] %v426
                  %v428 = vld [vmem:[%s382 + $0x2c0] sm:$0xff]
                  %429 = vst [vmem:[%s383 + $0xb0] sm:$0xff] %v428
                  %v430 = vld [vmem:[%s382 + $0x2e0] sm:$0xff]
                  %431 = vst [vmem:[%s383 + $0xb8] sm:$0xff] %v430
                  %v432 = vld [vmem:[%s382 + $0x300] sm:$0xff]
                  %433 = vst [vmem:[%s383 + $0xc0] sm:$0xff] %v432
                  %v434 = vld [vmem:[%s382 + $0x320] sm:$0xff]
                  %435 = vst [vmem:[%s383 + $0xc8] sm:$0xff] %v434
                  %v436 = vld [vmem:[%s382 + $0x340] sm:$0xff]
                  %437 = vst [vmem:[%s383 + $0xd0] sm:$0xff] %v436
                  %v438 = vld [vmem:[%s382 + $0x360] sm:$0xff]
                  %439 = vst [vmem:[%s383 + $0xd8] sm:$0xff] %v438
                  %v440 = vld [vmem:[%s382 + $0x380] sm:$0xff]
                  %441 = vst [vmem:[%s383 + $0xe0] sm:$0xff] %v440
                  %v442 = vld [vmem:[%s382 + $0x3a0] sm:$0xff]
                  %443 = vst [vmem:[%s383 + $0xe8] sm:$0xff] %v442
                  %v444 = vld [vmem:[%s382 + $0x3c0] sm:$0xff]
                  %445 = vst [vmem:[%s383 + $0xf0] sm:$0xff] %v444
                  %v446 = vld [vmem:[%s382 + $0x3e0] sm:$0xff]
                  %447 = vst [vmem:[%s383 + $0xf8] sm:$0xff] %v446
                  %v448 = vld [vmem:[%s382 + $0x400] sm:$0xff]
                  %449 = vst [vmem:[%s383 + $0x100] sm:$0xff] %v448
                  %v450 = vld [vmem:[%s382 + $0x420] sm:$0xff]
                  %451 = vst [vmem:[%s383 + $0x108] sm:$0xff] %v450
                  %v452 = vld [vmem:[%s382 + $0x440] sm:$0xff]
                  %453 = vst [vmem:[%s383 + $0x110] sm:$0xff] %v452
                  %v454 = vld [vmem:[%s382 + $0x460] sm:$0xff]
                  %455 = vst [vmem:[%s383 + $0x118] sm:$0xff] %v454
                  %v456 = vld [vmem:[%s382 + $0x480] sm:$0xff]
                  %457 = vst [vmem:[%s383 + $0x120] sm:$0xff] %v456
                  %v458 = vld [vmem:[%s382 + $0x4a0] sm:$0xff]
                  %459 = vst [vmem:[%s383 + $0x128] sm:$0xff] %v458
                  %v460 = vld [vmem:[%s382 + $0x4c0] sm:$0xff]
                  %461 = vst [vmem:[%s383 + $0x130] sm:$0xff] %v460
                  %v462 = vld [vmem:[%s382 + $0x4e0] sm:$0xff]
                  %463 = vst [vmem:[%s383 + $0x138] sm:$0xff] %v462
                  %v464 = vld [vmem:[%s382 + $0x500] sm:$0xff]
                  %465 = vst [vmem:[%s383 + $0x140] sm:$0xff] %v464
                  %v466 = vld [vmem:[%s382 + $0x520] sm:$0xff]
                  %467 = vst [vmem:[%s383 + $0x148] sm:$0xff] %v466
                  %v468 = vld [vmem:[%s382 + $0x540] sm:$0xff]
                  %469 = vst [vmem:[%s383 + $0x150] sm:$0xff] %v468
                  %v470 = vld [vmem:[%s382 + $0x560] sm:$0xff]
                  %471 = vst [vmem:[%s383 + $0x158] sm:$0xff] %v470
                  %v472 = vld [vmem:[%s382 + $0x580] sm:$0xff]
                  %473 = vst [vmem:[%s383 + $0x160] sm:$0xff] %v472
                  %v474 = vld [vmem:[%s382 + $0x5a0] sm:$0xff]
                  %475 = vst [vmem:[%s383 + $0x168] sm:$0xff] %v474
                  %v476 = vld [vmem:[%s382 + $0x5c0] sm:$0xff]
                  %477 = vst [vmem:[%s383 + $0x170] sm:$0xff] %v476
                  %v478 = vld [vmem:[%s382 + $0x5e0] sm:$0xff]
                  %479 = vst [vmem:[%s383 + $0x178] sm:$0xff] %v478
                  %v480 = vld [vmem:[%s382 + $0x600] sm:$0xff]
                  %481 = vst [vmem:[%s383 + $0x180] sm:$0xff] %v480
                  %v482 = vld [vmem:[%s382 + $0x620] sm:$0xff]
                  %483 = vst [vmem:[%s383 + $0x188] sm:$0xff] %v482
                  %v484 = vld [vmem:[%s382 + $0x640] sm:$0xff]
                  %485 = vst [vmem:[%s383 + $0x190] sm:$0xff] %v484
                  %v486 = vld [vmem:[%s382 + $0x660] sm:$0xff]
                  %487 = vst [vmem:[%s383 + $0x198] sm:$0xff] %v486
                  %v488 = vld [vmem:[%s382 + $0x680] sm:$0xff]
                  %489 = vst [vmem:[%s383 + $0x1a0] sm:$0xff] %v488
                  %v490 = vld [vmem:[%s382 + $0x6a0] sm:$0xff]
                  %491 = vst [vmem:[%s383 + $0x1a8] sm:$0xff] %v490
                  %v492 = vld [vmem:[%s382 + $0x6c0] sm:$0xff]
                  %493 = vst [vmem:[%s383 + $0x1b0] sm:$0xff] %v492
                  %v494 = vld [vmem:[%s382 + $0x6e0] sm:$0xff]
                  %495 = vst [vmem:[%s383 + $0x1b8] sm:$0xff] %v494
                  %v496 = vld [vmem:[%s382 + $0x700] sm:$0xff]
                  %497 = vst [vmem:[%s383 + $0x1c0] sm:$0xff] %v496
                  %v498 = vld [vmem:[%s382 + $0x720] sm:$0xff]
                  %499 = vst [vmem:[%s383 + $0x1c8] sm:$0xff] %v498
                  %v500 = vld [vmem:[%s382 + $0x740] sm:$0xff]
                  %501 = vst [vmem:[%s383 + $0x1d0] sm:$0xff] %v500
                  %v502 = vld [vmem:[%s382 + $0x760] sm:$0xff]
                  %503 = vst [vmem:[%s383 + $0x1d8] sm:$0xff] %v502
                  %v504 = vld [vmem:[%s382 + $0x780] sm:$0xff]
                  %505 = vst [vmem:[%s383 + $0x1e0] sm:$0xff] %v504
                  %v506 = vld [vmem:[%s382 + $0x7a0] sm:$0xff]
                  %507 = vst [vmem:[%s383 + $0x1e8] sm:$0xff] %v506
                  %v508 = vld [vmem:[%s382 + $0x7c0] sm:$0xff]
                  %509 = vst [vmem:[%s383 + $0x1f0] sm:$0xff] %v508
                  %v510 = vld [vmem:[%s382 + $0x7e0] sm:$0xff]
                  %511 = vst [vmem:[%s383 + $0x1f8] sm:$0xff] %v510
                  %v512 = vld [vmem:[%s382 + $0x800] sm:$0xff]
                  %513 = vst [vmem:[%s383 + $0x200] sm:$0xff] %v512
                  %v514 = vld [vmem:[%s382 + $0x820] sm:$0xff]
                  %515 = vst [vmem:[%s383 + $0x208] sm:$0xff] %v514
                  %v516 = vld [vmem:[%s382 + $0x840] sm:$0xff]
                  %517 = vst [vmem:[%s383 + $0x210] sm:$0xff] %v516
                  %v518 = vld [vmem:[%s382 + $0x860] sm:$0xff]
                  %519 = vst [vmem:[%s383 + $0x218] sm:$0xff] %v518
                  %v520 = vld [vmem:[%s382 + $0x880] sm:$0xff]
                  %521 = vst [vmem:[%s383 + $0x220] sm:$0xff] %v520
                  %v522 = vld [vmem:[%s382 + $0x8a0] sm:$0xff]
                  %523 = vst [vmem:[%s383 + $0x228] sm:$0xff] %v522
                  %v524 = vld [vmem:[%s382 + $0x8c0] sm:$0xff]
                  %525 = vst [vmem:[%s383 + $0x230] sm:$0xff] %v524
                  %v526 = vld [vmem:[%s382 + $0x8e0] sm:$0xff]
                  %527 = vst [vmem:[%s383 + $0x238] sm:$0xff] %v526
                  %v528 = vld [vmem:[%s382 + $0x900] sm:$0xff]
                  %529 = vst [vmem:[%s383 + $0x240] sm:$0xff] %v528
                  %v530 = vld [vmem:[%s382 + $0x920] sm:$0xff]
                  %531 = vst [vmem:[%s383 + $0x248] sm:$0xff] %v530
                  %v532 = vld [vmem:[%s382 + $0x940] sm:$0xff]
                  %533 = vst [vmem:[%s383 + $0x250] sm:$0xff] %v532
                  %v534 = vld [vmem:[%s382 + $0x960] sm:$0xff]
                  %535 = vst [vmem:[%s383 + $0x258] sm:$0xff] %v534
                  %v536 = vld [vmem:[%s382 + $0x980] sm:$0xff]
                  %537 = vst [vmem:[%s383 + $0x260] sm:$0xff] %v536
                  %v538 = vld [vmem:[%s382 + $0x9a0] sm:$0xff]
                  %539 = vst [vmem:[%s383 + $0x268] sm:$0xff] %v538
                  %v540 = vld [vmem:[%s382 + $0x9c0] sm:$0xff]
                  %541 = vst [vmem:[%s383 + $0x270] sm:$0xff] %v540
                  %v542 = vld [vmem:[%s382 + $0x9e0] sm:$0xff]
                  %543 = vst [vmem:[%s383 + $0x278] sm:$0xff] %v542
                  %v544 = vld [vmem:[%s382 + $0xa00] sm:$0xff]
                  %545 = vst [vmem:[%s383 + $0x280] sm:$0xff] %v544
                  %v546 = vld [vmem:[%s382 + $0xa20] sm:$0xff]
                  %547 = vst [vmem:[%s383 + $0x288] sm:$0xff] %v546
                  %v548 = vld [vmem:[%s382 + $0xa40] sm:$0xff]
                  %549 = vst [vmem:[%s383 + $0x290] sm:$0xff] %v548
                  %v550 = vld [vmem:[%s382 + $0xa60] sm:$0xff]
                  %551 = vst [vmem:[%s383 + $0x298] sm:$0xff] %v550
                  %v552 = vld [vmem:[%s382 + $0xa80] sm:$0xff]
                  %553 = vst [vmem:[%s383 + $0x2a0] sm:$0xff] %v552
                  %v554 = vld [vmem:[%s382 + $0xaa0] sm:$0xff]
                  %555 = vst [vmem:[%s383 + $0x2a8] sm:$0xff] %v554
                  %v556 = vld [vmem:[%s382 + $0xac0] sm:$0xff]
                  %557 = vst [vmem:[%s383 + $0x2b0] sm:$0xff] %v556
                  %v558 = vld [vmem:[%s382 + $0xae0] sm:$0xff]
                  %559 = vst [vmem:[%s383 + $0x2b8] sm:$0xff] %v558
                  %v560 = vld [vmem:[%s382 + $0xb00] sm:$0xff]
                  %561 = vst [vmem:[%s383 + $0x2c0] sm:$0xff] %v560
                  %v562 = vld [vmem:[%s382 + $0xb20] sm:$0xff]
                  %563 = vst [vmem:[%s383 + $0x2c8] sm:$0xff] %v562
                  %v564 = vld [vmem:[%s382 + $0xb40] sm:$0xff]
                  %565 = vst [vmem:[%s383 + $0x2d0] sm:$0xff] %v564
                  %v566 = vld [vmem:[%s382 + $0xb60] sm:$0xff]
                  %567 = vst [vmem:[%s383 + $0x2d8] sm:$0xff] %v566
                  %v568 = vld [vmem:[%s382 + $0xb80] sm:$0xff]
                  %569 = vst [vmem:[%s383 + $0x2e0] sm:$0xff] %v568
                  %v570 = vld [vmem:[%s382 + $0xba0] sm:$0xff]
                  %571 = vst [vmem:[%s383 + $0x2e8] sm:$0xff] %v570
                  %v572 = vld [vmem:[%s382 + $0xbc0] sm:$0xff]
                  %573 = vst [vmem:[%s383 + $0x2f0] sm:$0xff] %v572
                  %v574 = vld [vmem:[%s382 + $0xbe0] sm:$0xff]
                  %575 = vst [vmem:[%s383 + $0x2f8] sm:$0xff] %v574
                $region52: #{conv_feature_forward.9} parent=46 // loop_footer
                  %s381 = sadd.s32 1, %s377
                $region53: #{conv_feature_forward.9} parent=46 // loop_footer_branch
                  %376 = sbr.rel target = $region49
                $region54: #{conv_feature_forward.9} parent=46 // loop_exit
                  _
              $region47: #{conv_feature_forward.9} parent=31 // pred_fallthru
                _
              // Predicated region
              $region55: #{conv_feature_forward.9} parent=31 // pred_check
                _
              $region56: #{conv_feature_forward.9} parent=31 // pred_check_branch
                %577 = sbr.rel target = $region58
              $region57: #{conv_feature_forward.9} parent=31 // pred_region
                _
              $region58: #{conv_feature_forward.9} parent=31 // pred_fallthru
                _
            $region32: #{conv_feature_forward.9} parent=27 // pred_fallthru
              _
            // Predicated region
            $region33: #{conv_feature_forward.9} parent=27 // pred_check
              _
            $region34: #{conv_feature_forward.9} parent=27 // pred_check_branch
              %172 = sbr.rel target = $region36
            $region35: #{conv_feature_forward.9} parent=27 // pred_region
              loop: start=0, step=1, limit=1
              $region37: #{conv_feature_forward.9} parent=35 // loop_pre_header
                _
              $region38: #{conv_feature_forward.9} parent=35 // loop_header
                %s175 = sphi 0, %s179
                %p176 = scmp.ge.s32.totalorder %s175, 1
                %s180 = sphi %s166, %s166
                %s181 = sphi %s160, %s160
              $region39: #{conv_feature_forward.9} parent=35 // loop_header_branch
                %178 = sbr.rel (%p176) target = $region43
              $region40: #{conv_feature_forward.9} parent=35 // loop_body
                %v182 = vld [vmem:[%s180] sm:$0xff]
                %183 = vst [vmem:[%s181] sm:$0xff] %v182
                %v184 = vld [vmem:[%s180 + $0x20] sm:$0xff]
                %185 = vst [vmem:[%s181 + $0x8] sm:$0xff] %v184
                %v186 = vld [vmem:[%s180 + $0x40] sm:$0xff]
                %187 = vst [vmem:[%s181 + $0x10] sm:$0xff] %v186
                %v188 = vld [vmem:[%s180 + $0x60] sm:$0xff]
                %189 = vst [vmem:[%s181 + $0x18] sm:$0xff] %v188
                %v190 = vld [vmem:[%s180 + $0x80] sm:$0xff]
                %191 = vst [vmem:[%s181 + $0x20] sm:$0xff] %v190
                %v192 = vld [vmem:[%s180 + $0xa0] sm:$0xff]
                %193 = vst [vmem:[%s181 + $0x28] sm:$0xff] %v192
                %v194 = vld [vmem:[%s180 + $0xc0] sm:$0xff]
                %195 = vst [vmem:[%s181 + $0x30] sm:$0xff] %v194
                %v196 = vld [vmem:[%s180 + $0xe0] sm:$0xff]
                %197 = vst [vmem:[%s181 + $0x38] sm:$0xff] %v196
                %v198 = vld [vmem:[%s180 + $0x100] sm:$0xff]
                %199 = vst [vmem:[%s181 + $0x40] sm:$0xff] %v198
                %v200 = vld [vmem:[%s180 + $0x120] sm:$0xff]
                %201 = vst [vmem:[%s181 + $0x48] sm:$0xff] %v200
                %v202 = vld [vmem:[%s180 + $0x140] sm:$0xff]
                %203 = vst [vmem:[%s181 + $0x50] sm:$0xff] %v202
                %v204 = vld [vmem:[%s180 + $0x160] sm:$0xff]
                %205 = vst [vmem:[%s181 + $0x58] sm:$0xff] %v204
                %v206 = vld [vmem:[%s180 + $0x180] sm:$0xff]
                %207 = vst [vmem:[%s181 + $0x60] sm:$0xff] %v206
                %v208 = vld [vmem:[%s180 + $0x1a0] sm:$0xff]
                %209 = vst [vmem:[%s181 + $0x68] sm:$0xff] %v208
                %v210 = vld [vmem:[%s180 + $0x1c0] sm:$0xff]
                %211 = vst [vmem:[%s181 + $0x70] sm:$0xff] %v210
                %v212 = vld [vmem:[%s180 + $0x1e0] sm:$0xff]
                %213 = vst [vmem:[%s181 + $0x78] sm:$0xff] %v212
                %v214 = vld [vmem:[%s180 + $0x200] sm:$0xff]
                %215 = vst [vmem:[%s181 + $0x80] sm:$0xff] %v214
                %v216 = vld [vmem:[%s180 + $0x220] sm:$0xff]
                %217 = vst [vmem:[%s181 + $0x88] sm:$0xff] %v216
                %v218 = vld [vmem:[%s180 + $0x240] sm:$0xff]
                %219 = vst [vmem:[%s181 + $0x90] sm:$0xff] %v218
                %v220 = vld [vmem:[%s180 + $0x260] sm:$0xff]
                %221 = vst [vmem:[%s181 + $0x98] sm:$0xff] %v220
                %v222 = vld [vmem:[%s180 + $0x280] sm:$0xff]
                %223 = vst [vmem:[%s181 + $0xa0] sm:$0xff] %v222
                %v224 = vld [vmem:[%s180 + $0x2a0] sm:$0xff]
                %225 = vst [vmem:[%s181 + $0xa8] sm:$0xff] %v224
                %v226 = vld [vmem:[%s180 + $0x2c0] sm:$0xff]
                %227 = vst [vmem:[%s181 + $0xb0] sm:$0xff] %v226
                %v228 = vld [vmem:[%s180 + $0x2e0] sm:$0xff]
                %229 = vst [vmem:[%s181 + $0xb8] sm:$0xff] %v228
                %v230 = vld [vmem:[%s180 + $0x300] sm:$0xff]
                %231 = vst [vmem:[%s181 + $0xc0] sm:$0xff] %v230
                %v232 = vld [vmem:[%s180 + $0x320] sm:$0xff]
                %233 = vst [vmem:[%s181 + $0xc8] sm:$0xff] %v232
                %v234 = vld [vmem:[%s180 + $0x340] sm:$0xff]
                %235 = vst [vmem:[%s181 + $0xd0] sm:$0xff] %v234
                %v236 = vld [vmem:[%s180 + $0x360] sm:$0xff]
                %237 = vst [vmem:[%s181 + $0xd8] sm:$0xff] %v236
                %v238 = vld [vmem:[%s180 + $0x380] sm:$0xff]
                %239 = vst [vmem:[%s181 + $0xe0] sm:$0xff] %v238
                %v240 = vld [vmem:[%s180 + $0x3a0] sm:$0xff]
                %241 = vst [vmem:[%s181 + $0xe8] sm:$0xff] %v240
                %v242 = vld [vmem:[%s180 + $0x3c0] sm:$0xff]
                %243 = vst [vmem:[%s181 + $0xf0] sm:$0xff] %v242
                %v244 = vld [vmem:[%s180 + $0x3e0] sm:$0xff]
                %245 = vst [vmem:[%s181 + $0xf8] sm:$0xff] %v244
                %v246 = vld [vmem:[%s180 + $0x400] sm:$0xff]
                %247 = vst [vmem:[%s181 + $0x100] sm:$0xff] %v246
                %v248 = vld [vmem:[%s180 + $0x420] sm:$0xff]
                %249 = vst [vmem:[%s181 + $0x108] sm:$0xff] %v248
                %v250 = vld [vmem:[%s180 + $0x440] sm:$0xff]
                %251 = vst [vmem:[%s181 + $0x110] sm:$0xff] %v250
                %v252 = vld [vmem:[%s180 + $0x460] sm:$0xff]
                %253 = vst [vmem:[%s181 + $0x118] sm:$0xff] %v252
                %v254 = vld [vmem:[%s180 + $0x480] sm:$0xff]
                %255 = vst [vmem:[%s181 + $0x120] sm:$0xff] %v254
                %v256 = vld [vmem:[%s180 + $0x4a0] sm:$0xff]
                %257 = vst [vmem:[%s181 + $0x128] sm:$0xff] %v256
                %v258 = vld [vmem:[%s180 + $0x4c0] sm:$0xff]
                %259 = vst [vmem:[%s181 + $0x130] sm:$0xff] %v258
                %v260 = vld [vmem:[%s180 + $0x4e0] sm:$0xff]
                %261 = vst [vmem:[%s181 + $0x138] sm:$0xff] %v260
                %v262 = vld [vmem:[%s180 + $0x500] sm:$0xff]
                %263 = vst [vmem:[%s181 + $0x140] sm:$0xff] %v262
                %v264 = vld [vmem:[%s180 + $0x520] sm:$0xff]
                %265 = vst [vmem:[%s181 + $0x148] sm:$0xff] %v264
                %v266 = vld [vmem:[%s180 + $0x540] sm:$0xff]
                %267 = vst [vmem:[%s181 + $0x150] sm:$0xff] %v266
                %v268 = vld [vmem:[%s180 + $0x560] sm:$0xff]
                %269 = vst [vmem:[%s181 + $0x158] sm:$0xff] %v268
                %v270 = vld [vmem:[%s180 + $0x580] sm:$0xff]
                %271 = vst [vmem:[%s181 + $0x160] sm:$0xff] %v270
                %v272 = vld [vmem:[%s180 + $0x5a0] sm:$0xff]
                %273 = vst [vmem:[%s181 + $0x168] sm:$0xff] %v272
                %v274 = vld [vmem:[%s180 + $0x5c0] sm:$0xff]
                %275 = vst [vmem:[%s181 + $0x170] sm:$0xff] %v274
                %v276 = vld [vmem:[%s180 + $0x5e0] sm:$0xff]
                %277 = vst [vmem:[%s181 + $0x178] sm:$0xff] %v276
                %v278 = vld [vmem:[%s180 + $0x600] sm:$0xff]
                %279 = vst [vmem:[%s181 + $0x180] sm:$0xff] %v278
                %v280 = vld [vmem:[%s180 + $0x620] sm:$0xff]
                %281 = vst [vmem:[%s181 + $0x188] sm:$0xff] %v280
                %v282 = vld [vmem:[%s180 + $0x640] sm:$0xff]
                %283 = vst [vmem:[%s181 + $0x190] sm:$0xff] %v282
                %v284 = vld [vmem:[%s180 + $0x660] sm:$0xff]
                %285 = vst [vmem:[%s181 + $0x198] sm:$0xff] %v284
                %v286 = vld [vmem:[%s180 + $0x680] sm:$0xff]
                %287 = vst [vmem:[%s181 + $0x1a0] sm:$0xff] %v286
                %v288 = vld [vmem:[%s180 + $0x6a0] sm:$0xff]
                %289 = vst [vmem:[%s181 + $0x1a8] sm:$0xff] %v288
                %v290 = vld [vmem:[%s180 + $0x6c0] sm:$0xff]
                %291 = vst [vmem:[%s181 + $0x1b0] sm:$0xff] %v290
                %v292 = vld [vmem:[%s180 + $0x6e0] sm:$0xff]
                %293 = vst [vmem:[%s181 + $0x1b8] sm:$0xff] %v292
                %v294 = vld [vmem:[%s180 + $0x700] sm:$0xff]
                %295 = vst [vmem:[%s181 + $0x1c0] sm:$0xff] %v294
                %v296 = vld [vmem:[%s180 + $0x720] sm:$0xff]
                %297 = vst [vmem:[%s181 + $0x1c8] sm:$0xff] %v296
                %v298 = vld [vmem:[%s180 + $0x740] sm:$0xff]
                %299 = vst [vmem:[%s181 + $0x1d0] sm:$0xff] %v298
                %v300 = vld [vmem:[%s180 + $0x760] sm:$0xff]
                %301 = vst [vmem:[%s181 + $0x1d8] sm:$0xff] %v300
                %v302 = vld [vmem:[%s180 + $0x780] sm:$0xff]
                %303 = vst [vmem:[%s181 + $0x1e0] sm:$0xff] %v302
                %v304 = vld [vmem:[%s180 + $0x7a0] sm:$0xff]
                %305 = vst [vmem:[%s181 + $0x1e8] sm:$0xff] %v304
                %v306 = vld [vmem:[%s180 + $0x7c0] sm:$0xff]
                %307 = vst [vmem:[%s181 + $0x1f0] sm:$0xff] %v306
                %v308 = vld [vmem:[%s180 + $0x7e0] sm:$0xff]
                %309 = vst [vmem:[%s181 + $0x1f8] sm:$0xff] %v308
                %v310 = vld [vmem:[%s180 + $0x800] sm:$0xff]
                %311 = vst [vmem:[%s181 + $0x200] sm:$0xff] %v310
                %v312 = vld [vmem:[%s180 + $0x820] sm:$0xff]
                %313 = vst [vmem:[%s181 + $0x208] sm:$0xff] %v312
                %v314 = vld [vmem:[%s180 + $0x840] sm:$0xff]
                %315 = vst [vmem:[%s181 + $0x210] sm:$0xff] %v314
                %v316 = vld [vmem:[%s180 + $0x860] sm:$0xff]
                %317 = vst [vmem:[%s181 + $0x218] sm:$0xff] %v316
                %v318 = vld [vmem:[%s180 + $0x880] sm:$0xff]
                %319 = vst [vmem:[%s181 + $0x220] sm:$0xff] %v318
                %v320 = vld [vmem:[%s180 + $0x8a0] sm:$0xff]
                %321 = vst [vmem:[%s181 + $0x228] sm:$0xff] %v320
                %v322 = vld [vmem:[%s180 + $0x8c0] sm:$0xff]
                %323 = vst [vmem:[%s181 + $0x230] sm:$0xff] %v322
                %v324 = vld [vmem:[%s180 + $0x8e0] sm:$0xff]
                %325 = vst [vmem:[%s181 + $0x238] sm:$0xff] %v324
                %v326 = vld [vmem:[%s180 + $0x900] sm:$0xff]
                %327 = vst [vmem:[%s181 + $0x240] sm:$0xff] %v326
                %v328 = vld [vmem:[%s180 + $0x920] sm:$0xff]
                %329 = vst [vmem:[%s181 + $0x248] sm:$0xff] %v328
                %v330 = vld [vmem:[%s180 + $0x940] sm:$0xff]
                %331 = vst [vmem:[%s181 + $0x250] sm:$0xff] %v330
                %v332 = vld [vmem:[%s180 + $0x960] sm:$0xff]
                %333 = vst [vmem:[%s181 + $0x258] sm:$0xff] %v332
                %v334 = vld [vmem:[%s180 + $0x980] sm:$0xff]
                %335 = vst [vmem:[%s181 + $0x260] sm:$0xff] %v334
                %v336 = vld [vmem:[%s180 + $0x9a0] sm:$0xff]
                %337 = vst [vmem:[%s181 + $0x268] sm:$0xff] %v336
                %v338 = vld [vmem:[%s180 + $0x9c0] sm:$0xff]
                %339 = vst [vmem:[%s181 + $0x270] sm:$0xff] %v338
                %v340 = vld [vmem:[%s180 + $0x9e0] sm:$0xff]
                %341 = vst [vmem:[%s181 + $0x278] sm:$0xff] %v340
                %v342 = vld [vmem:[%s180 + $0xa00] sm:$0xff]
                %343 = vst [vmem:[%s181 + $0x280] sm:$0xff] %v342
                %v344 = vld [vmem:[%s180 + $0xa20] sm:$0xff]
                %345 = vst [vmem:[%s181 + $0x288] sm:$0xff] %v344
                %v346 = vld [vmem:[%s180 + $0xa40] sm:$0xff]
                %347 = vst [vmem:[%s181 + $0x290] sm:$0xff] %v346
                %v348 = vld [vmem:[%s180 + $0xa60] sm:$0xff]
                %349 = vst [vmem:[%s181 + $0x298] sm:$0xff] %v348
                %v350 = vld [vmem:[%s180 + $0xa80] sm:$0xff]
                %351 = vst [vmem:[%s181 + $0x2a0] sm:$0xff] %v350
                %v352 = vld [vmem:[%s180 + $0xaa0] sm:$0xff]
                %353 = vst [vmem:[%s181 + $0x2a8] sm:$0xff] %v352
                %v354 = vld [vmem:[%s180 + $0xac0] sm:$0xff]
                %355 = vst [vmem:[%s181 + $0x2b0] sm:$0xff] %v354
                %v356 = vld [vmem:[%s180 + $0xae0] sm:$0xff]
                %357 = vst [vmem:[%s181 + $0x2b8] sm:$0xff] %v356
                %v358 = vld [vmem:[%s180 + $0xb00] sm:$0xff]
                %359 = vst [vmem:[%s181 + $0x2c0] sm:$0xff] %v358
                %v360 = vld [vmem:[%s180 + $0xb20] sm:$0xff]
                %361 = vst [vmem:[%s181 + $0x2c8] sm:$0xff] %v360
                %v362 = vld [vmem:[%s180 + $0xb40] sm:$0xff]
                %363 = vst [vmem:[%s181 + $0x2d0] sm:$0xff] %v362
                %v364 = vld [vmem:[%s180 + $0xb60] sm:$0xff]
                %365 = vst [vmem:[%s181 + $0x2d8] sm:$0xff] %v364
                %v366 = vld [vmem:[%s180 + $0xb80] sm:$0xff]
                %367 = vst [vmem:[%s181 + $0x2e0] sm:$0xff] %v366
                %v368 = vld [vmem:[%s180 + $0xba0] sm:$0xff]
                %369 = vst [vmem:[%s181 + $0x2e8] sm:$0xff] %v368
                %v370 = vld [vmem:[%s180 + $0xbc0] sm:$0xff]
                %371 = vst [vmem:[%s181 + $0x2f0] sm:$0xff] %v370
                %v372 = vld [vmem:[%s180 + $0xbe0] sm:$0xff]
                %373 = vst [vmem:[%s181 + $0x2f8] sm:$0xff] %v372
              $region41: #{conv_feature_forward.9} parent=35 // loop_footer
                %s179 = sadd.s32 1, %s175
              $region42: #{conv_feature_forward.9} parent=35 // loop_footer_branch
                %174 = sbr.rel target = $region38
              $region43: #{conv_feature_forward.9} parent=35 // loop_exit
                _
            $region36: #{conv_feature_forward.9} parent=27 // pred_fallthru
              _
          $region28: #{conv_feature_forward.9} parent=23 // pred_fallthru
            _
          %578 = vnop
        $region24: #{conv_feature_forward.9} parent=15 // pred_fallthru
          _
        // Predicated region
        $region59: #{conv_feature_forward.9} parent=15 // pred_check
          %p579 = pneg %p95
        $region60: #{conv_feature_forward.9} parent=15 // pred_check_branch
          %581 = sbr.rel (%p579) target = $region62
        $region61: #{conv_feature_forward.9} parent=15 // pred_region
          %s582 = smul.u32 2, %s16
          %p583 = scmp.lt.s32.totalorder %s582, 7
          %s584 = scalar_select %p583, %s582, 7
          %s585 = scalar_lea.vmem %s2, %s584
          %s586 = smul.u32 2, %s16
        $region62: #{conv_feature_forward.9} parent=15 // pred_fallthru
          _
      $region16: #{conv_feature_forward.9} parent=5 // pred_fallthru
        _
      %p587 = scmp.le.s32.totalorder 1, %s9
      %p588 = scmp.lt.s32.totalorder %s9, 13
      %p589 = pnand %p587, %p588
      %p590 = pneg %p589
      // Predicated region
      $region63: #{conv_feature_forward.9} parent=5 // pred_check
        _
      $region64: #{conv_feature_forward.9} parent=5 // pred_check_branch
        %592 = sbr.rel (%p589) target = $region66
      $region65: #{conv_feature_forward.9} parent=5 // pred_region
        %s593 = ssub.s32 %s9, 1
        %s594 = sand.u32 %s62, 1
        %s595 = sand.u32 %s62, 1
        %s596 = smul.addr %s595, 768
        %s597 = scalar_lea.vmem [#allocation3], %s596
        // Predicated region
        $region67: #{conv_feature_forward.9} parent=65 // pred_check
          %p598 = pneg %p75
        $region68: #{conv_feature_forward.9} parent=65 // pred_check_branch
          %600 = sbr.rel (%p598) target = $region70
        $region69: #{conv_feature_forward.9} parent=65 // pred_region
          _
        $region70: #{conv_feature_forward.9} parent=65 // pred_fallthru
          _
        %s601 = smul.u32 6, %s19
        %p602 = scmp.lt.s32.totalorder %s601, 17
        %s603 = scalar_select %p602, %s601, 17
        %s604 = scalar_lea.vmem %s0, %s603
        %p605 = pneg %p47
        %p606 = pneg %p44
        %s607 = sand.u32 %s62, 1
        %s608 = sand.u32 %s62, 1
        %s609 = smul.addr %s608, 768
        %s610 = scalar_lea.vmem [#allocation3], %s609
        %p611 = pneg %p75
        %p612 = pneg %p72
        %s613 = smul.u32 2, %s18
        %p614 = scmp.lt.s32.totalorder %s613, 7
        %s615 = scalar_select %p614, %s613, 7
        %s616 = scalar_lea.vmem %s2, %s615
        %p617 = pneg %p101
        %p618 = pneg %p98
        %p619 = pneg %p127
        %p620 = pneg %p124
        %s621 = smul.u32 2, %s18
        %p622 = scmp.lt.s32.totalorder %s621, 7
        %s623 = scalar_select %p622, %s621, 7
        %s624 = scalar_lea.vmem %s3, %s623
        %s625 = smul.u32 6, %s19
        %p626 = scmp.lt.s32.totalorder %s625, 17
        %s627 = scalar_select %p626, %s625, 17
        %s628 = scalar_lea.vmem %s0, %s627
        %s629 = smul.u32 6, %s19
        %s630 = smul.u32 96, %s19
        %s631 = smul.u32 2, %s18
        %s632 = smul.u32 2, %s18
        %p633 = scmp.lt.s32.totalorder %s632, 7
        %s634 = scalar_select %p633, %s632, 7
        %s635 = scalar_lea.vmem %s2, %s634
        %s636 = smul.u32 2, %s18
        %s637 = smul.u32 2, %s18
        %p638 = scmp.lt.s32.totalorder %s637, 7
        %s639 = scalar_select %p638, %s637, 7
        %s640 = scalar_lea.vmem %s3, %s639
        %s641 = smul.u32 2, %s18
        %p642 = scmp.eq.s32.totalorder %s19, 0
        // Predicated region
        $region71: #{conv_feature_forward.9} parent=65 // pred_check
          %p643 = pneg %p642
        $region72: #{conv_feature_forward.9} parent=65 // pred_check_branch
          %645 = sbr.rel (%p643) target = $region74
        $region73: #{conv_feature_forward.9} parent=65 // pred_region
          %646 = vst [vmem:[#allocation2] sm:$0xf] 0.0
        $region74: #{conv_feature_forward.9} parent=65 // pred_fallthru
          _
        %v647 = vld [vmem:[#allocation2] sm:$0xf]
        %v648 = vld [vmem:[%s628] sm:$0x3f]
        %v649 = vld [vmem:[%s597] sm:$0xff]
        %v650 = vld [vmem:[%s597 + $0x8] sm:$0xff]
        %v651 = vld [vmem:[%s597 + $0x10] sm:$0xff]
        %v652 = vld [vmem:[%s597 + $0x18] sm:$0xff]
        %v653 = vld [vmem:[%s597 + $0x20] sm:$0xff]
        %v654 = vld [vmem:[%s597 + $0x28] sm:$0xff]
        %v655 = vld [vmem:[%s597 + $0x30] sm:$0xff]
        %v656 = vld [vmem:[%s597 + $0x38] sm:$0xff]
        %v657 = vld [vmem:[%s597 + $0x40] sm:$0xff]
        %v658 = vld [vmem:[%s597 + $0x48] sm:$0xff]
        %v659 = vld [vmem:[%s597 + $0x50] sm:$0xff]
        %v660 = vld [vmem:[%s597 + $0x58] sm:$0xff]
        %v661 = vld [vmem:[%s597 + $0x60] sm:$0xff]
        %v662 = vld [vmem:[%s597 + $0x68] sm:$0xff]
        %v663 = vld [vmem:[%s597 + $0x70] sm:$0xff]
        %v664 = vld [vmem:[%s597 + $0x78] sm:$0xff]
        %v665 = vld [vmem:[%s597 + $0x80] sm:$0xff]
        %v666 = vld [vmem:[%s597 + $0x88] sm:$0xff]
        %v667 = vld [vmem:[%s597 + $0x90] sm:$0xff]
        %v668 = vld [vmem:[%s597 + $0x98] sm:$0xff]
        %v669 = vld [vmem:[%s597 + $0xa0] sm:$0xff]
        %v670 = vld [vmem:[%s597 + $0xa8] sm:$0xff]
        %v671 = vld [vmem:[%s597 + $0xb0] sm:$0xff]
        %v672 = vld [vmem:[%s597 + $0xb8] sm:$0xff]
        %v673 = vld [vmem:[%s597 + $0xc0] sm:$0xff]
        %v674 = vld [vmem:[%s597 + $0xc8] sm:$0xff]
        %v675 = vld [vmem:[%s597 + $0xd0] sm:$0xff]
        %v676 = vld [vmem:[%s597 + $0xd8] sm:$0xff]
        %v677 = vld [vmem:[%s597 + $0xe0] sm:$0xff]
        %v678 = vld [vmem:[%s597 + $0xe8] sm:$0xff]
        %v679 = vld [vmem:[%s597 + $0xf0] sm:$0xff]
        %v680 = vld [vmem:[%s597 + $0xf8] sm:$0xff]
        %v681 = vld [vmem:[%s597 + $0x100] sm:$0xff]
        %v682 = vld [vmem:[%s597 + $0x108] sm:$0xff]
        %v683 = vld [vmem:[%s597 + $0x110] sm:$0xff]
        %v684 = vld [vmem:[%s597 + $0x118] sm:$0xff]
        %v685 = vld [vmem:[%s597 + $0x120] sm:$0xff]
        %v686 = vld [vmem:[%s597 + $0x128] sm:$0xff]
        %v687 = vld [vmem:[%s597 + $0x130] sm:$0xff]
        %v688 = vld [vmem:[%s597 + $0x138] sm:$0xff]
        %v689 = vld [vmem:[%s597 + $0x140] sm:$0xff]
        %v690 = vld [vmem:[%s597 + $0x148] sm:$0xff]
        %v691 = vld [vmem:[%s597 + $0x150] sm:$0xff]
        %v692 = vld [vmem:[%s597 + $0x158] sm:$0xff]
        %v693 = vld [vmem:[%s597 + $0x160] sm:$0xff]
        %v694 = vld [vmem:[%s597 + $0x168] sm:$0xff]
        %v695 = vld [vmem:[%s597 + $0x170] sm:$0xff]
        %v696 = vld [vmem:[%s597 + $0x178] sm:$0xff]
        %v697 = vld [vmem:[%s597 + $0x180] sm:$0xff]
        %v698 = vld [vmem:[%s597 + $0x188] sm:$0xff]
        %v699 = vld [vmem:[%s597 + $0x190] sm:$0xff]
        %v700 = vld [vmem:[%s597 + $0x198] sm:$0xff]
        %v701 = vld [vmem:[%s597 + $0x1a0] sm:$0xff]
        %v702 = vld [vmem:[%s597 + $0x1a8] sm:$0xff]
        %v703 = vld [vmem:[%s597 + $0x1b0] sm:$0xff]
        %v704 = vld [vmem:[%s597 + $0x1b8] sm:$0xff]
        %v705 = vld [vmem:[%s597 + $0x1c0] sm:$0xff]
        %v706 = vld [vmem:[%s597 + $0x1c8] sm:$0xff]
        %v707 = vld [vmem:[%s597 + $0x1d0] sm:$0xff]
        %v708 = vld [vmem:[%s597 + $0x1d8] sm:$0xff]
        %v709 = vld [vmem:[%s597 + $0x1e0] sm:$0xff]
        %v710 = vld [vmem:[%s597 + $0x1e8] sm:$0xff]
        %v711 = vld [vmem:[%s597 + $0x1f0] sm:$0xff]
        %v712 = vld [vmem:[%s597 + $0x1f8] sm:$0xff]
        %v713 = vld [vmem:[%s597 + $0x200] sm:$0xff]
        %v714 = vld [vmem:[%s597 + $0x208] sm:$0xff]
        %v715 = vld [vmem:[%s597 + $0x210] sm:$0xff]
        %v716 = vld [vmem:[%s597 + $0x218] sm:$0xff]
        %v717 = vld [vmem:[%s597 + $0x220] sm:$0xff]
        %v718 = vld [vmem:[%s597 + $0x228] sm:$0xff]
        %v719 = vld [vmem:[%s597 + $0x230] sm:$0xff]
        %v720 = vld [vmem:[%s597 + $0x238] sm:$0xff]
        %v721 = vld [vmem:[%s597 + $0x240] sm:$0xff]
        %v722 = vld [vmem:[%s597 + $0x248] sm:$0xff]
        %v723 = vld [vmem:[%s597 + $0x250] sm:$0xff]
        %v724 = vld [vmem:[%s597 + $0x258] sm:$0xff]
        %v725 = vld [vmem:[%s597 + $0x260] sm:$0xff]
        %v726 = vld [vmem:[%s597 + $0x268] sm:$0xff]
        %v727 = vld [vmem:[%s597 + $0x270] sm:$0xff]
        %v728 = vld [vmem:[%s597 + $0x278] sm:$0xff]
        %v729 = vld [vmem:[%s597 + $0x280] sm:$0xff]
        %v730 = vld [vmem:[%s597 + $0x288] sm:$0xff]
        %v731 = vld [vmem:[%s597 + $0x290] sm:$0xff]
        %v732 = vld [vmem:[%s597 + $0x298] sm:$0xff]
        %v733 = vld [vmem:[%s597 + $0x2a0] sm:$0xff]
        %v734 = vld [vmem:[%s597 + $0x2a8] sm:$0xff]
        %v735 = vld [vmem:[%s597 + $0x2b0] sm:$0xff]
        %v736 = vld [vmem:[%s597 + $0x2b8] sm:$0xff]
        %v737 = vld [vmem:[%s597 + $0x2c0] sm:$0xff]
        %v738 = vld [vmem:[%s597 + $0x2c8] sm:$0xff]
        %v739 = vld [vmem:[%s597 + $0x2d0] sm:$0xff]
        %v740 = vld [vmem:[%s597 + $0x2d8] sm:$0xff]
        %v741 = vld [vmem:[%s597 + $0x2e0] sm:$0xff]
        %v742 = vld [vmem:[%s597 + $0x2e8] sm:$0xff]
        %v743 = vld [vmem:[%s597 + $0x2f0] sm:$0xff]
        %v744 = vld [vmem:[%s597 + $0x2f8] sm:$0xff]
        %v746 = vcombine.high %v648, %v648
        %v748 = vunpack.c.l.s4 1966171168
        %v749 = vunpack.c.0.s8 %v748
        %v750 = vlaneseq
        %v751 = vshrl.u32 %v750, 7
        %v752 = vsub.s32 %v749, %v751
        %v753 = vrot.slane %v648, %v752
        %v755 = vunpack.c.l.s4 1966171168
        %v756 = vunpack.c.0.s8 %v755
        %v757 = vlaneseq
        %v758 = vshrl.u32 %v757, 7
        %v759 = vsub.s32 %v756, %v758
        %v760 = vrot.slane %v746, %v759
        %v761 = vcombine.high %v753, %v753
        %v762 = vcombine.high %v760, %v760
        %v764 = vunpack.c.l.s4 1966171168
        %v765 = vunpack.c.0.s8 %v764
        %v766 = vlaneseq
        %v767 = vshrl.u32 %v766, 7
        %v768 = vsub.s32 %v765, %v767
        %v769 = vrot.slane %v753, %v768
        %v771 = vunpack.c.l.s4 1966171168
        %v772 = vunpack.c.0.s8 %v771
        %v773 = vlaneseq
        %v774 = vshrl.u32 %v773, 7
        %v775 = vsub.s32 %v772, %v774
        %v776 = vrot.slane %v760, %v775
        %v778 = vunpack.c.l.s4 1966171168
        %v779 = vunpack.c.0.s8 %v778
        %v780 = vlaneseq
        %v781 = vshrl.u32 %v780, 7
        %v782 = vsub.s32 %v779, %v781
        %v783 = vrot.slane %v761, %v782
        %v785 = vunpack.c.l.s4 1966171168
        %v786 = vunpack.c.0.s8 %v785
        %v787 = vlaneseq
        %v788 = vshrl.u32 %v787, 7
        %v789 = vsub.s32 %v786, %v788
        %v790 = vrot.slane %v762, %v789
        %v791 = vcombine.high %v769, %v769
        %v792 = vcombine.high %v783, %v783
        %v895 = vunpack.c.l.b16 %v649
        %v896 = vunpack.c.h.b16 %v649
        %v897 = vunpack.c.l.b16 %v650
        %v898 = vunpack.c.h.b16 %v650
        %v899 = vunpack.c.l.b16 %v651
        %v900 = vunpack.c.h.b16 %v651
        %v901 = vunpack.c.l.b16 %v652
        %v902 = vunpack.c.h.b16 %v652
        %v903 = vunpack.c.l.b16 %v653
        %v904 = vunpack.c.h.b16 %v653
        %v905 = vunpack.c.l.b16 %v654
        %v906 = vunpack.c.h.b16 %v654
        %v907 = vunpack.c.l.b16 %v655
        %v908 = vunpack.c.h.b16 %v655
        %v909 = vunpack.c.l.b16 %v656
        %v910 = vunpack.c.h.b16 %v656
        %v911 = vunpack.c.l.b16 %v657
        %v912 = vunpack.c.h.b16 %v657
        %v913 = vunpack.c.l.b16 %v658
        %v914 = vunpack.c.h.b16 %v658
        %v915 = vunpack.c.l.b16 %v659
        %v916 = vunpack.c.h.b16 %v659
        %v917 = vunpack.c.l.b16 %v660
        %v918 = vunpack.c.h.b16 %v660
        %v919 = vunpack.c.l.b16 %v661
        %v920 = vunpack.c.h.b16 %v661
        %v921 = vunpack.c.l.b16 %v662
        %v922 = vunpack.c.h.b16 %v662
        %v923 = vunpack.c.l.b16 %v663
        %v924 = vunpack.c.h.b16 %v663
        %v925 = vunpack.c.l.b16 %v664
        %v926 = vunpack.c.h.b16 %v664
        %v927 = vunpack.c.l.b16 %v665
        %v928 = vunpack.c.h.b16 %v665
        %v929 = vunpack.c.l.b16 %v666
        %v930 = vunpack.c.h.b16 %v666
        %v931 = vunpack.c.l.b16 %v667
        %v932 = vunpack.c.h.b16 %v667
        %v933 = vunpack.c.l.b16 %v668
        %v934 = vunpack.c.h.b16 %v668
        %v935 = vunpack.c.l.b16 %v669
        %v936 = vunpack.c.h.b16 %v669
        %v937 = vunpack.c.l.b16 %v670
        %v938 = vunpack.c.h.b16 %v670
        %v939 = vunpack.c.l.b16 %v671
        %v940 = vunpack.c.h.b16 %v671
        %v941 = vunpack.c.l.b16 %v672
        %v942 = vunpack.c.h.b16 %v672
        %v943 = vunpack.c.l.b16 %v673
        %v944 = vunpack.c.h.b16 %v673
        %v945 = vunpack.c.l.b16 %v674
        %v946 = vunpack.c.h.b16 %v674
        %v947 = vunpack.c.l.b16 %v675
        %v948 = vunpack.c.h.b16 %v675
        %v949 = vunpack.c.l.b16 %v676
        %v950 = vunpack.c.h.b16 %v676
        %v951 = vunpack.c.l.b16 %v677
        %v952 = vunpack.c.h.b16 %v677
        %v953 = vunpack.c.l.b16 %v678
        %v954 = vunpack.c.h.b16 %v678
        %v955 = vunpack.c.l.b16 %v679
        %v956 = vunpack.c.h.b16 %v679
        %v957 = vunpack.c.l.b16 %v680
        %v958 = vunpack.c.h.b16 %v680
        %v959 = vunpack.c.l.b16 %v681
        %v960 = vunpack.c.h.b16 %v681
        %v961 = vunpack.c.l.b16 %v682
        %v962 = vunpack.c.h.b16 %v682
        %v963 = vunpack.c.l.b16 %v683
        %v964 = vunpack.c.h.b16 %v683
        %v965 = vunpack.c.l.b16 %v684
        %v966 = vunpack.c.h.b16 %v684
        %v967 = vunpack.c.l.b16 %v685
        %v968 = vunpack.c.h.b16 %v685
        %v969 = vunpack.c.l.b16 %v686
        %v970 = vunpack.c.h.b16 %v686
        %v971 = vunpack.c.l.b16 %v687
        %v972 = vunpack.c.h.b16 %v687
        %v973 = vunpack.c.l.b16 %v688
        %v974 = vunpack.c.h.b16 %v688
        %v975 = vunpack.c.l.b16 %v689
        %v976 = vunpack.c.h.b16 %v689
        %v977 = vunpack.c.l.b16 %v690
        %v978 = vunpack.c.h.b16 %v690
        %v979 = vunpack.c.l.b16 %v691
        %v980 = vunpack.c.h.b16 %v691
        %v981 = vunpack.c.l.b16 %v692
        %v982 = vunpack.c.h.b16 %v692
        %v983 = vunpack.c.l.b16 %v693
        %v984 = vunpack.c.h.b16 %v693
        %v985 = vunpack.c.l.b16 %v694
        %v986 = vunpack.c.h.b16 %v694
        %v987 = vunpack.c.l.b16 %v695
        %v988 = vunpack.c.h.b16 %v695
        %v989 = vunpack.c.l.b16 %v696
        %v990 = vunpack.c.h.b16 %v696
        %v991 = vunpack.c.l.b16 %v697
        %v992 = vunpack.c.h.b16 %v697
        %v993 = vunpack.c.l.b16 %v698
        %v994 = vunpack.c.h.b16 %v698
        %v995 = vunpack.c.l.b16 %v699
        %v996 = vunpack.c.h.b16 %v699
        %v997 = vunpack.c.l.b16 %v700
        %v998 = vunpack.c.h.b16 %v700
        %v999 = vunpack.c.l.b16 %v701
        %v1000 = vunpack.c.h.b16 %v701
        %v1001 = vunpack.c.l.b16 %v702
        %v1002 = vunpack.c.h.b16 %v702
        %v1003 = vunpack.c.l.b16 %v703
        %v1004 = vunpack.c.h.b16 %v703
        %v1005 = vunpack.c.l.b16 %v704
        %v1006 = vunpack.c.h.b16 %v704
        %v1007 = vunpack.c.l.b16 %v705
        %v1008 = vunpack.c.h.b16 %v705
        %v1009 = vunpack.c.l.b16 %v706
        %v1010 = vunpack.c.h.b16 %v706
        %v1011 = vunpack.c.l.b16 %v707
        %v1012 = vunpack.c.h.b16 %v707
        %v1013 = vunpack.c.l.b16 %v708
        %v1014 = vunpack.c.h.b16 %v708
        %v1015 = vunpack.c.l.b16 %v709
        %v1016 = vunpack.c.h.b16 %v709
        %v1017 = vunpack.c.l.b16 %v710
        %v1018 = vunpack.c.h.b16 %v710
        %v1019 = vunpack.c.l.b16 %v711
        %v1020 = vunpack.c.h.b16 %v711
        %v1021 = vunpack.c.l.b16 %v712
        %v1022 = vunpack.c.h.b16 %v712
        %v1023 = vunpack.c.l.b16 %v713
        %v1024 = vunpack.c.h.b16 %v713
        %v1025 = vunpack.c.l.b16 %v714
        %v1026 = vunpack.c.h.b16 %v714
        %v1027 = vunpack.c.l.b16 %v715
        %v1028 = vunpack.c.h.b16 %v715
        %v1029 = vunpack.c.l.b16 %v716
        %v1030 = vunpack.c.h.b16 %v716
        %v1031 = vunpack.c.l.b16 %v717
        %v1032 = vunpack.c.h.b16 %v717
        %v1033 = vunpack.c.l.b16 %v718
        %v1034 = vunpack.c.h.b16 %v718
        %v1035 = vunpack.c.l.b16 %v719
        %v1036 = vunpack.c.h.b16 %v719
        %v1037 = vunpack.c.l.b16 %v720
        %v1038 = vunpack.c.h.b16 %v720
        %v1039 = vunpack.c.l.b16 %v721
        %v1040 = vunpack.c.h.b16 %v721
        %v1041 = vunpack.c.l.b16 %v722
        %v1042 = vunpack.c.h.b16 %v722
        %v1043 = vunpack.c.l.b16 %v723
        %v1044 = vunpack.c.h.b16 %v723
        %v1045 = vunpack.c.l.b16 %v724
        %v1046 = vunpack.c.h.b16 %v724
        %v1047 = vunpack.c.l.b16 %v725
        %v1048 = vunpack.c.h.b16 %v725
        %v1049 = vunpack.c.l.b16 %v726
        %v1050 = vunpack.c.h.b16 %v726
        %v1051 = vunpack.c.l.b16 %v727
        %v1052 = vunpack.c.h.b16 %v727
        %v1053 = vunpack.c.l.b16 %v728
        %v1054 = vunpack.c.h.b16 %v728
        %v1055 = vunpack.c.l.b16 %v729
        %v1056 = vunpack.c.h.b16 %v729
        %v1057 = vunpack.c.l.b16 %v730
        %v1058 = vunpack.c.h.b16 %v730
        %v1059 = vunpack.c.l.b16 %v731
        %v1060 = vunpack.c.h.b16 %v731
        %v1061 = vunpack.c.l.b16 %v732
        %v1062 = vunpack.c.h.b16 %v732
        %v1063 = vunpack.c.l.b16 %v733
        %v1064 = vunpack.c.h.b16 %v733
        %v1065 = vunpack.c.l.b16 %v734
        %v1066 = vunpack.c.h.b16 %v734
        %v1067 = vunpack.c.l.b16 %v735
        %v1068 = vunpack.c.h.b16 %v735
        %v1069 = vunpack.c.l.b16 %v736
        %v1070 = vunpack.c.h.b16 %v736
        %v1071 = vunpack.c.l.b16 %v737
        %v1072 = vunpack.c.h.b16 %v737
        %v1073 = vunpack.c.l.b16 %v738
        %v1074 = vunpack.c.h.b16 %v738
        %v1075 = vunpack.c.l.b16 %v739
        %v1076 = vunpack.c.h.b16 %v739
        %v1077 = vunpack.c.l.b16 %v740
        %v1078 = vunpack.c.h.b16 %v740
        %v1079 = vunpack.c.l.b16 %v741
        %v1080 = vunpack.c.h.b16 %v741
        %v1081 = vunpack.c.l.b16 %v742
        %v1082 = vunpack.c.h.b16 %v742
        %v1083 = vunpack.c.l.b16 %v743
        %v1084 = vunpack.c.h.b16 %v743
        %v1085 = vunpack.c.l.b16 %v744
        %v1086 = vunpack.c.h.b16 %v744
        %v1087 = vpack.c.b16 %v897, %v895
        %v1088 = vpack.c.b16 %v898, %v896
        %v1089 = vpack.c.b16 %v901, %v899
        %v1090 = vpack.c.b16 %v902, %v900
        %v1091 = vpack.c.b16 %v905, %v903
        %v1092 = vpack.c.b16 %v906, %v904
        %v1093 = vpack.c.b16 %v909, %v907
        %v1094 = vpack.c.b16 %v910, %v908
        %v1095 = vpack.c.b16 %v913, %v911
        %v1096 = vpack.c.b16 %v914, %v912
        %v1097 = vpack.c.b16 %v917, %v915
        %v1098 = vpack.c.b16 %v918, %v916
        %v1099 = vpack.c.b16 %v921, %v919
        %v1100 = vpack.c.b16 %v922, %v920
        %v1101 = vpack.c.b16 %v925, %v923
        %v1102 = vpack.c.b16 %v926, %v924
        %v1103 = vpack.c.b16 %v929, %v927
        %v1104 = vpack.c.b16 %v930, %v928
        %v1105 = vpack.c.b16 %v933, %v931
        %v1106 = vpack.c.b16 %v934, %v932
        %v1107 = vpack.c.b16 %v937, %v935
        %v1108 = vpack.c.b16 %v938, %v936
        %v1109 = vpack.c.b16 %v941, %v939
        %v1110 = vpack.c.b16 %v942, %v940
        %v1111 = vpack.c.b16 %v945, %v943
        %v1112 = vpack.c.b16 %v946, %v944
        %v1113 = vpack.c.b16 %v949, %v947
        %v1114 = vpack.c.b16 %v950, %v948
        %v1115 = vpack.c.b16 %v953, %v951
        %v1116 = vpack.c.b16 %v954, %v952
        %v1117 = vpack.c.b16 %v957, %v955
        %v1118 = vpack.c.b16 %v958, %v956
        %v1119 = vpack.c.b16 %v961, %v959
        %v1120 = vpack.c.b16 %v962, %v960
        %v1121 = vpack.c.b16 %v965, %v963
        %v1122 = vpack.c.b16 %v966, %v964
        %v1123 = vpack.c.b16 %v969, %v967
        %v1124 = vpack.c.b16 %v970, %v968
        %v1125 = vpack.c.b16 %v973, %v971
        %v1126 = vpack.c.b16 %v974, %v972
        %v1127 = vpack.c.b16 %v977, %v975
        %v1128 = vpack.c.b16 %v978, %v976
        %v1129 = vpack.c.b16 %v981, %v979
        %v1130 = vpack.c.b16 %v982, %v980
        %v1131 = vpack.c.b16 %v985, %v983
        %v1132 = vpack.c.b16 %v986, %v984
        %v1133 = vpack.c.b16 %v989, %v987
        %v1134 = vpack.c.b16 %v990, %v988
        %v1135 = vpack.c.b16 %v993, %v991
        %v1136 = vpack.c.b16 %v994, %v992
        %v1137 = vpack.c.b16 %v997, %v995
        %v1138 = vpack.c.b16 %v998, %v996
        %v1139 = vpack.c.b16 %v1001, %v999
        %v1140 = vpack.c.b16 %v1002, %v1000
        %v1141 = vpack.c.b16 %v1005, %v1003
        %v1142 = vpack.c.b16 %v1006, %v1004
        %v1143 = vpack.c.b16 %v1009, %v1007
        %v1144 = vpack.c.b16 %v1010, %v1008
        %v1145 = vpack.c.b16 %v1013, %v1011
        %v1146 = vpack.c.b16 %v1014, %v1012
        %v1147 = vpack.c.b16 %v1017, %v1015
        %v1148 = vpack.c.b16 %v1018, %v1016
        %v1149 = vpack.c.b16 %v1021, %v1019
        %v1150 = vpack.c.b16 %v1022, %v1020
        %v1151 = vpack.c.b16 %v1025, %v1023
        %v1152 = vpack.c.b16 %v1026, %v1024
        %v1153 = vpack.c.b16 %v1029, %v1027
        %v1154 = vpack.c.b16 %v1030, %v1028
        %v1155 = vpack.c.b16 %v1033, %v1031
        %v1156 = vpack.c.b16 %v1034, %v1032
        %v1157 = vpack.c.b16 %v1037, %v1035
        %v1158 = vpack.c.b16 %v1038, %v1036
        %v1159 = vpack.c.b16 %v1041, %v1039
        %v1160 = vpack.c.b16 %v1042, %v1040
        %v1161 = vpack.c.b16 %v1045, %v1043
        %v1162 = vpack.c.b16 %v1046, %v1044
        %v1163 = vpack.c.b16 %v1049, %v1047
        %v1164 = vpack.c.b16 %v1050, %v1048
        %v1165 = vpack.c.b16 %v1053, %v1051
        %v1166 = vpack.c.b16 %v1054, %v1052
        %v1167 = vpack.c.b16 %v1057, %v1055
        %v1168 = vpack.c.b16 %v1058, %v1056
        %v1169 = vpack.c.b16 %v1061, %v1059
        %v1170 = vpack.c.b16 %v1062, %v1060
        %v1171 = vpack.c.b16 %v1065, %v1063
        %v1172 = vpack.c.b16 %v1066, %v1064
        %v1173 = vpack.c.b16 %v1069, %v1067
        %v1174 = vpack.c.b16 %v1070, %v1068
        %v1175 = vpack.c.b16 %v1073, %v1071
        %v1176 = vpack.c.b16 %v1074, %v1072
        %v1177 = vpack.c.b16 %v1077, %v1075
        %v1178 = vpack.c.b16 %v1078, %v1076
        %v1179 = vpack.c.b16 %v1081, %v1079
        %v1180 = vpack.c.b16 %v1082, %v1080
        %v1181 = vpack.c.b16 %v1085, %v1083
        %v1182 = vpack.c.b16 %v1086, %v1084
        %1279 = vmatprep.subr.bf16.mxu0 %v1088
        %1280 = vmatpush1.bf16.msra.mxu0 %v1087
        %1281 = vmatprep.subr.bf16.mxu0 %v1090
        %1282 = vmatpush1.bf16.msra.mxu0 %v1089
        %1283 = vmatprep.subr.bf16.mxu0 %v1092
        %1284 = vmatpush1.bf16.msra.mxu0 %v1091
        %1285 = vmatprep.subr.bf16.mxu0 %v1094
        %1286 = vmatpush1.bf16.msra.mxu0 %v1093
        %1287 = vmatprep.subr.bf16.mxu0 %v1096
        %1288 = vmatpush1.bf16.msra.mxu0 %v1095
        %1289 = vmatprep.subr.bf16.mxu0 %v1098
        %1290 = vmatpush1.bf16.msra.mxu0 %v1097
        %1291 = vmatprep.subr.bf16.mxu0 %v1100
        %1292 = vmatpush1.bf16.msra.mxu0 %v1099
        %1293 = vmatprep.subr.bf16.mxu0 %v1102
        %1294 = vmatpush1.bf16.msra.mxu0 %v1101
        %1295 = vmatprep.subr.bf16.mxu0 %v1104
        %1296 = vmatpush1.bf16.msra.mxu0 %v1103
        %1297 = vmatprep.subr.bf16.mxu0 %v1106
        %1298 = vmatpush1.bf16.msra.mxu0 %v1105
        %1299 = vmatprep.subr.bf16.mxu0 %v1108
        %1300 = vmatpush1.bf16.msra.mxu0 %v1107
        %1301 = vmatprep.subr.bf16.mxu0 %v1110
        %1302 = vmatpush1.bf16.msra.mxu0 %v1109
        %1303 = vmatprep.subr.bf16.mxu0 %v1112
        %1304 = vmatpush1.bf16.msra.mxu0 %v1111
        %1305 = vmatprep.subr.bf16.mxu0 %v1114
        %1306 = vmatpush1.bf16.msra.mxu0 %v1113
        %1307 = vmatprep.subr.bf16.mxu0 %v1116
        %1308 = vmatpush1.bf16.msra.mxu0 %v1115
        %1309 = vmatprep.subr.bf16.mxu0 %v1118
        %1310 = vmatpush1.bf16.msra.mxu0 %v1117
        %1311 = vmatprep.mubr.bf16.mxu0 %v783
        %1312 = vmatmul.mubr.bf16.gmra.mrb[0].mxu0 %v769
        %v1313 = vpop.f32.mrb[0].mxu0
        %v1314 = vadd.f32 0.0, %v1313
        %v1315 = vpop.f32.mrb[0].mxu0
        %v1316 = vadd.f32 0.0, %v1315
        %v1317 = vpop.f32.mrb[0].mxu0
        %v1318 = vpop.f32.mrb[0].mxu0
        %1319 = vdwg.mxu0
        %1320 = vmatprep.subr.bf16.mxu0 %v1120
        %1321 = vmatpush1.bf16.msra.mxu0 %v1119
        %1322 = vmatprep.subr.bf16.mxu0 %v1122
        %1323 = vmatpush1.bf16.msra.mxu0 %v1121
        %1324 = vmatprep.subr.bf16.mxu0 %v1124
        %1325 = vmatpush1.bf16.msra.mxu0 %v1123
        %1326 = vmatprep.subr.bf16.mxu0 %v1126
        %1327 = vmatpush1.bf16.msra.mxu0 %v1125
        %1328 = vmatprep.subr.bf16.mxu0 %v1128
        %1329 = vmatpush1.bf16.msra.mxu0 %v1127
        %1330 = vmatprep.subr.bf16.mxu0 %v1130
        %1331 = vmatpush1.bf16.msra.mxu0 %v1129
        %1332 = vmatprep.subr.bf16.mxu0 %v1132
        %1333 = vmatpush1.bf16.msra.mxu0 %v1131
        %1334 = vmatprep.subr.bf16.mxu0 %v1134
        %1335 = vmatpush1.bf16.msra.mxu0 %v1133
        %1336 = vmatprep.subr.bf16.mxu0 %v1136
        %1337 = vmatpush1.bf16.msra.mxu0 %v1135
        %1338 = vmatprep.subr.bf16.mxu0 %v1138
        %1339 = vmatpush1.bf16.msra.mxu0 %v1137
        %1340 = vmatprep.subr.bf16.mxu0 %v1140
        %1341 = vmatpush1.bf16.msra.mxu0 %v1139
        %1342 = vmatprep.subr.bf16.mxu0 %v1142
        %1343 = vmatpush1.bf16.msra.mxu0 %v1141
        %1344 = vmatprep.subr.bf16.mxu0 %v1144
        %1345 = vmatpush1.bf16.msra.mxu0 %v1143
        %1346 = vmatprep.subr.bf16.mxu0 %v1146
        %1347 = vmatpush1.bf16.msra.mxu0 %v1145
        %1348 = vmatprep.subr.bf16.mxu0 %v1148
        %1349 = vmatpush1.bf16.msra.mxu0 %v1147
        %1350 = vmatprep.subr.bf16.mxu0 %v1150
        %1351 = vmatpush1.bf16.msra.mxu0 %v1149
        %1352 = vmatprep.mubr.bf16.mxu0 %v792
        %1353 = vmatmul.mubr.bf16.gmra.mrb[0].mxu0 %v791
        %v1354 = vpop.f32.mrb[0].mxu0
        %v1355 = vadd.f32 %v1314, %v1354
        %v1356 = vpop.f32.mrb[0].mxu0
        %v1357 = vadd.f32 %v1316, %v1356
        %v1358 = vpop.f32.mrb[0].mxu0
        %v1359 = vpop.f32.mrb[0].mxu0
        %1360 = vdwg.mxu0
        %1361 = vmatprep.subr.bf16.mxu0 %v1152
        %1362 = vmatpush1.bf16.msra.mxu0 %v1151
        %1363 = vmatprep.subr.bf16.mxu0 %v1154
        %1364 = vmatpush1.bf16.msra.mxu0 %v1153
        %1365 = vmatprep.subr.bf16.mxu0 %v1156
        %1366 = vmatpush1.bf16.msra.mxu0 %v1155
        %1367 = vmatprep.subr.bf16.mxu0 %v1158
        %1368 = vmatpush1.bf16.msra.mxu0 %v1157
        %1369 = vmatprep.subr.bf16.mxu0 %v1160
        %1370 = vmatpush1.bf16.msra.mxu0 %v1159
        %1371 = vmatprep.subr.bf16.mxu0 %v1162
        %1372 = vmatpush1.bf16.msra.mxu0 %v1161
        %1373 = vmatprep.subr.bf16.mxu0 %v1164
        %1374 = vmatpush1.bf16.msra.mxu0 %v1163
        %1375 = vmatprep.subr.bf16.mxu0 %v1166
        %1376 = vmatpush1.bf16.msra.mxu0 %v1165
        %1377 = vmatprep.subr.bf16.mxu0 %v1168
        %1378 = vmatpush1.bf16.msra.mxu0 %v1167
        %1379 = vmatprep.subr.bf16.mxu0 %v1170
        %1380 = vmatpush1.bf16.msra.mxu0 %v1169
        %1381 = vmatprep.subr.bf16.mxu0 %v1172
        %1382 = vmatpush1.bf16.msra.mxu0 %v1171
        %1383 = vmatprep.subr.bf16.mxu0 %v1174
        %1384 = vmatpush1.bf16.msra.mxu0 %v1173
        %1385 = vmatprep.subr.bf16.mxu0 %v1176
        %1386 = vmatpush1.bf16.msra.mxu0 %v1175
        %1387 = vmatprep.subr.bf16.mxu0 %v1178
        %1388 = vmatpush1.bf16.msra.mxu0 %v1177
        %1389 = vmatprep.subr.bf16.mxu0 %v1180
        %1390 = vmatpush1.bf16.msra.mxu0 %v1179
        %1391 = vmatprep.subr.bf16.mxu0 %v1182
        %1392 = vmatpush1.bf16.msra.mxu0 %v1181
        %1393 = vmatprep.mubr.bf16.mxu0 %v790
        %1394 = vmatmul.mubr.bf16.gmra.mrb[0].mxu0 %v776
        %v1395 = vpop.f32.mrb[0].mxu0
        %v1396 = vadd.f32 %v1355, %v1395
        %v1397 = vpop.f32.mrb[0].mxu0
        %v1398 = vadd.f32 %v1357, %v1397
        %v1399 = vpop.f32.mrb[0].mxu0
        %v1400 = vpop.f32.mrb[0].mxu0
        %1401 = vdwg.mxu0
        %v1404 = vcombine.low %v1396, %v1398
        %v1406 = vunpack.c.l.s4 1983009808
        %v1407 = vunpack.c.0.s8 %v1406
        %v1408 = vlaneseq
        %v1409 = vshrl.u32 %v1408, 7
        %v1410 = vsub.s32 %v1407, %v1409
        %v1411 = vrot.slane %v1404, %v1410
        %v1413 = vadd.f32 %v647, %v1411
        %1414 = vst [vmem:[#allocation2] sm:$0xf] %v1413
        %p1415 = scmp.eq.s32.totalorder %s19, 2
        // Predicated region
        $region75: #{conv_feature_forward.9} parent=65 // pred_check
          %p1416 = pneg %p1415
        $region76: #{conv_feature_forward.9} parent=65 // pred_check_branch
          %1418 = sbr.rel (%p1416) target = $region78
        $region77: #{conv_feature_forward.9} parent=65 // pred_region
          %v1419 = vld [vmem:[#allocation2] sm:$0xf]
          %v1420 = vld [vmem:[%s635] sm:$0x3]
          %v1422 = vlaneseq
          %v1423 = vshrl.u32 %v1422, 7
          %v1424 = vsub.s32 0, %v1423
          %v1425 = vrot.slane %v1420, %v1424
          %v1426 = vlaneseq
          %v1427 = vshrl.u32 %v1426, 7
          %v1428 = vsub.s32 1, %v1427
          %v1429 = vrot.slane %v1420, %v1428
          %v1430 = vcombine.low %v1425, %v1429
          %v1432 = vunpack.c.l.s4 1983009808
          %v1433 = vunpack.c.0.s8 %v1432
          %v1434 = vlaneseq
          %v1435 = vshrl.u32 %v1434, 7
          %v1436 = vsub.s32 %v1433, %v1435
          %v1437 = vrot.slane %v1430, %v1436
          %v1439 = vadd.f32 %v1419, %v1437
          %v1440 = vmax.f32 %v1439, 0.0
          %v1443 = vunpack.c.l.s4 1983009808
          %v1444 = vunpack.c.0.s8 %v1443
          %v1445 = vlaneseq
          %v1446 = vshrl.u32 %v1445, 7
          %v1447 = vsub.s32 %v1444, %v1446
          %v1448 = vrot.slane %v1440, %v1447
          %v1449 = vcombine.high %v1448, %v1448
          %v1452 = vpack.c.bf16 %v1448, %v1448
          %v1453 = vpack.c.bf16 %v1449, %v1449
          %v1456 = vcombine.low %v1452, %v1453
          %v1458 = vunpack.c.l.s4 1966171168
          %v1459 = vunpack.c.0.s8 %v1458
          %v1460 = vlaneseq
          %v1461 = vshrl.u32 %v1460, 7
          %v1462 = vsub.s32 %v1459, %v1461
          %v1463 = vrot.slane %v1456, %v1462
          %v1465 = vunpack.c.l.s4 1966171168
          %v1466 = vunpack.c.0.s8 %v1465
          %v1467 = vlaneseq
          %v1468 = vshrl.u32 %v1467, 7
          %v1469 = vsub.s32 %v1466, %v1468
          %v1470 = vrot.slane %v1463, %v1469
          %1472 = vst [vmem:[%s640] sm:$0x3] %v1470
        $region78: #{conv_feature_forward.9} parent=65 // pred_fallthru
          _
        %s1473 = smul.u32 2, %s18
        %p1474 = scmp.lt.s32.totalorder %s1473, 7
        %s1475 = scalar_select %p1474, %s1473, 7
        %s1476 = scalar_lea.vmem %s3, %s1475
        // Predicated region
        $region79: #{conv_feature_forward.9} parent=65 // pred_check
          %p1477 = pneg %p124
        $region80: #{conv_feature_forward.9} parent=65 // pred_check_branch
          %1479 = sbr.rel (%p1477) target = $region82
        $region81: #{conv_feature_forward.9} parent=65 // pred_region
          %s1480 = smul.u32 2, %s18
        $region82: #{conv_feature_forward.9} parent=65 // pred_fallthru
          _
      $region66: #{conv_feature_forward.9} parent=5 // pred_fallthru
        _
      %p1481 = scmp.le.s32.totalorder 2, %s9
      // Predicated region
      $region83: #{conv_feature_forward.9} parent=5 // pred_check
        %p1482 = pneg %p1481
      $region84: #{conv_feature_forward.9} parent=5 // pred_check_branch
        %1484 = sbr.rel (%p1482) target = $region86
      $region85: #{conv_feature_forward.9} parent=5 // pred_region
        %s1485 = ssub.s32 %s9, 2
        // Predicated region
        $region87: #{conv_feature_forward.9} parent=85 // pred_check
          %p1486 = pneg %p130
        $region88: #{conv_feature_forward.9} parent=85 // pred_check_branch
          %1488 = sbr.rel (%p1486) target = $region90
        $region89: #{conv_feature_forward.9} parent=85 // pred_region
          %s1489 = smul.u32 2, %s20
          %p1490 = scmp.lt.s32.totalorder %s1489, 7
          %s1491 = scalar_select %p1490, %s1489, 7
          %s1492 = scalar_lea.vmem %s3, %s1491
        $region90: #{conv_feature_forward.9} parent=85 // pred_fallthru
          _
      $region86: #{conv_feature_forward.9} parent=5 // pred_fallthru
        _
    $region6: #{conv_feature_forward.9} parent=1 // loop_footer
      %s13 = sadd.s32 1, %s9
    $region7: #{conv_feature_forward.9} parent=1 // loop_footer_branch
      %8 = sbr.rel target = $region3
    $region8: #{conv_feature_forward.9} parent=1 // loop_exit
      _

// kernel: conv_feature_forward.10
$region0: #{conv_feature_forward.10}
  #allocation0 [shape = 'u32[]', space=smem, size = 0x4, offset = 0x4, fixed_abs, tag = 'smem constant byte address 0x4 - core index']
  #allocation1 [shape = 'u32[144,128]{1,0:T(1,128)}', space=vmem, size = 0x12000, scoped, tag = 'internal scratch']
  #allocation2 [shape = 'f32[2,256]{1,0:T(2,128)}', space=vmem, size = 0x800, scoped, tag = 'scratch operand']
  %s0 = inlined_call_operand.vmem [shape: bf16[2,1024], index: 0, kind: input, shape index: {}, may-alias: {0,3}]
  %s1 = inlined_call_operand.vmem [shape: bf16[1024,1024], index: 1, kind: input, shape index: {}]
  %s2 = inlined_call_operand.vmem [shape: f32[1,1024], index: 2, kind: input, shape index: {}]
  %s3 = inlined_call_operand.vmem [shape: bf16[2,1024], index: 3, kind: input, shape index: {}, may-alias: {0,3}]
  %s4 = inlined_call_operand.vmem [shape: bf16[2,1024], index: 4, kind: output, shape index: {}]
  %s5 = sld [smem:[#allocation0]]
  $region95: #{conv_feature_forward.10} parent=0
    _
  %s7 = ssub.s32 1, %s5
  %s8 = scalar_select 0, %s7, %s5
  $region1: #{conv_feature_forward.10} parent=0
    #allocation3 [shape = 'u8[524288]{0}', space=vmem, size = 0x80000, scoped, tag = 'input window, operand 1']
    loop: start=0, step=1, limit=10
    $region2: #{conv_feature_forward.10} parent=1 // loop_pre_header
      _
    $region3: #{conv_feature_forward.10} parent=1 // loop_header
      %s10 = sphi 0, %s14
      %p11 = scmp.ge.s32.totalorder %s10, 10
      %s17 = sphi 0, %s29
      %s18 = sphi 0, %s25
      %s19 = sphi 0, %s17
      %s20 = sphi 0, %s18
      %s21 = sphi 0, %s19
      %s22 = sphi 0, %s20
      %s32 = sphi 0, %s34
      %s35 = sphi 0, %s32
      %s36 = sphi 0, %s35
      %s52 = sphi 0, %s36
      %s60 = sphi 0, %s62
      %s63 = sphi 0, %s60
      %s64 = sphi 0, %s63
      %s80 = sphi 0, %s64
      %s86 = sphi 0, %s88
      %s89 = sphi 0, %s86
      %s90 = sphi 0, %s89
      %s106 = sphi 0, %s90
      %s112 = sphi 0, %s114
      %s115 = sphi 0, %s112
      %s116 = sphi 0, %s115
      %s132 = sphi 0, %s116
      %s138 = sphi 0, %s140
      %s141 = sphi 0, %s138
      %s142 = sphi 0, %s141
      %s158 = sphi 0, %s142
    $region4: #{conv_feature_forward.10} parent=1 // loop_header_branch
      %13 = sbr.rel (%p11) target = $region8
    $region5: #{conv_feature_forward.10} parent=1 // loop_body
      %s15 = ssub.s32 %s10, 1
      %s16 = ssub.s32 %s10, 2
      %s23 = sadd.s32 1, %s18
      %p24 = scmp.ge.s32.totalorder %s23, 2
      %s25 = scalar_select %p24, 0, %s23
      %s26 = sadd.s32 1, %s17
      %s27 = scalar_select %p24, %s26, %s17
      %p28 = scmp.ge.s32.totalorder %s27, 4
      %s29 = scalar_select %p28, 0, %s27
      %s30 = ssub.s32 %s18, %s25
      %p31 = scmp.eq.s32.totalorder %s30, 0
      %s33 = sadd.s32 %s32, 1
      %s34 = scalar_select %p31, %s32, %s33
      %p37 = pneg %p31
      %p38 = scmp.eq.s32.totalorder %s10, 7
      %p39 = por %p37, %p38
      %p40 = scmp.ne.s32.totalorder %s32, %s35
      %p41 = scmp.eq.s32.totalorder %s10, 0
      %p42 = por %p40, %p41
      %p43 = scmp.ne.s32.totalorder %s32, %s35
      %p44 = scmp.eq.s32.totalorder %s15, 7
      %p45 = por %p43, %p44
      %p46 = scmp.ne.s32.totalorder %s35, %s36
      %p47 = scmp.eq.s32.totalorder %s15, 0
      %p48 = por %p46, %p47
      %p49 = scmp.ne.s32.totalorder %s35, %s36
      %p50 = scmp.eq.s32.totalorder %s16, 7
      %p51 = por %p49, %p50
      %p53 = scmp.ne.s32.totalorder %s36, %s52
      %p54 = scmp.eq.s32.totalorder %s16, 0
      %p55 = por %p53, %p54
      %s56 = ssub.s32 %s18, %s25
      %s57 = ssub.s32 %s17, %s29
      %s58 = sor.u32 %s56, %s57
      %p59 = scmp.eq.s32.totalorder %s58, 0
      %s61 = sadd.s32 %s60, 1
      %s62 = scalar_select %p59, %s60, %s61
      %p65 = pneg %p59
      %p66 = scmp.eq.s32.totalorder %s10, 7
      %p67 = por %p65, %p66
      %p68 = scmp.ne.s32.totalorder %s60, %s63
      %p69 = scmp.eq.s32.totalorder %s10, 0
      %p70 = por %p68, %p69
      %p71 = scmp.ne.s32.totalorder %s60, %s63
      %p72 = scmp.eq.s32.totalorder %s15, 7
      %p73 = por %p71, %p72
      %p74 = scmp.ne.s32.totalorder %s63, %s64
      %p75 = scmp.eq.s32.totalorder %s15, 0
      %p76 = por %p74, %p75
      %p77 = scmp.ne.s32.totalorder %s63, %s64
      %p78 = scmp.eq.s32.totalorder %s16, 7
      %p79 = por %p77, %p78
      %p81 = scmp.ne.s32.totalorder %s64, %s80
      %p82 = scmp.eq.s32.totalorder %s16, 0
      %p83 = por %p81, %p82
      %s84 = ssub.s32 %s17, %s29
      %p85 = scmp.eq.s32.totalorder %s84, 0
      %s87 = sadd.s32 %s86, 1
      %s88 = scalar_select %p85, %s86, %s87
      %p91 = pneg %p85
      %p92 = scmp.eq.s32.totalorder %s10, 7
      %p93 = por %p91, %p92
      %p94 = scmp.ne.s32.totalorder %s86, %s89
      %p95 = scmp.eq.s32.totalorder %s10, 0
      %p96 = por %p94, %p95
      %p97 = scmp.ne.s32.totalorder %s86, %s89
      %p98 = scmp.eq.s32.totalorder %s15, 7
      %p99 = por %p97, %p98
      %p100 = scmp.ne.s32.totalorder %s89, %s90
      %p101 = scmp.eq.s32.totalorder %s15, 0
      %p102 = por %p100, %p101
      %p103 = scmp.ne.s32.totalorder %s89, %s90
      %p104 = scmp.eq.s32.totalorder %s16, 7
      %p105 = por %p103, %p104
      %p107 = scmp.ne.s32.totalorder %s90, %s106
      %p108 = scmp.eq.s32.totalorder %s16, 0
      %p109 = por %p107, %p108
      %s110 = ssub.s32 %s17, %s29
      %p111 = scmp.eq.s32.totalorder %s110, 0
      %s113 = sadd.s32 %s112, 1
      %s114 = scalar_select %p111, %s112, %s113
      %p117 = pneg %p111
      %p118 = scmp.eq.s32.totalorder %s10, 7
      %p119 = por %p117, %p118
      %p120 = scmp.ne.s32.totalorder %s112, %s115
      %p121 = scmp.eq.s32.totalorder %s10, 0
      %p122 = por %p120, %p121
      %p123 = scmp.ne.s32.totalorder %s112, %s115
      %p124 = scmp.eq.s32.totalorder %s15, 7
      %p125 = por %p123, %p124
      %p126 = scmp.ne.s32.totalorder %s115, %s116
      %p127 = scmp.eq.s32.totalorder %s15, 0
      %p128 = por %p126, %p127
      %p129 = scmp.ne.s32.totalorder %s115, %s116
      %p130 = scmp.eq.s32.totalorder %s16, 7
      %p131 = por %p129, %p130
      %p133 = scmp.ne.s32.totalorder %s116, %s132
      %p134 = scmp.eq.s32.totalorder %s16, 0
      %p135 = por %p133, %p134
      %s136 = ssub.s32 %s17, %s29
      %p137 = scmp.eq.s32.totalorder %s136, 0
      %s139 = sadd.s32 %s138, 1
      %s140 = scalar_select %p137, %s138, %s139
      %p143 = pneg %p137
      %p144 = scmp.eq.s32.totalorder %s10, 7
      %p145 = por %p143, %p144
      %p146 = scmp.ne.s32.totalorder %s138, %s141
      %p147 = scmp.eq.s32.totalorder %s10, 0
      %p148 = por %p146, %p147
      %p149 = scmp.ne.s32.totalorder %s138, %s141
      %p150 = scmp.eq.s32.totalorder %s15, 7
      %p151 = por %p149, %p150
      %p152 = scmp.ne.s32.totalorder %s141, %s142
      %p153 = scmp.eq.s32.totalorder %s15, 0
      %p154 = por %p152, %p153
      %p155 = scmp.ne.s32.totalorder %s141, %s142
      %p156 = scmp.eq.s32.totalorder %s16, 7
      %p157 = por %p155, %p156
      %p159 = scmp.ne.s32.totalorder %s142, %s158
      %p160 = scmp.eq.s32.totalorder %s16, 0
      %p161 = por %p159, %p160
      %p162 = scmp.le.s32.totalorder 1, %s10
      %p163 = scmp.lt.s32.totalorder %s10, 9
      %p164 = pnand %p162, %p163
      %p165 = pneg %p164
      // Predicated region
      $region9: #{conv_feature_forward.10} parent=5 // pred_check
        _
      $region10: #{conv_feature_forward.10} parent=5 // pred_check_branch
        %167 = sbr.rel (%p164) target = $region12
      $region11: #{conv_feature_forward.10} parent=5 // pred_region
        %s168 = ssub.s32 %s10, 1
      $region12: #{conv_feature_forward.10} parent=5 // pred_fallthru
        _
      %p169 = scmp.lt.s32.totalorder %s10, 8
      // Predicated region
      $region13: #{conv_feature_forward.10} parent=5 // pred_check
        %p170 = pneg %p169
      $region14: #{conv_feature_forward.10} parent=5 // pred_check_branch
        %172 = sbr.rel (%p170) target = $region16
      $region15: #{conv_feature_forward.10} parent=5 // pred_region
        // Predicated region
        $region17: #{conv_feature_forward.10} parent=15 // pred_check
          %p173 = pneg %p42
        $region18: #{conv_feature_forward.10} parent=15 // pred_check_branch
          %175 = sbr.rel (%p173) target = $region20
        $region19: #{conv_feature_forward.10} parent=15 // pred_region
          %s176 = smul.u32 4, %s18
          %p177 = scmp.lt.s32.totalorder %s176, 7
          %s178 = scalar_select %p177, %s176, 7
          %s179 = scalar_lea.vmem %s0, %s178
          %s180 = smul.u32 4, %s18
        $region20: #{conv_feature_forward.10} parent=15 // pred_fallthru
          _
        // Predicated region
        $region21: #{conv_feature_forward.10} parent=15 // pred_check
          %p181 = pneg %p70
        $region22: #{conv_feature_forward.10} parent=15 // pred_check_branch
          %183 = sbr.rel (%p181) target = $region24
        $region23: #{conv_feature_forward.10} parent=15 // pred_region
          %s184 = sand.u32 %s60, 1
          %s185 = sand.u32 %s60, 1
          %s186 = smul.addr %s185, 512
          %s187 = scalar_lea.vmem [#allocation3], %s186
          %s188 = smul.u32 64, %s18
          %s189 = smul.u32 2, %s17
          %s190 = smul.addr %s188, 8
          %s191 = sadd.s32 %s189, %s190
          %s192 = smul.addr %s191, 4
          %s193 = scalar_lea.vmem %s1, %s192
          // Predicated region
          $region25: #{conv_feature_forward.10} parent=23 // pred_check
            _
          $region26: #{conv_feature_forward.10} parent=23 // pred_check_branch
            %195 = sbr.rel (0) target = $region28
          $region27: #{conv_feature_forward.10} parent=23 // pred_region
            // Predicated region
            $region29: #{conv_feature_forward.10} parent=27 // pred_check
              _
            $region30: #{conv_feature_forward.10} parent=27 // pred_check_branch
              %197 = sbr.rel (0) target = $region32
            $region31: #{conv_feature_forward.10} parent=27 // pred_region
              // Predicated region
              $region44: #{conv_feature_forward.10} parent=31 // pred_check
                _
              $region45: #{conv_feature_forward.10} parent=31 // pred_check_branch
                %338 = sbr.rel (0) target = $region47
              $region46: #{conv_feature_forward.10} parent=31 // pred_region
                loop: start=0, step=1, limit=1
                $region48: #{conv_feature_forward.10} parent=46 // loop_pre_header
                  _
                $region49: #{conv_feature_forward.10} parent=46 // loop_header
                  %s340 = sphi 0, %s344
                  %p341 = scmp.ge.s32.totalorder %s340, 1
                  %s345 = sphi %s193, %s193
                  %s346 = sphi %s187, %s187
                $region50: #{conv_feature_forward.10} parent=46 // loop_header_branch
                  %343 = sbr.rel (%p341) target = $region54
                $region51: #{conv_feature_forward.10} parent=46 // loop_body
                  %v347 = vld [vmem:[%s345] sm:$0xff]
                  %348 = vst [vmem:[%s346] sm:$0xff] %v347
                  %v349 = vld [vmem:[%s345 + $0x20] sm:$0xff]
                  %350 = vst [vmem:[%s346 + $0x8] sm:$0xff] %v349
                  %v351 = vld [vmem:[%s345 + $0x40] sm:$0xff]
                  %352 = vst [vmem:[%s346 + $0x10] sm:$0xff] %v351
                  %v353 = vld [vmem:[%s345 + $0x60] sm:$0xff]
                  %354 = vst [vmem:[%s346 + $0x18] sm:$0xff] %v353
                  %v355 = vld [vmem:[%s345 + $0x80] sm:$0xff]
                  %356 = vst [vmem:[%s346 + $0x20] sm:$0xff] %v355
                  %v357 = vld [vmem:[%s345 + $0xa0] sm:$0xff]
                  %358 = vst [vmem:[%s346 + $0x28] sm:$0xff] %v357
                  %v359 = vld [vmem:[%s345 + $0xc0] sm:$0xff]
                  %360 = vst [vmem:[%s346 + $0x30] sm:$0xff] %v359
                  %v361 = vld [vmem:[%s345 + $0xe0] sm:$0xff]
                  %362 = vst [vmem:[%s346 + $0x38] sm:$0xff] %v361
                  %v363 = vld [vmem:[%s345 + $0x100] sm:$0xff]
                  %364 = vst [vmem:[%s346 + $0x40] sm:$0xff] %v363
                  %v365 = vld [vmem:[%s345 + $0x120] sm:$0xff]
                  %366 = vst [vmem:[%s346 + $0x48] sm:$0xff] %v365
                  %v367 = vld [vmem:[%s345 + $0x140] sm:$0xff]
                  %368 = vst [vmem:[%s346 + $0x50] sm:$0xff] %v367
                  %v369 = vld [vmem:[%s345 + $0x160] sm:$0xff]
                  %370 = vst [vmem:[%s346 + $0x58] sm:$0xff] %v369
                  %v371 = vld [vmem:[%s345 + $0x180] sm:$0xff]
                  %372 = vst [vmem:[%s346 + $0x60] sm:$0xff] %v371
                  %v373 = vld [vmem:[%s345 + $0x1a0] sm:$0xff]
                  %374 = vst [vmem:[%s346 + $0x68] sm:$0xff] %v373
                  %v375 = vld [vmem:[%s345 + $0x1c0] sm:$0xff]
                  %376 = vst [vmem:[%s346 + $0x70] sm:$0xff] %v375
                  %v377 = vld [vmem:[%s345 + $0x1e0] sm:$0xff]
                  %378 = vst [vmem:[%s346 + $0x78] sm:$0xff] %v377
                  %v379 = vld [vmem:[%s345 + $0x200] sm:$0xff]
                  %380 = vst [vmem:[%s346 + $0x80] sm:$0xff] %v379
                  %v381 = vld [vmem:[%s345 + $0x220] sm:$0xff]
                  %382 = vst [vmem:[%s346 + $0x88] sm:$0xff] %v381
                  %v383 = vld [vmem:[%s345 + $0x240] sm:$0xff]
                  %384 = vst [vmem:[%s346 + $0x90] sm:$0xff] %v383
                  %v385 = vld [vmem:[%s345 + $0x260] sm:$0xff]
                  %386 = vst [vmem:[%s346 + $0x98] sm:$0xff] %v385
                  %v387 = vld [vmem:[%s345 + $0x280] sm:$0xff]
                  %388 = vst [vmem:[%s346 + $0xa0] sm:$0xff] %v387
                  %v389 = vld [vmem:[%s345 + $0x2a0] sm:$0xff]
                  %390 = vst [vmem:[%s346 + $0xa8] sm:$0xff] %v389
                  %v391 = vld [vmem:[%s345 + $0x2c0] sm:$0xff]
                  %392 = vst [vmem:[%s346 + $0xb0] sm:$0xff] %v391
                  %v393 = vld [vmem:[%s345 + $0x2e0] sm:$0xff]
                  %394 = vst [vmem:[%s346 + $0xb8] sm:$0xff] %v393
                  %v395 = vld [vmem:[%s345 + $0x300] sm:$0xff]
                  %396 = vst [vmem:[%s346 + $0xc0] sm:$0xff] %v395
                  %v397 = vld [vmem:[%s345 + $0x320] sm:$0xff]
                  %398 = vst [vmem:[%s346 + $0xc8] sm:$0xff] %v397
                  %v399 = vld [vmem:[%s345 + $0x340] sm:$0xff]
                  %400 = vst [vmem:[%s346 + $0xd0] sm:$0xff] %v399
                  %v401 = vld [vmem:[%s345 + $0x360] sm:$0xff]
                  %402 = vst [vmem:[%s346 + $0xd8] sm:$0xff] %v401
                  %v403 = vld [vmem:[%s345 + $0x380] sm:$0xff]
                  %404 = vst [vmem:[%s346 + $0xe0] sm:$0xff] %v403
                  %v405 = vld [vmem:[%s345 + $0x3a0] sm:$0xff]
                  %406 = vst [vmem:[%s346 + $0xe8] sm:$0xff] %v405
                  %v407 = vld [vmem:[%s345 + $0x3c0] sm:$0xff]
                  %408 = vst [vmem:[%s346 + $0xf0] sm:$0xff] %v407
                  %v409 = vld [vmem:[%s345 + $0x3e0] sm:$0xff]
                  %410 = vst [vmem:[%s346 + $0xf8] sm:$0xff] %v409
                  %v411 = vld [vmem:[%s345 + $0x400] sm:$0xff]
                  %412 = vst [vmem:[%s346 + $0x100] sm:$0xff] %v411
                  %v413 = vld [vmem:[%s345 + $0x420] sm:$0xff]
                  %414 = vst [vmem:[%s346 + $0x108] sm:$0xff] %v413
                  %v415 = vld [vmem:[%s345 + $0x440] sm:$0xff]
                  %416 = vst [vmem:[%s346 + $0x110] sm:$0xff] %v415
                  %v417 = vld [vmem:[%s345 + $0x460] sm:$0xff]
                  %418 = vst [vmem:[%s346 + $0x118] sm:$0xff] %v417
                  %v419 = vld [vmem:[%s345 + $0x480] sm:$0xff]
                  %420 = vst [vmem:[%s346 + $0x120] sm:$0xff] %v419
                  %v421 = vld [vmem:[%s345 + $0x4a0] sm:$0xff]
                  %422 = vst [vmem:[%s346 + $0x128] sm:$0xff] %v421
                  %v423 = vld [vmem:[%s345 + $0x4c0] sm:$0xff]
                  %424 = vst [vmem:[%s346 + $0x130] sm:$0xff] %v423
                  %v425 = vld [vmem:[%s345 + $0x4e0] sm:$0xff]
                  %426 = vst [vmem:[%s346 + $0x138] sm:$0xff] %v425
                  %v427 = vld [vmem:[%s345 + $0x500] sm:$0xff]
                  %428 = vst [vmem:[%s346 + $0x140] sm:$0xff] %v427
                  %v429 = vld [vmem:[%s345 + $0x520] sm:$0xff]
                  %430 = vst [vmem:[%s346 + $0x148] sm:$0xff] %v429
                  %v431 = vld [vmem:[%s345 + $0x540] sm:$0xff]
                  %432 = vst [vmem:[%s346 + $0x150] sm:$0xff] %v431
                  %v433 = vld [vmem:[%s345 + $0x560] sm:$0xff]
                  %434 = vst [vmem:[%s346 + $0x158] sm:$0xff] %v433
                  %v435 = vld [vmem:[%s345 + $0x580] sm:$0xff]
                  %436 = vst [vmem:[%s346 + $0x160] sm:$0xff] %v435
                  %v437 = vld [vmem:[%s345 + $0x5a0] sm:$0xff]
                  %438 = vst [vmem:[%s346 + $0x168] sm:$0xff] %v437
                  %v439 = vld [vmem:[%s345 + $0x5c0] sm:$0xff]
                  %440 = vst [vmem:[%s346 + $0x170] sm:$0xff] %v439
                  %v441 = vld [vmem:[%s345 + $0x5e0] sm:$0xff]
                  %442 = vst [vmem:[%s346 + $0x178] sm:$0xff] %v441
                  %v443 = vld [vmem:[%s345 + $0x600] sm:$0xff]
                  %444 = vst [vmem:[%s346 + $0x180] sm:$0xff] %v443
                  %v445 = vld [vmem:[%s345 + $0x620] sm:$0xff]
                  %446 = vst [vmem:[%s346 + $0x188] sm:$0xff] %v445
                  %v447 = vld [vmem:[%s345 + $0x640] sm:$0xff]
                  %448 = vst [vmem:[%s346 + $0x190] sm:$0xff] %v447
                  %v449 = vld [vmem:[%s345 + $0x660] sm:$0xff]
                  %450 = vst [vmem:[%s346 + $0x198] sm:$0xff] %v449
                  %v451 = vld [vmem:[%s345 + $0x680] sm:$0xff]
                  %452 = vst [vmem:[%s346 + $0x1a0] sm:$0xff] %v451
                  %v453 = vld [vmem:[%s345 + $0x6a0] sm:$0xff]
                  %454 = vst [vmem:[%s346 + $0x1a8] sm:$0xff] %v453
                  %v455 = vld [vmem:[%s345 + $0x6c0] sm:$0xff]
                  %456 = vst [vmem:[%s346 + $0x1b0] sm:$0xff] %v455
                  %v457 = vld [vmem:[%s345 + $0x6e0] sm:$0xff]
                  %458 = vst [vmem:[%s346 + $0x1b8] sm:$0xff] %v457
                  %v459 = vld [vmem:[%s345 + $0x700] sm:$0xff]
                  %460 = vst [vmem:[%s346 + $0x1c0] sm:$0xff] %v459
                  %v461 = vld [vmem:[%s345 + $0x720] sm:$0xff]
                  %462 = vst [vmem:[%s346 + $0x1c8] sm:$0xff] %v461
                  %v463 = vld [vmem:[%s345 + $0x740] sm:$0xff]
                  %464 = vst [vmem:[%s346 + $0x1d0] sm:$0xff] %v463
                  %v465 = vld [vmem:[%s345 + $0x760] sm:$0xff]
                  %466 = vst [vmem:[%s346 + $0x1d8] sm:$0xff] %v465
                  %v467 = vld [vmem:[%s345 + $0x780] sm:$0xff]
                  %468 = vst [vmem:[%s346 + $0x1e0] sm:$0xff] %v467
                  %v469 = vld [vmem:[%s345 + $0x7a0] sm:$0xff]
                  %470 = vst [vmem:[%s346 + $0x1e8] sm:$0xff] %v469
                  %v471 = vld [vmem:[%s345 + $0x7c0] sm:$0xff]
                  %472 = vst [vmem:[%s346 + $0x1f0] sm:$0xff] %v471
                  %v473 = vld [vmem:[%s345 + $0x7e0] sm:$0xff]
                  %474 = vst [vmem:[%s346 + $0x1f8] sm:$0xff] %v473
                $region52: #{conv_feature_forward.10} parent=46 // loop_footer
                  %s344 = sadd.s32 1, %s340
                $region53: #{conv_feature_forward.10} parent=46 // loop_footer_branch
                  %339 = sbr.rel target = $region49
                $region54: #{conv_feature_forward.10} parent=46 // loop_exit
                  _
              $region47: #{conv_feature_forward.10} parent=31 // pred_fallthru
                _
              // Predicated region
              $region55: #{conv_feature_forward.10} parent=31 // pred_check
                _
              $region56: #{conv_feature_forward.10} parent=31 // pred_check_branch
                %476 = sbr.rel target = $region58
              $region57: #{conv_feature_forward.10} parent=31 // pred_region
                _
              $region58: #{conv_feature_forward.10} parent=31 // pred_fallthru
                _
            $region32: #{conv_feature_forward.10} parent=27 // pred_fallthru
              _
            // Predicated region
            $region33: #{conv_feature_forward.10} parent=27 // pred_check
              _
            $region34: #{conv_feature_forward.10} parent=27 // pred_check_branch
              %199 = sbr.rel target = $region36
            $region35: #{conv_feature_forward.10} parent=27 // pred_region
              loop: start=0, step=1, limit=1
              $region37: #{conv_feature_forward.10} parent=35 // loop_pre_header
                _
              $region38: #{conv_feature_forward.10} parent=35 // loop_header
                %s202 = sphi 0, %s206
                %p203 = scmp.ge.s32.totalorder %s202, 1
                %s207 = sphi %s193, %s193
                %s208 = sphi %s187, %s187
              $region39: #{conv_feature_forward.10} parent=35 // loop_header_branch
                %205 = sbr.rel (%p203) target = $region43
              $region40: #{conv_feature_forward.10} parent=35 // loop_body
                %v209 = vld [vmem:[%s207] sm:$0xff]
                %210 = vst [vmem:[%s208] sm:$0xff] %v209
                %v211 = vld [vmem:[%s207 + $0x20] sm:$0xff]
                %212 = vst [vmem:[%s208 + $0x8] sm:$0xff] %v211
                %v213 = vld [vmem:[%s207 + $0x40] sm:$0xff]
                %214 = vst [vmem:[%s208 + $0x10] sm:$0xff] %v213
                %v215 = vld [vmem:[%s207 + $0x60] sm:$0xff]
                %216 = vst [vmem:[%s208 + $0x18] sm:$0xff] %v215
                %v217 = vld [vmem:[%s207 + $0x80] sm:$0xff]
                %218 = vst [vmem:[%s208 + $0x20] sm:$0xff] %v217
                %v219 = vld [vmem:[%s207 + $0xa0] sm:$0xff]
                %220 = vst [vmem:[%s208 + $0x28] sm:$0xff] %v219
                %v221 = vld [vmem:[%s207 + $0xc0] sm:$0xff]
                %222 = vst [vmem:[%s208 + $0x30] sm:$0xff] %v221
                %v223 = vld [vmem:[%s207 + $0xe0] sm:$0xff]
                %224 = vst [vmem:[%s208 + $0x38] sm:$0xff] %v223
                %v225 = vld [vmem:[%s207 + $0x100] sm:$0xff]
                %226 = vst [vmem:[%s208 + $0x40] sm:$0xff] %v225
                %v227 = vld [vmem:[%s207 + $0x120] sm:$0xff]
                %228 = vst [vmem:[%s208 + $0x48] sm:$0xff] %v227
                %v229 = vld [vmem:[%s207 + $0x140] sm:$0xff]
                %230 = vst [vmem:[%s208 + $0x50] sm:$0xff] %v229
                %v231 = vld [vmem:[%s207 + $0x160] sm:$0xff]
                %232 = vst [vmem:[%s208 + $0x58] sm:$0xff] %v231
                %v233 = vld [vmem:[%s207 + $0x180] sm:$0xff]
                %234 = vst [vmem:[%s208 + $0x60] sm:$0xff] %v233
                %v235 = vld [vmem:[%s207 + $0x1a0] sm:$0xff]
                %236 = vst [vmem:[%s208 + $0x68] sm:$0xff] %v235
                %v237 = vld [vmem:[%s207 + $0x1c0] sm:$0xff]
                %238 = vst [vmem:[%s208 + $0x70] sm:$0xff] %v237
                %v239 = vld [vmem:[%s207 + $0x1e0] sm:$0xff]
                %240 = vst [vmem:[%s208 + $0x78] sm:$0xff] %v239
                %v241 = vld [vmem:[%s207 + $0x200] sm:$0xff]
                %242 = vst [vmem:[%s208 + $0x80] sm:$0xff] %v241
                %v243 = vld [vmem:[%s207 + $0x220] sm:$0xff]
                %244 = vst [vmem:[%s208 + $0x88] sm:$0xff] %v243
                %v245 = vld [vmem:[%s207 + $0x240] sm:$0xff]
                %246 = vst [vmem:[%s208 + $0x90] sm:$0xff] %v245
                %v247 = vld [vmem:[%s207 + $0x260] sm:$0xff]
                %248 = vst [vmem:[%s208 + $0x98] sm:$0xff] %v247
                %v249 = vld [vmem:[%s207 + $0x280] sm:$0xff]
                %250 = vst [vmem:[%s208 + $0xa0] sm:$0xff] %v249
                %v251 = vld [vmem:[%s207 + $0x2a0] sm:$0xff]
                %252 = vst [vmem:[%s208 + $0xa8] sm:$0xff] %v251
                %v253 = vld [vmem:[%s207 + $0x2c0] sm:$0xff]
                %254 = vst [vmem:[%s208 + $0xb0] sm:$0xff] %v253
                %v255 = vld [vmem:[%s207 + $0x2e0] sm:$0xff]
                %256 = vst [vmem:[%s208 + $0xb8] sm:$0xff] %v255
                %v257 = vld [vmem:[%s207 + $0x300] sm:$0xff]
                %258 = vst [vmem:[%s208 + $0xc0] sm:$0xff] %v257
                %v259 = vld [vmem:[%s207 + $0x320] sm:$0xff]
                %260 = vst [vmem:[%s208 + $0xc8] sm:$0xff] %v259
                %v261 = vld [vmem:[%s207 + $0x340] sm:$0xff]
                %262 = vst [vmem:[%s208 + $0xd0] sm:$0xff] %v261
                %v263 = vld [vmem:[%s207 + $0x360] sm:$0xff]
                %264 = vst [vmem:[%s208 + $0xd8] sm:$0xff] %v263
                %v265 = vld [vmem:[%s207 + $0x380] sm:$0xff]
                %266 = vst [vmem:[%s208 + $0xe0] sm:$0xff] %v265
                %v267 = vld [vmem:[%s207 + $0x3a0] sm:$0xff]
                %268 = vst [vmem:[%s208 + $0xe8] sm:$0xff] %v267
                %v269 = vld [vmem:[%s207 + $0x3c0] sm:$0xff]
                %270 = vst [vmem:[%s208 + $0xf0] sm:$0xff] %v269
                %v271 = vld [vmem:[%s207 + $0x3e0] sm:$0xff]
                %272 = vst [vmem:[%s208 + $0xf8] sm:$0xff] %v271
                %v273 = vld [vmem:[%s207 + $0x400] sm:$0xff]
                %274 = vst [vmem:[%s208 + $0x100] sm:$0xff] %v273
                %v275 = vld [vmem:[%s207 + $0x420] sm:$0xff]
                %276 = vst [vmem:[%s208 + $0x108] sm:$0xff] %v275
                %v277 = vld [vmem:[%s207 + $0x440] sm:$0xff]
                %278 = vst [vmem:[%s208 + $0x110] sm:$0xff] %v277
                %v279 = vld [vmem:[%s207 + $0x460] sm:$0xff]
                %280 = vst [vmem:[%s208 + $0x118] sm:$0xff] %v279
                %v281 = vld [vmem:[%s207 + $0x480] sm:$0xff]
                %282 = vst [vmem:[%s208 + $0x120] sm:$0xff] %v281
                %v283 = vld [vmem:[%s207 + $0x4a0] sm:$0xff]
                %284 = vst [vmem:[%s208 + $0x128] sm:$0xff] %v283
                %v285 = vld [vmem:[%s207 + $0x4c0] sm:$0xff]
                %286 = vst [vmem:[%s208 + $0x130] sm:$0xff] %v285
                %v287 = vld [vmem:[%s207 + $0x4e0] sm:$0xff]
                %288 = vst [vmem:[%s208 + $0x138] sm:$0xff] %v287
                %v289 = vld [vmem:[%s207 + $0x500] sm:$0xff]
                %290 = vst [vmem:[%s208 + $0x140] sm:$0xff] %v289
                %v291 = vld [vmem:[%s207 + $0x520] sm:$0xff]
                %292 = vst [vmem:[%s208 + $0x148] sm:$0xff] %v291
                %v293 = vld [vmem:[%s207 + $0x540] sm:$0xff]
                %294 = vst [vmem:[%s208 + $0x150] sm:$0xff] %v293
                %v295 = vld [vmem:[%s207 + $0x560] sm:$0xff]
                %296 = vst [vmem:[%s208 + $0x158] sm:$0xff] %v295
                %v297 = vld [vmem:[%s207 + $0x580] sm:$0xff]
                %298 = vst [vmem:[%s208 + $0x160] sm:$0xff] %v297
                %v299 = vld [vmem:[%s207 + $0x5a0] sm:$0xff]
                %300 = vst [vmem:[%s208 + $0x168] sm:$0xff] %v299
                %v301 = vld [vmem:[%s207 + $0x5c0] sm:$0xff]
                %302 = vst [vmem:[%s208 + $0x170] sm:$0xff] %v301
                %v303 = vld [vmem:[%s207 + $0x5e0] sm:$0xff]
                %304 = vst [vmem:[%s208 + $0x178] sm:$0xff] %v303
                %v305 = vld [vmem:[%s207 + $0x600] sm:$0xff]
                %306 = vst [vmem:[%s208 + $0x180] sm:$0xff] %v305
                %v307 = vld [vmem:[%s207 + $0x620] sm:$0xff]
                %308 = vst [vmem:[%s208 + $0x188] sm:$0xff] %v307
                %v309 = vld [vmem:[%s207 + $0x640] sm:$0xff]
                %310 = vst [vmem:[%s208 + $0x190] sm:$0xff] %v309
                %v311 = vld [vmem:[%s207 + $0x660] sm:$0xff]
                %312 = vst [vmem:[%s208 + $0x198] sm:$0xff] %v311
                %v313 = vld [vmem:[%s207 + $0x680] sm:$0xff]
                %314 = vst [vmem:[%s208 + $0x1a0] sm:$0xff] %v313
                %v315 = vld [vmem:[%s207 + $0x6a0] sm:$0xff]
                %316 = vst [vmem:[%s208 + $0x1a8] sm:$0xff] %v315
                %v317 = vld [vmem:[%s207 + $0x6c0] sm:$0xff]
                %318 = vst [vmem:[%s208 + $0x1b0] sm:$0xff] %v317
                %v319 = vld [vmem:[%s207 + $0x6e0] sm:$0xff]
                %320 = vst [vmem:[%s208 + $0x1b8] sm:$0xff] %v319
                %v321 = vld [vmem:[%s207 + $0x700] sm:$0xff]
                %322 = vst [vmem:[%s208 + $0x1c0] sm:$0xff] %v321
                %v323 = vld [vmem:[%s207 + $0x720] sm:$0xff]
                %324 = vst [vmem:[%s208 + $0x1c8] sm:$0xff] %v323
                %v325 = vld [vmem:[%s207 + $0x740] sm:$0xff]
                %326 = vst [vmem:[%s208 + $0x1d0] sm:$0xff] %v325
                %v327 = vld [vmem:[%s207 + $0x760] sm:$0xff]
                %328 = vst [vmem:[%s208 + $0x1d8] sm:$0xff] %v327
                %v329 = vld [vmem:[%s207 + $0x780] sm:$0xff]
                %330 = vst [vmem:[%s208 + $0x1e0] sm:$0xff] %v329
                %v331 = vld [vmem:[%s207 + $0x7a0] sm:$0xff]
                %332 = vst [vmem:[%s208 + $0x1e8] sm:$0xff] %v331
                %v333 = vld [vmem:[%s207 + $0x7c0] sm:$0xff]
                %334 = vst [vmem:[%s208 + $0x1f0] sm:$0xff] %v333
                %v335 = vld [vmem:[%s207 + $0x7e0] sm:$0xff]
                %336 = vst [vmem:[%s208 + $0x1f8] sm:$0xff] %v335
              $region41: #{conv_feature_forward.10} parent=35 // loop_footer
                %s206 = sadd.s32 1, %s202
              $region42: #{conv_feature_forward.10} parent=35 // loop_footer_branch
                %201 = sbr.rel target = $region38
              $region43: #{conv_feature_forward.10} parent=35 // loop_exit
                _
            $region36: #{conv_feature_forward.10} parent=27 // pred_fallthru
              _
          $region28: #{conv_feature_forward.10} parent=23 // pred_fallthru
            _
          %477 = vnop
        $region24: #{conv_feature_forward.10} parent=15 // pred_fallthru
          _
        // Predicated region
        $region59: #{conv_feature_forward.10} parent=15 // pred_check
          %p478 = pneg %p96
        $region60: #{conv_feature_forward.10} parent=15 // pred_check_branch
          %480 = sbr.rel (%p478) target = $region62
        $region61: #{conv_feature_forward.10} parent=15 // pred_region
          %s481 = smul.u32 2, %s17
          %p482 = scmp.lt.s32.totalorder %s481, 7
          %s483 = scalar_select %p482, %s481, 7
          %s484 = scalar_lea.vmem %s2, %s483
          %s485 = smul.u32 2, %s17
        $region62: #{conv_feature_forward.10} parent=15 // pred_fallthru
          _
        // Predicated region
        $region63: #{conv_feature_forward.10} parent=15 // pred_check
          %p486 = pneg %p122
        $region64: #{conv_feature_forward.10} parent=15 // pred_check_branch
          %488 = sbr.rel (%p486) target = $region66
        $region65: #{conv_feature_forward.10} parent=15 // pred_region
          %s489 = smul.u32 2, %s17
          %p490 = scmp.lt.s32.totalorder %s489, 7
          %s491 = scalar_select %p490, %s489, 7
          %s492 = scalar_lea.vmem %s3, %s491
          %s493 = smul.u32 2, %s17
        $region66: #{conv_feature_forward.10} parent=15 // pred_fallthru
          _
      $region16: #{conv_feature_forward.10} parent=5 // pred_fallthru
        _
      %p494 = scmp.le.s32.totalorder 1, %s10
      %p495 = scmp.lt.s32.totalorder %s10, 9
      %p496 = pnand %p494, %p495
      %p497 = pneg %p496
      // Predicated region
      $region67: #{conv_feature_forward.10} parent=5 // pred_check
        _
      $region68: #{conv_feature_forward.10} parent=5 // pred_check_branch
        %499 = sbr.rel (%p496) target = $region70
      $region69: #{conv_feature_forward.10} parent=5 // pred_region
        %s500 = ssub.s32 %s10, 1
        %s501 = sand.u32 %s63, 1
        %s502 = sand.u32 %s63, 1
        %s503 = smul.addr %s502, 512
        %s504 = scalar_lea.vmem [#allocation3], %s503
        // Predicated region
        $region71: #{conv_feature_forward.10} parent=69 // pred_check
          %p505 = pneg %p76
        $region72: #{conv_feature_forward.10} parent=69 // pred_check_branch
          %507 = sbr.rel (%p505) target = $region74
        $region73: #{conv_feature_forward.10} parent=69 // pred_region
          _
        $region74: #{conv_feature_forward.10} parent=69 // pred_fallthru
          _
        %s508 = smul.u32 4, %s20
        %p509 = scmp.lt.s32.totalorder %s508, 7
        %s510 = scalar_select %p509, %s508, 7
        %s511 = scalar_lea.vmem %s0, %s510
        %p512 = pneg %p48
        %p513 = pneg %p45
        %s514 = sand.u32 %s63, 1
        %s515 = sand.u32 %s63, 1
        %s516 = smul.addr %s515, 512
        %s517 = scalar_lea.vmem [#allocation3], %s516
        %p518 = pneg %p76
        %p519 = pneg %p73
        %s520 = smul.u32 2, %s19
        %p521 = scmp.lt.s32.totalorder %s520, 7
        %s522 = scalar_select %p521, %s520, 7
        %s523 = scalar_lea.vmem %s2, %s522
        %p524 = pneg %p102
        %p525 = pneg %p99
        %s526 = smul.u32 2, %s19
        %p527 = scmp.lt.s32.totalorder %s526, 7
        %s528 = scalar_select %p527, %s526, 7
        %s529 = scalar_lea.vmem %s3, %s528
        %p530 = pneg %p128
        %p531 = pneg %p125
        %p532 = pneg %p154
        %p533 = pneg %p151
        %s534 = smul.u32 2, %s19
        %p535 = scmp.lt.s32.totalorder %s534, 7
        %s536 = scalar_select %p535, %s534, 7
        %s537 = scalar_lea.vmem %s4, %s536
        %s538 = smul.u32 4, %s20
        %p539 = scmp.lt.s32.totalorder %s538, 7
        %s540 = scalar_select %p539, %s538, 7
        %s541 = scalar_lea.vmem %s0, %s540
        %s542 = smul.u32 4, %s20
        %s543 = smul.u32 64, %s20
        %s544 = smul.u32 2, %s19
        %s545 = smul.u32 2, %s19
        %p546 = scmp.lt.s32.totalorder %s545, 7
        %s547 = scalar_select %p546, %s545, 7
        %s548 = scalar_lea.vmem %s2, %s547
        %s549 = smul.u32 2, %s19
        %s550 = smul.u32 2, %s19
        %p551 = scmp.lt.s32.totalorder %s550, 7
        %s552 = scalar_select %p551, %s550, 7
        %s553 = scalar_lea.vmem %s3, %s552
        %s554 = smul.u32 2, %s19
        %s555 = smul.u32 2, %s19
        %p556 = scmp.lt.s32.totalorder %s555, 7
        %s557 = scalar_select %p556, %s555, 7
        %s558 = scalar_lea.vmem %s4, %s557
        %s559 = smul.u32 2, %s19
        %p560 = scmp.eq.s32.totalorder %s20, 0
        // Predicated region
        $region75: #{conv_feature_forward.10} parent=69 // pred_check
          %p561 = pneg %p560
        $region76: #{conv_feature_forward.10} parent=69 // pred_check_branch
          %563 = sbr.rel (%p561) target = $region78
        $region77: #{conv_feature_forward.10} parent=69 // pred_region
          %564 = vst [vmem:[#allocation2] sm:$0xf] 0.0
        $region78: #{conv_feature_forward.10} parent=69 // pred_fallthru
          _
        %v565 = vld [vmem:[#allocation2] sm:$0xf]
        %v566 = vld [vmem:[%s541] sm:$0xf]
        %v567 = vld [vmem:[%s504] sm:$0xff]
        %v568 = vld [vmem:[%s504 + $0x8] sm:$0xff]
        %v569 = vld [vmem:[%s504 + $0x10] sm:$0xff]
        %v570 = vld [vmem:[%s504 + $0x18] sm:$0xff]
        %v571 = vld [vmem:[%s504 + $0x20] sm:$0xff]
        %v572 = vld [vmem:[%s504 + $0x28] sm:$0xff]
        %v573 = vld [vmem:[%s504 + $0x30] sm:$0xff]
        %v574 = vld [vmem:[%s504 + $0x38] sm:$0xff]
        %v575 = vld [vmem:[%s504 + $0x40] sm:$0xff]
        %v576 = vld [vmem:[%s504 + $0x48] sm:$0xff]
        %v577 = vld [vmem:[%s504 + $0x50] sm:$0xff]
        %v578 = vld [vmem:[%s504 + $0x58] sm:$0xff]
        %v579 = vld [vmem:[%s504 + $0x60] sm:$0xff]
        %v580 = vld [vmem:[%s504 + $0x68] sm:$0xff]
        %v581 = vld [vmem:[%s504 + $0x70] sm:$0xff]
        %v582 = vld [vmem:[%s504 + $0x78] sm:$0xff]
        %v583 = vld [vmem:[%s504 + $0x80] sm:$0xff]
        %v584 = vld [vmem:[%s504 + $0x88] sm:$0xff]
        %v585 = vld [vmem:[%s504 + $0x90] sm:$0xff]
        %v586 = vld [vmem:[%s504 + $0x98] sm:$0xff]
        %v587 = vld [vmem:[%s504 + $0xa0] sm:$0xff]
        %v588 = vld [vmem:[%s504 + $0xa8] sm:$0xff]
        %v589 = vld [vmem:[%s504 + $0xb0] sm:$0xff]
        %v590 = vld [vmem:[%s504 + $0xb8] sm:$0xff]
        %v591 = vld [vmem:[%s504 + $0xc0] sm:$0xff]
        %v592 = vld [vmem:[%s504 + $0xc8] sm:$0xff]
        %v593 = vld [vmem:[%s504 + $0xd0] sm:$0xff]
        %v594 = vld [vmem:[%s504 + $0xd8] sm:$0xff]
        %v595 = vld [vmem:[%s504 + $0xe0] sm:$0xff]
        %v596 = vld [vmem:[%s504 + $0xe8] sm:$0xff]
        %v597 = vld [vmem:[%s504 + $0xf0] sm:$0xff]
        %v598 = vld [vmem:[%s504 + $0xf8] sm:$0xff]
        %v599 = vld [vmem:[%s504 + $0x100] sm:$0xff]
        %v600 = vld [vmem:[%s504 + $0x108] sm:$0xff]
        %v601 = vld [vmem:[%s504 + $0x110] sm:$0xff]
        %v602 = vld [vmem:[%s504 + $0x118] sm:$0xff]
        %v603 = vld [vmem:[%s504 + $0x120] sm:$0xff]
        %v604 = vld [vmem:[%s504 + $0x128] sm:$0xff]
        %v605 = vld [vmem:[%s504 + $0x130] sm:$0xff]
        %v606 = vld [vmem:[%s504 + $0x138] sm:$0xff]
        %v607 = vld [vmem:[%s504 + $0x140] sm:$0xff]
        %v608 = vld [vmem:[%s504 + $0x148] sm:$0xff]
        %v609 = vld [vmem:[%s504 + $0x150] sm:$0xff]
        %v610 = vld [vmem:[%s504 + $0x158] sm:$0xff]
        %v611 = vld [vmem:[%s504 + $0x160] sm:$0xff]
        %v612 = vld [vmem:[%s504 + $0x168] sm:$0xff]
        %v613 = vld [vmem:[%s504 + $0x170] sm:$0xff]
        %v614 = vld [vmem:[%s504 + $0x178] sm:$0xff]
        %v615 = vld [vmem:[%s504 + $0x180] sm:$0xff]
        %v616 = vld [vmem:[%s504 + $0x188] sm:$0xff]
        %v617 = vld [vmem:[%s504 + $0x190] sm:$0xff]
        %v618 = vld [vmem:[%s504 + $0x198] sm:$0xff]
        %v619 = vld [vmem:[%s504 + $0x1a0] sm:$0xff]
        %v620 = vld [vmem:[%s504 + $0x1a8] sm:$0xff]
        %v621 = vld [vmem:[%s504 + $0x1b0] sm:$0xff]
        %v622 = vld [vmem:[%s504 + $0x1b8] sm:$0xff]
        %v623 = vld [vmem:[%s504 + $0x1c0] sm:$0xff]
        %v624 = vld [vmem:[%s504 + $0x1c8] sm:$0xff]
        %v625 = vld [vmem:[%s504 + $0x1d0] sm:$0xff]
        %v626 = vld [vmem:[%s504 + $0x1d8] sm:$0xff]
        %v627 = vld [vmem:[%s504 + $0x1e0] sm:$0xff]
        %v628 = vld [vmem:[%s504 + $0x1e8] sm:$0xff]
        %v629 = vld [vmem:[%s504 + $0x1f0] sm:$0xff]
        %v630 = vld [vmem:[%s504 + $0x1f8] sm:$0xff]
        %v633 = vunpack.c.l.s4 1966171168
        %v634 = vunpack.c.0.s8 %v633
        %v635 = vlaneseq
        %v636 = vshrl.u32 %v635, 7
        %v637 = vsub.s32 %v634, %v636
        %v638 = vrot.slane %v566, %v637
        %v639 = vcombine.high %v638, %v638
        %v641 = vunpack.c.l.s4 1966171168
        %v642 = vunpack.c.0.s8 %v641
        %v643 = vlaneseq
        %v644 = vshrl.u32 %v643, 7
        %v645 = vsub.s32 %v642, %v644
        %v646 = vrot.slane %v638, %v645
        %v648 = vunpack.c.l.s4 1966171168
        %v649 = vunpack.c.0.s8 %v648
        %v650 = vlaneseq
        %v651 = vshrl.u32 %v650, 7
        %v652 = vsub.s32 %v649, %v651
        %v653 = vrot.slane %v639, %v652
        %v654 = vcombine.high %v646, %v646
        %v655 = vcombine.high %v653, %v653
        %v724 = vunpack.c.l.b16 %v567
        %v725 = vunpack.c.h.b16 %v567
        %v726 = vunpack.c.l.b16 %v568
        %v727 = vunpack.c.h.b16 %v568
        %v728 = vunpack.c.l.b16 %v569
        %v729 = vunpack.c.h.b16 %v569
        %v730 = vunpack.c.l.b16 %v570
        %v731 = vunpack.c.h.b16 %v570
        %v732 = vunpack.c.l.b16 %v571
        %v733 = vunpack.c.h.b16 %v571
        %v734 = vunpack.c.l.b16 %v572
        %v735 = vunpack.c.h.b16 %v572
        %v736 = vunpack.c.l.b16 %v573
        %v737 = vunpack.c.h.b16 %v573
        %v738 = vunpack.c.l.b16 %v574
        %v739 = vunpack.c.h.b16 %v574
        %v740 = vunpack.c.l.b16 %v575
        %v741 = vunpack.c.h.b16 %v575
        %v742 = vunpack.c.l.b16 %v576
        %v743 = vunpack.c.h.b16 %v576
        %v744 = vunpack.c.l.b16 %v577
        %v745 = vunpack.c.h.b16 %v577
        %v746 = vunpack.c.l.b16 %v578
        %v747 = vunpack.c.h.b16 %v578
        %v748 = vunpack.c.l.b16 %v579
        %v749 = vunpack.c.h.b16 %v579
        %v750 = vunpack.c.l.b16 %v580
        %v751 = vunpack.c.h.b16 %v580
        %v752 = vunpack.c.l.b16 %v581
        %v753 = vunpack.c.h.b16 %v581
        %v754 = vunpack.c.l.b16 %v582
        %v755 = vunpack.c.h.b16 %v582
        %v756 = vunpack.c.l.b16 %v583
        %v757 = vunpack.c.h.b16 %v583
        %v758 = vunpack.c.l.b16 %v584
        %v759 = vunpack.c.h.b16 %v584
        %v760 = vunpack.c.l.b16 %v585
        %v761 = vunpack.c.h.b16 %v585
        %v762 = vunpack.c.l.b16 %v586
        %v763 = vunpack.c.h.b16 %v586
        %v764 = vunpack.c.l.b16 %v587
        %v765 = vunpack.c.h.b16 %v587
        %v766 = vunpack.c.l.b16 %v588
        %v767 = vunpack.c.h.b16 %v588
        %v768 = vunpack.c.l.b16 %v589
        %v769 = vunpack.c.h.b16 %v589
        %v770 = vunpack.c.l.b16 %v590
        %v771 = vunpack.c.h.b16 %v590
        %v772 = vunpack.c.l.b16 %v591
        %v773 = vunpack.c.h.b16 %v591
        %v774 = vunpack.c.l.b16 %v592
        %v775 = vunpack.c.h.b16 %v592
        %v776 = vunpack.c.l.b16 %v593
        %v777 = vunpack.c.h.b16 %v593
        %v778 = vunpack.c.l.b16 %v594
        %v779 = vunpack.c.h.b16 %v594
        %v780 = vunpack.c.l.b16 %v595
        %v781 = vunpack.c.h.b16 %v595
        %v782 = vunpack.c.l.b16 %v596
        %v783 = vunpack.c.h.b16 %v596
        %v784 = vunpack.c.l.b16 %v597
        %v785 = vunpack.c.h.b16 %v597
        %v786 = vunpack.c.l.b16 %v598
        %v787 = vunpack.c.h.b16 %v598
        %v788 = vunpack.c.l.b16 %v599
        %v789 = vunpack.c.h.b16 %v599
        %v790 = vunpack.c.l.b16 %v600
        %v791 = vunpack.c.h.b16 %v600
        %v792 = vunpack.c.l.b16 %v601
        %v793 = vunpack.c.h.b16 %v601
        %v794 = vunpack.c.l.b16 %v602
        %v795 = vunpack.c.h.b16 %v602
        %v796 = vunpack.c.l.b16 %v603
        %v797 = vunpack.c.h.b16 %v603
        %v798 = vunpack.c.l.b16 %v604
        %v799 = vunpack.c.h.b16 %v604
        %v800 = vunpack.c.l.b16 %v605
        %v801 = vunpack.c.h.b16 %v605
        %v802 = vunpack.c.l.b16 %v606
        %v803 = vunpack.c.h.b16 %v606
        %v804 = vunpack.c.l.b16 %v607
        %v805 = vunpack.c.h.b16 %v607
        %v806 = vunpack.c.l.b16 %v608
        %v807 = vunpack.c.h.b16 %v608
        %v808 = vunpack.c.l.b16 %v609
        %v809 = vunpack.c.h.b16 %v609
        %v810 = vunpack.c.l.b16 %v610
        %v811 = vunpack.c.h.b16 %v610
        %v812 = vunpack.c.l.b16 %v611
        %v813 = vunpack.c.h.b16 %v611
        %v814 = vunpack.c.l.b16 %v612
        %v815 = vunpack.c.h.b16 %v612
        %v816 = vunpack.c.l.b16 %v613
        %v817 = vunpack.c.h.b16 %v613
        %v818 = vunpack.c.l.b16 %v614
        %v819 = vunpack.c.h.b16 %v614
        %v820 = vunpack.c.l.b16 %v615
        %v821 = vunpack.c.h.b16 %v615
        %v822 = vunpack.c.l.b16 %v616
        %v823 = vunpack.c.h.b16 %v616
        %v824 = vunpack.c.l.b16 %v617
        %v825 = vunpack.c.h.b16 %v617
        %v826 = vunpack.c.l.b16 %v618
        %v827 = vunpack.c.h.b16 %v618
        %v828 = vunpack.c.l.b16 %v619
        %v829 = vunpack.c.h.b16 %v619
        %v830 = vunpack.c.l.b16 %v620
        %v831 = vunpack.c.h.b16 %v620
        %v832 = vunpack.c.l.b16 %v621
        %v833 = vunpack.c.h.b16 %v621
        %v834 = vunpack.c.l.b16 %v622
        %v835 = vunpack.c.h.b16 %v622
        %v836 = vunpack.c.l.b16 %v623
        %v837 = vunpack.c.h.b16 %v623
        %v838 = vunpack.c.l.b16 %v624
        %v839 = vunpack.c.h.b16 %v624
        %v840 = vunpack.c.l.b16 %v625
        %v841 = vunpack.c.h.b16 %v625
        %v842 = vunpack.c.l.b16 %v626
        %v843 = vunpack.c.h.b16 %v626
        %v844 = vunpack.c.l.b16 %v627
        %v845 = vunpack.c.h.b16 %v627
        %v846 = vunpack.c.l.b16 %v628
        %v847 = vunpack.c.h.b16 %v628
        %v848 = vunpack.c.l.b16 %v629
        %v849 = vunpack.c.h.b16 %v629
        %v850 = vunpack.c.l.b16 %v630
        %v851 = vunpack.c.h.b16 %v630
        %v852 = vpack.c.b16 %v726, %v724
        %v853 = vpack.c.b16 %v727, %v725
        %v854 = vpack.c.b16 %v730, %v728
        %v855 = vpack.c.b16 %v731, %v729
        %v856 = vpack.c.b16 %v734, %v732
        %v857 = vpack.c.b16 %v735, %v733
        %v858 = vpack.c.b16 %v738, %v736
        %v859 = vpack.c.b16 %v739, %v737
        %v860 = vpack.c.b16 %v742, %v740
        %v861 = vpack.c.b16 %v743, %v741
        %v862 = vpack.c.b16 %v746, %v744
        %v863 = vpack.c.b16 %v747, %v745
        %v864 = vpack.c.b16 %v750, %v748
        %v865 = vpack.c.b16 %v751, %v749
        %v866 = vpack.c.b16 %v754, %v752
        %v867 = vpack.c.b16 %v755, %v753
        %v868 = vpack.c.b16 %v758, %v756
        %v869 = vpack.c.b16 %v759, %v757
        %v870 = vpack.c.b16 %v762, %v760
        %v871 = vpack.c.b16 %v763, %v761
        %v872 = vpack.c.b16 %v766, %v764
        %v873 = vpack.c.b16 %v767, %v765
        %v874 = vpack.c.b16 %v770, %v768
        %v875 = vpack.c.b16 %v771, %v769
        %v876 = vpack.c.b16 %v774, %v772
        %v877 = vpack.c.b16 %v775, %v773
        %v878 = vpack.c.b16 %v778, %v776
        %v879 = vpack.c.b16 %v779, %v777
        %v880 = vpack.c.b16 %v782, %v780
        %v881 = vpack.c.b16 %v783, %v781
        %v882 = vpack.c.b16 %v786, %v784
        %v883 = vpack.c.b16 %v787, %v785
        %v884 = vpack.c.b16 %v790, %v788
        %v885 = vpack.c.b16 %v791, %v789
        %v886 = vpack.c.b16 %v794, %v792
        %v887 = vpack.c.b16 %v795, %v793
        %v888 = vpack.c.b16 %v798, %v796
        %v889 = vpack.c.b16 %v799, %v797
        %v890 = vpack.c.b16 %v802, %v800
        %v891 = vpack.c.b16 %v803, %v801
        %v892 = vpack.c.b16 %v806, %v804
        %v893 = vpack.c.b16 %v807, %v805
        %v894 = vpack.c.b16 %v810, %v808
        %v895 = vpack.c.b16 %v811, %v809
        %v896 = vpack.c.b16 %v814, %v812
        %v897 = vpack.c.b16 %v815, %v813
        %v898 = vpack.c.b16 %v818, %v816
        %v899 = vpack.c.b16 %v819, %v817
        %v900 = vpack.c.b16 %v822, %v820
        %v901 = vpack.c.b16 %v823, %v821
        %v902 = vpack.c.b16 %v826, %v824
        %v903 = vpack.c.b16 %v827, %v825
        %v904 = vpack.c.b16 %v830, %v828
        %v905 = vpack.c.b16 %v831, %v829
        %v906 = vpack.c.b16 %v834, %v832
        %v907 = vpack.c.b16 %v835, %v833
        %v908 = vpack.c.b16 %v838, %v836
        %v909 = vpack.c.b16 %v839, %v837
        %v910 = vpack.c.b16 %v842, %v840
        %v911 = vpack.c.b16 %v843, %v841
        %v912 = vpack.c.b16 %v846, %v844
        %v913 = vpack.c.b16 %v847, %v845
        %v914 = vpack.c.b16 %v850, %v848
        %v915 = vpack.c.b16 %v851, %v849
        %980 = vmatprep.subr.bf16.mxu0 %v853
        %981 = vmatpush1.bf16.msra.mxu0 %v852
        %982 = vmatprep.subr.bf16.mxu0 %v855
        %983 = vmatpush1.bf16.msra.mxu0 %v854
        %984 = vmatprep.subr.bf16.mxu0 %v857
        %985 = vmatpush1.bf16.msra.mxu0 %v856
        %986 = vmatprep.subr.bf16.mxu0 %v859
        %987 = vmatpush1.bf16.msra.mxu0 %v858
        %988 = vmatprep.subr.bf16.mxu0 %v861
        %989 = vmatpush1.bf16.msra.mxu0 %v860
        %990 = vmatprep.subr.bf16.mxu0 %v863
        %991 = vmatpush1.bf16.msra.mxu0 %v862
        %992 = vmatprep.subr.bf16.mxu0 %v865
        %993 = vmatpush1.bf16.msra.mxu0 %v864
        %994 = vmatprep.subr.bf16.mxu0 %v867
        %995 = vmatpush1.bf16.msra.mxu0 %v866
        %996 = vmatprep.subr.bf16.mxu0 %v869
        %997 = vmatpush1.bf16.msra.mxu0 %v868
        %998 = vmatprep.subr.bf16.mxu0 %v871
        %999 = vmatpush1.bf16.msra.mxu0 %v870
        %1000 = vmatprep.subr.bf16.mxu0 %v873
        %1001 = vmatpush1.bf16.msra.mxu0 %v872
        %1002 = vmatprep.subr.bf16.mxu0 %v875
        %1003 = vmatpush1.bf16.msra.mxu0 %v874
        %1004 = vmatprep.subr.bf16.mxu0 %v877
        %1005 = vmatpush1.bf16.msra.mxu0 %v876
        %1006 = vmatprep.subr.bf16.mxu0 %v879
        %1007 = vmatpush1.bf16.msra.mxu0 %v878
        %1008 = vmatprep.subr.bf16.mxu0 %v881
        %1009 = vmatpush1.bf16.msra.mxu0 %v880
        %1010 = vmatprep.subr.bf16.mxu0 %v883
        %1011 = vmatpush1.bf16.msra.mxu0 %v882
        %1012 = vmatprep.mubr.bf16.mxu0 %v653
        %1013 = vmatmul.mubr.bf16.gmra.mrb[0].mxu0 %v646
        %v1014 = vpop.f32.mrb[0].mxu0
        %v1015 = vadd.f32 0.0, %v1014
        %v1016 = vpop.f32.mrb[0].mxu0
        %v1017 = vadd.f32 0.0, %v1016
        %v1018 = vpop.f32.mrb[0].mxu0
        %v1019 = vpop.f32.mrb[0].mxu0
        %1020 = vdwg.mxu0
        %1021 = vmatprep.subr.bf16.mxu0 %v885
        %1022 = vmatpush1.bf16.msra.mxu0 %v884
        %1023 = vmatprep.subr.bf16.mxu0 %v887
        %1024 = vmatpush1.bf16.msra.mxu0 %v886
        %1025 = vmatprep.subr.bf16.mxu0 %v889
        %1026 = vmatpush1.bf16.msra.mxu0 %v888
        %1027 = vmatprep.subr.bf16.mxu0 %v891
        %1028 = vmatpush1.bf16.msra.mxu0 %v890
        %1029 = vmatprep.subr.bf16.mxu0 %v893
        %1030 = vmatpush1.bf16.msra.mxu0 %v892
        %1031 = vmatprep.subr.bf16.mxu0 %v895
        %1032 = vmatpush1.bf16.msra.mxu0 %v894
        %1033 = vmatprep.subr.bf16.mxu0 %v897
        %1034 = vmatpush1.bf16.msra.mxu0 %v896
        %1035 = vmatprep.subr.bf16.mxu0 %v899
        %1036 = vmatpush1.bf16.msra.mxu0 %v898
        %1037 = vmatprep.subr.bf16.mxu0 %v901
        %1038 = vmatpush1.bf16.msra.mxu0 %v900
        %1039 = vmatprep.subr.bf16.mxu0 %v903
        %1040 = vmatpush1.bf16.msra.mxu0 %v902
        %1041 = vmatprep.subr.bf16.mxu0 %v905
        %1042 = vmatpush1.bf16.msra.mxu0 %v904
        %1043 = vmatprep.subr.bf16.mxu0 %v907
        %1044 = vmatpush1.bf16.msra.mxu0 %v906
        %1045 = vmatprep.subr.bf16.mxu0 %v909
        %1046 = vmatpush1.bf16.msra.mxu0 %v908
        %1047 = vmatprep.subr.bf16.mxu0 %v911
        %1048 = vmatpush1.bf16.msra.mxu0 %v910
        %1049 = vmatprep.subr.bf16.mxu0 %v913
        %1050 = vmatpush1.bf16.msra.mxu0 %v912
        %1051 = vmatprep.subr.bf16.mxu0 %v915
        %1052 = vmatpush1.bf16.msra.mxu0 %v914
        %1053 = vmatprep.mubr.bf16.mxu0 %v655
        %1054 = vmatmul.mubr.bf16.gmra.mrb[0].mxu0 %v654
        %v1055 = vpop.f32.mrb[0].mxu0
        %v1056 = vadd.f32 %v1015, %v1055
        %v1057 = vpop.f32.mrb[0].mxu0
        %v1058 = vadd.f32 %v1017, %v1057
        %v1059 = vpop.f32.mrb[0].mxu0
        %v1060 = vpop.f32.mrb[0].mxu0
        %1061 = vdwg.mxu0
        %v1064 = vcombine.low %v1056, %v1058
        %v1066 = vunpack.c.l.s4 1983009808
        %v1067 = vunpack.c.0.s8 %v1066
        %v1068 = vlaneseq
        %v1069 = vshrl.u32 %v1068, 7
        %v1070 = vsub.s32 %v1067, %v1069
        %v1071 = vrot.slane %v1064, %v1070
        %v1073 = vadd.f32 %v565, %v1071
        %1074 = vst [vmem:[#allocation2] sm:$0xf] %v1073
        %p1075 = scmp.eq.s32.totalorder %s20, 1
        // Predicated region
        $region79: #{conv_feature_forward.10} parent=69 // pred_check
          %p1076 = pneg %p1075
        $region80: #{conv_feature_forward.10} parent=69 // pred_check_branch
          %1078 = sbr.rel (%p1076) target = $region82
        $region81: #{conv_feature_forward.10} parent=69 // pred_region
          %v1079 = vld [vmem:[#allocation2] sm:$0xf]
          %v1080 = vld [vmem:[%s548] sm:$0x3]
          %v1082 = vlaneseq
          %v1083 = vshrl.u32 %v1082, 7
          %v1084 = vsub.s32 0, %v1083
          %v1085 = vrot.slane %v1080, %v1084
          %v1086 = vlaneseq
          %v1087 = vshrl.u32 %v1086, 7
          %v1088 = vsub.s32 1, %v1087
          %v1089 = vrot.slane %v1080, %v1088
          %v1090 = vcombine.low %v1085, %v1089
          %v1092 = vunpack.c.l.s4 1983009808
          %v1093 = vunpack.c.0.s8 %v1092
          %v1094 = vlaneseq
          %v1095 = vshrl.u32 %v1094, 7
          %v1096 = vsub.s32 %v1093, %v1095
          %v1097 = vrot.slane %v1090, %v1096
          %v1099 = vadd.f32 %v1079, %v1097
          %v1100 = vld [vmem:[%s553] sm:$0x3]
          %v1101 = vunpack.c.l.bf16 %v1100
          %v1102 = vadd.f32 %v1099, %v1101
          %v1103 = vmax.f32 %v1102, 0.0
          %v1106 = vunpack.c.l.s4 1983009808
          %v1107 = vunpack.c.0.s8 %v1106
          %v1108 = vlaneseq
          %v1109 = vshrl.u32 %v1108, 7
          %v1110 = vsub.s32 %v1107, %v1109
          %v1111 = vrot.slane %v1103, %v1110
          %v1112 = vcombine.high %v1111, %v1111
          %v1115 = vpack.c.bf16 %v1111, %v1111
          %v1116 = vpack.c.bf16 %v1112, %v1112
          %v1119 = vcombine.low %v1115, %v1116
          %v1121 = vunpack.c.l.s4 1966171168
          %v1122 = vunpack.c.0.s8 %v1121
          %v1123 = vlaneseq
          %v1124 = vshrl.u32 %v1123, 7
          %v1125 = vsub.s32 %v1122, %v1124
          %v1126 = vrot.slane %v1119, %v1125
          %v1128 = vunpack.c.l.s4 1966171168
          %v1129 = vunpack.c.0.s8 %v1128
          %v1130 = vlaneseq
          %v1131 = vshrl.u32 %v1130, 7
          %v1132 = vsub.s32 %v1129, %v1131
          %v1133 = vrot.slane %v1126, %v1132
          %1135 = vst [vmem:[%s558] sm:$0x3] %v1133
        $region82: #{conv_feature_forward.10} parent=69 // pred_fallthru
          _
        %s1136 = smul.u32 2, %s19
        %p1137 = scmp.lt.s32.totalorder %s1136, 7
        %s1138 = scalar_select %p1137, %s1136, 7
        %s1139 = scalar_lea.vmem %s4, %s1138
        // Predicated region
        $region83: #{conv_feature_forward.10} parent=69 // pred_check
          %p1140 = pneg %p151
        $region84: #{conv_feature_forward.10} parent=69 // pred_check_branch
          %1142 = sbr.rel (%p1140) target = $region86
        $region85: #{conv_feature_forward.10} parent=69 // pred_region
          %s1143 = smul.u32 2, %s19
        $region86: #{conv_feature_forward.10} parent=69 // pred_fallthru
          _
      $region70: #{conv_feature_forward.10} parent=5 // pred_fallthru
        _
      %p1144 = scmp.le.s32.totalorder 2, %s10
      // Predicated region
      $region87: #{conv_feature_forward.10} parent=5 // pred_check
        %p1145 = pneg %p1144
      $region88: #{conv_feature_forward.10} parent=5 // pred_check_branch
        %1147 = sbr.rel (%p1145) target = $region90
      $region89: #{conv_feature_forward.10} parent=5 // pred_region
        %s1148 = ssub.s32 %s10, 2
        // Predicated region
        $region91: #{conv_feature_forward.10} parent=89 // pred_check
          %p1149 = pneg %p157
        $region92: #{conv_feature_forward.10} parent=89 // pred_check_branch
          %1151 = sbr.rel (%p1149) target = $region94
        $region93: #{conv_feature_forward.10} parent=89 // pred_region
          %s1152 = smul.u32 2, %s21
          %p1153 = scmp.lt.s32.totalorder %s1152, 7
          %s1154 = scalar_select %p1153, %s1152, 7
          %s1155 = scalar_lea.vmem %s4, %s1154
        $region94: #{conv_feature_forward.10} parent=89 // pred_fallthru
          _
      $region90: #{conv_feature_forward.10} parent=5 // pred_fallthru
        _
    $region6: #{conv_feature_forward.10} parent=1 // loop_footer
      %s14 = sadd.s32 1, %s10
    $region7: #{conv_feature_forward.10} parent=1 // loop_footer_branch
      %9 = sbr.rel target = $region3
    $region8: #{conv_feature_forward.10} parent=1 // loop_exit
      _

// kernel: conv_feature_forward.11
$region0: #{conv_feature_forward.11}
  #allocation0 [shape = 'u32[]', space=smem, size = 0x4, offset = 0x4, fixed_abs, tag = 'smem constant byte address 0x4 - core index']
  #allocation1 [shape = 'u32[144,128]{1,0:T(1,128)}', space=vmem, size = 0x12000, scoped, tag = 'internal scratch']
  #allocation2 [shape = 'f32[2,256]{1,0:T(2,128)}', space=vmem, size = 0x800, scoped, tag = 'scratch operand']
  %s0 = inlined_call_operand.vmem [shape: bf16[2,1024], index: 0, kind: input, shape index: {}, may-alias: {0,3}]
  %s1 = inlined_call_operand.vmem [shape: bf16[1024,1024], index: 1, kind: input, shape index: {}]
  %s2 = inlined_call_operand.vmem [shape: f32[1,1024], index: 2, kind: input, shape index: {}]
  %s3 = inlined_call_operand.vmem [shape: bf16[2,1024], index: 3, kind: input, shape index: {}, may-alias: {0,3}]
  %s4 = inlined_call_operand.hbm [shape: f32[2,1024], index: 4, kind: output, shape index: {}]
  %s5 = sld [smem:[#allocation0]]
  $region95: #{conv_feature_forward.11} parent=0
    _
  %s7 = ssub.s32 1, %s5
  %s8 = scalar_select 0, %s7, %s5
  $region1: #{conv_feature_forward.11} parent=0
    #allocation3 [shape = 'u8[524288]{0}', space=vmem, size = 0x80000, scoped, tag = 'input window, operand 1']
    #allocation4 [shape = 'u8[4096]{0}', space=vmem, size = 0x1000, scoped, tag = 'output window, operand 0']
    #allocation5 [shape = 's32[2]{0}', space=sflag, size = 0x8, scoped, tag = 'scoped memory for conv_feature_forward.11']
    %9 = vsyncpa [#allocation5], 0
    %s10 = scalar_lea.sflag [#allocation5], 1
    %11 = vsyncpa %s10, 0
    loop: start=0, step=1, limit=10
    $region2: #{conv_feature_forward.11} parent=1 // loop_pre_header
      _
    $region3: #{conv_feature_forward.11} parent=1 // loop_header
      %s13 = sphi 0, %s17
      %p14 = scmp.ge.s32.totalorder %s13, 10
      %s20 = sphi 0, %s32
      %s21 = sphi 0, %s28
      %s22 = sphi 0, %s20
      %s23 = sphi 0, %s21
      %s24 = sphi 0, %s22
      %s25 = sphi 0, %s23
      %s35 = sphi 0, %s37
      %s38 = sphi 0, %s35
      %s39 = sphi 0, %s38
      %s55 = sphi 0, %s39
      %s63 = sphi 0, %s65
      %s66 = sphi 0, %s63
      %s67 = sphi 0, %s66
      %s83 = sphi 0, %s67
      %s89 = sphi 0, %s91
      %s92 = sphi 0, %s89
      %s93 = sphi 0, %s92
      %s109 = sphi 0, %s93
      %s115 = sphi 0, %s117
      %s118 = sphi 0, %s115
      %s119 = sphi 0, %s118
      %s135 = sphi 0, %s119
      %s141 = sphi 0, %s143
      %s144 = sphi 0, %s141
      %s145 = sphi 0, %s144
      %s161 = sphi 0, %s145
    $region4: #{conv_feature_forward.11} parent=1 // loop_header_branch
      %16 = sbr.rel (%p14) target = $region8
    $region5: #{conv_feature_forward.11} parent=1 // loop_body
      %s18 = ssub.s32 %s13, 1
      %s19 = ssub.s32 %s13, 2
      %s26 = sadd.s32 1, %s21
      %p27 = scmp.ge.s32.totalorder %s26, 2
      %s28 = scalar_select %p27, 0, %s26
      %s29 = sadd.s32 1, %s20
      %s30 = scalar_select %p27, %s29, %s20
      %p31 = scmp.ge.s32.totalorder %s30, 4
      %s32 = scalar_select %p31, 0, %s30
      %s33 = ssub.s32 %s21, %s28
      %p34 = scmp.eq.s32.totalorder %s33, 0
      %s36 = sadd.s32 %s35, 1
      %s37 = scalar_select %p34, %s35, %s36
      %p40 = pneg %p34
      %p41 = scmp.eq.s32.totalorder %s13, 7
      %p42 = por %p40, %p41
      %p43 = scmp.ne.s32.totalorder %s35, %s38
      %p44 = scmp.eq.s32.totalorder %s13, 0
      %p45 = por %p43, %p44
      %p46 = scmp.ne.s32.totalorder %s35, %s38
      %p47 = scmp.eq.s32.totalorder %s18, 7
      %p48 = por %p46, %p47
      %p49 = scmp.ne.s32.totalorder %s38, %s39
      %p50 = scmp.eq.s32.totalorder %s18, 0
      %p51 = por %p49, %p50
      %p52 = scmp.ne.s32.totalorder %s38, %s39
      %p53 = scmp.eq.s32.totalorder %s19, 7
      %p54 = por %p52, %p53
      %p56 = scmp.ne.s32.totalorder %s39, %s55
      %p57 = scmp.eq.s32.totalorder %s19, 0
      %p58 = por %p56, %p57
      %s59 = ssub.s32 %s21, %s28
      %s60 = ssub.s32 %s20, %s32
      %s61 = sor.u32 %s59, %s60
      %p62 = scmp.eq.s32.totalorder %s61, 0
      %s64 = sadd.s32 %s63, 1
      %s65 = scalar_select %p62, %s63, %s64
      %p68 = pneg %p62
      %p69 = scmp.eq.s32.totalorder %s13, 7
      %p70 = por %p68, %p69
      %p71 = scmp.ne.s32.totalorder %s63, %s66
      %p72 = scmp.eq.s32.totalorder %s13, 0
      %p73 = por %p71, %p72
      %p74 = scmp.ne.s32.totalorder %s63, %s66
      %p75 = scmp.eq.s32.totalorder %s18, 7
      %p76 = por %p74, %p75
      %p77 = scmp.ne.s32.totalorder %s66, %s67
      %p78 = scmp.eq.s32.totalorder %s18, 0
      %p79 = por %p77, %p78
      %p80 = scmp.ne.s32.totalorder %s66, %s67
      %p81 = scmp.eq.s32.totalorder %s19, 7
      %p82 = por %p80, %p81
      %p84 = scmp.ne.s32.totalorder %s67, %s83
      %p85 = scmp.eq.s32.totalorder %s19, 0
      %p86 = por %p84, %p85
      %s87 = ssub.s32 %s20, %s32
      %p88 = scmp.eq.s32.totalorder %s87, 0
      %s90 = sadd.s32 %s89, 1
      %s91 = scalar_select %p88, %s89, %s90
      %p94 = pneg %p88
      %p95 = scmp.eq.s32.totalorder %s13, 7
      %p96 = por %p94, %p95
      %p97 = scmp.ne.s32.totalorder %s89, %s92
      %p98 = scmp.eq.s32.totalorder %s13, 0
      %p99 = por %p97, %p98
      %p100 = scmp.ne.s32.totalorder %s89, %s92
      %p101 = scmp.eq.s32.totalorder %s18, 7
      %p102 = por %p100, %p101
      %p103 = scmp.ne.s32.totalorder %s92, %s93
      %p104 = scmp.eq.s32.totalorder %s18, 0
      %p105 = por %p103, %p104
      %p106 = scmp.ne.s32.totalorder %s92, %s93
      %p107 = scmp.eq.s32.totalorder %s19, 7
      %p108 = por %p106, %p107
      %p110 = scmp.ne.s32.totalorder %s93, %s109
      %p111 = scmp.eq.s32.totalorder %s19, 0
      %p112 = por %p110, %p111
      %s113 = ssub.s32 %s20, %s32
      %p114 = scmp.eq.s32.totalorder %s113, 0
      %s116 = sadd.s32 %s115, 1
      %s117 = scalar_select %p114, %s115, %s116
      %p120 = pneg %p114
      %p121 = scmp.eq.s32.totalorder %s13, 7
      %p122 = por %p120, %p121
      %p123 = scmp.ne.s32.totalorder %s115, %s118
      %p124 = scmp.eq.s32.totalorder %s13, 0
      %p125 = por %p123, %p124
      %p126 = scmp.ne.s32.totalorder %s115, %s118
      %p127 = scmp.eq.s32.totalorder %s18, 7
      %p128 = por %p126, %p127
      %p129 = scmp.ne.s32.totalorder %s118, %s119
      %p130 = scmp.eq.s32.totalorder %s18, 0
      %p131 = por %p129, %p130
      %p132 = scmp.ne.s32.totalorder %s118, %s119
      %p133 = scmp.eq.s32.totalorder %s19, 7
      %p134 = por %p132, %p133
      %p136 = scmp.ne.s32.totalorder %s119, %s135
      %p137 = scmp.eq.s32.totalorder %s19, 0
      %p138 = por %p136, %p137
      %s139 = ssub.s32 %s20, %s32
      %p140 = scmp.eq.s32.totalorder %s139, 0
      %s142 = sadd.s32 %s141, 1
      %s143 = scalar_select %p140, %s141, %s142
      %p146 = pneg %p140
      %p147 = scmp.eq.s32.totalorder %s13, 7
      %p148 = por %p146, %p147
      %p149 = scmp.ne.s32.totalorder %s141, %s144
      %p150 = scmp.eq.s32.totalorder %s13, 0
      %p151 = por %p149, %p150
      %p152 = scmp.ne.s32.totalorder %s141, %s144
      %p153 = scmp.eq.s32.totalorder %s18, 7
      %p154 = por %p152, %p153
      %p155 = scmp.ne.s32.totalorder %s144, %s145
      %p156 = scmp.eq.s32.totalorder %s18, 0
      %p157 = por %p155, %p156
      %p158 = scmp.ne.s32.totalorder %s144, %s145
      %p159 = scmp.eq.s32.totalorder %s19, 7
      %p160 = por %p158, %p159
      %p162 = scmp.ne.s32.totalorder %s145, %s161
      %p163 = scmp.eq.s32.totalorder %s19, 0
      %p164 = por %p162, %p163
      %p165 = scmp.le.s32.totalorder 1, %s13
      %p166 = scmp.lt.s32.totalorder %s13, 9
      %p167 = pnand %p165, %p166
      %p168 = pneg %p167
      // Predicated region
      $region9: #{conv_feature_forward.11} parent=5 // pred_check
        _
      $region10: #{conv_feature_forward.11} parent=5 // pred_check_branch
        %170 = sbr.rel (%p167) target = $region12
      $region11: #{conv_feature_forward.11} parent=5 // pred_region
        %s171 = ssub.s32 %s13, 1
      $region12: #{conv_feature_forward.11} parent=5 // pred_fallthru
        _
      %p172 = scmp.lt.s32.totalorder %s13, 8
      // Predicated region
      $region13: #{conv_feature_forward.11} parent=5 // pred_check
        %p173 = pneg %p172
      $region14: #{conv_feature_forward.11} parent=5 // pred_check_branch
        %175 = sbr.rel (%p173) target = $region16
      $region15: #{conv_feature_forward.11} parent=5 // pred_region
        // Predicated region
        $region17: #{conv_feature_forward.11} parent=15 // pred_check
          %p176 = pneg %p45
        $region18: #{conv_feature_forward.11} parent=15 // pred_check_branch
          %178 = sbr.rel (%p176) target = $region20
        $region19: #{conv_feature_forward.11} parent=15 // pred_region
          %s179 = smul.u32 4, %s21
          %p180 = scmp.lt.s32.totalorder %s179, 7
          %s181 = scalar_select %p180, %s179, 7
          %s182 = scalar_lea.vmem %s0, %s181
          %s183 = smul.u32 4, %s21
        $region20: #{conv_feature_forward.11} parent=15 // pred_fallthru
          _
        // Predicated region
        $region21: #{conv_feature_forward.11} parent=15 // pred_check
          %p184 = pneg %p73
        $region22: #{conv_feature_forward.11} parent=15 // pred_check_branch
          %186 = sbr.rel (%p184) target = $region24
        $region23: #{conv_feature_forward.11} parent=15 // pred_region
          %s187 = sand.u32 %s63, 1
          %s188 = sand.u32 %s63, 1
          %s189 = smul.addr %s188, 512
          %s190 = scalar_lea.vmem [#allocation3], %s189
          %s191 = smul.u32 64, %s21
          %s192 = smul.u32 2, %s20
          %s193 = smul.addr %s191, 8
          %s194 = sadd.s32 %s192, %s193
          %s195 = smul.addr %s194, 4
          %s196 = scalar_lea.vmem %s1, %s195
          // Predicated region
          $region25: #{conv_feature_forward.11} parent=23 // pred_check
            _
          $region26: #{conv_feature_forward.11} parent=23 // pred_check_branch
            %198 = sbr.rel (0) target = $region28
          $region27: #{conv_feature_forward.11} parent=23 // pred_region
            // Predicated region
            $region29: #{conv_feature_forward.11} parent=27 // pred_check
              _
            $region30: #{conv_feature_forward.11} parent=27 // pred_check_branch
              %200 = sbr.rel (0) target = $region32
            $region31: #{conv_feature_forward.11} parent=27 // pred_region
              // Predicated region
              $region44: #{conv_feature_forward.11} parent=31 // pred_check
                _
              $region45: #{conv_feature_forward.11} parent=31 // pred_check_branch
                %341 = sbr.rel (0) target = $region47
              $region46: #{conv_feature_forward.11} parent=31 // pred_region
                loop: start=0, step=1, limit=1
                $region48: #{conv_feature_forward.11} parent=46 // loop_pre_header
                  _
                $region49: #{conv_feature_forward.11} parent=46 // loop_header
                  %s343 = sphi 0, %s347
                  %p344 = scmp.ge.s32.totalorder %s343, 1
                  %s348 = sphi %s196, %s196
                  %s349 = sphi %s190, %s190
                $region50: #{conv_feature_forward.11} parent=46 // loop_header_branch
                  %346 = sbr.rel (%p344) target = $region54
                $region51: #{conv_feature_forward.11} parent=46 // loop_body
                  %v350 = vld [vmem:[%s348] sm:$0xff]
                  %351 = vst [vmem:[%s349] sm:$0xff] %v350
                  %v352 = vld [vmem:[%s348 + $0x20] sm:$0xff]
                  %353 = vst [vmem:[%s349 + $0x8] sm:$0xff] %v352
                  %v354 = vld [vmem:[%s348 + $0x40] sm:$0xff]
                  %355 = vst [vmem:[%s349 + $0x10] sm:$0xff] %v354
                  %v356 = vld [vmem:[%s348 + $0x60] sm:$0xff]
                  %357 = vst [vmem:[%s349 + $0x18] sm:$0xff] %v356
                  %v358 = vld [vmem:[%s348 + $0x80] sm:$0xff]
                  %359 = vst [vmem:[%s349 + $0x20] sm:$0xff] %v358
                  %v360 = vld [vmem:[%s348 + $0xa0] sm:$0xff]
                  %361 = vst [vmem:[%s349 + $0x28] sm:$0xff] %v360
                  %v362 = vld [vmem:[%s348 + $0xc0] sm:$0xff]
                  %363 = vst [vmem:[%s349 + $0x30] sm:$0xff] %v362
                  %v364 = vld [vmem:[%s348 + $0xe0] sm:$0xff]
                  %365 = vst [vmem:[%s349 + $0x38] sm:$0xff] %v364
                  %v366 = vld [vmem:[%s348 + $0x100] sm:$0xff]
                  %367 = vst [vmem:[%s349 + $0x40] sm:$0xff] %v366
                  %v368 = vld [vmem:[%s348 + $0x120] sm:$0xff]
                  %369 = vst [vmem:[%s349 + $0x48] sm:$0xff] %v368
                  %v370 = vld [vmem:[%s348 + $0x140] sm:$0xff]
                  %371 = vst [vmem:[%s349 + $0x50] sm:$0xff] %v370
                  %v372 = vld [vmem:[%s348 + $0x160] sm:$0xff]
                  %373 = vst [vmem:[%s349 + $0x58] sm:$0xff] %v372
                  %v374 = vld [vmem:[%s348 + $0x180] sm:$0xff]
                  %375 = vst [vmem:[%s349 + $0x60] sm:$0xff] %v374
                  %v376 = vld [vmem:[%s348 + $0x1a0] sm:$0xff]
                  %377 = vst [vmem:[%s349 + $0x68] sm:$0xff] %v376
                  %v378 = vld [vmem:[%s348 + $0x1c0] sm:$0xff]
                  %379 = vst [vmem:[%s349 + $0x70] sm:$0xff] %v378
                  %v380 = vld [vmem:[%s348 + $0x1e0] sm:$0xff]
                  %381 = vst [vmem:[%s349 + $0x78] sm:$0xff] %v380
                  %v382 = vld [vmem:[%s348 + $0x200] sm:$0xff]
                  %383 = vst [vmem:[%s349 + $0x80] sm:$0xff] %v382
                  %v384 = vld [vmem:[%s348 + $0x220] sm:$0xff]
                  %385 = vst [vmem:[%s349 + $0x88] sm:$0xff] %v384
                  %v386 = vld [vmem:[%s348 + $0x240] sm:$0xff]
                  %387 = vst [vmem:[%s349 + $0x90] sm:$0xff] %v386
                  %v388 = vld [vmem:[%s348 + $0x260] sm:$0xff]
                  %389 = vst [vmem:[%s349 + $0x98] sm:$0xff] %v388
                  %v390 = vld [vmem:[%s348 + $0x280] sm:$0xff]
                  %391 = vst [vmem:[%s349 + $0xa0] sm:$0xff] %v390
                  %v392 = vld [vmem:[%s348 + $0x2a0] sm:$0xff]
                  %393 = vst [vmem:[%s349 + $0xa8] sm:$0xff] %v392
                  %v394 = vld [vmem:[%s348 + $0x2c0] sm:$0xff]
                  %395 = vst [vmem:[%s349 + $0xb0] sm:$0xff] %v394
                  %v396 = vld [vmem:[%s348 + $0x2e0] sm:$0xff]
                  %397 = vst [vmem:[%s349 + $0xb8] sm:$0xff] %v396
                  %v398 = vld [vmem:[%s348 + $0x300] sm:$0xff]
                  %399 = vst [vmem:[%s349 + $0xc0] sm:$0xff] %v398
                  %v400 = vld [vmem:[%s348 + $0x320] sm:$0xff]
                  %401 = vst [vmem:[%s349 + $0xc8] sm:$0xff] %v400
                  %v402 = vld [vmem:[%s348 + $0x340] sm:$0xff]
                  %403 = vst [vmem:[%s349 + $0xd0] sm:$0xff] %v402
                  %v404 = vld [vmem:[%s348 + $0x360] sm:$0xff]
                  %405 = vst [vmem:[%s349 + $0xd8] sm:$0xff] %v404
                  %v406 = vld [vmem:[%s348 + $0x380] sm:$0xff]
                  %407 = vst [vmem:[%s349 + $0xe0] sm:$0xff] %v406
                  %v408 = vld [vmem:[%s348 + $0x3a0] sm:$0xff]
                  %409 = vst [vmem:[%s349 + $0xe8] sm:$0xff] %v408
                  %v410 = vld [vmem:[%s348 + $0x3c0] sm:$0xff]
                  %411 = vst [vmem:[%s349 + $0xf0] sm:$0xff] %v410
                  %v412 = vld [vmem:[%s348 + $0x3e0] sm:$0xff]
                  %413 = vst [vmem:[%s349 + $0xf8] sm:$0xff] %v412
                  %v414 = vld [vmem:[%s348 + $0x400] sm:$0xff]
                  %415 = vst [vmem:[%s349 + $0x100] sm:$0xff] %v414
                  %v416 = vld [vmem:[%s348 + $0x420] sm:$0xff]
                  %417 = vst [vmem:[%s349 + $0x108] sm:$0xff] %v416
                  %v418 = vld [vmem:[%s348 + $0x440] sm:$0xff]
                  %419 = vst [vmem:[%s349 + $0x110] sm:$0xff] %v418
                  %v420 = vld [vmem:[%s348 + $0x460] sm:$0xff]
                  %421 = vst [vmem:[%s349 + $0x118] sm:$0xff] %v420
                  %v422 = vld [vmem:[%s348 + $0x480] sm:$0xff]
                  %423 = vst [vmem:[%s349 + $0x120] sm:$0xff] %v422
                  %v424 = vld [vmem:[%s348 + $0x4a0] sm:$0xff]
                  %425 = vst [vmem:[%s349 + $0x128] sm:$0xff] %v424
                  %v426 = vld [vmem:[%s348 + $0x4c0] sm:$0xff]
                  %427 = vst [vmem:[%s349 + $0x130] sm:$0xff] %v426
                  %v428 = vld [vmem:[%s348 + $0x4e0] sm:$0xff]
                  %429 = vst [vmem:[%s349 + $0x138] sm:$0xff] %v428
                  %v430 = vld [vmem:[%s348 + $0x500] sm:$0xff]
                  %431 = vst [vmem:[%s349 + $0x140] sm:$0xff] %v430
                  %v432 = vld [vmem:[%s348 + $0x520] sm:$0xff]
                  %433 = vst [vmem:[%s349 + $0x148] sm:$0xff] %v432
                  %v434 = vld [vmem:[%s348 + $0x540] sm:$0xff]
                  %435 = vst [vmem:[%s349 + $0x150] sm:$0xff] %v434
                  %v436 = vld [vmem:[%s348 + $0x560] sm:$0xff]
                  %437 = vst [vmem:[%s349 + $0x158] sm:$0xff] %v436
                  %v438 = vld [vmem:[%s348 + $0x580] sm:$0xff]
                  %439 = vst [vmem:[%s349 + $0x160] sm:$0xff] %v438
                  %v440 = vld [vmem:[%s348 + $0x5a0] sm:$0xff]
                  %441 = vst [vmem:[%s349 + $0x168] sm:$0xff] %v440
                  %v442 = vld [vmem:[%s348 + $0x5c0] sm:$0xff]
                  %443 = vst [vmem:[%s349 + $0x170] sm:$0xff] %v442
                  %v444 = vld [vmem:[%s348 + $0x5e0] sm:$0xff]
                  %445 = vst [vmem:[%s349 + $0x178] sm:$0xff] %v444
                  %v446 = vld [vmem:[%s348 + $0x600] sm:$0xff]
                  %447 = vst [vmem:[%s349 + $0x180] sm:$0xff] %v446
                  %v448 = vld [vmem:[%s348 + $0x620] sm:$0xff]
                  %449 = vst [vmem:[%s349 + $0x188] sm:$0xff] %v448
                  %v450 = vld [vmem:[%s348 + $0x640] sm:$0xff]
                  %451 = vst [vmem:[%s349 + $0x190] sm:$0xff] %v450
                  %v452 = vld [vmem:[%s348 + $0x660] sm:$0xff]
                  %453 = vst [vmem:[%s349 + $0x198] sm:$0xff] %v452
                  %v454 = vld [vmem:[%s348 + $0x680] sm:$0xff]
                  %455 = vst [vmem:[%s349 + $0x1a0] sm:$0xff] %v454
                  %v456 = vld [vmem:[%s348 + $0x6a0] sm:$0xff]
                  %457 = vst [vmem:[%s349 + $0x1a8] sm:$0xff] %v456
                  %v458 = vld [vmem:[%s348 + $0x6c0] sm:$0xff]
                  %459 = vst [vmem:[%s349 + $0x1b0] sm:$0xff] %v458
                  %v460 = vld [vmem:[%s348 + $0x6e0] sm:$0xff]
                  %461 = vst [vmem:[%s349 + $0x1b8] sm:$0xff] %v460
                  %v462 = vld [vmem:[%s348 + $0x700] sm:$0xff]
                  %463 = vst [vmem:[%s349 + $0x1c0] sm:$0xff] %v462
                  %v464 = vld [vmem:[%s348 + $0x720] sm:$0xff]
                  %465 = vst [vmem:[%s349 + $0x1c8] sm:$0xff] %v464
                  %v466 = vld [vmem:[%s348 + $0x740] sm:$0xff]
                  %467 = vst [vmem:[%s349 + $0x1d0] sm:$0xff] %v466
                  %v468 = vld [vmem:[%s348 + $0x760] sm:$0xff]
                  %469 = vst [vmem:[%s349 + $0x1d8] sm:$0xff] %v468
                  %v470 = vld [vmem:[%s348 + $0x780] sm:$0xff]
                  %471 = vst [vmem:[%s349 + $0x1e0] sm:$0xff] %v470
                  %v472 = vld [vmem:[%s348 + $0x7a0] sm:$0xff]
                  %473 = vst [vmem:[%s349 + $0x1e8] sm:$0xff] %v472
                  %v474 = vld [vmem:[%s348 + $0x7c0] sm:$0xff]
                  %475 = vst [vmem:[%s349 + $0x1f0] sm:$0xff] %v474
                  %v476 = vld [vmem:[%s348 + $0x7e0] sm:$0xff]
                  %477 = vst [vmem:[%s349 + $0x1f8] sm:$0xff] %v476
                $region52: #{conv_feature_forward.11} parent=46 // loop_footer
                  %s347 = sadd.s32 1, %s343
                $region53: #{conv_feature_forward.11} parent=46 // loop_footer_branch
                  %342 = sbr.rel target = $region49
                $region54: #{conv_feature_forward.11} parent=46 // loop_exit
                  _
              $region47: #{conv_feature_forward.11} parent=31 // pred_fallthru
                _
              // Predicated region
              $region55: #{conv_feature_forward.11} parent=31 // pred_check
                _
              $region56: #{conv_feature_forward.11} parent=31 // pred_check_branch
                %479 = sbr.rel target = $region58
              $region57: #{conv_feature_forward.11} parent=31 // pred_region
                _
              $region58: #{conv_feature_forward.11} parent=31 // pred_fallthru
                _
            $region32: #{conv_feature_forward.11} parent=27 // pred_fallthru
              _
            // Predicated region
            $region33: #{conv_feature_forward.11} parent=27 // pred_check
              _
            $region34: #{conv_feature_forward.11} parent=27 // pred_check_branch
              %202 = sbr.rel target = $region36
            $region35: #{conv_feature_forward.11} parent=27 // pred_region
              loop: start=0, step=1, limit=1
              $region37: #{conv_feature_forward.11} parent=35 // loop_pre_header
                _
              $region38: #{conv_feature_forward.11} parent=35 // loop_header
                %s205 = sphi 0, %s209
                %p206 = scmp.ge.s32.totalorder %s205, 1
                %s210 = sphi %s196, %s196
                %s211 = sphi %s190, %s190
              $region39: #{conv_feature_forward.11} parent=35 // loop_header_branch
                %208 = sbr.rel (%p206) target = $region43
              $region40: #{conv_feature_forward.11} parent=35 // loop_body
                %v212 = vld [vmem:[%s210] sm:$0xff]
                %213 = vst [vmem:[%s211] sm:$0xff] %v212
                %v214 = vld [vmem:[%s210 + $0x20] sm:$0xff]
                %215 = vst [vmem:[%s211 + $0x8] sm:$0xff] %v214
                %v216 = vld [vmem:[%s210 + $0x40] sm:$0xff]
                %217 = vst [vmem:[%s211 + $0x10] sm:$0xff] %v216
                %v218 = vld [vmem:[%s210 + $0x60] sm:$0xff]
                %219 = vst [vmem:[%s211 + $0x18] sm:$0xff] %v218
                %v220 = vld [vmem:[%s210 + $0x80] sm:$0xff]
                %221 = vst [vmem:[%s211 + $0x20] sm:$0xff] %v220
                %v222 = vld [vmem:[%s210 + $0xa0] sm:$0xff]
                %223 = vst [vmem:[%s211 + $0x28] sm:$0xff] %v222
                %v224 = vld [vmem:[%s210 + $0xc0] sm:$0xff]
                %225 = vst [vmem:[%s211 + $0x30] sm:$0xff] %v224
                %v226 = vld [vmem:[%s210 + $0xe0] sm:$0xff]
                %227 = vst [vmem:[%s211 + $0x38] sm:$0xff] %v226
                %v228 = vld [vmem:[%s210 + $0x100] sm:$0xff]
                %229 = vst [vmem:[%s211 + $0x40] sm:$0xff] %v228
                %v230 = vld [vmem:[%s210 + $0x120] sm:$0xff]
                %231 = vst [vmem:[%s211 + $0x48] sm:$0xff] %v230
                %v232 = vld [vmem:[%s210 + $0x140] sm:$0xff]
                %233 = vst [vmem:[%s211 + $0x50] sm:$0xff] %v232
                %v234 = vld [vmem:[%s210 + $0x160] sm:$0xff]
                %235 = vst [vmem:[%s211 + $0x58] sm:$0xff] %v234
                %v236 = vld [vmem:[%s210 + $0x180] sm:$0xff]
                %237 = vst [vmem:[%s211 + $0x60] sm:$0xff] %v236
                %v238 = vld [vmem:[%s210 + $0x1a0] sm:$0xff]
                %239 = vst [vmem:[%s211 + $0x68] sm:$0xff] %v238
                %v240 = vld [vmem:[%s210 + $0x1c0] sm:$0xff]
                %241 = vst [vmem:[%s211 + $0x70] sm:$0xff] %v240
                %v242 = vld [vmem:[%s210 + $0x1e0] sm:$0xff]
                %243 = vst [vmem:[%s211 + $0x78] sm:$0xff] %v242
                %v244 = vld [vmem:[%s210 + $0x200] sm:$0xff]
                %245 = vst [vmem:[%s211 + $0x80] sm:$0xff] %v244
                %v246 = vld [vmem:[%s210 + $0x220] sm:$0xff]
                %247 = vst [vmem:[%s211 + $0x88] sm:$0xff] %v246
                %v248 = vld [vmem:[%s210 + $0x240] sm:$0xff]
                %249 = vst [vmem:[%s211 + $0x90] sm:$0xff] %v248
                %v250 = vld [vmem:[%s210 + $0x260] sm:$0xff]
                %251 = vst [vmem:[%s211 + $0x98] sm:$0xff] %v250
                %v252 = vld [vmem:[%s210 + $0x280] sm:$0xff]
                %253 = vst [vmem:[%s211 + $0xa0] sm:$0xff] %v252
                %v254 = vld [vmem:[%s210 + $0x2a0] sm:$0xff]
                %255 = vst [vmem:[%s211 + $0xa8] sm:$0xff] %v254
                %v256 = vld [vmem:[%s210 + $0x2c0] sm:$0xff]
                %257 = vst [vmem:[%s211 + $0xb0] sm:$0xff] %v256
                %v258 = vld [vmem:[%s210 + $0x2e0] sm:$0xff]
                %259 = vst [vmem:[%s211 + $0xb8] sm:$0xff] %v258
                %v260 = vld [vmem:[%s210 + $0x300] sm:$0xff]
                %261 = vst [vmem:[%s211 + $0xc0] sm:$0xff] %v260
                %v262 = vld [vmem:[%s210 + $0x320] sm:$0xff]
                %263 = vst [vmem:[%s211 + $0xc8] sm:$0xff] %v262
                %v264 = vld [vmem:[%s210 + $0x340] sm:$0xff]
                %265 = vst [vmem:[%s211 + $0xd0] sm:$0xff] %v264
                %v266 = vld [vmem:[%s210 + $0x360] sm:$0xff]
                %267 = vst [vmem:[%s211 + $0xd8] sm:$0xff] %v266
                %v268 = vld [vmem:[%s210 + $0x380] sm:$0xff]
                %269 = vst [vmem:[%s211 + $0xe0] sm:$0xff] %v268
                %v270 = vld [vmem:[%s210 + $0x3a0] sm:$0xff]
                %271 = vst [vmem:[%s211 + $0xe8] sm:$0xff] %v270
                %v272 = vld [vmem:[%s210 + $0x3c0] sm:$0xff]
                %273 = vst [vmem:[%s211 + $0xf0] sm:$0xff] %v272
                %v274 = vld [vmem:[%s210 + $0x3e0] sm:$0xff]
                %275 = vst [vmem:[%s211 + $0xf8] sm:$0xff] %v274
                %v276 = vld [vmem:[%s210 + $0x400] sm:$0xff]
                %277 = vst [vmem:[%s211 + $0x100] sm:$0xff] %v276
                %v278 = vld [vmem:[%s210 + $0x420] sm:$0xff]
                %279 = vst [vmem:[%s211 + $0x108] sm:$0xff] %v278
                %v280 = vld [vmem:[%s210 + $0x440] sm:$0xff]
                %281 = vst [vmem:[%s211 + $0x110] sm:$0xff] %v280
                %v282 = vld [vmem:[%s210 + $0x460] sm:$0xff]
                %283 = vst [vmem:[%s211 + $0x118] sm:$0xff] %v282
                %v284 = vld [vmem:[%s210 + $0x480] sm:$0xff]
                %285 = vst [vmem:[%s211 + $0x120] sm:$0xff] %v284
                %v286 = vld [vmem:[%s210 + $0x4a0] sm:$0xff]
                %287 = vst [vmem:[%s211 + $0x128] sm:$0xff] %v286
                %v288 = vld [vmem:[%s210 + $0x4c0] sm:$0xff]
                %289 = vst [vmem:[%s211 + $0x130] sm:$0xff] %v288
                %v290 = vld [vmem:[%s210 + $0x4e0] sm:$0xff]
                %291 = vst [vmem:[%s211 + $0x138] sm:$0xff] %v290
                %v292 = vld [vmem:[%s210 + $0x500] sm:$0xff]
                %293 = vst [vmem:[%s211 + $0x140] sm:$0xff] %v292
                %v294 = vld [vmem:[%s210 + $0x520] sm:$0xff]
                %295 = vst [vmem:[%s211 + $0x148] sm:$0xff] %v294
                %v296 = vld [vmem:[%s210 + $0x540] sm:$0xff]
                %297 = vst [vmem:[%s211 + $0x150] sm:$0xff] %v296
                %v298 = vld [vmem:[%s210 + $0x560] sm:$0xff]
                %299 = vst [vmem:[%s211 + $0x158] sm:$0xff] %v298
                %v300 = vld [vmem:[%s210 + $0x580] sm:$0xff]
                %301 = vst [vmem:[%s211 + $0x160] sm:$0xff] %v300
                %v302 = vld [vmem:[%s210 + $0x5a0] sm:$0xff]
                %303 = vst [vmem:[%s211 + $0x168] sm:$0xff] %v302
                %v304 = vld [vmem:[%s210 + $0x5c0] sm:$0xff]
                %305 = vst [vmem:[%s211 + $0x170] sm:$0xff] %v304
                %v306 = vld [vmem:[%s210 + $0x5e0] sm:$0xff]
                %307 = vst [vmem:[%s211 + $0x178] sm:$0xff] %v306
                %v308 = vld [vmem:[%s210 + $0x600] sm:$0xff]
                %309 = vst [vmem:[%s211 + $0x180] sm:$0xff] %v308
                %v310 = vld [vmem:[%s210 + $0x620] sm:$0xff]
                %311 = vst [vmem:[%s211 + $0x188] sm:$0xff] %v310
                %v312 = vld [vmem:[%s210 + $0x640] sm:$0xff]
                %313 = vst [vmem:[%s211 + $0x190] sm:$0xff] %v312
                %v314 = vld [vmem:[%s210 + $0x660] sm:$0xff]
                %315 = vst [vmem:[%s211 + $0x198] sm:$0xff] %v314
                %v316 = vld [vmem:[%s210 + $0x680] sm:$0xff]
                %317 = vst [vmem:[%s211 + $0x1a0] sm:$0xff] %v316
                %v318 = vld [vmem:[%s210 + $0x6a0] sm:$0xff]
                %319 = vst [vmem:[%s211 + $0x1a8] sm:$0xff] %v318
                %v320 = vld [vmem:[%s210 + $0x6c0] sm:$0xff]
                %321 = vst [vmem:[%s211 + $0x1b0] sm:$0xff] %v320
                %v322 = vld [vmem:[%s210 + $0x6e0] sm:$0xff]
                %323 = vst [vmem:[%s211 + $0x1b8] sm:$0xff] %v322
                %v324 = vld [vmem:[%s210 + $0x700] sm:$0xff]
                %325 = vst [vmem:[%s211 + $0x1c0] sm:$0xff] %v324
                %v326 = vld [vmem:[%s210 + $0x720] sm:$0xff]
                %327 = vst [vmem:[%s211 + $0x1c8] sm:$0xff] %v326
                %v328 = vld [vmem:[%s210 + $0x740] sm:$0xff]
                %329 = vst [vmem:[%s211 + $0x1d0] sm:$0xff] %v328
                %v330 = vld [vmem:[%s210 + $0x760] sm:$0xff]
                %331 = vst [vmem:[%s211 + $0x1d8] sm:$0xff] %v330
                %v332 = vld [vmem:[%s210 + $0x780] sm:$0xff]
                %333 = vst [vmem:[%s211 + $0x1e0] sm:$0xff] %v332
                %v334 = vld [vmem:[%s210 + $0x7a0] sm:$0xff]
                %335 = vst [vmem:[%s211 + $0x1e8] sm:$0xff] %v334
                %v336 = vld [vmem:[%s210 + $0x7c0] sm:$0xff]
                %337 = vst [vmem:[%s211 + $0x1f0] sm:$0xff] %v336
                %v338 = vld [vmem:[%s210 + $0x7e0] sm:$0xff]
                %339 = vst [vmem:[%s211 + $0x1f8] sm:$0xff] %v338
              $region41: #{conv_feature_forward.11} parent=35 // loop_footer
                %s209 = sadd.s32 1, %s205
              $region42: #{conv_feature_forward.11} parent=35 // loop_footer_branch
                %204 = sbr.rel target = $region38
              $region43: #{conv_feature_forward.11} parent=35 // loop_exit
                _
            $region36: #{conv_feature_forward.11} parent=27 // pred_fallthru
              _
          $region28: #{conv_feature_forward.11} parent=23 // pred_fallthru
            _
          %480 = vnop
        $region24: #{conv_feature_forward.11} parent=15 // pred_fallthru
          _
        // Predicated region
        $region59: #{conv_feature_forward.11} parent=15 // pred_check
          %p481 = pneg %p99
        $region60: #{conv_feature_forward.11} parent=15 // pred_check_branch
          %483 = sbr.rel (%p481) target = $region62
        $region61: #{conv_feature_forward.11} parent=15 // pred_region
          %s484 = smul.u32 2, %s20
          %p485 = scmp.lt.s32.totalorder %s484, 7
          %s486 = scalar_select %p485, %s484, 7
          %s487 = scalar_lea.vmem %s2, %s486
          %s488 = smul.u32 2, %s20
        $region62: #{conv_feature_forward.11} parent=15 // pred_fallthru
          _
        // Predicated region
        $region63: #{conv_feature_forward.11} parent=15 // pred_check
          %p489 = pneg %p125
        $region64: #{conv_feature_forward.11} parent=15 // pred_check_branch
          %491 = sbr.rel (%p489) target = $region66
        $region65: #{conv_feature_forward.11} parent=15 // pred_region
          %s492 = smul.u32 2, %s20
          %p493 = scmp.lt.s32.totalorder %s492, 7
          %s494 = scalar_select %p493, %s492, 7
          %s495 = scalar_lea.vmem %s3, %s494
          %s496 = smul.u32 2, %s20
        $region66: #{conv_feature_forward.11} parent=15 // pred_fallthru
          _
      $region16: #{conv_feature_forward.11} parent=5 // pred_fallthru
        _
      %p497 = scmp.le.s32.totalorder 1, %s13
      %p498 = scmp.lt.s32.totalorder %s13, 9
      %p499 = pnand %p497, %p498
      %p500 = pneg %p499
      // Predicated region
      $region67: #{conv_feature_forward.11} parent=5 // pred_check
        _
      $region68: #{conv_feature_forward.11} parent=5 // pred_check_branch
        %502 = sbr.rel (%p499) target = $region70
      $region69: #{conv_feature_forward.11} parent=5 // pred_region
        %s503 = ssub.s32 %s13, 1
        %s504 = sand.u32 %s66, 1
        %s505 = sand.u32 %s66, 1
        %s506 = smul.addr %s505, 512
        %s507 = scalar_lea.vmem [#allocation3], %s506
        // Predicated region
        $region71: #{conv_feature_forward.11} parent=69 // pred_check
          %p508 = pneg %p79
        $region72: #{conv_feature_forward.11} parent=69 // pred_check_branch
          %510 = sbr.rel (%p508) target = $region74
        $region73: #{conv_feature_forward.11} parent=69 // pred_region
          _
        $region74: #{conv_feature_forward.11} parent=69 // pred_fallthru
          _
        %s511 = smul.u32 4, %s23
        %p512 = scmp.lt.s32.totalorder %s511, 7
        %s513 = scalar_select %p512, %s511, 7
        %s514 = scalar_lea.vmem %s0, %s513
        %p515 = pneg %p51
        %p516 = pneg %p48
        %s517 = sand.u32 %s66, 1
        %s518 = sand.u32 %s66, 1
        %s519 = smul.addr %s518, 512
        %s520 = scalar_lea.vmem [#allocation3], %s519
        %p521 = pneg %p79
        %p522 = pneg %p76
        %s523 = smul.u32 2, %s22
        %p524 = scmp.lt.s32.totalorder %s523, 7
        %s525 = scalar_select %p524, %s523, 7
        %s526 = scalar_lea.vmem %s2, %s525
        %p527 = pneg %p105
        %p528 = pneg %p102
        %s529 = smul.u32 2, %s22
        %p530 = scmp.lt.s32.totalorder %s529, 7
        %s531 = scalar_select %p530, %s529, 7
        %s532 = scalar_lea.vmem %s3, %s531
        %p533 = pneg %p131
        %p534 = pneg %p128
        %p535 = pneg %p157
        %p536 = pneg %p154
        %s537 = sand.u32 %s144, 1
        %s538 = scalar_lea.sflag [#allocation5], %s537
        %s539 = sand.u32 %s144, 1
        %s540 = smul.addr %s539, 4
        %s541 = scalar_lea.vmem [#allocation4], %s540
        %s542 = smul.u32 4, %s23
        %p543 = scmp.lt.s32.totalorder %s542, 7
        %s544 = scalar_select %p543, %s542, 7
        %s545 = scalar_lea.vmem %s0, %s544
        %s546 = smul.u32 4, %s23
        %s547 = smul.u32 64, %s23
        %s548 = smul.u32 2, %s22
        %s549 = smul.u32 2, %s22
        %p550 = scmp.lt.s32.totalorder %s549, 7
        %s551 = scalar_select %p550, %s549, 7
        %s552 = scalar_lea.vmem %s2, %s551
        %s553 = smul.u32 2, %s22
        %s554 = smul.u32 2, %s22
        %p555 = scmp.lt.s32.totalorder %s554, 7
        %s556 = scalar_select %p555, %s554, 7
        %s557 = scalar_lea.vmem %s3, %s556
        %s558 = smul.u32 2, %s22
        %s559 = smul.u32 2, %s22
        %p560 = scmp.eq.s32.totalorder %s23, 0
        // Predicated region
        $region75: #{conv_feature_forward.11} parent=69 // pred_check
          %p561 = pneg %p560
        $region76: #{conv_feature_forward.11} parent=69 // pred_check_branch
          %563 = sbr.rel (%p561) target = $region78
        $region77: #{conv_feature_forward.11} parent=69 // pred_region
          %564 = vst [vmem:[#allocation2] sm:$0xf] 0.0
        $region78: #{conv_feature_forward.11} parent=69 // pred_fallthru
          _
        %v565 = vld [vmem:[#allocation2] sm:$0xf]
        %v566 = vld [vmem:[%s545] sm:$0xf]
        %v567 = vld [vmem:[%s507] sm:$0xff]
        %v568 = vld [vmem:[%s507 + $0x8] sm:$0xff]
        %v569 = vld [vmem:[%s507 + $0x10] sm:$0xff]
        %v570 = vld [vmem:[%s507 + $0x18] sm:$0xff]
        %v571 = vld [vmem:[%s507 + $0x20] sm:$0xff]
        %v572 = vld [vmem:[%s507 + $0x28] sm:$0xff]
        %v573 = vld [vmem:[%s507 + $0x30] sm:$0xff]
        %v574 = vld [vmem:[%s507 + $0x38] sm:$0xff]
        %v575 = vld [vmem:[%s507 + $0x40] sm:$0xff]
        %v576 = vld [vmem:[%s507 + $0x48] sm:$0xff]
        %v577 = vld [vmem:[%s507 + $0x50] sm:$0xff]
        %v578 = vld [vmem:[%s507 + $0x58] sm:$0xff]
        %v579 = vld [vmem:[%s507 + $0x60] sm:$0xff]
        %v580 = vld [vmem:[%s507 + $0x68] sm:$0xff]
        %v581 = vld [vmem:[%s507 + $0x70] sm:$0xff]
        %v582 = vld [vmem:[%s507 + $0x78] sm:$0xff]
        %v583 = vld [vmem:[%s507 + $0x80] sm:$0xff]
        %v584 = vld [vmem:[%s507 + $0x88] sm:$0xff]
        %v585 = vld [vmem:[%s507 + $0x90] sm:$0xff]
        %v586 = vld [vmem:[%s507 + $0x98] sm:$0xff]
        %v587 = vld [vmem:[%s507 + $0xa0] sm:$0xff]
        %v588 = vld [vmem:[%s507 + $0xa8] sm:$0xff]
        %v589 = vld [vmem:[%s507 + $0xb0] sm:$0xff]
        %v590 = vld [vmem:[%s507 + $0xb8] sm:$0xff]
        %v591 = vld [vmem:[%s507 + $0xc0] sm:$0xff]
        %v592 = vld [vmem:[%s507 + $0xc8] sm:$0xff]
        %v593 = vld [vmem:[%s507 + $0xd0] sm:$0xff]
        %v594 = vld [vmem:[%s507 + $0xd8] sm:$0xff]
        %v595 = vld [vmem:[%s507 + $0xe0] sm:$0xff]
        %v596 = vld [vmem:[%s507 + $0xe8] sm:$0xff]
        %v597 = vld [vmem:[%s507 + $0xf0] sm:$0xff]
        %v598 = vld [vmem:[%s507 + $0xf8] sm:$0xff]
        %v599 = vld [vmem:[%s507 + $0x100] sm:$0xff]
        %v600 = vld [vmem:[%s507 + $0x108] sm:$0xff]
        %v601 = vld [vmem:[%s507 + $0x110] sm:$0xff]
        %v602 = vld [vmem:[%s507 + $0x118] sm:$0xff]
        %v603 = vld [vmem:[%s507 + $0x120] sm:$0xff]
        %v604 = vld [vmem:[%s507 + $0x128] sm:$0xff]
        %v605 = vld [vmem:[%s507 + $0x130] sm:$0xff]
        %v606 = vld [vmem:[%s507 + $0x138] sm:$0xff]
        %v607 = vld [vmem:[%s507 + $0x140] sm:$0xff]
        %v608 = vld [vmem:[%s507 + $0x148] sm:$0xff]
        %v609 = vld [vmem:[%s507 + $0x150] sm:$0xff]
        %v610 = vld [vmem:[%s507 + $0x158] sm:$0xff]
        %v611 = vld [vmem:[%s507 + $0x160] sm:$0xff]
        %v612 = vld [vmem:[%s507 + $0x168] sm:$0xff]
        %v613 = vld [vmem:[%s507 + $0x170] sm:$0xff]
        %v614 = vld [vmem:[%s507 + $0x178] sm:$0xff]
        %v615 = vld [vmem:[%s507 + $0x180] sm:$0xff]
        %v616 = vld [vmem:[%s507 + $0x188] sm:$0xff]
        %v617 = vld [vmem:[%s507 + $0x190] sm:$0xff]
        %v618 = vld [vmem:[%s507 + $0x198] sm:$0xff]
        %v619 = vld [vmem:[%s507 + $0x1a0] sm:$0xff]
        %v620 = vld [vmem:[%s507 + $0x1a8] sm:$0xff]
        %v621 = vld [vmem:[%s507 + $0x1b0] sm:$0xff]
        %v622 = vld [vmem:[%s507 + $0x1b8] sm:$0xff]
        %v623 = vld [vmem:[%s507 + $0x1c0] sm:$0xff]
        %v624 = vld [vmem:[%s507 + $0x1c8] sm:$0xff]
        %v625 = vld [vmem:[%s507 + $0x1d0] sm:$0xff]
        %v626 = vld [vmem:[%s507 + $0x1d8] sm:$0xff]
        %v627 = vld [vmem:[%s507 + $0x1e0] sm:$0xff]
        %v628 = vld [vmem:[%s507 + $0x1e8] sm:$0xff]
        %v629 = vld [vmem:[%s507 + $0x1f0] sm:$0xff]
        %v630 = vld [vmem:[%s507 + $0x1f8] sm:$0xff]
        %v633 = vunpack.c.l.s4 1966171168
        %v634 = vunpack.c.0.s8 %v633
        %v635 = vlaneseq
        %v636 = vshrl.u32 %v635, 7
        %v637 = vsub.s32 %v634, %v636
        %v638 = vrot.slane %v566, %v637
        %v639 = vcombine.high %v638, %v638
        %v641 = vunpack.c.l.s4 1966171168
        %v642 = vunpack.c.0.s8 %v641
        %v643 = vlaneseq
        %v644 = vshrl.u32 %v643, 7
        %v645 = vsub.s32 %v642, %v644
        %v646 = vrot.slane %v638, %v645
        %v648 = vunpack.c.l.s4 1966171168
        %v649 = vunpack.c.0.s8 %v648
        %v650 = vlaneseq
        %v651 = vshrl.u32 %v650, 7
        %v652 = vsub.s32 %v649, %v651
        %v653 = vrot.slane %v639, %v652
        %v654 = vcombine.high %v646, %v646
        %v655 = vcombine.high %v653, %v653
        %v724 = vunpack.c.l.b16 %v567
        %v725 = vunpack.c.h.b16 %v567
        %v726 = vunpack.c.l.b16 %v568
        %v727 = vunpack.c.h.b16 %v568
        %v728 = vunpack.c.l.b16 %v569
        %v729 = vunpack.c.h.b16 %v569
        %v730 = vunpack.c.l.b16 %v570
        %v731 = vunpack.c.h.b16 %v570
        %v732 = vunpack.c.l.b16 %v571
        %v733 = vunpack.c.h.b16 %v571
        %v734 = vunpack.c.l.b16 %v572
        %v735 = vunpack.c.h.b16 %v572
        %v736 = vunpack.c.l.b16 %v573
        %v737 = vunpack.c.h.b16 %v573
        %v738 = vunpack.c.l.b16 %v574
        %v739 = vunpack.c.h.b16 %v574
        %v740 = vunpack.c.l.b16 %v575
        %v741 = vunpack.c.h.b16 %v575
        %v742 = vunpack.c.l.b16 %v576
        %v743 = vunpack.c.h.b16 %v576
        %v744 = vunpack.c.l.b16 %v577
        %v745 = vunpack.c.h.b16 %v577
        %v746 = vunpack.c.l.b16 %v578
        %v747 = vunpack.c.h.b16 %v578
        %v748 = vunpack.c.l.b16 %v579
        %v749 = vunpack.c.h.b16 %v579
        %v750 = vunpack.c.l.b16 %v580
        %v751 = vunpack.c.h.b16 %v580
        %v752 = vunpack.c.l.b16 %v581
        %v753 = vunpack.c.h.b16 %v581
        %v754 = vunpack.c.l.b16 %v582
        %v755 = vunpack.c.h.b16 %v582
        %v756 = vunpack.c.l.b16 %v583
        %v757 = vunpack.c.h.b16 %v583
        %v758 = vunpack.c.l.b16 %v584
        %v759 = vunpack.c.h.b16 %v584
        %v760 = vunpack.c.l.b16 %v585
        %v761 = vunpack.c.h.b16 %v585
        %v762 = vunpack.c.l.b16 %v586
        %v763 = vunpack.c.h.b16 %v586
        %v764 = vunpack.c.l.b16 %v587
        %v765 = vunpack.c.h.b16 %v587
        %v766 = vunpack.c.l.b16 %v588
        %v767 = vunpack.c.h.b16 %v588
        %v768 = vunpack.c.l.b16 %v589
        %v769 = vunpack.c.h.b16 %v589
        %v770 = vunpack.c.l.b16 %v590
        %v771 = vunpack.c.h.b16 %v590
        %v772 = vunpack.c.l.b16 %v591
        %v773 = vunpack.c.h.b16 %v591
        %v774 = vunpack.c.l.b16 %v592
        %v775 = vunpack.c.h.b16 %v592
        %v776 = vunpack.c.l.b16 %v593
        %v777 = vunpack.c.h.b16 %v593
        %v778 = vunpack.c.l.b16 %v594
        %v779 = vunpack.c.h.b16 %v594
        %v780 = vunpack.c.l.b16 %v595
        %v781 = vunpack.c.h.b16 %v595
        %v782 = vunpack.c.l.b16 %v596
        %v783 = vunpack.c.h.b16 %v596
        %v784 = vunpack.c.l.b16 %v597
        %v785 = vunpack.c.h.b16 %v597
        %v786 = vunpack.c.l.b16 %v598
        %v787 = vunpack.c.h.b16 %v598
        %v788 = vunpack.c.l.b16 %v599
        %v789 = vunpack.c.h.b16 %v599
        %v790 = vunpack.c.l.b16 %v600
        %v791 = vunpack.c.h.b16 %v600
        %v792 = vunpack.c.l.b16 %v601
        %v793 = vunpack.c.h.b16 %v601
        %v794 = vunpack.c.l.b16 %v602
        %v795 = vunpack.c.h.b16 %v602
        %v796 = vunpack.c.l.b16 %v603
        %v797 = vunpack.c.h.b16 %v603
        %v798 = vunpack.c.l.b16 %v604
        %v799 = vunpack.c.h.b16 %v604
        %v800 = vunpack.c.l.b16 %v605
        %v801 = vunpack.c.h.b16 %v605
        %v802 = vunpack.c.l.b16 %v606
        %v803 = vunpack.c.h.b16 %v606
        %v804 = vunpack.c.l.b16 %v607
        %v805 = vunpack.c.h.b16 %v607
        %v806 = vunpack.c.l.b16 %v608
        %v807 = vunpack.c.h.b16 %v608
        %v808 = vunpack.c.l.b16 %v609
        %v809 = vunpack.c.h.b16 %v609
        %v810 = vunpack.c.l.b16 %v610
        %v811 = vunpack.c.h.b16 %v610
        %v812 = vunpack.c.l.b16 %v611
        %v813 = vunpack.c.h.b16 %v611
        %v814 = vunpack.c.l.b16 %v612
        %v815 = vunpack.c.h.b16 %v612
        %v816 = vunpack.c.l.b16 %v613
        %v817 = vunpack.c.h.b16 %v613
        %v818 = vunpack.c.l.b16 %v614
        %v819 = vunpack.c.h.b16 %v614
        %v820 = vunpack.c.l.b16 %v615
        %v821 = vunpack.c.h.b16 %v615
        %v822 = vunpack.c.l.b16 %v616
        %v823 = vunpack.c.h.b16 %v616
        %v824 = vunpack.c.l.b16 %v617
        %v825 = vunpack.c.h.b16 %v617
        %v826 = vunpack.c.l.b16 %v618
        %v827 = vunpack.c.h.b16 %v618
        %v828 = vunpack.c.l.b16 %v619
        %v829 = vunpack.c.h.b16 %v619
        %v830 = vunpack.c.l.b16 %v620
        %v831 = vunpack.c.h.b16 %v620
        %v832 = vunpack.c.l.b16 %v621
        %v833 = vunpack.c.h.b16 %v621
        %v834 = vunpack.c.l.b16 %v622
        %v835 = vunpack.c.h.b16 %v622
        %v836 = vunpack.c.l.b16 %v623
        %v837 = vunpack.c.h.b16 %v623
        %v838 = vunpack.c.l.b16 %v624
        %v839 = vunpack.c.h.b16 %v624
        %v840 = vunpack.c.l.b16 %v625
        %v841 = vunpack.c.h.b16 %v625
        %v842 = vunpack.c.l.b16 %v626
        %v843 = vunpack.c.h.b16 %v626
        %v844 = vunpack.c.l.b16 %v627
        %v845 = vunpack.c.h.b16 %v627
        %v846 = vunpack.c.l.b16 %v628
        %v847 = vunpack.c.h.b16 %v628
        %v848 = vunpack.c.l.b16 %v629
        %v849 = vunpack.c.h.b16 %v629
        %v850 = vunpack.c.l.b16 %v630
        %v851 = vunpack.c.h.b16 %v630
        %v852 = vpack.c.b16 %v726, %v724
        %v853 = vpack.c.b16 %v727, %v725
        %v854 = vpack.c.b16 %v730, %v728
        %v855 = vpack.c.b16 %v731, %v729
        %v856 = vpack.c.b16 %v734, %v732
        %v857 = vpack.c.b16 %v735, %v733
        %v858 = vpack.c.b16 %v738, %v736
        %v859 = vpack.c.b16 %v739, %v737
        %v860 = vpack.c.b16 %v742, %v740
        %v861 = vpack.c.b16 %v743, %v741
        %v862 = vpack.c.b16 %v746, %v744
        %v863 = vpack.c.b16 %v747, %v745
        %v864 = vpack.c.b16 %v750, %v748
        %v865 = vpack.c.b16 %v751, %v749
        %v866 = vpack.c.b16 %v754, %v752
        %v867 = vpack.c.b16 %v755, %v753
        %v868 = vpack.c.b16 %v758, %v756
        %v869 = vpack.c.b16 %v759, %v757
        %v870 = vpack.c.b16 %v762, %v760
        %v871 = vpack.c.b16 %v763, %v761
        %v872 = vpack.c.b16 %v766, %v764
        %v873 = vpack.c.b16 %v767, %v765
        %v874 = vpack.c.b16 %v770, %v768
        %v875 = vpack.c.b16 %v771, %v769
        %v876 = vpack.c.b16 %v774, %v772
        %v877 = vpack.c.b16 %v775, %v773
        %v878 = vpack.c.b16 %v778, %v776
        %v879 = vpack.c.b16 %v779, %v777
        %v880 = vpack.c.b16 %v782, %v780
        %v881 = vpack.c.b16 %v783, %v781
        %v882 = vpack.c.b16 %v786, %v784
        %v883 = vpack.c.b16 %v787, %v785
        %v884 = vpack.c.b16 %v790, %v788
        %v885 = vpack.c.b16 %v791, %v789
        %v886 = vpack.c.b16 %v794, %v792
        %v887 = vpack.c.b16 %v795, %v793
        %v888 = vpack.c.b16 %v798, %v796
        %v889 = vpack.c.b16 %v799, %v797
        %v890 = vpack.c.b16 %v802, %v800
        %v891 = vpack.c.b16 %v803, %v801
        %v892 = vpack.c.b16 %v806, %v804
        %v893 = vpack.c.b16 %v807, %v805
        %v894 = vpack.c.b16 %v810, %v808
        %v895 = vpack.c.b16 %v811, %v809
        %v896 = vpack.c.b16 %v814, %v812
        %v897 = vpack.c.b16 %v815, %v813
        %v898 = vpack.c.b16 %v818, %v816
        %v899 = vpack.c.b16 %v819, %v817
        %v900 = vpack.c.b16 %v822, %v820
        %v901 = vpack.c.b16 %v823, %v821
        %v902 = vpack.c.b16 %v826, %v824
        %v903 = vpack.c.b16 %v827, %v825
        %v904 = vpack.c.b16 %v830, %v828
        %v905 = vpack.c.b16 %v831, %v829
        %v906 = vpack.c.b16 %v834, %v832
        %v907 = vpack.c.b16 %v835, %v833
        %v908 = vpack.c.b16 %v838, %v836
        %v909 = vpack.c.b16 %v839, %v837
        %v910 = vpack.c.b16 %v842, %v840
        %v911 = vpack.c.b16 %v843, %v841
        %v912 = vpack.c.b16 %v846, %v844
        %v913 = vpack.c.b16 %v847, %v845
        %v914 = vpack.c.b16 %v850, %v848
        %v915 = vpack.c.b16 %v851, %v849
        %980 = vmatprep.subr.bf16.mxu0 %v853
        %981 = vmatpush1.bf16.msra.mxu0 %v852
        %982 = vmatprep.subr.bf16.mxu0 %v855
        %983 = vmatpush1.bf16.msra.mxu0 %v854
        %984 = vmatprep.subr.bf16.mxu0 %v857
        %985 = vmatpush1.bf16.msra.mxu0 %v856
        %986 = vmatprep.subr.bf16.mxu0 %v859
        %987 = vmatpush1.bf16.msra.mxu0 %v858
        %988 = vmatprep.subr.bf16.mxu0 %v861
        %989 = vmatpush1.bf16.msra.mxu0 %v860
        %990 = vmatprep.subr.bf16.mxu0 %v863
        %991 = vmatpush1.bf16.msra.mxu0 %v862
        %992 = vmatprep.subr.bf16.mxu0 %v865
        %993 = vmatpush1.bf16.msra.mxu0 %v864
        %994 = vmatprep.subr.bf16.mxu0 %v867
        %995 = vmatpush1.bf16.msra.mxu0 %v866
        %996 = vmatprep.subr.bf16.mxu0 %v869
        %997 = vmatpush1.bf16.msra.mxu0 %v868
        %998 = vmatprep.subr.bf16.mxu0 %v871
        %999 = vmatpush1.bf16.msra.mxu0 %v870
        %1000 = vmatprep.subr.bf16.mxu0 %v873
        %1001 = vmatpush1.bf16.msra.mxu0 %v872
        %1002 = vmatprep.subr.bf16.mxu0 %v875
        %1003 = vmatpush1.bf16.msra.mxu0 %v874
        %1004 = vmatprep.subr.bf16.mxu0 %v877
        %1005 = vmatpush1.bf16.msra.mxu0 %v876
        %1006 = vmatprep.subr.bf16.mxu0 %v879
        %1007 = vmatpush1.bf16.msra.mxu0 %v878
        %1008 = vmatprep.subr.bf16.mxu0 %v881
        %1009 = vmatpush1.bf16.msra.mxu0 %v880
        %1010 = vmatprep.subr.bf16.mxu0 %v883
        %1011 = vmatpush1.bf16.msra.mxu0 %v882
        %1012 = vmatprep.mubr.bf16.mxu0 %v653
        %1013 = vmatmul.mubr.bf16.gmra.mrb[0].mxu0 %v646
        %v1014 = vpop.f32.mrb[0].mxu0
        %v1015 = vadd.f32 0.0, %v1014
        %v1016 = vpop.f32.mrb[0].mxu0
        %v1017 = vadd.f32 0.0, %v1016
        %v1018 = vpop.f32.mrb[0].mxu0
        %v1019 = vpop.f32.mrb[0].mxu0
        %1020 = vdwg.mxu0
        %1021 = vmatprep.subr.bf16.mxu0 %v885
        %1022 = vmatpush1.bf16.msra.mxu0 %v884
        %1023 = vmatprep.subr.bf16.mxu0 %v887
        %1024 = vmatpush1.bf16.msra.mxu0 %v886
        %1025 = vmatprep.subr.bf16.mxu0 %v889
        %1026 = vmatpush1.bf16.msra.mxu0 %v888
        %1027 = vmatprep.subr.bf16.mxu0 %v891
        %1028 = vmatpush1.bf16.msra.mxu0 %v890
        %1029 = vmatprep.subr.bf16.mxu0 %v893
        %1030 = vmatpush1.bf16.msra.mxu0 %v892
        %1031 = vmatprep.subr.bf16.mxu0 %v895
        %1032 = vmatpush1.bf16.msra.mxu0 %v894
        %1033 = vmatprep.subr.bf16.mxu0 %v897
        %1034 = vmatpush1.bf16.msra.mxu0 %v896
        %1035 = vmatprep.subr.bf16.mxu0 %v899
        %1036 = vmatpush1.bf16.msra.mxu0 %v898
        %1037 = vmatprep.subr.bf16.mxu0 %v901
        %1038 = vmatpush1.bf16.msra.mxu0 %v900
        %1039 = vmatprep.subr.bf16.mxu0 %v903
        %1040 = vmatpush1.bf16.msra.mxu0 %v902
        %1041 = vmatprep.subr.bf16.mxu0 %v905
        %1042 = vmatpush1.bf16.msra.mxu0 %v904
        %1043 = vmatprep.subr.bf16.mxu0 %v907
        %1044 = vmatpush1.bf16.msra.mxu0 %v906
        %1045 = vmatprep.subr.bf16.mxu0 %v909
        %1046 = vmatpush1.bf16.msra.mxu0 %v908
        %1047 = vmatprep.subr.bf16.mxu0 %v911
        %1048 = vmatpush1.bf16.msra.mxu0 %v910
        %1049 = vmatprep.subr.bf16.mxu0 %v913
        %1050 = vmatpush1.bf16.msra.mxu0 %v912
        %1051 = vmatprep.subr.bf16.mxu0 %v915
        %1052 = vmatpush1.bf16.msra.mxu0 %v914
        %1053 = vmatprep.mubr.bf16.mxu0 %v655
        %1054 = vmatmul.mubr.bf16.gmra.mrb[0].mxu0 %v654
        %v1055 = vpop.f32.mrb[0].mxu0
        %v1056 = vadd.f32 %v1015, %v1055
        %v1057 = vpop.f32.mrb[0].mxu0
        %v1058 = vadd.f32 %v1017, %v1057
        %v1059 = vpop.f32.mrb[0].mxu0
        %v1060 = vpop.f32.mrb[0].mxu0
        %1061 = vdwg.mxu0
        %v1064 = vcombine.low %v1056, %v1058
        %v1066 = vunpack.c.l.s4 1983009808
        %v1067 = vunpack.c.0.s8 %v1066
        %v1068 = vlaneseq
        %v1069 = vshrl.u32 %v1068, 7
        %v1070 = vsub.s32 %v1067, %v1069
        %v1071 = vrot.slane %v1064, %v1070
        %v1073 = vadd.f32 %v565, %v1071
        %1074 = vst [vmem:[#allocation2] sm:$0xf] %v1073
        %p1075 = scmp.eq.s32.totalorder %s23, 1
        // Predicated region
        $region79: #{conv_feature_forward.11} parent=69 // pred_check
          %p1076 = pneg %p1075
        $region80: #{conv_feature_forward.11} parent=69 // pred_check_branch
          %1078 = sbr.rel (%p1076) target = $region82
        $region81: #{conv_feature_forward.11} parent=69 // pred_region
          %v1079 = vld [vmem:[#allocation2] sm:$0xf]
          %v1080 = vld [vmem:[%s552] sm:$0x3]
          %v1082 = vlaneseq
          %v1083 = vshrl.u32 %v1082, 7
          %v1084 = vsub.s32 0, %v1083
          %v1085 = vrot.slane %v1080, %v1084
          %v1086 = vlaneseq
          %v1087 = vshrl.u32 %v1086, 7
          %v1088 = vsub.s32 1, %v1087
          %v1089 = vrot.slane %v1080, %v1088
          %v1090 = vcombine.low %v1085, %v1089
          %v1092 = vunpack.c.l.s4 1983009808
          %v1093 = vunpack.c.0.s8 %v1092
          %v1094 = vlaneseq
          %v1095 = vshrl.u32 %v1094, 7
          %v1096 = vsub.s32 %v1093, %v1095
          %v1097 = vrot.slane %v1090, %v1096
          %v1099 = vadd.f32 %v1079, %v1097
          %v1100 = vld [vmem:[%s557] sm:$0x3]
          %v1101 = vunpack.c.l.bf16 %v1100
          %v1102 = vadd.f32 %v1099, %v1101
          %v1103 = vtanh.pop %v1102
          %1104 = vst [vmem:[%s541] sm:$0xf] %v1103
        $region82: #{conv_feature_forward.11} parent=69 // pred_fallthru
          _
        %s1105 = sand.u32 %s144, 1
        %s1106 = scalar_lea.sflag [#allocation5], %s1105
        %s1107 = sand.u32 %s144, 1
        %s1108 = smul.addr %s1107, 4
        %s1109 = scalar_lea.vmem [#allocation4], %s1108
        // Predicated region
        $region83: #{conv_feature_forward.11} parent=69 // pred_check
          %p1110 = pneg %p154
        $region84: #{conv_feature_forward.11} parent=69 // pred_check_branch
          %1112 = sbr.rel (%p1110) target = $region86
        $region85: #{conv_feature_forward.11} parent=69 // pred_region
          %s1113 = smul.u32 2, %s22
          %s1115 = ssub.s32 64, 64
          %1116 = vsyncadd %s1106, %s1115
          %s1117 = smul.addr %s1113, 32
          %s1118 = scalar_lea.hbm %s4, %s1117
          %s1120 = sshll.u32 %s1109, 4
          %s1121 = int_to_ptr.vmem [resolvable:$true] %s1120
          %1123 = dma.vmem_to_hbm [thread:$0]  %s1121, 64, %s1118, %s1106
        $region86: #{conv_feature_forward.11} parent=69 // pred_fallthru
          _
      $region70: #{conv_feature_forward.11} parent=5 // pred_fallthru
        _
      %p1124 = scmp.le.s32.totalorder 2, %s13
      // Predicated region
      $region87: #{conv_feature_forward.11} parent=5 // pred_check
        %p1125 = pneg %p1124
      $region88: #{conv_feature_forward.11} parent=5 // pred_check_branch
        %1127 = sbr.rel (%p1125) target = $region90
      $region89: #{conv_feature_forward.11} parent=5 // pred_region
        %s1128 = ssub.s32 %s13, 2
        // Predicated region
        $region91: #{conv_feature_forward.11} parent=89 // pred_check
          %p1129 = pneg %p160
        $region92: #{conv_feature_forward.11} parent=89 // pred_check_branch
          %1131 = sbr.rel (%p1129) target = $region94
        $region93: #{conv_feature_forward.11} parent=89 // pred_region
          %s1132 = sand.u32 %s145, 1
          %s1133 = scalar_lea.sflag [#allocation5], %s1132
          %s1134 = sand.u32 %s145, 1
          %s1135 = smul.addr %s1134, 4
          %s1136 = scalar_lea.vmem [#allocation4], %s1135
          %1137 = dma.done %s1133, 64
        $region94: #{conv_feature_forward.11} parent=89 // pred_fallthru
          _
      $region90: #{conv_feature_forward.11} parent=5 // pred_fallthru
        _
    $region6: #{conv_feature_forward.11} parent=1 // loop_footer
      %s17 = sadd.s32 1, %s13
    $region7: #{conv_feature_forward.11} parent=1 // loop_footer_branch
      %12 = sbr.rel target = $region3
    $region8: #{conv_feature_forward.11} parent=1 // loop_exit
      _
    %1138 = vsyncpa [#allocation5], 1
    %s1139 = scalar_lea.sflag [#allocation5], 1
    %1140 = vsyncpa %s1139, 1

</llo_original>
